<compile_context>
chip_gen: v6e
topology: v6e:2x2x1
jax: 0.10.0
libtpu: 0.0.40
codegen_flags: <defaults>
</compile_context>

<pallas_src>
import functools

import jax
import jax.numpy as jnp
from jax.experimental import pallas as pl
from jax.experimental.pallas import tpu as pltpu


def _round_up(n, m):
    return ((n + m - 1) // m) * m


# ----------------------------------------------------------------------------- #
# GRU-over-sequence kernel: D independent recurrences (e.g. fw/bw directions),
# time-chunked grid, hidden carried in the resident final-hidden output block.
# ----------------------------------------------------------------------------- #
def _gru_seq_kernel(gx_ref, h0_ref, whh_ref, bhh_ref, lo_ref, hi_ref,
                    out_ref, hN_ref):
    c = pl.program_id(0)
    Tc = gx_ref.shape[0]
    H = hN_ref.shape[-1]

    @pl.when(c == 0)
    def _():
        hN_ref[...] = h0_ref[...]

    whh = whh_ref[...]          # (D, H, 3H)
    bhh = bhh_ref[...]          # (D, 1, 3H)
    lo = lo_ref[...]            # (D, B, 1)  valid iff lo <= t < hi
    hi = hi_ref[...]
    base = c * Tc

    h = hN_ref[...]             # (D, B, H) carried across chunks
    for s in range(Tc):         # Tc is a static block size -> fully unrolled
        gx = gx_ref[s]          # (D, B, 3H) precomputed x @ W_ih + b_ih
        gh = jnp.einsum('dbh,dhk->dbk', h, whh,
                        preferred_element_type=jnp.float32) + bhh
        r = jax.nn.sigmoid(gx[..., 0:H] + gh[..., 0:H])
        z = jax.nn.sigmoid(gx[..., H:2 * H] + gh[..., H:2 * H])
        n = jnp.tanh(gx[..., 2 * H:3 * H] + r * gh[..., 2 * H:3 * H])
        h_cand = (1.0 - z) * n + z * h
        t = (base + s).astype(jnp.float32)
        valid = ((t >= lo) & (t < hi)).astype(jnp.float32)   # (D, B, 1)
        h = valid * h_cand + (1.0 - valid) * h                # hold on padding
        out_ref[s] = h
    hN_ref[...] = h


def gru_seq_stack(gx, h0, whh, bhh, lo, hi, *, time_chunk=8):
    """Run D independent GRU recurrences over a shared (chunked) time axis.

    gx : (T, D, B, 3H) precomputed input-gate pre-activations (time already
         flipped for reversed directions).   h0: (D, B, H).
    whh: (D, H, 3H)  bhh: (D, 1, 3H)  (gate order r, z, n).
    lo, hi: (D, B, 1) float32 validity bounds (pack_padded_sequence semantics).
    Returns (outputs (T, D, B, H), final hidden (D, B, H)).
    """
    T, D, B, G3 = gx.shape
    H = h0.shape[-1]
    assert G3 == 3 * H

    Bp = _round_up(B, 8)                # sublane-align the batch
    Tc = min(time_chunk, T)
    Tp = _round_up(T, Tc)

    if Bp != B:
        gx = jnp.pad(gx, ((0, 0), (0, 0), (0, Bp - B), (0, 0)))
        h0 = jnp.pad(h0, ((0, 0), (0, Bp - B), (0, 0)))
        lo = jnp.pad(lo, ((0, 0), (0, Bp - B), (0, 0)))
        hi = jnp.pad(hi, ((0, 0), (0, Bp - B), (0, 0)))   # hi=0 -> never valid
    if Tp != T:
        gx = jnp.pad(gx, ((0, Tp - T), (0, 0), (0, 0), (0, 0)))

    out, h_n = pl.pallas_call(
        _gru_seq_kernel,
        grid=(Tp // Tc,),
        in_specs=[
            pl.BlockSpec((Tc, D, Bp, 3 * H), lambda c: (c, 0, 0, 0)),
            pl.BlockSpec((D, Bp, H), lambda c: (0, 0, 0)),
            pl.BlockSpec((D, H, 3 * H), lambda c: (0, 0, 0)),
            pl.BlockSpec((D, 1, 3 * H), lambda c: (0, 0, 0)),
            pl.BlockSpec((D, Bp, 1), lambda c: (0, 0, 0)),
            pl.BlockSpec((D, Bp, 1), lambda c: (0, 0, 0)),
        ],
        out_specs=[
            pl.BlockSpec((Tc, D, Bp, H), lambda c: (c, 0, 0, 0)),
            pl.BlockSpec((D, Bp, H), lambda c: (0, 0, 0)),
        ],
        out_shape=[
            jax.ShapeDtypeStruct((Tp, D, Bp, H), jnp.float32),
            jax.ShapeDtypeStruct((D, Bp, H), jnp.float32),
        ],
        compiler_params=pltpu.CompilerParams(dimension_semantics=("arbitrary",)),
    )(gx, h0, whh, bhh, lo, hi)
    return out[:T, :, :B, :], h_n[:, :B, :]


def bi_gru_seq(x, lengths, h0, layer_p, *, time_chunk=8):
    """One bidirectional GRU layer over (T, B, I); both directions in one kernel.

    Returns (out_fw (T,B,H), out_bw (T,B,H) in original time order, h_n (2,B,H)).
    """
    T, B, _ = x.shape
    # Big, MXU-friendly input projections (whole sequence at once).
    gx_f = jnp.einsum('tbi,ik->tbk', x, layer_p['wih'][0],
                      preferred_element_type=jnp.float32) + layer_p['bih'][0]
    gx_b = jnp.einsum('tbi,ik->tbk', x, layer_p['wih'][1],
                      preferred_element_type=jnp.float32) + layer_p['bih'][1]
    gx = jnp.stack([gx_f, jnp.flip(gx_b, axis=0)], axis=1)       # (T, 2, B, 3H)

    lenf = lengths.astype(jnp.float32)[:, None]                  # (B, 1)
    lo = jnp.stack([jnp.zeros_like(lenf), float(T) - lenf], axis=0)
    hi = jnp.stack([lenf, jnp.full_like(lenf, float(T))], axis=0)

    out, h_n = gru_seq_stack(gx, h0, layer_p['whh'], layer_p['bhh'], lo, hi,
                             time_chunk=time_chunk)
    out_f = out[:, 0]
    out_b = jnp.flip(out[:, 1], axis=0)
    return out_f, out_b, h_n


# ----------------------------------------------------------------------------- #
# Fused decoder kernel: the whole teacher-forced decode loop in ONE pallas_call.
# Per grid step: Bahdanau attention + 2-layer GRU cell + output + log_softmax.
# ----------------------------------------------------------------------------- #
def _decoder_seq_kernel(eg_ref, h_init_ref, ek_ref, enc_ref,
                        wa_k_ref, v_ref,
                        wih0c_ref, whh0_ref, bhh0_ref,
                        wih1_ref, bih1_ref, whh1_ref, bhh1_ref,
                        wout_ref, bout_ref,
                        logp_ref, h_scr):
    t = pl.program_id(0)
    H = h_scr.shape[-1]

    @pl.when(t == 0)
    def _():
        h_scr[...] = h_init_ref[...]

    def mm(a, b):
        return jnp.dot(a, b, preferred_element_type=jnp.float32)

    h0 = h_scr[0]                                           # (B, H)
    h1 = h_scr[1]

    # --- attention (encoder projection ek = enc @ W_e + b hoisted outside) ----
    query = h0 + h1                                         # last_hidden.sum(0)
    key_proj = mm(query, wa_k_ref[...])                     # (B, H)
    energy = jnp.tanh(key_proj[None, :, :] + ek_ref[...])   # (Tn, B, H)
    scores = jnp.sum(energy * v_ref[...], axis=-1, keepdims=True)   # (Tn, B, 1)
    smax = jnp.max(scores, axis=0, keepdims=True)
    exps = jnp.exp(scores - smax)
    denom = jnp.sum(exps, axis=0, keepdims=True)
    attn = exps * pl.reciprocal(denom, approx=True)         # (Tn, B, 1)
    ctx = jnp.sum(attn * enc_ref[...], axis=0)              # (B, H)

    # --- 2-layer GRU cell (gate order r, z, n; fused 3H-wide weights) ---------
    def gru_cell(gx, h, whh, bhh):
        gh = mm(h, whh) + bhh
        r = jax.nn.sigmoid(gx[:, 0:H] + gh[:, 0:H])
        z = jax.nn.sigmoid(gx[:, H:2 * H] + gh[:, H:2 * H])
        n = jnp.tanh(gx[:, 2 * H:3 * H] + r * gh[:, 2 * H:3 * H])
        return (1.0 - z) * n + z * h

    gx0 = eg_ref[0] + mm(ctx, wih0c_ref[...])   # embedding part precomputed
    h0n = gru_cell(gx0, h0, whh0_ref[...], bhh0_ref[...])
    # TODO(synk): inter-layer GRU dropout (p=0.5, training mode) omitted.
    gx1 = mm(h0n, wih1_ref[...]) + bih1_ref[...]
    h1n = gru_cell(gx1, h1, whh1_ref[...], bhh1_ref[...])

    # --- output projection + log_softmax (lane-dense padded vocab) ------------
    logits = mm(h1n, wout_ref[...]) + bout_ref[...]          # (B, Vp)
    lmax = jnp.max(logits, axis=-1, keepdims=True)
    shifted = logits - lmax
    lse = jnp.log(jnp.sum(jnp.exp(shifted), axis=-1, keepdims=True))
    logp_ref[0] = shifted - lse

    h_scr[0] = h0n
    h_scr[1] = h1n


def decoder_sequence(params, emb_gates, h_init, enc_out):
    """All teacher-forced decoder steps in a single pallas_call."""
    S, B, G3 = emb_gates.shape
    H = h_init.shape[-1]
    Tn = enc_out.shape[0]
    V = params['w_out'].shape[-1]

    Bp = _round_up(B, 8)
    Vp = _round_up(V, 128)

    # Step-invariant attention projection of the encoder outputs (hoisted).
    enc_keys = jnp.einsum('tbh,hk->tbk', enc_out, params['wa_e'],
                          preferred_element_type=jnp.float32) + params['ba']

    def padb(x, axis):
        if Bp == B:
            return x
        widths = [(0, 0)] * x.ndim
        widths[axis] = (0, Bp - B)
        return jnp.pad(x, widths)

    emb_gates = padb(emb_gates, 1)
    h_init = padb(h_init, 1)
    enc_keys = padb(enc_keys, 1)
    enc_out_p = padb(enc_out, 1)

    w_out = jnp.pad(params['w_out'], ((0, 0), (0, Vp - V)))
    # Padded vocab columns get a huge negative bias so they never affect the
    # log_softmax normalization; they are sliced off below.
    b_out = jnp.pad(params['b_out'], ((0, 0), (0, Vp - V)), constant_values=-1e30)

    def const(shape):
        return pl.BlockSpec(shape, lambda t, _n=len(shape): (0,) * _n)

    logp = pl.pallas_call(
        _decoder_seq_kernel,
        grid=(S,),
        in_specs=[
            pl.BlockSpec((1, Bp, 3 * H), lambda t: (t, 0, 0)),   # emb gates, per step
            const((2, Bp, H)),                                   # h_init
            const((Tn, Bp, H)),                                  # enc_keys (resident)
            const((Tn, Bp, H)),                                  # enc_out  (resident)
            const((H, H)),                                       # wa_k
            const((1, H)),                                       # v
            const((H, 3 * H)),                                   # wih0 (ctx rows)
            const((H, 3 * H)),                                   # whh0
            const((1, 3 * H)),                                   # bhh0
            const((H, 3 * H)),                                   # wih1
            const((1, 3 * H)),                                   # bih1
            const((H, 3 * H)),                                   # whh1
            const((1, 3 * H)),                                   # bhh1
            const((H, Vp)),                                      # w_out
            const((1, Vp)),                                      # b_out
        ],
        out_specs=pl.BlockSpec((1, Bp, Vp), lambda t: (t, 0, 0)),
        out_shape=jax.ShapeDtypeStruct((S, Bp, Vp), jnp.float32),
        scratch_shapes=[pltpu.VMEM((2, Bp, H), jnp.float32)],
        compiler_params=pltpu.CompilerParams(dimension_semantics=("arbitrary",)),
    )(emb_gates, h_init, enc_keys, enc_out_p,
      params['wa_k'], params['v'],
      params['wih0_c'], params['whh0'], params['bhh0'],
      params['wih1'], params['bih1'], params['whh1'], params['bhh1'],
      w_out, b_out)
    return logp[:, :B, :V]


# ----------------------------------------------------------------------------- #
# Model glue (embeddings, parameter setup, encoders) in plain JAX.
# ----------------------------------------------------------------------------- #
def init_params(key, E, H, vocab_in, vocab_out):
    ks = iter(jax.random.split(key, 64))

    def nrm(shape, scale=0.1):
        return (scale * jax.random.normal(next(ks), shape)).astype(jnp.float32)

    def zeros(shape):
        return jnp.zeros(shape, jnp.float32)

    def bi_layer(I):
        # Fused gate weights, gate order [r, z, n]; dir 0 = forward, 1 = backward.
        return {'wih': nrm((2, I, 3 * H)), 'whh': nrm((2, H, 3 * H)),
                'bih': zeros((2, 1, 3 * H)), 'bhh': zeros((2, 1, 3 * H))}

    return {
        # Utterance encoder: 2-layer bidirectional GRU (biases zero, as in init_weight).
        'utt_embed': nrm((vocab_in, E)),
        'utt_l0': bi_layer(E),
        'utt_l1': bi_layer(2 * H),
        # Context encoder: 1-layer bidirectional GRU.
        'ctx': bi_layer(H),
        # Decoder: Bahdanau attention + 2-layer GRU + output projection.
        'dec_embed': nrm((vocab_out, E)),
        'wa_k': nrm((H, H)), 'wa_e': nrm((H, H)),
        'ba': zeros((1, H)), 'v': nrm((1, H)),
        'wih0_e': nrm((E, 3 * H)),          # W_ih layer 0, embedding rows
        'wih0_c': nrm((H, 3 * H)),          # W_ih layer 0, attention-context rows
        'bih0': zeros((1, 3 * H)),
        'whh0': nrm((H, 3 * H)), 'bhh0': zeros((1, 3 * H)),
        'wih1': nrm((H, 3 * H)), 'bih1': zeros((1, 3 * H)),
        'whh1': nrm((H, 3 * H)), 'bhh1': zeros((1, 3 * H)),
        'w_out': nrm((H, vocab_out)), 'b_out': zeros((1, vocab_out)),
    }


def utterance_encoder(params, tokens, lengths, key, H, *, time_chunk=8):
    """All turns batched together: tokens (turns, T, B), lengths (turns, B)."""
    TURNS, T, B = tokens.shape
    Beff = TURNS * B
    emb = params['utt_embed'][tokens]                            # (turns, T, B, E)
    emb = jnp.transpose(emb, (1, 0, 2, 3)).reshape(T, Beff, -1)  # (T, turns*B, E)
    lens = lengths.reshape(Beff)
    h_init = jax.random.normal(key, (4, Beff, H), dtype=jnp.float32)  # torch.randn

    o0f, o0b, h0n = bi_gru_seq(emb, lens, h_init[0:2], params['utt_l0'],
                               time_chunk=time_chunk)
    x1 = jnp.concatenate([o0f, o0b], axis=-1)                    # (T, turns*B, 2H)
    _, _, h1n = bi_gru_seq(x1, lens, h_init[2:4], params['utt_l1'],
                           time_chunk=time_chunk)

    hidden = h0n[0] + h0n[1] + h1n[0] + h1n[1]                   # hidden.sum(axis=0)
    return jnp.tanh(hidden).reshape(TURNS, B, H)


def context_encoder(params, turns, key, H, *, time_chunk=8):
    Tn, B, _ = turns.shape
    lens = jnp.full((B,), Tn, dtype=jnp.int32)                   # no padding
    h_init = jax.random.normal(key, (2, B, H), dtype=jnp.float32)
    out_f, out_b, h_n = bi_gru_seq(turns, lens, h_init, params['ctx'],
                                   time_chunk=time_chunk)
    output = out_f + out_b                   # == output[:,:,:H] + output[:,:,H:]
    hidden = jnp.tanh(h_n)                   # (2, B, H)
    return output, hidden


def hred_forward(params, src, tgt, lengths, key, H):
    # src: (turn_size, T_src, B) int32; tgt: (maxlen, B) int32; lengths: (turn_size, B)
    turn_size, _, B = src.shape
    maxlen = tgt.shape[0]
    V = params['w_out'].shape[-1]
    k_utt, k_ctx = jax.random.split(key, 2)

    turns = utterance_encoder(params, src, lengths, k_utt, H)    # (turn_size, B, H)
    context_output, hidden = context_encoder(params, turns, k_ctx, H)

    # Teacher forcing (deterministic stand-in for random.random() < teach_force).
    # Pre-gather all target embeddings and fold them into the layer-0 GRU gate
    # pre-activations with one big matmul; the decode loop runs in one kernel.
    emb_all = params['dec_embed'][tgt[:-1]]                      # (maxlen-1, B, E)
    emb_gates = jnp.einsum('tbe,ek->tbk', emb_all, params['wih0_e'],
                           preferred_element_type=jnp.float32) + params['bih0']
    logp = decoder_sequence(params, emb_gates, hidden, context_output)

    outputs = jnp.concatenate([jnp.zeros((1, B, V), jnp.float32), logp], axis=0)
    return outputs                                               # (maxlen, B, V)


if __name__ == "__main__":
    E, H = 16, 32                 # embed_size, utter/context/decoder hidden (must match)
    VOCAB_IN, VOCAB_OUT = 50, 50  # input_size, output_size
    TURNS, T_SRC, B, MAXLEN = 3, 8, 2, 6

    key = jax.random.PRNGKey(0)
    kp, ks, kt, kl, kh = jax.random.split(key, 5)

    params = init_params(kp, E, H, VOCAB_IN, VOCAB_OUT)
    src = jax.random.randint(ks, (TURNS, T_SRC, B), 0, VOCAB_IN)
    tgt = jax.random.randint(kt, (MAXLEN, B), 0, VOCAB_OUT)
    lengths = jax.random.randint(kl, (TURNS, B), 3, T_SRC + 1)

    fwd = jax.jit(functools.partial(hred_forward, H=H))
    out = fwd(params, src, tgt, lengths, kh)
    out = jax.block_until_ready(out)
    assert out.shape == (MAXLEN, B, VOCAB_OUT)
    assert bool(jnp.all(jnp.isfinite(out)))
    print("KERNEL_OK")
</pallas_src>

<mosaic_0001>
module attributes {stable_mosaic.version = 11 : i64} {
  func.func @_gru_seq_kernel(%arg0: i32, %arg1: memref<8x2x8x96xf32, #tpu.memory_space<vmem>>, %arg2: memref<2x8x32xf32, #tpu.memory_space<vmem>>, %arg3: memref<2x32x96xf32, #tpu.memory_space<vmem>>, %arg4: memref<2x1x96xf32, #tpu.memory_space<vmem>>, %arg5: memref<2x8x1xf32, #tpu.memory_space<vmem>>, %arg6: memref<2x8x1xf32, #tpu.memory_space<vmem>>, %arg7: memref<8x2x8x32xf32, #tpu.memory_space<vmem>>, %arg8: memref<2x8x32xf32, #tpu.memory_space<vmem>>) attributes {dimension_semantics = [#tpu.dimension_semantics<arbitrary>], iteration_bounds = array<i64: 1>, scalar_prefetch = 0 : i64, scratch_operands = 0 : i64, tpu.core_type = #tpu.core_type<tc>, window_params = [{transform_indices = @transform_0, window_bounds = array<i64: 8, 2, 8, 96>}, {pipeline_mode = #tpu.pipeline_mode<synchronous>, transform_indices = @transform_1, window_bounds = array<i64: 2, 8, 32>}, {pipeline_mode = #tpu.pipeline_mode<synchronous>, transform_indices = @transform_2, window_bounds = array<i64: 2, 32, 96>}, {pipeline_mode = #tpu.pipeline_mode<synchronous>, transform_indices = @transform_3, window_bounds = array<i64: 2, 1, 96>}, {pipeline_mode = #tpu.pipeline_mode<synchronous>, transform_indices = @transform_4, window_bounds = array<i64: 2, 8, 1>}, {pipeline_mode = #tpu.pipeline_mode<synchronous>, transform_indices = @transform_5, window_bounds = array<i64: 2, 8, 1>}, {transform_indices = @transform_6, window_bounds = array<i64: 8, 2, 8, 32>}, {pipeline_mode = #tpu.pipeline_mode<synchronous>, transform_indices = @transform_7, window_bounds = array<i64: 2, 8, 32>}]} {
    %c0_i32 = arith.constant 0 : i32
    %0 = arith.cmpi eq, %arg0, %c0_i32 : i32
    %1 = arith.extui %0 : i1 to i32
    %c0_i32_0 = arith.constant 0 : i32
    %2 = arith.cmpi ne, %1, %c0_i32_0 : i32
    scf.if %2 {
      %c0_115 = arith.constant 0 : index
      %c0_116 = arith.constant 0 : index
      %c0_117 = arith.constant 0 : index
      %410 = vector.load %arg2[%c0_115, %c0_116, %c0_117] : memref<2x8x32xf32, #tpu.memory_space<vmem>>, vector<2x8x32xf32>
      %c0_118 = arith.constant 0 : index
      %c0_119 = arith.constant 0 : index
      %c0_120 = arith.constant 0 : index
      %411 = vector.load %arg8[%c0_118, %c0_119, %c0_120] : memref<2x8x32xf32, #tpu.memory_space<vmem>>, vector<2x8x32xf32>
      tpu.vector_store %arg8[%c0_118, %c0_119, %c0_120], %410 {strides = array<i32>} : memref<2x8x32xf32, #tpu.memory_space<vmem>>, vector<2x8x32xf32>,
    } else {
    }
    %c0 = arith.constant 0 : index
    %c0_1 = arith.constant 0 : index
    %c0_2 = arith.constant 0 : index
    %3 = vector.load %arg3[%c0, %c0_1, %c0_2] : memref<2x32x96xf32, #tpu.memory_space<vmem>>, vector<2x32x96xf32>
    %c0_3 = arith.constant 0 : index
    %c0_4 = arith.constant 0 : index
    %c0_5 = arith.constant 0 : index
    %4 = vector.load %arg4[%c0_3, %c0_4, %c0_5] : memref<2x1x96xf32, #tpu.memory_space<vmem>>, vector<2x1x96xf32>
    %c0_6 = arith.constant 0 : index
    %c0_7 = arith.constant 0 : index
    %c0_8 = arith.constant 0 : index
    %5 = vector.load %arg5[%c0_6, %c0_7, %c0_8] : memref<2x8x1xf32, #tpu.memory_space<vmem>>, vector<2x8x1xf32>
    %c0_9 = arith.constant 0 : index
    %c0_10 = arith.constant 0 : index
    %c0_11 = arith.constant 0 : index
    %6 = vector.load %arg6[%c0_9, %c0_10, %c0_11] : memref<2x8x1xf32, #tpu.memory_space<vmem>>, vector<2x8x1xf32>
    %c8_i32 = arith.constant 8 : i32
    %7 = arith.muli %arg0, %c8_i32 : i32
    %c0_12 = arith.constant 0 : index
    %c0_13 = arith.constant 0 : index
    %c0_14 = arith.constant 0 : index
    %8 = vector.load %arg8[%c0_12, %c0_13, %c0_14] : memref<2x8x32xf32, #tpu.memory_space<vmem>>, vector<2x8x32xf32>
    %c0_15 = arith.constant 0 : index
    %c0_16 = arith.constant 0 : index
    %c0_17 = arith.constant 0 : index
    %c0_18 = arith.constant 0 : index
    %9 = vector.load %arg1[%c0_15, %c0_16, %c0_17, %c0_18] : memref<8x2x8x96xf32, #tpu.memory_space<vmem>>, vector<1x2x8x96xf32>
    %10 = vector.shape_cast %9 : vector<1x2x8x96xf32> to vector<2x8x96xf32>
    "tpu.trace_start"() <{level = 10 : i32, message = "dbh,dhk->dbk"}> : () -> ()
    %cst = arith.constant dense<0.000000e+00> : vector<2x8x96xf32>
    %11 = tpu.matmul %8, %3, %cst {dimension_numbers = #tpu.dot_dimension_numbers<[2], [1], [1], [2], [0, 0, 0, 1, 1, 2], [0], [0]>} : vector<2x8x32xf32>, vector<2x32x96xf32>, vector<2x8x96xf32> -> vector<2x8x96xf32>
    "tpu.trace_stop"() : () -> ()
    %12 = vector.broadcast %4 : vector<2x1x96xf32> to vector<2x8x96xf32>
    %13 = arith.addf %11, %12 : vector<2x8x96xf32>
    %14 = vector.extract_strided_slice %10 {offsets = [0, 0, 0], sizes = [2, 8, 32], strides = [1, 1, 1]} : vector<2x8x96xf32> to vector<2x8x32xf32>
    %15 = vector.extract_strided_slice %13 {offsets = [0, 0, 0], sizes = [2, 8, 32], strides = [1, 1, 1]} : vector<2x8x96xf32> to vector<2x8x32xf32>
    %16 = arith.addf %14, %15 : vector<2x8x32xf32>
    %17 = arith.negf %16 : vector<2x8x32xf32>
    %18 = math.exp %17 : vector<2x8x32xf32>
    %cst_19 = arith.constant 1.000000e+00 : f32
    %19 = vector.broadcast %cst_19 : f32 to vector<2x8x32xf32>
    %20 = arith.addf %19, %18 : vector<2x8x32xf32>
    %21 = arith.divf %19, %20 : vector<2x8x32xf32>
    %22 = vector.extract_strided_slice %10 {offsets = [0, 0, 32], sizes = [2, 8, 32], strides = [1, 1, 1]} : vector<2x8x96xf32> to vector<2x8x32xf32>
    %23 = vector.extract_strided_slice %13 {offsets = [0, 0, 32], sizes = [2, 8, 32], strides = [1, 1, 1]} : vector<2x8x96xf32> to vector<2x8x32xf32>
    %24 = arith.addf %22, %23 : vector<2x8x32xf32>
    %25 = arith.negf %24 : vector<2x8x32xf32>
    %26 = math.exp %25 : vector<2x8x32xf32>
    %cst_20 = arith.constant 1.000000e+00 : f32
    %27 = vector.broadcast %cst_20 : f32 to vector<2x8x32xf32>
    %28 = arith.addf %27, %26 : vector<2x8x32xf32>
    %29 = arith.divf %27, %28 : vector<2x8x32xf32>
    %30 = vector.extract_strided_slice %10 {offsets = [0, 0, 64], sizes = [2, 8, 32], strides = [1, 1, 1]} : vector<2x8x96xf32> to vector<2x8x32xf32>
    %31 = vector.extract_strided_slice %13 {offsets = [0, 0, 64], sizes = [2, 8, 32], strides = [1, 1, 1]} : vector<2x8x96xf32> to vector<2x8x32xf32>
    %32 = arith.mulf %21, %31 : vector<2x8x32xf32>
    %33 = arith.addf %30, %32 : vector<2x8x32xf32>
    %34 = math.tanh %33 : vector<2x8x32xf32>
    %cst_21 = arith.constant 1.000000e+00 : f32
    %35 = vector.broadcast %cst_21 : f32 to vector<2x8x32xf32>
    %36 = arith.subf %35, %29 : vector<2x8x32xf32>
    %37 = arith.mulf %36, %34 : vector<2x8x32xf32>
    %38 = arith.mulf %29, %8 : vector<2x8x32xf32>
    %39 = arith.addf %37, %38 : vector<2x8x32xf32>
    %c0_i32_22 = arith.constant 0 : i32
    %40 = arith.addi %7, %c0_i32_22 : i32
    %41 = arith.sitofp %40 : i32 to f32
    %42 = vector.broadcast %41 : f32 to vector<2x8x1xf32>
    %43 = arith.cmpf oge, %42, %5 : vector<2x8x1xf32>
    %44 = vector.broadcast %41 : f32 to vector<2x8x1xf32>
    %45 = arith.cmpf olt, %44, %6 : vector<2x8x1xf32>
    %46 = arith.andi %43, %45 : vector<2x8x1xi1>
    %47 = arith.extui %46 : vector<2x8x1xi1> to vector<2x8x1xi32>
    %48 = arith.sitofp %47 : vector<2x8x1xi32> to vector<2x8x1xf32>
    %49 = vector.broadcast %48 : vector<2x8x1xf32> to vector<2x8x32xf32>
    %50 = arith.mulf %49, %39 : vector<2x8x32xf32>
    %cst_23 = arith.constant 1.000000e+00 : f32
    %51 = vector.broadcast %cst_23 : f32 to vector<2x8x1xf32>
    %52 = arith.subf %51, %48 : vector<2x8x1xf32>
    %53 = vector.broadcast %52 : vector<2x8x1xf32> to vector<2x8x32xf32>
    %54 = arith.mulf %53, %8 : vector<2x8x32xf32>
    %55 = arith.addf %50, %54 : vector<2x8x32xf32>
    %c0_24 = arith.constant 0 : index
    %c0_25 = arith.constant 0 : index
    %c0_26 = arith.constant 0 : index
    %c0_27 = arith.constant 0 : index
    %56 = vector.load %arg7[%c0_24, %c0_25, %c0_26, %c0_27] : memref<8x2x8x32xf32, #tpu.memory_space<vmem>>, vector<1x2x8x32xf32>
    %57 = vector.shape_cast %56 : vector<1x2x8x32xf32> to vector<2x8x32xf32>
    %58 = vector.shape_cast %55 : vector<2x8x32xf32> to vector<1x2x8x32xf32>
    tpu.vector_store %arg7[%c0_24, %c0_25, %c0_26, %c0_27], %58 {strides = array<i32>} : memref<8x2x8x32xf32, #tpu.memory_space<vmem>>, vector<1x2x8x32xf32>,
    %c1 = arith.constant 1 : index
    %c0_28 = arith.constant 0 : index
    %c0_29 = arith.constant 0 : index
    %c0_30 = arith.constant 0 : index
    %59 = vector.load %arg1[%c1, %c0_28, %c0_29, %c0_30] : memref<8x2x8x96xf32, #tpu.memory_space<vmem>>, vector<1x2x8x96xf32>
    %60 = vector.shape_cast %59 : vector<1x2x8x96xf32> to vector<2x8x96xf32>
    "tpu.trace_start"() <{level = 10 : i32, message = "dbh,dhk->dbk"}> : () -> ()
    %cst_31 = arith.constant dense<0.000000e+00> : vector<2x8x96xf32>
    %61 = tpu.matmul %55, %3, %cst_31 {dimension_numbers = #tpu.dot_dimension_numbers<[2], [1], [1], [2], [0, 0, 0, 1, 1, 2], [0], [0]>} : vector<2x8x32xf32>, vector<2x32x96xf32>, vector<2x8x96xf32> -> vector<2x8x96xf32>
    "tpu.trace_stop"() : () -> ()
    %62 = vector.broadcast %4 : vector<2x1x96xf32> to vector<2x8x96xf32>
    %63 = arith.addf %61, %62 : vector<2x8x96xf32>
    %64 = vector.extract_strided_slice %60 {offsets = [0, 0, 0], sizes = [2, 8, 32], strides = [1, 1, 1]} : vector<2x8x96xf32> to vector<2x8x32xf32>
    %65 = vector.extract_strided_slice %63 {offsets = [0, 0, 0], sizes = [2, 8, 32], strides = [1, 1, 1]} : vector<2x8x96xf32> to vector<2x8x32xf32>
    %66 = arith.addf %64, %65 : vector<2x8x32xf32>
    %67 = arith.negf %66 : vector<2x8x32xf32>
    %68 = math.exp %67 : vector<2x8x32xf32>
    %cst_32 = arith.constant 1.000000e+00 : f32
    %69 = vector.broadcast %cst_32 : f32 to vector<2x8x32xf32>
    %70 = arith.addf %69, %68 : vector<2x8x32xf32>
    %71 = arith.divf %69, %70 : vector<2x8x32xf32>
    %72 = vector.extract_strided_slice %60 {offsets = [0, 0, 32], sizes = [2, 8, 32], strides = [1, 1, 1]} : vector<2x8x96xf32> to vector<2x8x32xf32>
    %73 = vector.extract_strided_slice %63 {offsets = [0, 0, 32], sizes = [2, 8, 32], strides = [1, 1, 1]} : vector<2x8x96xf32> to vector<2x8x32xf32>
    %74 = arith.addf %72, %73 : vector<2x8x32xf32>
    %75 = arith.negf %74 : vector<2x8x32xf32>
    %76 = math.exp %75 : vector<2x8x32xf32>
    %cst_33 = arith.constant 1.000000e+00 : f32
    %77 = vector.broadcast %cst_33 : f32 to vector<2x8x32xf32>
    %78 = arith.addf %77, %76 : vector<2x8x32xf32>
    %79 = arith.divf %77, %78 : vector<2x8x32xf32>
    %80 = vector.extract_strided_slice %60 {offsets = [0, 0, 64], sizes = [2, 8, 32], strides = [1, 1, 1]} : vector<2x8x96xf32> to vector<2x8x32xf32>
    %81 = vector.extract_strided_slice %63 {offsets = [0, 0, 64], sizes = [2, 8, 32], strides = [1, 1, 1]} : vector<2x8x96xf32> to vector<2x8x32xf32>
    %82 = arith.mulf %71, %81 : vector<2x8x32xf32>
    %83 = arith.addf %80, %82 : vector<2x8x32xf32>
    %84 = math.tanh %83 : vector<2x8x32xf32>
    %cst_34 = arith.constant 1.000000e+00 : f32
    %85 = vector.broadcast %cst_34 : f32 to vector<2x8x32xf32>
    %86 = arith.subf %85, %79 : vector<2x8x32xf32>
    %87 = arith.mulf %86, %84 : vector<2x8x32xf32>
    %88 = arith.mulf %79, %55 : vector<2x8x32xf32>
    %89 = arith.addf %87, %88 : vector<2x8x32xf32>
    %c1_i32 = arith.constant 1 : i32
    %90 = arith.addi %7, %c1_i32 : i32
    %91 = arith.sitofp %90 : i32 to f32
    %92 = vector.broadcast %91 : f32 to vector<2x8x1xf32>
    %93 = arith.cmpf oge, %92, %5 : vector<2x8x1xf32>
    %94 = vector.broadcast %91 : f32 to vector<2x8x1xf32>
    %95 = arith.cmpf olt, %94, %6 : vector<2x8x1xf32>
    %96 = arith.andi %93, %95 : vector<2x8x1xi1>
    %97 = arith.extui %96 : vector<2x8x1xi1> to vector<2x8x1xi32>
    %98 = arith.sitofp %97 : vector<2x8x1xi32> to vector<2x8x1xf32>
    %99 = vector.broadcast %98 : vector<2x8x1xf32> to vector<2x8x32xf32>
    %100 = arith.mulf %99, %89 : vector<2x8x32xf32>
    %cst_35 = arith.constant 1.000000e+00 : f32
    %101 = vector.broadcast %cst_35 : f32 to vector<2x8x1xf32>
    %102 = arith.subf %101, %98 : vector<2x8x1xf32>
    %103 = vector.broadcast %102 : vector<2x8x1xf32> to vector<2x8x32xf32>
    %104 = arith.mulf %103, %55 : vector<2x8x32xf32>
    %105 = arith.addf %100, %104 : vector<2x8x32xf32>
    %c1_36 = arith.constant 1 : index
    %c0_37 = arith.constant 0 : index
    %c0_38 = arith.constant 0 : index
    %c0_39 = arith.constant 0 : index
    %106 = vector.load %arg7[%c1_36, %c0_37, %c0_38, %c0_39] : memref<8x2x8x32xf32, #tpu.memory_space<vmem>>, vector<1x2x8x32xf32>
    %107 = vector.shape_cast %106 : vector<1x2x8x32xf32> to vector<2x8x32xf32>
    %108 = vector.shape_cast %105 : vector<2x8x32xf32> to vector<1x2x8x32xf32>
    tpu.vector_store %arg7[%c1_36, %c0_37, %c0_38, %c0_39], %108 {strides = array<i32>} : memref<8x2x8x32xf32, #tpu.memory_space<vmem>>, vector<1x2x8x32xf32>,
    %c2 = arith.constant 2 : index
    %c0_40 = arith.constant 0 : index
    %c0_41 = arith.constant 0 : index
    %c0_42 = arith.constant 0 : index
    %109 = vector.load %arg1[%c2, %c0_40, %c0_41, %c0_42] : memref<8x2x8x96xf32, #tpu.memory_space<vmem>>, vector<1x2x8x96xf32>
    %110 = vector.shape_cast %109 : vector<1x2x8x96xf32> to vector<2x8x96xf32>
    "tpu.trace_start"() <{level = 10 : i32, message = "dbh,dhk->dbk"}> : () -> ()
    %cst_43 = arith.constant dense<0.000000e+00> : vector<2x8x96xf32>
    %111 = tpu.matmul %105, %3, %cst_43 {dimension_numbers = #tpu.dot_dimension_numbers<[2], [1], [1], [2], [0, 0, 0, 1, 1, 2], [0], [0]>} : vector<2x8x32xf32>, vector<2x32x96xf32>, vector<2x8x96xf32> -> vector<2x8x96xf32>
    "tpu.trace_stop"() : () -> ()
    %112 = vector.broadcast %4 : vector<2x1x96xf32> to vector<2x8x96xf32>
    %113 = arith.addf %111, %112 : vector<2x8x96xf32>
    %114 = vector.extract_strided_slice %110 {offsets = [0, 0, 0], sizes = [2, 8, 32], strides = [1, 1, 1]} : vector<2x8x96xf32> to vector<2x8x32xf32>
    %115 = vector.extract_strided_slice %113 {offsets = [0, 0, 0], sizes = [2, 8, 32], strides = [1, 1, 1]} : vector<2x8x96xf32> to vector<2x8x32xf32>
    %116 = arith.addf %114, %115 : vector<2x8x32xf32>
    %117 = arith.negf %116 : vector<2x8x32xf32>
    %118 = math.exp %117 : vector<2x8x32xf32>
    %cst_44 = arith.constant 1.000000e+00 : f32
    %119 = vector.broadcast %cst_44 : f32 to vector<2x8x32xf32>
    %120 = arith.addf %119, %118 : vector<2x8x32xf32>
    %121 = arith.divf %119, %120 : vector<2x8x32xf32>
    %122 = vector.extract_strided_slice %110 {offsets = [0, 0, 32], sizes = [2, 8, 32], strides = [1, 1, 1]} : vector<2x8x96xf32> to vector<2x8x32xf32>
    %123 = vector.extract_strided_slice %113 {offsets = [0, 0, 32], sizes = [2, 8, 32], strides = [1, 1, 1]} : vector<2x8x96xf32> to vector<2x8x32xf32>
    %124 = arith.addf %122, %123 : vector<2x8x32xf32>
    %125 = arith.negf %124 : vector<2x8x32xf32>
    %126 = math.exp %125 : vector<2x8x32xf32>
    %cst_45 = arith.constant 1.000000e+00 : f32
    %127 = vector.broadcast %cst_45 : f32 to vector<2x8x32xf32>
    %128 = arith.addf %127, %126 : vector<2x8x32xf32>
    %129 = arith.divf %127, %128 : vector<2x8x32xf32>
    %130 = vector.extract_strided_slice %110 {offsets = [0, 0, 64], sizes = [2, 8, 32], strides = [1, 1, 1]} : vector<2x8x96xf32> to vector<2x8x32xf32>
    %131 = vector.extract_strided_slice %113 {offsets = [0, 0, 64], sizes = [2, 8, 32], strides = [1, 1, 1]} : vector<2x8x96xf32> to vector<2x8x32xf32>
    %132 = arith.mulf %121, %131 : vector<2x8x32xf32>
    %133 = arith.addf %130, %132 : vector<2x8x32xf32>
    %134 = math.tanh %133 : vector<2x8x32xf32>
    %cst_46 = arith.constant 1.000000e+00 : f32
    %135 = vector.broadcast %cst_46 : f32 to vector<2x8x32xf32>
    %136 = arith.subf %135, %129 : vector<2x8x32xf32>
    %137 = arith.mulf %136, %134 : vector<2x8x32xf32>
    %138 = arith.mulf %129, %105 : vector<2x8x32xf32>
    %139 = arith.addf %137, %138 : vector<2x8x32xf32>
    %c2_i32 = arith.constant 2 : i32
    %140 = arith.addi %7, %c2_i32 : i32
    %141 = arith.sitofp %140 : i32 to f32
    %142 = vector.broadcast %141 : f32 to vector<2x8x1xf32>
    %143 = arith.cmpf oge, %142, %5 : vector<2x8x1xf32>
    %144 = vector.broadcast %141 : f32 to vector<2x8x1xf32>
    %145 = arith.cmpf olt, %144, %6 : vector<2x8x1xf32>
    %146 = arith.andi %143, %145 : vector<2x8x1xi1>
    %147 = arith.extui %146 : vector<2x8x1xi1> to vector<2x8x1xi32>
    %148 = arith.sitofp %147 : vector<2x8x1xi32> to vector<2x8x1xf32>
    %149 = vector.broadcast %148 : vector<2x8x1xf32> to vector<2x8x32xf32>
    %150 = arith.mulf %149, %139 : vector<2x8x32xf32>
    %cst_47 = arith.constant 1.000000e+00 : f32
    %151 = vector.broadcast %cst_47 : f32 to vector<2x8x1xf32>
    %152 = arith.subf %151, %148 : vector<2x8x1xf32>
    %153 = vector.broadcast %152 : vector<2x8x1xf32> to vector<2x8x32xf32>
    %154 = arith.mulf %153, %105 : vector<2x8x32xf32>
    %155 = arith.addf %150, %154 : vector<2x8x32xf32>
    %c2_48 = arith.constant 2 : index
    %c0_49 = arith.constant 0 : index
    %c0_50 = arith.constant 0 : index
    %c0_51 = arith.constant 0 : index
    %156 = vector.load %arg7[%c2_48, %c0_49, %c0_50, %c0_51] : memref<8x2x8x32xf32, #tpu.memory_space<vmem>>, vector<1x2x8x32xf32>
    %157 = vector.shape_cast %156 : vector<1x2x8x32xf32> to vector<2x8x32xf32>
    %158 = vector.shape_cast %155 : vector<2x8x32xf32> to vector<1x2x8x32xf32>
    tpu.vector_store %arg7[%c2_48, %c0_49, %c0_50, %c0_51], %158 {strides = array<i32>} : memref<8x2x8x32xf32, #tpu.memory_space<vmem>>, vector<1x2x8x32xf32>,
    %c3 = arith.constant 3 : index
    %c0_52 = arith.constant 0 : index
    %c0_53 = arith.constant 0 : index
    %c0_54 = arith.constant 0 : index
    %159 = vector.load %arg1[%c3, %c0_52, %c0_53, %c0_54] : memref<8x2x8x96xf32, #tpu.memory_space<vmem>>, vector<1x2x8x96xf32>
    %160 = vector.shape_cast %159 : vector<1x2x8x96xf32> to vector<2x8x96xf32>
    "tpu.trace_start"() <{level = 10 : i32, message = "dbh,dhk->dbk"}> : () -> ()
    %cst_55 = arith.constant dense<0.000000e+00> : vector<2x8x96xf32>
    %161 = tpu.matmul %155, %3, %cst_55 {dimension_numbers = #tpu.dot_dimension_numbers<[2], [1], [1], [2], [0, 0, 0, 1, 1, 2], [0], [0]>} : vector<2x8x32xf32>, vector<2x32x96xf32>, vector<2x8x96xf32> -> vector<2x8x96xf32>
    "tpu.trace_stop"() : () -> ()
    %162 = vector.broadcast %4 : vector<2x1x96xf32> to vector<2x8x96xf32>
    %163 = arith.addf %161, %162 : vector<2x8x96xf32>
    %164 = vector.extract_strided_slice %160 {offsets = [0, 0, 0], sizes = [2, 8, 32], strides = [1, 1, 1]} : vector<2x8x96xf32> to vector<2x8x32xf32>
    %165 = vector.extract_strided_slice %163 {offsets = [0, 0, 0], sizes = [2, 8, 32], strides = [1, 1, 1]} : vector<2x8x96xf32> to vector<2x8x32xf32>
    %166 = arith.addf %164, %165 : vector<2x8x32xf32>
    %167 = arith.negf %166 : vector<2x8x32xf32>
    %168 = math.exp %167 : vector<2x8x32xf32>
    %cst_56 = arith.constant 1.000000e+00 : f32
    %169 = vector.broadcast %cst_56 : f32 to vector<2x8x32xf32>
    %170 = arith.addf %169, %168 : vector<2x8x32xf32>
    %171 = arith.divf %169, %170 : vector<2x8x32xf32>
    %172 = vector.extract_strided_slice %160 {offsets = [0, 0, 32], sizes = [2, 8, 32], strides = [1, 1, 1]} : vector<2x8x96xf32> to vector<2x8x32xf32>
    %173 = vector.extract_strided_slice %163 {offsets = [0, 0, 32], sizes = [2, 8, 32], strides = [1, 1, 1]} : vector<2x8x96xf32> to vector<2x8x32xf32>
    %174 = arith.addf %172, %173 : vector<2x8x32xf32>
    %175 = arith.negf %174 : vector<2x8x32xf32>
    %176 = math.exp %175 : vector<2x8x32xf32>
    %cst_57 = arith.constant 1.000000e+00 : f32
    %177 = vector.broadcast %cst_57 : f32 to vector<2x8x32xf32>
    %178 = arith.addf %177, %176 : vector<2x8x32xf32>
    %179 = arith.divf %177, %178 : vector<2x8x32xf32>
    %180 = vector.extract_strided_slice %160 {offsets = [0, 0, 64], sizes = [2, 8, 32], strides = [1, 1, 1]} : vector<2x8x96xf32> to vector<2x8x32xf32>
    %181 = vector.extract_strided_slice %163 {offsets = [0, 0, 64], sizes = [2, 8, 32], strides = [1, 1, 1]} : vector<2x8x96xf32> to vector<2x8x32xf32>
    %182 = arith.mulf %171, %181 : vector<2x8x32xf32>
    %183 = arith.addf %180, %182 : vector<2x8x32xf32>
    %184 = math.tanh %183 : vector<2x8x32xf32>
    %cst_58 = arith.constant 1.000000e+00 : f32
    %185 = vector.broadcast %cst_58 : f32 to vector<2x8x32xf32>
    %186 = arith.subf %185, %179 : vector<2x8x32xf32>
    %187 = arith.mulf %186, %184 : vector<2x8x32xf32>
    %188 = arith.mulf %179, %155 : vector<2x8x32xf32>
    %189 = arith.addf %187, %188 : vector<2x8x32xf32>
    %c3_i32 = arith.constant 3 : i32
    %190 = arith.addi %7, %c3_i32 : i32
    %191 = arith.sitofp %190 : i32 to f32
    %192 = vector.broadcast %191 : f32 to vector<2x8x1xf32>
    %193 = arith.cmpf oge, %192, %5 : vector<2x8x1xf32>
    %194 = vector.broadcast %191 : f32 to vector<2x8x1xf32>
    %195 = arith.cmpf olt, %194, %6 : vector<2x8x1xf32>
    %196 = arith.andi %193, %195 : vector<2x8x1xi1>
    %197 = arith.extui %196 : vector<2x8x1xi1> to vector<2x8x1xi32>
    %198 = arith.sitofp %197 : vector<2x8x1xi32> to vector<2x8x1xf32>
    %199 = vector.broadcast %198 : vector<2x8x1xf32> to vector<2x8x32xf32>
    %200 = arith.mulf %199, %189 : vector<2x8x32xf32>
    %cst_59 = arith.constant 1.000000e+00 : f32
    %201 = vector.broadcast %cst_59 : f32 to vector<2x8x1xf32>
    %202 = arith.subf %201, %198 : vector<2x8x1xf32>
    %203 = vector.broadcast %202 : vector<2x8x1xf32> to vector<2x8x32xf32>
    %204 = arith.mulf %203, %155 : vector<2x8x32xf32>
    %205 = arith.addf %200, %204 : vector<2x8x32xf32>
    %c3_60 = arith.constant 3 : index
    %c0_61 = arith.constant 0 : index
    %c0_62 = arith.constant 0 : index
    %c0_63 = arith.constant 0 : index
    %206 = vector.load %arg7[%c3_60, %c0_61, %c0_62, %c0_63] : memref<8x2x8x32xf32, #tpu.memory_space<vmem>>, vector<1x2x8x32xf32>
    %207 = vector.shape_cast %206 : vector<1x2x8x32xf32> to vector<2x8x32xf32>
    %208 = vector.shape_cast %205 : vector<2x8x32xf32> to vector<1x2x8x32xf32>
    tpu.vector_store %arg7[%c3_60, %c0_61, %c0_62, %c0_63], %208 {strides = array<i32>} : memref<8x2x8x32xf32, #tpu.memory_space<vmem>>, vector<1x2x8x32xf32>,
    %c4 = arith.constant 4 : index
    %c0_64 = arith.constant 0 : index
    %c0_65 = arith.constant 0 : index
    %c0_66 = arith.constant 0 : index
    %209 = vector.load %arg1[%c4, %c0_64, %c0_65, %c0_66] : memref<8x2x8x96xf32, #tpu.memory_space<vmem>>, vector<1x2x8x96xf32>
    %210 = vector.shape_cast %209 : vector<1x2x8x96xf32> to vector<2x8x96xf32>
    "tpu.trace_start"() <{level = 10 : i32, message = "dbh,dhk->dbk"}> : () -> ()
    %cst_67 = arith.constant dense<0.000000e+00> : vector<2x8x96xf32>
    %211 = tpu.matmul %205, %3, %cst_67 {dimension_numbers = #tpu.dot_dimension_numbers<[2], [1], [1], [2], [0, 0, 0, 1, 1, 2], [0], [0]>} : vector<2x8x32xf32>, vector<2x32x96xf32>, vector<2x8x96xf32> -> vector<2x8x96xf32>
    "tpu.trace_stop"() : () -> ()
    %212 = vector.broadcast %4 : vector<2x1x96xf32> to vector<2x8x96xf32>
    %213 = arith.addf %211, %212 : vector<2x8x96xf32>
    %214 = vector.extract_strided_slice %210 {offsets = [0, 0, 0], sizes = [2, 8, 32], strides = [1, 1, 1]} : vector<2x8x96xf32> to vector<2x8x32xf32>
    %215 = vector.extract_strided_slice %213 {offsets = [0, 0, 0], sizes = [2, 8, 32], strides = [1, 1, 1]} : vector<2x8x96xf32> to vector<2x8x32xf32>
    %216 = arith.addf %214, %215 : vector<2x8x32xf32>
    %217 = arith.negf %216 : vector<2x8x32xf32>
    %218 = math.exp %217 : vector<2x8x32xf32>
    %cst_68 = arith.constant 1.000000e+00 : f32
    %219 = vector.broadcast %cst_68 : f32 to vector<2x8x32xf32>
    %220 = arith.addf %219, %218 : vector<2x8x32xf32>
    %221 = arith.divf %219, %220 : vector<2x8x32xf32>
    %222 = vector.extract_strided_slice %210 {offsets = [0, 0, 32], sizes = [2, 8, 32], strides = [1, 1, 1]} : vector<2x8x96xf32> to vector<2x8x32xf32>
    %223 = vector.extract_strided_slice %213 {offsets = [0, 0, 32], sizes = [2, 8, 32], strides = [1, 1, 1]} : vector<2x8x96xf32> to vector<2x8x32xf32>
    %224 = arith.addf %222, %223 : vector<2x8x32xf32>
    %225 = arith.negf %224 : vector<2x8x32xf32>
    %226 = math.exp %225 : vector<2x8x32xf32>
    %cst_69 = arith.constant 1.000000e+00 : f32
    %227 = vector.broadcast %cst_69 : f32 to vector<2x8x32xf32>
    %228 = arith.addf %227, %226 : vector<2x8x32xf32>
    %229 = arith.divf %227, %228 : vector<2x8x32xf32>
    %230 = vector.extract_strided_slice %210 {offsets = [0, 0, 64], sizes = [2, 8, 32], strides = [1, 1, 1]} : vector<2x8x96xf32> to vector<2x8x32xf32>
    %231 = vector.extract_strided_slice %213 {offsets = [0, 0, 64], sizes = [2, 8, 32], strides = [1, 1, 1]} : vector<2x8x96xf32> to vector<2x8x32xf32>
    %232 = arith.mulf %221, %231 : vector<2x8x32xf32>
    %233 = arith.addf %230, %232 : vector<2x8x32xf32>
    %234 = math.tanh %233 : vector<2x8x32xf32>
    %cst_70 = arith.constant 1.000000e+00 : f32
    %235 = vector.broadcast %cst_70 : f32 to vector<2x8x32xf32>
    %236 = arith.subf %235, %229 : vector<2x8x32xf32>
    %237 = arith.mulf %236, %234 : vector<2x8x32xf32>
    %238 = arith.mulf %229, %205 : vector<2x8x32xf32>
    %239 = arith.addf %237, %238 : vector<2x8x32xf32>
    %c4_i32 = arith.constant 4 : i32
    %240 = arith.addi %7, %c4_i32 : i32
    %241 = arith.sitofp %240 : i32 to f32
    %242 = vector.broadcast %241 : f32 to vector<2x8x1xf32>
    %243 = arith.cmpf oge, %242, %5 : vector<2x8x1xf32>
    %244 = vector.broadcast %241 : f32 to vector<2x8x1xf32>
    %245 = arith.cmpf olt, %244, %6 : vector<2x8x1xf32>
    %246 = arith.andi %243, %245 : vector<2x8x1xi1>
    %247 = arith.extui %246 : vector<2x8x1xi1> to vector<2x8x1xi32>
    %248 = arith.sitofp %247 : vector<2x8x1xi32> to vector<2x8x1xf32>
    %249 = vector.broadcast %248 : vector<2x8x1xf32> to vector<2x8x32xf32>
    %250 = arith.mulf %249, %239 : vector<2x8x32xf32>
    %cst_71 = arith.constant 1.000000e+00 : f32
    %251 = vector.broadcast %cst_71 : f32 to vector<2x8x1xf32>
    %252 = arith.subf %251, %248 : vector<2x8x1xf32>
    %253 = vector.broadcast %252 : vector<2x8x1xf32> to vector<2x8x32xf32>
    %254 = arith.mulf %253, %205 : vector<2x8x32xf32>
    %255 = arith.addf %250, %254 : vector<2x8x32xf32>
    %c4_72 = arith.constant 4 : index
    %c0_73 = arith.constant 0 : index
    %c0_74 = arith.constant 0 : index
    %c0_75 = arith.constant 0 : index
    %256 = vector.load %arg7[%c4_72, %c0_73, %c0_74, %c0_75] : memref<8x2x8x32xf32, #tpu.memory_space<vmem>>, vector<1x2x8x32xf32>
    %257 = vector.shape_cast %256 : vector<1x2x8x32xf32> to vector<2x8x32xf32>
    %258 = vector.shape_cast %255 : vector<2x8x32xf32> to vector<1x2x8x32xf32>
    tpu.vector_store %arg7[%c4_72, %c0_73, %c0_74, %c0_75], %258 {strides = array<i32>} : memref<8x2x8x32xf32, #tpu.memory_space<vmem>>, vector<1x2x8x32xf32>,
    %c5 = arith.constant 5 : index
    %c0_76 = arith.constant 0 : index
    %c0_77 = arith.constant 0 : index
    %c0_78 = arith.constant 0 : index
    %259 = vector.load %arg1[%c5, %c0_76, %c0_77, %c0_78] : memref<8x2x8x96xf32, #tpu.memory_space<vmem>>, vector<1x2x8x96xf32>
    %260 = vector.shape_cast %259 : vector<1x2x8x96xf32> to vector<2x8x96xf32>
    "tpu.trace_start"() <{level = 10 : i32, message = "dbh,dhk->dbk"}> : () -> ()
    %cst_79 = arith.constant dense<0.000000e+00> : vector<2x8x96xf32>
    %261 = tpu.matmul %255, %3, %cst_79 {dimension_numbers = #tpu.dot_dimension_numbers<[2], [1], [1], [2], [0, 0, 0, 1, 1, 2], [0], [0]>} : vector<2x8x32xf32>, vector<2x32x96xf32>, vector<2x8x96xf32> -> vector<2x8x96xf32>
    "tpu.trace_stop"() : () -> ()
    %262 = vector.broadcast %4 : vector<2x1x96xf32> to vector<2x8x96xf32>
    %263 = arith.addf %261, %262 : vector<2x8x96xf32>
    %264 = vector.extract_strided_slice %260 {offsets = [0, 0, 0], sizes = [2, 8, 32], strides = [1, 1, 1]} : vector<2x8x96xf32> to vector<2x8x32xf32>
    %265 = vector.extract_strided_slice %263 {offsets = [0, 0, 0], sizes = [2, 8, 32], strides = [1, 1, 1]} : vector<2x8x96xf32> to vector<2x8x32xf32>
    %266 = arith.addf %264, %265 : vector<2x8x32xf32>
    %267 = arith.negf %266 : vector<2x8x32xf32>
    %268 = math.exp %267 : vector<2x8x32xf32>
    %cst_80 = arith.constant 1.000000e+00 : f32
    %269 = vector.broadcast %cst_80 : f32 to vector<2x8x32xf32>
    %270 = arith.addf %269, %268 : vector<2x8x32xf32>
    %271 = arith.divf %269, %270 : vector<2x8x32xf32>
    %272 = vector.extract_strided_slice %260 {offsets = [0, 0, 32], sizes = [2, 8, 32], strides = [1, 1, 1]} : vector<2x8x96xf32> to vector<2x8x32xf32>
    %273 = vector.extract_strided_slice %263 {offsets = [0, 0, 32], sizes = [2, 8, 32], strides = [1, 1, 1]} : vector<2x8x96xf32> to vector<2x8x32xf32>
    %274 = arith.addf %272, %273 : vector<2x8x32xf32>
    %275 = arith.negf %274 : vector<2x8x32xf32>
    %276 = math.exp %275 : vector<2x8x32xf32>
    %cst_81 = arith.constant 1.000000e+00 : f32
    %277 = vector.broadcast %cst_81 : f32 to vector<2x8x32xf32>
    %278 = arith.addf %277, %276 : vector<2x8x32xf32>
    %279 = arith.divf %277, %278 : vector<2x8x32xf32>
    %280 = vector.extract_strided_slice %260 {offsets = [0, 0, 64], sizes = [2, 8, 32], strides = [1, 1, 1]} : vector<2x8x96xf32> to vector<2x8x32xf32>
    %281 = vector.extract_strided_slice %263 {offsets = [0, 0, 64], sizes = [2, 8, 32], strides = [1, 1, 1]} : vector<2x8x96xf32> to vector<2x8x32xf32>
    %282 = arith.mulf %271, %281 : vector<2x8x32xf32>
    %283 = arith.addf %280, %282 : vector<2x8x32xf32>
    %284 = math.tanh %283 : vector<2x8x32xf32>
    %cst_82 = arith.constant 1.000000e+00 : f32
    %285 = vector.broadcast %cst_82 : f32 to vector<2x8x32xf32>
    %286 = arith.subf %285, %279 : vector<2x8x32xf32>
    %287 = arith.mulf %286, %284 : vector<2x8x32xf32>
    %288 = arith.mulf %279, %255 : vector<2x8x32xf32>
    %289 = arith.addf %287, %288 : vector<2x8x32xf32>
    %c5_i32 = arith.constant 5 : i32
    %290 = arith.addi %7, %c5_i32 : i32
    %291 = arith.sitofp %290 : i32 to f32
    %292 = vector.broadcast %291 : f32 to vector<2x8x1xf32>
    %293 = arith.cmpf oge, %292, %5 : vector<2x8x1xf32>
    %294 = vector.broadcast %291 : f32 to vector<2x8x1xf32>
    %295 = arith.cmpf olt, %294, %6 : vector<2x8x1xf32>
    %296 = arith.andi %293, %295 : vector<2x8x1xi1>
    %297 = arith.extui %296 : vector<2x8x1xi1> to vector<2x8x1xi32>
    %298 = arith.sitofp %297 : vector<2x8x1xi32> to vector<2x8x1xf32>
    %299 = vector.broadcast %298 : vector<2x8x1xf32> to vector<2x8x32xf32>
    %300 = arith.mulf %299, %289 : vector<2x8x32xf32>
    %cst_83 = arith.constant 1.000000e+00 : f32
    %301 = vector.broadcast %cst_83 : f32 to vector<2x8x1xf32>
    %302 = arith.subf %301, %298 : vector<2x8x1xf32>
    %303 = vector.broadcast %302 : vector<2x8x1xf32> to vector<2x8x32xf32>
    %304 = arith.mulf %303, %255 : vector<2x8x32xf32>
    %305 = arith.addf %300, %304 : vector<2x8x32xf32>
    %c5_84 = arith.constant 5 : index
    %c0_85 = arith.constant 0 : index
    %c0_86 = arith.constant 0 : index
    %c0_87 = arith.constant 0 : index
    %306 = vector.load %arg7[%c5_84, %c0_85, %c0_86, %c0_87] : memref<8x2x8x32xf32, #tpu.memory_space<vmem>>, vector<1x2x8x32xf32>
    %307 = vector.shape_cast %306 : vector<1x2x8x32xf32> to vector<2x8x32xf32>
    %308 = vector.shape_cast %305 : vector<2x8x32xf32> to vector<1x2x8x32xf32>
    tpu.vector_store %arg7[%c5_84, %c0_85, %c0_86, %c0_87], %308 {strides = array<i32>} : memref<8x2x8x32xf32, #tpu.memory_space<vmem>>, vector<1x2x8x32xf32>,
    %c6 = arith.constant 6 : index
    %c0_88 = arith.constant 0 : index
    %c0_89 = arith.constant 0 : index
    %c0_90 = arith.constant 0 : index
    %309 = vector.load %arg1[%c6, %c0_88, %c0_89, %c0_90] : memref<8x2x8x96xf32, #tpu.memory_space<vmem>>, vector<1x2x8x96xf32>
    %310 = vector.shape_cast %309 : vector<1x2x8x96xf32> to vector<2x8x96xf32>
    "tpu.trace_start"() <{level = 10 : i32, message = "dbh,dhk->dbk"}> : () -> ()
    %cst_91 = arith.constant dense<0.000000e+00> : vector<2x8x96xf32>
    %311 = tpu.matmul %305, %3, %cst_91 {dimension_numbers = #tpu.dot_dimension_numbers<[2], [1], [1], [2], [0, 0, 0, 1, 1, 2], [0], [0]>} : vector<2x8x32xf32>, vector<2x32x96xf32>, vector<2x8x96xf32> -> vector<2x8x96xf32>
    "tpu.trace_stop"() : () -> ()
    %312 = vector.broadcast %4 : vector<2x1x96xf32> to vector<2x8x96xf32>
    %313 = arith.addf %311, %312 : vector<2x8x96xf32>
    %314 = vector.extract_strided_slice %310 {offsets = [0, 0, 0], sizes = [2, 8, 32], strides = [1, 1, 1]} : vector<2x8x96xf32> to vector<2x8x32xf32>
    %315 = vector.extract_strided_slice %313 {offsets = [0, 0, 0], sizes = [2, 8, 32], strides = [1, 1, 1]} : vector<2x8x96xf32> to vector<2x8x32xf32>
    %316 = arith.addf %314, %315 : vector<2x8x32xf32>
    %317 = arith.negf %316 : vector<2x8x32xf32>
    %318 = math.exp %317 : vector<2x8x32xf32>
    %cst_92 = arith.constant 1.000000e+00 : f32
    %319 = vector.broadcast %cst_92 : f32 to vector<2x8x32xf32>
    %320 = arith.addf %319, %318 : vector<2x8x32xf32>
    %321 = arith.divf %319, %320 : vector<2x8x32xf32>
    %322 = vector.extract_strided_slice %310 {offsets = [0, 0, 32], sizes = [2, 8, 32], strides = [1, 1, 1]} : vector<2x8x96xf32> to vector<2x8x32xf32>
    %323 = vector.extract_strided_slice %313 {offsets = [0, 0, 32], sizes = [2, 8, 32], strides = [1, 1, 1]} : vector<2x8x96xf32> to vector<2x8x32xf32>
    %324 = arith.addf %322, %323 : vector<2x8x32xf32>
    %325 = arith.negf %324 : vector<2x8x32xf32>
    %326 = math.exp %325 : vector<2x8x32xf32>
    %cst_93 = arith.constant 1.000000e+00 : f32
    %327 = vector.broadcast %cst_93 : f32 to vector<2x8x32xf32>
    %328 = arith.addf %327, %326 : vector<2x8x32xf32>
    %329 = arith.divf %327, %328 : vector<2x8x32xf32>
    %330 = vector.extract_strided_slice %310 {offsets = [0, 0, 64], sizes = [2, 8, 32], strides = [1, 1, 1]} : vector<2x8x96xf32> to vector<2x8x32xf32>
    %331 = vector.extract_strided_slice %313 {offsets = [0, 0, 64], sizes = [2, 8, 32], strides = [1, 1, 1]} : vector<2x8x96xf32> to vector<2x8x32xf32>
    %332 = arith.mulf %321, %331 : vector<2x8x32xf32>
    %333 = arith.addf %330, %332 : vector<2x8x32xf32>
    %334 = math.tanh %333 : vector<2x8x32xf32>
    %cst_94 = arith.constant 1.000000e+00 : f32
    %335 = vector.broadcast %cst_94 : f32 to vector<2x8x32xf32>
    %336 = arith.subf %335, %329 : vector<2x8x32xf32>
    %337 = arith.mulf %336, %334 : vector<2x8x32xf32>
    %338 = arith.mulf %329, %305 : vector<2x8x32xf32>
    %339 = arith.addf %337, %338 : vector<2x8x32xf32>
    %c6_i32 = arith.constant 6 : i32
    %340 = arith.addi %7, %c6_i32 : i32
    %341 = arith.sitofp %340 : i32 to f32
    %342 = vector.broadcast %341 : f32 to vector<2x8x1xf32>
    %343 = arith.cmpf oge, %342, %5 : vector<2x8x1xf32>
    %344 = vector.broadcast %341 : f32 to vector<2x8x1xf32>
    %345 = arith.cmpf olt, %344, %6 : vector<2x8x1xf32>
    %346 = arith.andi %343, %345 : vector<2x8x1xi1>
    %347 = arith.extui %346 : vector<2x8x1xi1> to vector<2x8x1xi32>
    %348 = arith.sitofp %347 : vector<2x8x1xi32> to vector<2x8x1xf32>
    %349 = vector.broadcast %348 : vector<2x8x1xf32> to vector<2x8x32xf32>
    %350 = arith.mulf %349, %339 : vector<2x8x32xf32>
    %cst_95 = arith.constant 1.000000e+00 : f32
    %351 = vector.broadcast %cst_95 : f32 to vector<2x8x1xf32>
    %352 = arith.subf %351, %348 : vector<2x8x1xf32>
    %353 = vector.broadcast %352 : vector<2x8x1xf32> to vector<2x8x32xf32>
    %354 = arith.mulf %353, %305 : vector<2x8x32xf32>
    %355 = arith.addf %350, %354 : vector<2x8x32xf32>
    %c6_96 = arith.constant 6 : index
    %c0_97 = arith.constant 0 : index
    %c0_98 = arith.constant 0 : index
    %c0_99 = arith.constant 0 : index
    %356 = vector.load %arg7[%c6_96, %c0_97, %c0_98, %c0_99] : memref<8x2x8x32xf32, #tpu.memory_space<vmem>>, vector<1x2x8x32xf32>
    %357 = vector.shape_cast %356 : vector<1x2x8x32xf32> to vector<2x8x32xf32>
    %358 = vector.shape_cast %355 : vector<2x8x32xf32> to vector<1x2x8x32xf32>
    tpu.vector_store %arg7[%c6_96, %c0_97, %c0_98, %c0_99], %358 {strides = array<i32>} : memref<8x2x8x32xf32, #tpu.memory_space<vmem>>, vector<1x2x8x32xf32>,
    %c7 = arith.constant 7 : index
    %c0_100 = arith.constant 0 : index
    %c0_101 = arith.constant 0 : index
    %c0_102 = arith.constant 0 : index
    %359 = vector.load %arg1[%c7, %c0_100, %c0_101, %c0_102] : memref<8x2x8x96xf32, #tpu.memory_space<vmem>>, vector<1x2x8x96xf32>
    %360 = vector.shape_cast %359 : vector<1x2x8x96xf32> to vector<2x8x96xf32>
    "tpu.trace_start"() <{level = 10 : i32, message = "dbh,dhk->dbk"}> : () -> ()
    %cst_103 = arith.constant dense<0.000000e+00> : vector<2x8x96xf32>
    %361 = tpu.matmul %355, %3, %cst_103 {dimension_numbers = #tpu.dot_dimension_numbers<[2], [1], [1], [2], [0, 0, 0, 1, 1, 2], [0], [0]>} : vector<2x8x32xf32>, vector<2x32x96xf32>, vector<2x8x96xf32> -> vector<2x8x96xf32>
    "tpu.trace_stop"() : () -> ()
    %362 = vector.broadcast %4 : vector<2x1x96xf32> to vector<2x8x96xf32>
    %363 = arith.addf %361, %362 : vector<2x8x96xf32>
    %364 = vector.extract_strided_slice %360 {offsets = [0, 0, 0], sizes = [2, 8, 32], strides = [1, 1, 1]} : vector<2x8x96xf32> to vector<2x8x32xf32>
    %365 = vector.extract_strided_slice %363 {offsets = [0, 0, 0], sizes = [2, 8, 32], strides = [1, 1, 1]} : vector<2x8x96xf32> to vector<2x8x32xf32>
    %366 = arith.addf %364, %365 : vector<2x8x32xf32>
    %367 = arith.negf %366 : vector<2x8x32xf32>
    %368 = math.exp %367 : vector<2x8x32xf32>
    %cst_104 = arith.constant 1.000000e+00 : f32
    %369 = vector.broadcast %cst_104 : f32 to vector<2x8x32xf32>
    %370 = arith.addf %369, %368 : vector<2x8x32xf32>
    %371 = arith.divf %369, %370 : vector<2x8x32xf32>
    %372 = vector.extract_strided_slice %360 {offsets = [0, 0, 32], sizes = [2, 8, 32], strides = [1, 1, 1]} : vector<2x8x96xf32> to vector<2x8x32xf32>
    %373 = vector.extract_strided_slice %363 {offsets = [0, 0, 32], sizes = [2, 8, 32], strides = [1, 1, 1]} : vector<2x8x96xf32> to vector<2x8x32xf32>
    %374 = arith.addf %372, %373 : vector<2x8x32xf32>
    %375 = arith.negf %374 : vector<2x8x32xf32>
    %376 = math.exp %375 : vector<2x8x32xf32>
    %cst_105 = arith.constant 1.000000e+00 : f32
    %377 = vector.broadcast %cst_105 : f32 to vector<2x8x32xf32>
    %378 = arith.addf %377, %376 : vector<2x8x32xf32>
    %379 = arith.divf %377, %378 : vector<2x8x32xf32>
    %380 = vector.extract_strided_slice %360 {offsets = [0, 0, 64], sizes = [2, 8, 32], strides = [1, 1, 1]} : vector<2x8x96xf32> to vector<2x8x32xf32>
    %381 = vector.extract_strided_slice %363 {offsets = [0, 0, 64], sizes = [2, 8, 32], strides = [1, 1, 1]} : vector<2x8x96xf32> to vector<2x8x32xf32>
    %382 = arith.mulf %371, %381 : vector<2x8x32xf32>
    %383 = arith.addf %380, %382 : vector<2x8x32xf32>
    %384 = math.tanh %383 : vector<2x8x32xf32>
    %cst_106 = arith.constant 1.000000e+00 : f32
    %385 = vector.broadcast %cst_106 : f32 to vector<2x8x32xf32>
    %386 = arith.subf %385, %379 : vector<2x8x32xf32>
    %387 = arith.mulf %386, %384 : vector<2x8x32xf32>
    %388 = arith.mulf %379, %355 : vector<2x8x32xf32>
    %389 = arith.addf %387, %388 : vector<2x8x32xf32>
    %c7_i32 = arith.constant 7 : i32
    %390 = arith.addi %7, %c7_i32 : i32
    %391 = arith.sitofp %390 : i32 to f32
    %392 = vector.broadcast %391 : f32 to vector<2x8x1xf32>
    %393 = arith.cmpf oge, %392, %5 : vector<2x8x1xf32>
    %394 = vector.broadcast %391 : f32 to vector<2x8x1xf32>
    %395 = arith.cmpf olt, %394, %6 : vector<2x8x1xf32>
    %396 = arith.andi %393, %395 : vector<2x8x1xi1>
    %397 = arith.extui %396 : vector<2x8x1xi1> to vector<2x8x1xi32>
    %398 = arith.sitofp %397 : vector<2x8x1xi32> to vector<2x8x1xf32>
    %399 = vector.broadcast %398 : vector<2x8x1xf32> to vector<2x8x32xf32>
    %400 = arith.mulf %399, %389 : vector<2x8x32xf32>
    %cst_107 = arith.constant 1.000000e+00 : f32
    %401 = vector.broadcast %cst_107 : f32 to vector<2x8x1xf32>
    %402 = arith.subf %401, %398 : vector<2x8x1xf32>
    %403 = vector.broadcast %402 : vector<2x8x1xf32> to vector<2x8x32xf32>
    %404 = arith.mulf %403, %355 : vector<2x8x32xf32>
    %405 = arith.addf %400, %404 : vector<2x8x32xf32>
    %c7_108 = arith.constant 7 : index
    %c0_109 = arith.constant 0 : index
    %c0_110 = arith.constant 0 : index
    %c0_111 = arith.constant 0 : index
    %406 = vector.load %arg7[%c7_108, %c0_109, %c0_110, %c0_111] : memref<8x2x8x32xf32, #tpu.memory_space<vmem>>, vector<1x2x8x32xf32>
    %407 = vector.shape_cast %406 : vector<1x2x8x32xf32> to vector<2x8x32xf32>
    %408 = vector.shape_cast %405 : vector<2x8x32xf32> to vector<1x2x8x32xf32>
    tpu.vector_store %arg7[%c7_108, %c0_109, %c0_110, %c0_111], %408 {strides = array<i32>} : memref<8x2x8x32xf32, #tpu.memory_space<vmem>>, vector<1x2x8x32xf32>,
    %c0_112 = arith.constant 0 : index
    %c0_113 = arith.constant 0 : index
    %c0_114 = arith.constant 0 : index
    %409 = vector.load %arg8[%c0_112, %c0_113, %c0_114] : memref<2x8x32xf32, #tpu.memory_space<vmem>>, vector<2x8x32xf32>
    tpu.vector_store %arg8[%c0_112, %c0_113, %c0_114], %405 {strides = array<i32>} : memref<2x8x32xf32, #tpu.memory_space<vmem>>, vector<2x8x32xf32>,
    return
  }
  func.func @transform_0(%arg0: i32) -> (i32, i32, i32, i32) {
    %c0_i32 = arith.constant 0 : i32
    %c0_i32_0 = arith.constant 0 : i32
    %c0_i32_1 = arith.constant 0 : i32
    %c0_i32_2 = arith.constant 0 : i32
    return %arg0, %c0_i32, %c0_i32_0, %c0_i32_1 : i32, i32, i32, i32
  }
  func.func @transform_1(%arg0: i32) -> (i32, i32, i32) {
    %c0_i32 = arith.constant 0 : i32
    %c0_i32_0 = arith.constant 0 : i32
    %c0_i32_1 = arith.constant 0 : i32
    %c0_i32_2 = arith.constant 0 : i32
    return %c0_i32, %c0_i32_0, %c0_i32_1 : i32, i32, i32
  }
  func.func @transform_2(%arg0: i32) -> (i32, i32, i32) {
    %c0_i32 = arith.constant 0 : i32
    %c0_i32_0 = arith.constant 0 : i32
    %c0_i32_1 = arith.constant 0 : i32
    %c0_i32_2 = arith.constant 0 : i32
    return %c0_i32, %c0_i32_0, %c0_i32_1 : i32, i32, i32
  }
  func.func @transform_3(%arg0: i32) -> (i32, i32, i32) {
    %c0_i32 = arith.constant 0 : i32
    %c0_i32_0 = arith.constant 0 : i32
    %c0_i32_1 = arith.constant 0 : i32
    %c0_i32_2 = arith.constant 0 : i32
    return %c0_i32, %c0_i32_0, %c0_i32_1 : i32, i32, i32
  }
  func.func @transform_4(%arg0: i32) -> (i32, i32, i32) {
    %c0_i32 = arith.constant 0 : i32
    %c0_i32_0 = arith.constant 0 : i32
    %c0_i32_1 = arith.constant 0 : i32
    %c0_i32_2 = arith.constant 0 : i32
    return %c0_i32, %c0_i32_0, %c0_i32_1 : i32, i32, i32
  }
  func.func @transform_5(%arg0: i32) -> (i32, i32, i32) {
    %c0_i32 = arith.constant 0 : i32
    %c0_i32_0 = arith.constant 0 : i32
    %c0_i32_1 = arith.constant 0 : i32
    %c0_i32_2 = arith.constant 0 : i32
    return %c0_i32, %c0_i32_0, %c0_i32_1 : i32, i32, i32
  }
  func.func @transform_6(%arg0: i32) -> (i32, i32, i32, i32) {
    %c0_i32 = arith.constant 0 : i32
    %c0_i32_0 = arith.constant 0 : i32
    %c0_i32_1 = arith.constant 0 : i32
    %c0_i32_2 = arith.constant 0 : i32
    return %arg0, %c0_i32, %c0_i32_0, %c0_i32_1 : i32, i32, i32, i32
  }
  func.func @transform_7(%arg0: i32) -> (i32, i32, i32) {
    %c0_i32 = arith.constant 0 : i32
    %c0_i32_0 = arith.constant 0 : i32
    %c0_i32_1 = arith.constant 0 : i32
    %c0_i32_2 = arith.constant 0 : i32
    return %c0_i32, %c0_i32_0, %c0_i32_1 : i32, i32, i32
  }
}

module attributes {stable_mosaic.version = 11 : i64} {
  func.func @_gru_seq_kernel(%arg0: i32, %arg1: memref<8x2x8x96xf32, #tpu.memory_space<vmem>>, %arg2: memref<2x8x32xf32, #tpu.memory_space<vmem>>, %arg3: memref<2x32x96xf32, #tpu.memory_space<vmem>>, %arg4: memref<2x1x96xf32, #tpu.memory_space<vmem>>, %arg5: memref<2x8x1xf32, #tpu.memory_space<vmem>>, %arg6: memref<2x8x1xf32, #tpu.memory_space<vmem>>, %arg7: memref<8x2x8x32xf32, #tpu.memory_space<vmem>>, %arg8: memref<2x8x32xf32, #tpu.memory_space<vmem>>) attributes {dimension_semantics = [#tpu.dimension_semantics<arbitrary>], iteration_bounds = array<i64: 1>, scalar_prefetch = 0 : i64, scratch_operands = 0 : i64, tpu.core_type = #tpu.core_type<tc>, window_params = [{transform_indices = @transform_0, window_bounds = array<i64: 8, 2, 8, 96>}, {pipeline_mode = #tpu.pipeline_mode<synchronous>, transform_indices = @transform_1, window_bounds = array<i64: 2, 8, 32>}, {pipeline_mode = #tpu.pipeline_mode<synchronous>, transform_indices = @transform_2, window_bounds = array<i64: 2, 32, 96>}, {pipeline_mode = #tpu.pipeline_mode<synchronous>, transform_indices = @transform_3, window_bounds = array<i64: 2, 1, 96>}, {pipeline_mode = #tpu.pipeline_mode<synchronous>, transform_indices = @transform_4, window_bounds = array<i64: 2, 8, 1>}, {pipeline_mode = #tpu.pipeline_mode<synchronous>, transform_indices = @transform_5, window_bounds = array<i64: 2, 8, 1>}, {transform_indices = @transform_6, window_bounds = array<i64: 8, 2, 8, 32>}, {pipeline_mode = #tpu.pipeline_mode<synchronous>, transform_indices = @transform_7, window_bounds = array<i64: 2, 8, 32>}]} {
    %c0_i32 = arith.constant 0 : i32
    %0 = arith.cmpi eq, %arg0, %c0_i32 : i32
    %1 = arith.extui %0 : i1 to i32
    %c0_i32_0 = arith.constant 0 : i32
    %2 = arith.cmpi ne, %1, %c0_i32_0 : i32
    scf.if %2 {
      %c0_115 = arith.constant 0 : index
      %c0_116 = arith.constant 0 : index
      %c0_117 = arith.constant 0 : index
      %410 = vector.load %arg2[%c0_115, %c0_116, %c0_117] : memref<2x8x32xf32, #tpu.memory_space<vmem>>, vector<2x8x32xf32>
      %c0_118 = arith.constant 0 : index
      %c0_119 = arith.constant 0 : index
      %c0_120 = arith.constant 0 : index
      %411 = vector.load %arg8[%c0_118, %c0_119, %c0_120] : memref<2x8x32xf32, #tpu.memory_space<vmem>>, vector<2x8x32xf32>
      tpu.vector_store %arg8[%c0_118, %c0_119, %c0_120], %410 {strides = array<i32>} : memref<2x8x32xf32, #tpu.memory_space<vmem>>, vector<2x8x32xf32>,
    } else {
    }
    %c0 = arith.constant 0 : index
    %c0_1 = arith.constant 0 : index
    %c0_2 = arith.constant 0 : index
    %3 = vector.load %arg3[%c0, %c0_1, %c0_2] : memref<2x32x96xf32, #tpu.memory_space<vmem>>, vector<2x32x96xf32>
    %c0_3 = arith.constant 0 : index
    %c0_4 = arith.constant 0 : index
    %c0_5 = arith.constant 0 : index
    %4 = vector.load %arg4[%c0_3, %c0_4, %c0_5] : memref<2x1x96xf32, #tpu.memory_space<vmem>>, vector<2x1x96xf32>
    %c0_6 = arith.constant 0 : index
    %c0_7 = arith.constant 0 : index
    %c0_8 = arith.constant 0 : index
    %5 = vector.load %arg5[%c0_6, %c0_7, %c0_8] : memref<2x8x1xf32, #tpu.memory_space<vmem>>, vector<2x8x1xf32>
    %c0_9 = arith.constant 0 : index
    %c0_10 = arith.constant 0 : index
    %c0_11 = arith.constant 0 : index
    %6 = vector.load %arg6[%c0_9, %c0_10, %c0_11] : memref<2x8x1xf32, #tpu.memory_space<vmem>>, vector<2x8x1xf32>
    %c8_i32 = arith.constant 8 : i32
    %7 = arith.muli %arg0, %c8_i32 : i32
    %c0_12 = arith.constant 0 : index
    %c0_13 = arith.constant 0 : index
    %c0_14 = arith.constant 0 : index
    %8 = vector.load %arg8[%c0_12, %c0_13, %c0_14] : memref<2x8x32xf32, #tpu.memory_space<vmem>>, vector<2x8x32xf32>
    %c0_15 = arith.constant 0 : index
    %c0_16 = arith.constant 0 : index
    %c0_17 = arith.constant 0 : index
    %c0_18 = arith.constant 0 : index
    %9 = vector.load %arg1[%c0_15, %c0_16, %c0_17, %c0_18] : memref<8x2x8x96xf32, #tpu.memory_space<vmem>>, vector<1x2x8x96xf32>
    %10 = vector.shape_cast %9 : vector<1x2x8x96xf32> to vector<2x8x96xf32>
    "tpu.trace_start"() <{level = 10 : i32, message = "dbh,dhk->dbk"}> : () -> ()
    %cst = arith.constant dense<0.000000e+00> : vector<2x8x96xf32>
    %11 = tpu.matmul %8, %3, %cst {dimension_numbers = #tpu.dot_dimension_numbers<[2], [1], [1], [2], [0, 0, 0, 1, 1, 2], [0], [0]>} : vector<2x8x32xf32>, vector<2x32x96xf32>, vector<2x8x96xf32> -> vector<2x8x96xf32>
    "tpu.trace_stop"() : () -> ()
    %12 = vector.broadcast %4 : vector<2x1x96xf32> to vector<2x8x96xf32>
    %13 = arith.addf %11, %12 : vector<2x8x96xf32>
    %14 = vector.extract_strided_slice %10 {offsets = [0, 0, 0], sizes = [2, 8, 32], strides = [1, 1, 1]} : vector<2x8x96xf32> to vector<2x8x32xf32>
    %15 = vector.extract_strided_slice %13 {offsets = [0, 0, 0], sizes = [2, 8, 32], strides = [1, 1, 1]} : vector<2x8x96xf32> to vector<2x8x32xf32>
    %16 = arith.addf %14, %15 : vector<2x8x32xf32>
    %17 = arith.negf %16 : vector<2x8x32xf32>
    %18 = math.exp %17 : vector<2x8x32xf32>
    %cst_19 = arith.constant 1.000000e+00 : f32
    %19 = vector.broadcast %cst_19 : f32 to vector<2x8x32xf32>
    %20 = arith.addf %19, %18 : vector<2x8x32xf32>
    %21 = arith.divf %19, %20 : vector<2x8x32xf32>
    %22 = vector.extract_strided_slice %10 {offsets = [0, 0, 32], sizes = [2, 8, 32], strides = [1, 1, 1]} : vector<2x8x96xf32> to vector<2x8x32xf32>
    %23 = vector.extract_strided_slice %13 {offsets = [0, 0, 32], sizes = [2, 8, 32], strides = [1, 1, 1]} : vector<2x8x96xf32> to vector<2x8x32xf32>
    %24 = arith.addf %22, %23 : vector<2x8x32xf32>
    %25 = arith.negf %24 : vector<2x8x32xf32>
    %26 = math.exp %25 : vector<2x8x32xf32>
    %cst_20 = arith.constant 1.000000e+00 : f32
    %27 = vector.broadcast %cst_20 : f32 to vector<2x8x32xf32>
    %28 = arith.addf %27, %26 : vector<2x8x32xf32>
    %29 = arith.divf %27, %28 : vector<2x8x32xf32>
    %30 = vector.extract_strided_slice %10 {offsets = [0, 0, 64], sizes = [2, 8, 32], strides = [1, 1, 1]} : vector<2x8x96xf32> to vector<2x8x32xf32>
    %31 = vector.extract_strided_slice %13 {offsets = [0, 0, 64], sizes = [2, 8, 32], strides = [1, 1, 1]} : vector<2x8x96xf32> to vector<2x8x32xf32>
    %32 = arith.mulf %21, %31 : vector<2x8x32xf32>
    %33 = arith.addf %30, %32 : vector<2x8x32xf32>
    %34 = math.tanh %33 : vector<2x8x32xf32>
    %cst_21 = arith.constant 1.000000e+00 : f32
    %35 = vector.broadcast %cst_21 : f32 to vector<2x8x32xf32>
    %36 = arith.subf %35, %29 : vector<2x8x32xf32>
    %37 = arith.mulf %36, %34 : vector<2x8x32xf32>
    %38 = arith.mulf %29, %8 : vector<2x8x32xf32>
    %39 = arith.addf %37, %38 : vector<2x8x32xf32>
    %c0_i32_22 = arith.constant 0 : i32
    %40 = arith.addi %7, %c0_i32_22 : i32
    %41 = arith.sitofp %40 : i32 to f32
    %42 = vector.broadcast %41 : f32 to vector<2x8x1xf32>
    %43 = arith.cmpf oge, %42, %5 : vector<2x8x1xf32>
    %44 = vector.broadcast %41 : f32 to vector<2x8x1xf32>
    %45 = arith.cmpf olt, %44, %6 : vector<2x8x1xf32>
    %46 = arith.andi %43, %45 : vector<2x8x1xi1>
    %47 = arith.extui %46 : vector<2x8x1xi1> to vector<2x8x1xi32>
    %48 = arith.sitofp %47 : vector<2x8x1xi32> to vector<2x8x1xf32>
    %49 = vector.broadcast %48 : vector<2x8x1xf32> to vector<2x8x32xf32>
    %50 = arith.mulf %49, %39 : vector<2x8x32xf32>
    %cst_23 = arith.constant 1.000000e+00 : f32
    %51 = vector.broadcast %cst_23 : f32 to vector<2x8x1xf32>
    %52 = arith.subf %51, %48 : vector<2x8x1xf32>
    %53 = vector.broadcast %52 : vector<2x8x1xf32> to vector<2x8x32xf32>
    %54 = arith.mulf %53, %8 : vector<2x8x32xf32>
    %55 = arith.addf %50, %54 : vector<2x8x32xf32>
    %c0_24 = arith.constant 0 : index
    %c0_25 = arith.constant 0 : index
    %c0_26 = arith.constant 0 : index
    %c0_27 = arith.constant 0 : index
    %56 = vector.load %arg7[%c0_24, %c0_25, %c0_26, %c0_27] : memref<8x2x8x32xf32, #tpu.memory_space<vmem>>, vector<1x2x8x32xf32>
    %57 = vector.shape_cast %56 : vector<1x2x8x32xf32> to vector<2x8x32xf32>
    %58 = vector.shape_cast %55 : vector<2x8x32xf32> to vector<1x2x8x32xf32>
    tpu.vector_store %arg7[%c0_24, %c0_25, %c0_26, %c0_27], %58 {strides = array<i32>} : memref<8x2x8x32xf32, #tpu.memory_space<vmem>>, vector<1x2x8x32xf32>,
    %c1 = arith.constant 1 : index
    %c0_28 = arith.constant 0 : index
    %c0_29 = arith.constant 0 : index
    %c0_30 = arith.constant 0 : index
    %59 = vector.load %arg1[%c1, %c0_28, %c0_29, %c0_30] : memref<8x2x8x96xf32, #tpu.memory_space<vmem>>, vector<1x2x8x96xf32>
    %60 = vector.shape_cast %59 : vector<1x2x8x96xf32> to vector<2x8x96xf32>
    "tpu.trace_start"() <{level = 10 : i32, message = "dbh,dhk->dbk"}> : () -> ()
    %cst_31 = arith.constant dense<0.000000e+00> : vector<2x8x96xf32>
    %61 = tpu.matmul %55, %3, %cst_31 {dimension_numbers = #tpu.dot_dimension_numbers<[2], [1], [1], [2], [0, 0, 0, 1, 1, 2], [0], [0]>} : vector<2x8x32xf32>, vector<2x32x96xf32>, vector<2x8x96xf32> -> vector<2x8x96xf32>
    "tpu.trace_stop"() : () -> ()
    %62 = vector.broadcast %4 : vector<2x1x96xf32> to vector<2x8x96xf32>
    %63 = arith.addf %61, %62 : vector<2x8x96xf32>
    %64 = vector.extract_strided_slice %60 {offsets = [0, 0, 0], sizes = [2, 8, 32], strides = [1, 1, 1]} : vector<2x8x96xf32> to vector<2x8x32xf32>
    %65 = vector.extract_strided_slice %63 {offsets = [0, 0, 0], sizes = [2, 8, 32], strides = [1, 1, 1]} : vector<2x8x96xf32> to vector<2x8x32xf32>
    %66 = arith.addf %64, %65 : vector<2x8x32xf32>
    %67 = arith.negf %66 : vector<2x8x32xf32>
    %68 = math.exp %67 : vector<2x8x32xf32>
    %cst_32 = arith.constant 1.000000e+00 : f32
    %69 = vector.broadcast %cst_32 : f32 to vector<2x8x32xf32>
    %70 = arith.addf %69, %68 : vector<2x8x32xf32>
    %71 = arith.divf %69, %70 : vector<2x8x32xf32>
    %72 = vector.extract_strided_slice %60 {offsets = [0, 0, 32], sizes = [2, 8, 32], strides = [1, 1, 1]} : vector<2x8x96xf32> to vector<2x8x32xf32>
    %73 = vector.extract_strided_slice %63 {offsets = [0, 0, 32], sizes = [2, 8, 32], strides = [1, 1, 1]} : vector<2x8x96xf32> to vector<2x8x32xf32>
    %74 = arith.addf %72, %73 : vector<2x8x32xf32>
    %75 = arith.negf %74 : vector<2x8x32xf32>
    %76 = math.exp %75 : vector<2x8x32xf32>
    %cst_33 = arith.constant 1.000000e+00 : f32
    %77 = vector.broadcast %cst_33 : f32 to vector<2x8x32xf32>
    %78 = arith.addf %77, %76 : vector<2x8x32xf32>
    %79 = arith.divf %77, %78 : vector<2x8x32xf32>
    %80 = vector.extract_strided_slice %60 {offsets = [0, 0, 64], sizes = [2, 8, 32], strides = [1, 1, 1]} : vector<2x8x96xf32> to vector<2x8x32xf32>
    %81 = vector.extract_strided_slice %63 {offsets = [0, 0, 64], sizes = [2, 8, 32], strides = [1, 1, 1]} : vector<2x8x96xf32> to vector<2x8x32xf32>
    %82 = arith.mulf %71, %81 : vector<2x8x32xf32>
    %83 = arith.addf %80, %82 : vector<2x8x32xf32>
    %84 = math.tanh %83 : vector<2x8x32xf32>
    %cst_34 = arith.constant 1.000000e+00 : f32
    %85 = vector.broadcast %cst_34 : f32 to vector<2x8x32xf32>
    %86 = arith.subf %85, %79 : vector<2x8x32xf32>
    %87 = arith.mulf %86, %84 : vector<2x8x32xf32>
    %88 = arith.mulf %79, %55 : vector<2x8x32xf32>
    %89 = arith.addf %87, %88 : vector<2x8x32xf32>
    %c1_i32 = arith.constant 1 : i32
    %90 = arith.addi %7, %c1_i32 : i32
    %91 = arith.sitofp %90 : i32 to f32
    %92 = vector.broadcast %91 : f32 to vector<2x8x1xf32>
    %93 = arith.cmpf oge, %92, %5 : vector<2x8x1xf32>
    %94 = vector.broadcast %91 : f32 to vector<2x8x1xf32>
    %95 = arith.cmpf olt, %94, %6 : vector<2x8x1xf32>
    %96 = arith.andi %93, %95 : vector<2x8x1xi1>
    %97 = arith.extui %96 : vector<2x8x1xi1> to vector<2x8x1xi32>
    %98 = arith.sitofp %97 : vector<2x8x1xi32> to vector<2x8x1xf32>
    %99 = vector.broadcast %98 : vector<2x8x1xf32> to vector<2x8x32xf32>
    %100 = arith.mulf %99, %89 : vector<2x8x32xf32>
    %cst_35 = arith.constant 1.000000e+00 : f32
    %101 = vector.broadcast %cst_35 : f32 to vector<2x8x1xf32>
    %102 = arith.subf %101, %98 : vector<2x8x1xf32>
    %103 = vector.broadcast %102 : vector<2x8x1xf32> to vector<2x8x32xf32>
    %104 = arith.mulf %103, %55 : vector<2x8x32xf32>
    %105 = arith.addf %100, %104 : vector<2x8x32xf32>
    %c1_36 = arith.constant 1 : index
    %c0_37 = arith.constant 0 : index
    %c0_38 = arith.constant 0 : index
    %c0_39 = arith.constant 0 : index
    %106 = vector.load %arg7[%c1_36, %c0_37, %c0_38, %c0_39] : memref<8x2x8x32xf32, #tpu.memory_space<vmem>>, vector<1x2x8x32xf32>
    %107 = vector.shape_cast %106 : vector<1x2x8x32xf32> to vector<2x8x32xf32>
    %108 = vector.shape_cast %105 : vector<2x8x32xf32> to vector<1x2x8x32xf32>
    tpu.vector_store %arg7[%c1_36, %c0_37, %c0_38, %c0_39], %108 {strides = array<i32>} : memref<8x2x8x32xf32, #tpu.memory_space<vmem>>, vector<1x2x8x32xf32>,
    %c2 = arith.constant 2 : index
    %c0_40 = arith.constant 0 : index
    %c0_41 = arith.constant 0 : index
    %c0_42 = arith.constant 0 : index
    %109 = vector.load %arg1[%c2, %c0_40, %c0_41, %c0_42] : memref<8x2x8x96xf32, #tpu.memory_space<vmem>>, vector<1x2x8x96xf32>
    %110 = vector.shape_cast %109 : vector<1x2x8x96xf32> to vector<2x8x96xf32>
    "tpu.trace_start"() <{level = 10 : i32, message = "dbh,dhk->dbk"}> : () -> ()
    %cst_43 = arith.constant dense<0.000000e+00> : vector<2x8x96xf32>
    %111 = tpu.matmul %105, %3, %cst_43 {dimension_numbers = #tpu.dot_dimension_numbers<[2], [1], [1], [2], [0, 0, 0, 1, 1, 2], [0], [0]>} : vector<2x8x32xf32>, vector<2x32x96xf32>, vector<2x8x96xf32> -> vector<2x8x96xf32>
    "tpu.trace_stop"() : () -> ()
    %112 = vector.broadcast %4 : vector<2x1x96xf32> to vector<2x8x96xf32>
    %113 = arith.addf %111, %112 : vector<2x8x96xf32>
    %114 = vector.extract_strided_slice %110 {offsets = [0, 0, 0], sizes = [2, 8, 32], strides = [1, 1, 1]} : vector<2x8x96xf32> to vector<2x8x32xf32>
    %115 = vector.extract_strided_slice %113 {offsets = [0, 0, 0], sizes = [2, 8, 32], strides = [1, 1, 1]} : vector<2x8x96xf32> to vector<2x8x32xf32>
    %116 = arith.addf %114, %115 : vector<2x8x32xf32>
    %117 = arith.negf %116 : vector<2x8x32xf32>
    %118 = math.exp %117 : vector<2x8x32xf32>
    %cst_44 = arith.constant 1.000000e+00 : f32
    %119 = vector.broadcast %cst_44 : f32 to vector<2x8x32xf32>
    %120 = arith.addf %119, %118 : vector<2x8x32xf32>
    %121 = arith.divf %119, %120 : vector<2x8x32xf32>
    %122 = vector.extract_strided_slice %110 {offsets = [0, 0, 32], sizes = [2, 8, 32], strides = [1, 1, 1]} : vector<2x8x96xf32> to vector<2x8x32xf32>
    %123 = vector.extract_strided_slice %113 {offsets = [0, 0, 32], sizes = [2, 8, 32], strides = [1, 1, 1]} : vector<2x8x96xf32> to vector<2x8x32xf32>
    %124 = arith.addf %122, %123 : vector<2x8x32xf32>
    %125 = arith.negf %124 : vector<2x8x32xf32>
    %126 = math.exp %125 : vector<2x8x32xf32>
    %cst_45 = arith.constant 1.000000e+00 : f32
    %127 = vector.broadcast %cst_45 : f32 to vector<2x8x32xf32>
    %128 = arith.addf %127, %126 : vector<2x8x32xf32>
    %129 = arith.divf %127, %128 : vector<2x8x32xf32>
    %130 = vector.extract_strided_slice %110 {offsets = [0, 0, 64], sizes = [2, 8, 32], strides = [1, 1, 1]} : vector<2x8x96xf32> to vector<2x8x32xf32>
    %131 = vector.extract_strided_slice %113 {offsets = [0, 0, 64], sizes = [2, 8, 32], strides = [1, 1, 1]} : vector<2x8x96xf32> to vector<2x8x32xf32>
    %132 = arith.mulf %121, %131 : vector<2x8x32xf32>
    %133 = arith.addf %130, %132 : vector<2x8x32xf32>
    %134 = math.tanh %133 : vector<2x8x32xf32>
    %cst_46 = arith.constant 1.000000e+00 : f32
    %135 = vector.broadcast %cst_46 : f32 to vector<2x8x32xf32>
    %136 = arith.subf %135, %129 : vector<2x8x32xf32>
    %137 = arith.mulf %136, %134 : vector<2x8x32xf32>
    %138 = arith.mulf %129, %105 : vector<2x8x32xf32>
    %139 = arith.addf %137, %138 : vector<2x8x32xf32>
    %c2_i32 = arith.constant 2 : i32
    %140 = arith.addi %7, %c2_i32 : i32
    %141 = arith.sitofp %140 : i32 to f32
    %142 = vector.broadcast %141 : f32 to vector<2x8x1xf32>
    %143 = arith.cmpf oge, %142, %5 : vector<2x8x1xf32>
    %144 = vector.broadcast %141 : f32 to vector<2x8x1xf32>
    %145 = arith.cmpf olt, %144, %6 : vector<2x8x1xf32>
    %146 = arith.andi %143, %145 : vector<2x8x1xi1>
    %147 = arith.extui %146 : vector<2x8x1xi1> to vector<2x8x1xi32>
    %148 = arith.sitofp %147 : vector<2x8x1xi32> to vector<2x8x1xf32>
    %149 = vector.broadcast %148 : vector<2x8x1xf32> to vector<2x8x32xf32>
    %150 = arith.mulf %149, %139 : vector<2x8x32xf32>
    %cst_47 = arith.constant 1.000000e+00 : f32
    %151 = vector.broadcast %cst_47 : f32 to vector<2x8x1xf32>
    %152 = arith.subf %151, %148 : vector<2x8x1xf32>
    %153 = vector.broadcast %152 : vector<2x8x1xf32> to vector<2x8x32xf32>
    %154 = arith.mulf %153, %105 : vector<2x8x32xf32>
    %155 = arith.addf %150, %154 : vector<2x8x32xf32>
    %c2_48 = arith.constant 2 : index
    %c0_49 = arith.constant 0 : index
    %c0_50 = arith.constant 0 : index
    %c0_51 = arith.constant 0 : index
    %156 = vector.load %arg7[%c2_48, %c0_49, %c0_50, %c0_51] : memref<8x2x8x32xf32, #tpu.memory_space<vmem>>, vector<1x2x8x32xf32>
    %157 = vector.shape_cast %156 : vector<1x2x8x32xf32> to vector<2x8x32xf32>
    %158 = vector.shape_cast %155 : vector<2x8x32xf32> to vector<1x2x8x32xf32>
    tpu.vector_store %arg7[%c2_48, %c0_49, %c0_50, %c0_51], %158 {strides = array<i32>} : memref<8x2x8x32xf32, #tpu.memory_space<vmem>>, vector<1x2x8x32xf32>,
    %c3 = arith.constant 3 : index
    %c0_52 = arith.constant 0 : index
    %c0_53 = arith.constant 0 : index
    %c0_54 = arith.constant 0 : index
    %159 = vector.load %arg1[%c3, %c0_52, %c0_53, %c0_54] : memref<8x2x8x96xf32, #tpu.memory_space<vmem>>, vector<1x2x8x96xf32>
    %160 = vector.shape_cast %159 : vector<1x2x8x96xf32> to vector<2x8x96xf32>
    "tpu.trace_start"() <{level = 10 : i32, message = "dbh,dhk->dbk"}> : () -> ()
    %cst_55 = arith.constant dense<0.000000e+00> : vector<2x8x96xf32>
    %161 = tpu.matmul %155, %3, %cst_55 {dimension_numbers = #tpu.dot_dimension_numbers<[2], [1], [1], [2], [0, 0, 0, 1, 1, 2], [0], [0]>} : vector<2x8x32xf32>, vector<2x32x96xf32>, vector<2x8x96xf32> -> vector<2x8x96xf32>
    "tpu.trace_stop"() : () -> ()
    %162 = vector.broadcast %4 : vector<2x1x96xf32> to vector<2x8x96xf32>
    %163 = arith.addf %161, %162 : vector<2x8x96xf32>
    %164 = vector.extract_strided_slice %160 {offsets = [0, 0, 0], sizes = [2, 8, 32], strides = [1, 1, 1]} : vector<2x8x96xf32> to vector<2x8x32xf32>
    %165 = vector.extract_strided_slice %163 {offsets = [0, 0, 0], sizes = [2, 8, 32], strides = [1, 1, 1]} : vector<2x8x96xf32> to vector<2x8x32xf32>
    %166 = arith.addf %164, %165 : vector<2x8x32xf32>
    %167 = arith.negf %166 : vector<2x8x32xf32>
    %168 = math.exp %167 : vector<2x8x32xf32>
    %cst_56 = arith.constant 1.000000e+00 : f32
    %169 = vector.broadcast %cst_56 : f32 to vector<2x8x32xf32>
    %170 = arith.addf %169, %168 : vector<2x8x32xf32>
    %171 = arith.divf %169, %170 : vector<2x8x32xf32>
    %172 = vector.extract_strided_slice %160 {offsets = [0, 0, 32], sizes = [2, 8, 32], strides = [1, 1, 1]} : vector<2x8x96xf32> to vector<2x8x32xf32>
    %173 = vector.extract_strided_slice %163 {offsets = [0, 0, 32], sizes = [2, 8, 32], strides = [1, 1, 1]} : vector<2x8x96xf32> to vector<2x8x32xf32>
    %174 = arith.addf %172, %173 : vector<2x8x32xf32>
    %175 = arith.negf %174 : vector<2x8x32xf32>
    %176 = math.exp %175 : vector<2x8x32xf32>
    %cst_57 = arith.constant 1.000000e+00 : f32
    %177 = vector.broadcast %cst_57 : f32 to vector<2x8x32xf32>
    %178 = arith.addf %177, %176 : vector<2x8x32xf32>
    %179 = arith.divf %177, %178 : vector<2x8x32xf32>
    %180 = vector.extract_strided_slice %160 {offsets = [0, 0, 64], sizes = [2, 8, 32], strides = [1, 1, 1]} : vector<2x8x96xf32> to vector<2x8x32xf32>
    %181 = vector.extract_strided_slice %163 {offsets = [0, 0, 64], sizes = [2, 8, 32], strides = [1, 1, 1]} : vector<2x8x96xf32> to vector<2x8x32xf32>
    %182 = arith.mulf %171, %181 : vector<2x8x32xf32>
    %183 = arith.addf %180, %182 : vector<2x8x32xf32>
    %184 = math.tanh %183 : vector<2x8x32xf32>
    %cst_58 = arith.constant 1.000000e+00 : f32
    %185 = vector.broadcast %cst_58 : f32 to vector<2x8x32xf32>
    %186 = arith.subf %185, %179 : vector<2x8x32xf32>
    %187 = arith.mulf %186, %184 : vector<2x8x32xf32>
    %188 = arith.mulf %179, %155 : vector<2x8x32xf32>
    %189 = arith.addf %187, %188 : vector<2x8x32xf32>
    %c3_i32 = arith.constant 3 : i32
    %190 = arith.addi %7, %c3_i32 : i32
    %191 = arith.sitofp %190 : i32 to f32
    %192 = vector.broadcast %191 : f32 to vector<2x8x1xf32>
    %193 = arith.cmpf oge, %192, %5 : vector<2x8x1xf32>
    %194 = vector.broadcast %191 : f32 to vector<2x8x1xf32>
    %195 = arith.cmpf olt, %194, %6 : vector<2x8x1xf32>
    %196 = arith.andi %193, %195 : vector<2x8x1xi1>
    %197 = arith.extui %196 : vector<2x8x1xi1> to vector<2x8x1xi32>
    %198 = arith.sitofp %197 : vector<2x8x1xi32> to vector<2x8x1xf32>
    %199 = vector.broadcast %198 : vector<2x8x1xf32> to vector<2x8x32xf32>
    %200 = arith.mulf %199, %189 : vector<2x8x32xf32>
    %cst_59 = arith.constant 1.000000e+00 : f32
    %201 = vector.broadcast %cst_59 : f32 to vector<2x8x1xf32>
    %202 = arith.subf %201, %198 : vector<2x8x1xf32>
    %203 = vector.broadcast %202 : vector<2x8x1xf32> to vector<2x8x32xf32>
    %204 = arith.mulf %203, %155 : vector<2x8x32xf32>
    %205 = arith.addf %200, %204 : vector<2x8x32xf32>
    %c3_60 = arith.constant 3 : index
    %c0_61 = arith.constant 0 : index
    %c0_62 = arith.constant 0 : index
    %c0_63 = arith.constant 0 : index
    %206 = vector.load %arg7[%c3_60, %c0_61, %c0_62, %c0_63] : memref<8x2x8x32xf32, #tpu.memory_space<vmem>>, vector<1x2x8x32xf32>
    %207 = vector.shape_cast %206 : vector<1x2x8x32xf32> to vector<2x8x32xf32>
    %208 = vector.shape_cast %205 : vector<2x8x32xf32> to vector<1x2x8x32xf32>
    tpu.vector_store %arg7[%c3_60, %c0_61, %c0_62, %c0_63], %208 {strides = array<i32>} : memref<8x2x8x32xf32, #tpu.memory_space<vmem>>, vector<1x2x8x32xf32>,
    %c4 = arith.constant 4 : index
    %c0_64 = arith.constant 0 : index
    %c0_65 = arith.constant 0 : index
    %c0_66 = arith.constant 0 : index
    %209 = vector.load %arg1[%c4, %c0_64, %c0_65, %c0_66] : memref<8x2x8x96xf32, #tpu.memory_space<vmem>>, vector<1x2x8x96xf32>
    %210 = vector.shape_cast %209 : vector<1x2x8x96xf32> to vector<2x8x96xf32>
    "tpu.trace_start"() <{level = 10 : i32, message = "dbh,dhk->dbk"}> : () -> ()
    %cst_67 = arith.constant dense<0.000000e+00> : vector<2x8x96xf32>
    %211 = tpu.matmul %205, %3, %cst_67 {dimension_numbers = #tpu.dot_dimension_numbers<[2], [1], [1], [2], [0, 0, 0, 1, 1, 2], [0], [0]>} : vector<2x8x32xf32>, vector<2x32x96xf32>, vector<2x8x96xf32> -> vector<2x8x96xf32>
    "tpu.trace_stop"() : () -> ()
    %212 = vector.broadcast %4 : vector<2x1x96xf32> to vector<2x8x96xf32>
    %213 = arith.addf %211, %212 : vector<2x8x96xf32>
    %214 = vector.extract_strided_slice %210 {offsets = [0, 0, 0], sizes = [2, 8, 32], strides = [1, 1, 1]} : vector<2x8x96xf32> to vector<2x8x32xf32>
    %215 = vector.extract_strided_slice %213 {offsets = [0, 0, 0], sizes = [2, 8, 32], strides = [1, 1, 1]} : vector<2x8x96xf32> to vector<2x8x32xf32>
    %216 = arith.addf %214, %215 : vector<2x8x32xf32>
    %217 = arith.negf %216 : vector<2x8x32xf32>
    %218 = math.exp %217 : vector<2x8x32xf32>
    %cst_68 = arith.constant 1.000000e+00 : f32
    %219 = vector.broadcast %cst_68 : f32 to vector<2x8x32xf32>
    %220 = arith.addf %219, %218 : vector<2x8x32xf32>
    %221 = arith.divf %219, %220 : vector<2x8x32xf32>
    %222 = vector.extract_strided_slice %210 {offsets = [0, 0, 32], sizes = [2, 8, 32], strides = [1, 1, 1]} : vector<2x8x96xf32> to vector<2x8x32xf32>
    %223 = vector.extract_strided_slice %213 {offsets = [0, 0, 32], sizes = [2, 8, 32], strides = [1, 1, 1]} : vector<2x8x96xf32> to vector<2x8x32xf32>
    %224 = arith.addf %222, %223 : vector<2x8x32xf32>
    %225 = arith.negf %224 : vector<2x8x32xf32>
    %226 = math.exp %225 : vector<2x8x32xf32>
    %cst_69 = arith.constant 1.000000e+00 : f32
    %227 = vector.broadcast %cst_69 : f32 to vector<2x8x32xf32>
    %228 = arith.addf %227, %226 : vector<2x8x32xf32>
    %229 = arith.divf %227, %228 : vector<2x8x32xf32>
    %230 = vector.extract_strided_slice %210 {offsets = [0, 0, 64], sizes = [2, 8, 32], strides = [1, 1, 1]} : vector<2x8x96xf32> to vector<2x8x32xf32>
    %231 = vector.extract_strided_slice %213 {offsets = [0, 0, 64], sizes = [2, 8, 32], strides = [1, 1, 1]} : vector<2x8x96xf32> to vector<2x8x32xf32>
    %232 = arith.mulf %221, %231 : vector<2x8x32xf32>
    %233 = arith.addf %230, %232 : vector<2x8x32xf32>
    %234 = math.tanh %233 : vector<2x8x32xf32>
    %cst_70 = arith.constant 1.000000e+00 : f32
    %235 = vector.broadcast %cst_70 : f32 to vector<2x8x32xf32>
    %236 = arith.subf %235, %229 : vector<2x8x32xf32>
    %237 = arith.mulf %236, %234 : vector<2x8x32xf32>
    %238 = arith.mulf %229, %205 : vector<2x8x32xf32>
    %239 = arith.addf %237, %238 : vector<2x8x32xf32>
    %c4_i32 = arith.constant 4 : i32
    %240 = arith.addi %7, %c4_i32 : i32
    %241 = arith.sitofp %240 : i32 to f32
    %242 = vector.broadcast %241 : f32 to vector<2x8x1xf32>
    %243 = arith.cmpf oge, %242, %5 : vector<2x8x1xf32>
    %244 = vector.broadcast %241 : f32 to vector<2x8x1xf32>
    %245 = arith.cmpf olt, %244, %6 : vector<2x8x1xf32>
    %246 = arith.andi %243, %245 : vector<2x8x1xi1>
    %247 = arith.extui %246 : vector<2x8x1xi1> to vector<2x8x1xi32>
    %248 = arith.sitofp %247 : vector<2x8x1xi32> to vector<2x8x1xf32>
    %249 = vector.broadcast %248 : vector<2x8x1xf32> to vector<2x8x32xf32>
    %250 = arith.mulf %249, %239 : vector<2x8x32xf32>
    %cst_71 = arith.constant 1.000000e+00 : f32
    %251 = vector.broadcast %cst_71 : f32 to vector<2x8x1xf32>
    %252 = arith.subf %251, %248 : vector<2x8x1xf32>
    %253 = vector.broadcast %252 : vector<2x8x1xf32> to vector<2x8x32xf32>
    %254 = arith.mulf %253, %205 : vector<2x8x32xf32>
    %255 = arith.addf %250, %254 : vector<2x8x32xf32>
    %c4_72 = arith.constant 4 : index
    %c0_73 = arith.constant 0 : index
    %c0_74 = arith.constant 0 : index
    %c0_75 = arith.constant 0 : index
    %256 = vector.load %arg7[%c4_72, %c0_73, %c0_74, %c0_75] : memref<8x2x8x32xf32, #tpu.memory_space<vmem>>, vector<1x2x8x32xf32>
    %257 = vector.shape_cast %256 : vector<1x2x8x32xf32> to vector<2x8x32xf32>
    %258 = vector.shape_cast %255 : vector<2x8x32xf32> to vector<1x2x8x32xf32>
    tpu.vector_store %arg7[%c4_72, %c0_73, %c0_74, %c0_75], %258 {strides = array<i32>} : memref<8x2x8x32xf32, #tpu.memory_space<vmem>>, vector<1x2x8x32xf32>,
    %c5 = arith.constant 5 : index
    %c0_76 = arith.constant 0 : index
    %c0_77 = arith.constant 0 : index
    %c0_78 = arith.constant 0 : index
    %259 = vector.load %arg1[%c5, %c0_76, %c0_77, %c0_78] : memref<8x2x8x96xf32, #tpu.memory_space<vmem>>, vector<1x2x8x96xf32>
    %260 = vector.shape_cast %259 : vector<1x2x8x96xf32> to vector<2x8x96xf32>
    "tpu.trace_start"() <{level = 10 : i32, message = "dbh,dhk->dbk"}> : () -> ()
    %cst_79 = arith.constant dense<0.000000e+00> : vector<2x8x96xf32>
    %261 = tpu.matmul %255, %3, %cst_79 {dimension_numbers = #tpu.dot_dimension_numbers<[2], [1], [1], [2], [0, 0, 0, 1, 1, 2], [0], [0]>} : vector<2x8x32xf32>, vector<2x32x96xf32>, vector<2x8x96xf32> -> vector<2x8x96xf32>
    "tpu.trace_stop"() : () -> ()
    %262 = vector.broadcast %4 : vector<2x1x96xf32> to vector<2x8x96xf32>
    %263 = arith.addf %261, %262 : vector<2x8x96xf32>
    %264 = vector.extract_strided_slice %260 {offsets = [0, 0, 0], sizes = [2, 8, 32], strides = [1, 1, 1]} : vector<2x8x96xf32> to vector<2x8x32xf32>
    %265 = vector.extract_strided_slice %263 {offsets = [0, 0, 0], sizes = [2, 8, 32], strides = [1, 1, 1]} : vector<2x8x96xf32> to vector<2x8x32xf32>
    %266 = arith.addf %264, %265 : vector<2x8x32xf32>
    %267 = arith.negf %266 : vector<2x8x32xf32>
    %268 = math.exp %267 : vector<2x8x32xf32>
    %cst_80 = arith.constant 1.000000e+00 : f32
    %269 = vector.broadcast %cst_80 : f32 to vector<2x8x32xf32>
    %270 = arith.addf %269, %268 : vector<2x8x32xf32>
    %271 = arith.divf %269, %270 : vector<2x8x32xf32>
    %272 = vector.extract_strided_slice %260 {offsets = [0, 0, 32], sizes = [2, 8, 32], strides = [1, 1, 1]} : vector<2x8x96xf32> to vector<2x8x32xf32>
    %273 = vector.extract_strided_slice %263 {offsets = [0, 0, 32], sizes = [2, 8, 32], strides = [1, 1, 1]} : vector<2x8x96xf32> to vector<2x8x32xf32>
    %274 = arith.addf %272, %273 : vector<2x8x32xf32>
    %275 = arith.negf %274 : vector<2x8x32xf32>
    %276 = math.exp %275 : vector<2x8x32xf32>
    %cst_81 = arith.constant 1.000000e+00 : f32
    %277 = vector.broadcast %cst_81 : f32 to vector<2x8x32xf32>
    %278 = arith.addf %277, %276 : vector<2x8x32xf32>
    %279 = arith.divf %277, %278 : vector<2x8x32xf32>
    %280 = vector.extract_strided_slice %260 {offsets = [0, 0, 64], sizes = [2, 8, 32], strides = [1, 1, 1]} : vector<2x8x96xf32> to vector<2x8x32xf32>
    %281 = vector.extract_strided_slice %263 {offsets = [0, 0, 64], sizes = [2, 8, 32], strides = [1, 1, 1]} : vector<2x8x96xf32> to vector<2x8x32xf32>
    %282 = arith.mulf %271, %281 : vector<2x8x32xf32>
    %283 = arith.addf %280, %282 : vector<2x8x32xf32>
    %284 = math.tanh %283 : vector<2x8x32xf32>
    %cst_82 = arith.constant 1.000000e+00 : f32
    %285 = vector.broadcast %cst_82 : f32 to vector<2x8x32xf32>
    %286 = arith.subf %285, %279 : vector<2x8x32xf32>
    %287 = arith.mulf %286, %284 : vector<2x8x32xf32>
    %288 = arith.mulf %279, %255 : vector<2x8x32xf32>
    %289 = arith.addf %287, %288 : vector<2x8x32xf32>
    %c5_i32 = arith.constant 5 : i32
    %290 = arith.addi %7, %c5_i32 : i32
    %291 = arith.sitofp %290 : i32 to f32
    %292 = vector.broadcast %291 : f32 to vector<2x8x1xf32>
    %293 = arith.cmpf oge, %292, %5 : vector<2x8x1xf32>
    %294 = vector.broadcast %291 : f32 to vector<2x8x1xf32>
    %295 = arith.cmpf olt, %294, %6 : vector<2x8x1xf32>
    %296 = arith.andi %293, %295 : vector<2x8x1xi1>
    %297 = arith.extui %296 : vector<2x8x1xi1> to vector<2x8x1xi32>
    %298 = arith.sitofp %297 : vector<2x8x1xi32> to vector<2x8x1xf32>
    %299 = vector.broadcast %298 : vector<2x8x1xf32> to vector<2x8x32xf32>
    %300 = arith.mulf %299, %289 : vector<2x8x32xf32>
    %cst_83 = arith.constant 1.000000e+00 : f32
    %301 = vector.broadcast %cst_83 : f32 to vector<2x8x1xf32>
    %302 = arith.subf %301, %298 : vector<2x8x1xf32>
    %303 = vector.broadcast %302 : vector<2x8x1xf32> to vector<2x8x32xf32>
    %304 = arith.mulf %303, %255 : vector<2x8x32xf32>
    %305 = arith.addf %300, %304 : vector<2x8x32xf32>
    %c5_84 = arith.constant 5 : index
    %c0_85 = arith.constant 0 : index
    %c0_86 = arith.constant 0 : index
    %c0_87 = arith.constant 0 : index
    %306 = vector.load %arg7[%c5_84, %c0_85, %c0_86, %c0_87] : memref<8x2x8x32xf32, #tpu.memory_space<vmem>>, vector<1x2x8x32xf32>
    %307 = vector.shape_cast %306 : vector<1x2x8x32xf32> to vector<2x8x32xf32>
    %308 = vector.shape_cast %305 : vector<2x8x32xf32> to vector<1x2x8x32xf32>
    tpu.vector_store %arg7[%c5_84, %c0_85, %c0_86, %c0_87], %308 {strides = array<i32>} : memref<8x2x8x32xf32, #tpu.memory_space<vmem>>, vector<1x2x8x32xf32>,
    %c6 = arith.constant 6 : index
    %c0_88 = arith.constant 0 : index
    %c0_89 = arith.constant 0 : index
    %c0_90 = arith.constant 0 : index
    %309 = vector.load %arg1[%c6, %c0_88, %c0_89, %c0_90] : memref<8x2x8x96xf32, #tpu.memory_space<vmem>>, vector<1x2x8x96xf32>
    %310 = vector.shape_cast %309 : vector<1x2x8x96xf32> to vector<2x8x96xf32>
    "tpu.trace_start"() <{level = 10 : i32, message = "dbh,dhk->dbk"}> : () -> ()
    %cst_91 = arith.constant dense<0.000000e+00> : vector<2x8x96xf32>
    %311 = tpu.matmul %305, %3, %cst_91 {dimension_numbers = #tpu.dot_dimension_numbers<[2], [1], [1], [2], [0, 0, 0, 1, 1, 2], [0], [0]>} : vector<2x8x32xf32>, vector<2x32x96xf32>, vector<2x8x96xf32> -> vector<2x8x96xf32>
    "tpu.trace_stop"() : () -> ()
    %312 = vector.broadcast %4 : vector<2x1x96xf32> to vector<2x8x96xf32>
    %313 = arith.addf %311, %312 : vector<2x8x96xf32>
    %314 = vector.extract_strided_slice %310 {offsets = [0, 0, 0], sizes = [2, 8, 32], strides = [1, 1, 1]} : vector<2x8x96xf32> to vector<2x8x32xf32>
    %315 = vector.extract_strided_slice %313 {offsets = [0, 0, 0], sizes = [2, 8, 32], strides = [1, 1, 1]} : vector<2x8x96xf32> to vector<2x8x32xf32>
    %316 = arith.addf %314, %315 : vector<2x8x32xf32>
    %317 = arith.negf %316 : vector<2x8x32xf32>
    %318 = math.exp %317 : vector<2x8x32xf32>
    %cst_92 = arith.constant 1.000000e+00 : f32
    %319 = vector.broadcast %cst_92 : f32 to vector<2x8x32xf32>
    %320 = arith.addf %319, %318 : vector<2x8x32xf32>
    %321 = arith.divf %319, %320 : vector<2x8x32xf32>
    %322 = vector.extract_strided_slice %310 {offsets = [0, 0, 32], sizes = [2, 8, 32], strides = [1, 1, 1]} : vector<2x8x96xf32> to vector<2x8x32xf32>
    %323 = vector.extract_strided_slice %313 {offsets = [0, 0, 32], sizes = [2, 8, 32], strides = [1, 1, 1]} : vector<2x8x96xf32> to vector<2x8x32xf32>
    %324 = arith.addf %322, %323 : vector<2x8x32xf32>
    %325 = arith.negf %324 : vector<2x8x32xf32>
    %326 = math.exp %325 : vector<2x8x32xf32>
    %cst_93 = arith.constant 1.000000e+00 : f32
    %327 = vector.broadcast %cst_93 : f32 to vector<2x8x32xf32>
    %328 = arith.addf %327, %326 : vector<2x8x32xf32>
    %329 = arith.divf %327, %328 : vector<2x8x32xf32>
    %330 = vector.extract_strided_slice %310 {offsets = [0, 0, 64], sizes = [2, 8, 32], strides = [1, 1, 1]} : vector<2x8x96xf32> to vector<2x8x32xf32>
    %331 = vector.extract_strided_slice %313 {offsets = [0, 0, 64], sizes = [2, 8, 32], strides = [1, 1, 1]} : vector<2x8x96xf32> to vector<2x8x32xf32>
    %332 = arith.mulf %321, %331 : vector<2x8x32xf32>
    %333 = arith.addf %330, %332 : vector<2x8x32xf32>
    %334 = math.tanh %333 : vector<2x8x32xf32>
    %cst_94 = arith.constant 1.000000e+00 : f32
    %335 = vector.broadcast %cst_94 : f32 to vector<2x8x32xf32>
    %336 = arith.subf %335, %329 : vector<2x8x32xf32>
    %337 = arith.mulf %336, %334 : vector<2x8x32xf32>
    %338 = arith.mulf %329, %305 : vector<2x8x32xf32>
    %339 = arith.addf %337, %338 : vector<2x8x32xf32>
    %c6_i32 = arith.constant 6 : i32
    %340 = arith.addi %7, %c6_i32 : i32
    %341 = arith.sitofp %340 : i32 to f32
    %342 = vector.broadcast %341 : f32 to vector<2x8x1xf32>
    %343 = arith.cmpf oge, %342, %5 : vector<2x8x1xf32>
    %344 = vector.broadcast %341 : f32 to vector<2x8x1xf32>
    %345 = arith.cmpf olt, %344, %6 : vector<2x8x1xf32>
    %346 = arith.andi %343, %345 : vector<2x8x1xi1>
    %347 = arith.extui %346 : vector<2x8x1xi1> to vector<2x8x1xi32>
    %348 = arith.sitofp %347 : vector<2x8x1xi32> to vector<2x8x1xf32>
    %349 = vector.broadcast %348 : vector<2x8x1xf32> to vector<2x8x32xf32>
    %350 = arith.mulf %349, %339 : vector<2x8x32xf32>
    %cst_95 = arith.constant 1.000000e+00 : f32
    %351 = vector.broadcast %cst_95 : f32 to vector<2x8x1xf32>
    %352 = arith.subf %351, %348 : vector<2x8x1xf32>
    %353 = vector.broadcast %352 : vector<2x8x1xf32> to vector<2x8x32xf32>
    %354 = arith.mulf %353, %305 : vector<2x8x32xf32>
    %355 = arith.addf %350, %354 : vector<2x8x32xf32>
    %c6_96 = arith.constant 6 : index
    %c0_97 = arith.constant 0 : index
    %c0_98 = arith.constant 0 : index
    %c0_99 = arith.constant 0 : index
    %356 = vector.load %arg7[%c6_96, %c0_97, %c0_98, %c0_99] : memref<8x2x8x32xf32, #tpu.memory_space<vmem>>, vector<1x2x8x32xf32>
    %357 = vector.shape_cast %356 : vector<1x2x8x32xf32> to vector<2x8x32xf32>
    %358 = vector.shape_cast %355 : vector<2x8x32xf32> to vector<1x2x8x32xf32>
    tpu.vector_store %arg7[%c6_96, %c0_97, %c0_98, %c0_99], %358 {strides = array<i32>} : memref<8x2x8x32xf32, #tpu.memory_space<vmem>>, vector<1x2x8x32xf32>,
    %c7 = arith.constant 7 : index
    %c0_100 = arith.constant 0 : index
    %c0_101 = arith.constant 0 : index
    %c0_102 = arith.constant 0 : index
    %359 = vector.load %arg1[%c7, %c0_100, %c0_101, %c0_102] : memref<8x2x8x96xf32, #tpu.memory_space<vmem>>, vector<1x2x8x96xf32>
    %360 = vector.shape_cast %359 : vector<1x2x8x96xf32> to vector<2x8x96xf32>
    "tpu.trace_start"() <{level = 10 : i32, message = "dbh,dhk->dbk"}> : () -> ()
    %cst_103 = arith.constant dense<0.000000e+00> : vector<2x8x96xf32>
    %361 = tpu.matmul %355, %3, %cst_103 {dimension_numbers = #tpu.dot_dimension_numbers<[2], [1], [1], [2], [0, 0, 0, 1, 1, 2], [0], [0]>} : vector<2x8x32xf32>, vector<2x32x96xf32>, vector<2x8x96xf32> -> vector<2x8x96xf32>
    "tpu.trace_stop"() : () -> ()
    %362 = vector.broadcast %4 : vector<2x1x96xf32> to vector<2x8x96xf32>
    %363 = arith.addf %361, %362 : vector<2x8x96xf32>
    %364 = vector.extract_strided_slice %360 {offsets = [0, 0, 0], sizes = [2, 8, 32], strides = [1, 1, 1]} : vector<2x8x96xf32> to vector<2x8x32xf32>
    %365 = vector.extract_strided_slice %363 {offsets = [0, 0, 0], sizes = [2, 8, 32], strides = [1, 1, 1]} : vector<2x8x96xf32> to vector<2x8x32xf32>
    %366 = arith.addf %364, %365 : vector<2x8x32xf32>
    %367 = arith.negf %366 : vector<2x8x32xf32>
    %368 = math.exp %367 : vector<2x8x32xf32>
    %cst_104 = arith.constant 1.000000e+00 : f32
    %369 = vector.broadcast %cst_104 : f32 to vector<2x8x32xf32>
    %370 = arith.addf %369, %368 : vector<2x8x32xf32>
    %371 = arith.divf %369, %370 : vector<2x8x32xf32>
    %372 = vector.extract_strided_slice %360 {offsets = [0, 0, 32], sizes = [2, 8, 32], strides = [1, 1, 1]} : vector<2x8x96xf32> to vector<2x8x32xf32>
    %373 = vector.extract_strided_slice %363 {offsets = [0, 0, 32], sizes = [2, 8, 32], strides = [1, 1, 1]} : vector<2x8x96xf32> to vector<2x8x32xf32>
    %374 = arith.addf %372, %373 : vector<2x8x32xf32>
    %375 = arith.negf %374 : vector<2x8x32xf32>
    %376 = math.exp %375 : vector<2x8x32xf32>
    %cst_105 = arith.constant 1.000000e+00 : f32
    %377 = vector.broadcast %cst_105 : f32 to vector<2x8x32xf32>
    %378 = arith.addf %377, %376 : vector<2x8x32xf32>
    %379 = arith.divf %377, %378 : vector<2x8x32xf32>
    %380 = vector.extract_strided_slice %360 {offsets = [0, 0, 64], sizes = [2, 8, 32], strides = [1, 1, 1]} : vector<2x8x96xf32> to vector<2x8x32xf32>
    %381 = vector.extract_strided_slice %363 {offsets = [0, 0, 64], sizes = [2, 8, 32], strides = [1, 1, 1]} : vector<2x8x96xf32> to vector<2x8x32xf32>
    %382 = arith.mulf %371, %381 : vector<2x8x32xf32>
    %383 = arith.addf %380, %382 : vector<2x8x32xf32>
    %384 = math.tanh %383 : vector<2x8x32xf32>
    %cst_106 = arith.constant 1.000000e+00 : f32
    %385 = vector.broadcast %cst_106 : f32 to vector<2x8x32xf32>
    %386 = arith.subf %385, %379 : vector<2x8x32xf32>
    %387 = arith.mulf %386, %384 : vector<2x8x32xf32>
    %388 = arith.mulf %379, %355 : vector<2x8x32xf32>
    %389 = arith.addf %387, %388 : vector<2x8x32xf32>
    %c7_i32 = arith.constant 7 : i32
    %390 = arith.addi %7, %c7_i32 : i32
    %391 = arith.sitofp %390 : i32 to f32
    %392 = vector.broadcast %391 : f32 to vector<2x8x1xf32>
    %393 = arith.cmpf oge, %392, %5 : vector<2x8x1xf32>
    %394 = vector.broadcast %391 : f32 to vector<2x8x1xf32>
    %395 = arith.cmpf olt, %394, %6 : vector<2x8x1xf32>
    %396 = arith.andi %393, %395 : vector<2x8x1xi1>
    %397 = arith.extui %396 : vector<2x8x1xi1> to vector<2x8x1xi32>
    %398 = arith.sitofp %397 : vector<2x8x1xi32> to vector<2x8x1xf32>
    %399 = vector.broadcast %398 : vector<2x8x1xf32> to vector<2x8x32xf32>
    %400 = arith.mulf %399, %389 : vector<2x8x32xf32>
    %cst_107 = arith.constant 1.000000e+00 : f32
    %401 = vector.broadcast %cst_107 : f32 to vector<2x8x1xf32>
    %402 = arith.subf %401, %398 : vector<2x8x1xf32>
    %403 = vector.broadcast %402 : vector<2x8x1xf32> to vector<2x8x32xf32>
    %404 = arith.mulf %403, %355 : vector<2x8x32xf32>
    %405 = arith.addf %400, %404 : vector<2x8x32xf32>
    %c7_108 = arith.constant 7 : index
    %c0_109 = arith.constant 0 : index
    %c0_110 = arith.constant 0 : index
    %c0_111 = arith.constant 0 : index
    %406 = vector.load %arg7[%c7_108, %c0_109, %c0_110, %c0_111] : memref<8x2x8x32xf32, #tpu.memory_space<vmem>>, vector<1x2x8x32xf32>
    %407 = vector.shape_cast %406 : vector<1x2x8x32xf32> to vector<2x8x32xf32>
    %408 = vector.shape_cast %405 : vector<2x8x32xf32> to vector<1x2x8x32xf32>
    tpu.vector_store %arg7[%c7_108, %c0_109, %c0_110, %c0_111], %408 {strides = array<i32>} : memref<8x2x8x32xf32, #tpu.memory_space<vmem>>, vector<1x2x8x32xf32>,
    %c0_112 = arith.constant 0 : index
    %c0_113 = arith.constant 0 : index
    %c0_114 = arith.constant 0 : index
    %409 = vector.load %arg8[%c0_112, %c0_113, %c0_114] : memref<2x8x32xf32, #tpu.memory_space<vmem>>, vector<2x8x32xf32>
    tpu.vector_store %arg8[%c0_112, %c0_113, %c0_114], %405 {strides = array<i32>} : memref<2x8x32xf32, #tpu.memory_space<vmem>>, vector<2x8x32xf32>,
    return
  }
  func.func @transform_0(%arg0: i32) -> (i32, i32, i32, i32) {
    %c0_i32 = arith.constant 0 : i32
    %c0_i32_0 = arith.constant 0 : i32
    %c0_i32_1 = arith.constant 0 : i32
    %c0_i32_2 = arith.constant 0 : i32
    return %arg0, %c0_i32, %c0_i32_0, %c0_i32_1 : i32, i32, i32, i32
  }
  func.func @transform_1(%arg0: i32) -> (i32, i32, i32) {
    %c0_i32 = arith.constant 0 : i32
    %c0_i32_0 = arith.constant 0 : i32
    %c0_i32_1 = arith.constant 0 : i32
    %c0_i32_2 = arith.constant 0 : i32
    return %c0_i32, %c0_i32_0, %c0_i32_1 : i32, i32, i32
  }
  func.func @transform_2(%arg0: i32) -> (i32, i32, i32) {
    %c0_i32 = arith.constant 0 : i32
    %c0_i32_0 = arith.constant 0 : i32
    %c0_i32_1 = arith.constant 0 : i32
    %c0_i32_2 = arith.constant 0 : i32
    return %c0_i32, %c0_i32_0, %c0_i32_1 : i32, i32, i32
  }
  func.func @transform_3(%arg0: i32) -> (i32, i32, i32) {
    %c0_i32 = arith.constant 0 : i32
    %c0_i32_0 = arith.constant 0 : i32
    %c0_i32_1 = arith.constant 0 : i32
    %c0_i32_2 = arith.constant 0 : i32
    return %c0_i32, %c0_i32_0, %c0_i32_1 : i32, i32, i32
  }
  func.func @transform_4(%arg0: i32) -> (i32, i32, i32) {
    %c0_i32 = arith.constant 0 : i32
    %c0_i32_0 = arith.constant 0 : i32
    %c0_i32_1 = arith.constant 0 : i32
    %c0_i32_2 = arith.constant 0 : i32
    return %c0_i32, %c0_i32_0, %c0_i32_1 : i32, i32, i32
  }
  func.func @transform_5(%arg0: i32) -> (i32, i32, i32) {
    %c0_i32 = arith.constant 0 : i32
    %c0_i32_0 = arith.constant 0 : i32
    %c0_i32_1 = arith.constant 0 : i32
    %c0_i32_2 = arith.constant 0 : i32
    return %c0_i32, %c0_i32_0, %c0_i32_1 : i32, i32, i32
  }
  func.func @transform_6(%arg0: i32) -> (i32, i32, i32, i32) {
    %c0_i32 = arith.constant 0 : i32
    %c0_i32_0 = arith.constant 0 : i32
    %c0_i32_1 = arith.constant 0 : i32
    %c0_i32_2 = arith.constant 0 : i32
    return %arg0, %c0_i32, %c0_i32_0, %c0_i32_1 : i32, i32, i32, i32
  }
  func.func @transform_7(%arg0: i32) -> (i32, i32, i32) {
    %c0_i32 = arith.constant 0 : i32
    %c0_i32_0 = arith.constant 0 : i32
    %c0_i32_1 = arith.constant 0 : i32
    %c0_i32_2 = arith.constant 0 : i32
    return %c0_i32, %c0_i32_0, %c0_i32_1 : i32, i32, i32
  }
}

module attributes {stable_mosaic.version = 11 : i64} {
  func.func @_gru_seq_kernel(%arg0: i32, %arg1: memref<3x2x8x96xf32, #tpu.memory_space<vmem>>, %arg2: memref<2x8x32xf32, #tpu.memory_space<vmem>>, %arg3: memref<2x32x96xf32, #tpu.memory_space<vmem>>, %arg4: memref<2x1x96xf32, #tpu.memory_space<vmem>>, %arg5: memref<2x8x1xf32, #tpu.memory_space<vmem>>, %arg6: memref<2x8x1xf32, #tpu.memory_space<vmem>>, %arg7: memref<3x2x8x32xf32, #tpu.memory_space<vmem>>, %arg8: memref<2x8x32xf32, #tpu.memory_space<vmem>>) attributes {dimension_semantics = [#tpu.dimension_semantics<arbitrary>], iteration_bounds = array<i64: 1>, scalar_prefetch = 0 : i64, scratch_operands = 0 : i64, tpu.core_type = #tpu.core_type<tc>, window_params = [{transform_indices = @transform_0, window_bounds = array<i64: 3, 2, 8, 96>}, {pipeline_mode = #tpu.pipeline_mode<synchronous>, transform_indices = @transform_1, window_bounds = array<i64: 2, 8, 32>}, {pipeline_mode = #tpu.pipeline_mode<synchronous>, transform_indices = @transform_2, window_bounds = array<i64: 2, 32, 96>}, {pipeline_mode = #tpu.pipeline_mode<synchronous>, transform_indices = @transform_3, window_bounds = array<i64: 2, 1, 96>}, {pipeline_mode = #tpu.pipeline_mode<synchronous>, transform_indices = @transform_4, window_bounds = array<i64: 2, 8, 1>}, {pipeline_mode = #tpu.pipeline_mode<synchronous>, transform_indices = @transform_5, window_bounds = array<i64: 2, 8, 1>}, {transform_indices = @transform_6, window_bounds = array<i64: 3, 2, 8, 32>}, {pipeline_mode = #tpu.pipeline_mode<synchronous>, transform_indices = @transform_7, window_bounds = array<i64: 2, 8, 32>}]} {
    %c0_i32 = arith.constant 0 : i32
    %0 = arith.cmpi eq, %arg0, %c0_i32 : i32
    %1 = arith.extui %0 : i1 to i32
    %c0_i32_0 = arith.constant 0 : i32
    %2 = arith.cmpi ne, %1, %c0_i32_0 : i32
    scf.if %2 {
      %c0_55 = arith.constant 0 : index
      %c0_56 = arith.constant 0 : index
      %c0_57 = arith.constant 0 : index
      %160 = vector.load %arg2[%c0_55, %c0_56, %c0_57] : memref<2x8x32xf32, #tpu.memory_space<vmem>>, vector<2x8x32xf32>
      %c0_58 = arith.constant 0 : index
      %c0_59 = arith.constant 0 : index
      %c0_60 = arith.constant 0 : index
      %161 = vector.load %arg8[%c0_58, %c0_59, %c0_60] : memref<2x8x32xf32, #tpu.memory_space<vmem>>, vector<2x8x32xf32>
      tpu.vector_store %arg8[%c0_58, %c0_59, %c0_60], %160 {strides = array<i32>} : memref<2x8x32xf32, #tpu.memory_space<vmem>>, vector<2x8x32xf32>,
    } else {
    }
    %c0 = arith.constant 0 : index
    %c0_1 = arith.constant 0 : index
    %c0_2 = arith.constant 0 : index
    %3 = vector.load %arg3[%c0, %c0_1, %c0_2] : memref<2x32x96xf32, #tpu.memory_space<vmem>>, vector<2x32x96xf32>
    %c0_3 = arith.constant 0 : index
    %c0_4 = arith.constant 0 : index
    %c0_5 = arith.constant 0 : index
    %4 = vector.load %arg4[%c0_3, %c0_4, %c0_5] : memref<2x1x96xf32, #tpu.memory_space<vmem>>, vector<2x1x96xf32>
    %c0_6 = arith.constant 0 : index
    %c0_7 = arith.constant 0 : index
    %c0_8 = arith.constant 0 : index
    %5 = vector.load %arg5[%c0_6, %c0_7, %c0_8] : memref<2x8x1xf32, #tpu.memory_space<vmem>>, vector<2x8x1xf32>
    %c0_9 = arith.constant 0 : index
    %c0_10 = arith.constant 0 : index
    %c0_11 = arith.constant 0 : index
    %6 = vector.load %arg6[%c0_9, %c0_10, %c0_11] : memref<2x8x1xf32, #tpu.memory_space<vmem>>, vector<2x8x1xf32>
    %c3_i32 = arith.constant 3 : i32
    %7 = arith.muli %arg0, %c3_i32 : i32
    %c0_12 = arith.constant 0 : index
    %c0_13 = arith.constant 0 : index
    %c0_14 = arith.constant 0 : index
    %8 = vector.load %arg8[%c0_12, %c0_13, %c0_14] : memref<2x8x32xf32, #tpu.memory_space<vmem>>, vector<2x8x32xf32>
    %c0_15 = arith.constant 0 : index
    %c0_16 = arith.constant 0 : index
    %c0_17 = arith.constant 0 : index
    %c0_18 = arith.constant 0 : index
    %9 = vector.load %arg1[%c0_15, %c0_16, %c0_17, %c0_18] : memref<3x2x8x96xf32, #tpu.memory_space<vmem>>, vector<1x2x8x96xf32>
    %10 = vector.shape_cast %9 : vector<1x2x8x96xf32> to vector<2x8x96xf32>
    "tpu.trace_start"() <{level = 10 : i32, message = "dbh,dhk->dbk"}> : () -> ()
    %cst = arith.constant dense<0.000000e+00> : vector<2x8x96xf32>
    %11 = tpu.matmul %8, %3, %cst {dimension_numbers = #tpu.dot_dimension_numbers<[2], [1], [1], [2], [0, 0, 0, 1, 1, 2], [0], [0]>} : vector<2x8x32xf32>, vector<2x32x96xf32>, vector<2x8x96xf32> -> vector<2x8x96xf32>
    "tpu.trace_stop"() : () -> ()
    %12 = vector.broadcast %4 : vector<2x1x96xf32> to vector<2x8x96xf32>
    %13 = arith.addf %11, %12 : vector<2x8x96xf32>
    %14 = vector.extract_strided_slice %10 {offsets = [0, 0, 0], sizes = [2, 8, 32], strides = [1, 1, 1]} : vector<2x8x96xf32> to vector<2x8x32xf32>
    %15 = vector.extract_strided_slice %13 {offsets = [0, 0, 0], sizes = [2, 8, 32], strides = [1, 1, 1]} : vector<2x8x96xf32> to vector<2x8x32xf32>
    %16 = arith.addf %14, %15 : vector<2x8x32xf32>
    %17 = arith.negf %16 : vector<2x8x32xf32>
    %18 = math.exp %17 : vector<2x8x32xf32>
    %cst_19 = arith.constant 1.000000e+00 : f32
    %19 = vector.broadcast %cst_19 : f32 to vector<2x8x32xf32>
    %20 = arith.addf %19, %18 : vector<2x8x32xf32>
    %21 = arith.divf %19, %20 : vector<2x8x32xf32>
    %22 = vector.extract_strided_slice %10 {offsets = [0, 0, 32], sizes = [2, 8, 32], strides = [1, 1, 1]} : vector<2x8x96xf32> to vector<2x8x32xf32>
    %23 = vector.extract_strided_slice %13 {offsets = [0, 0, 32], sizes = [2, 8, 32], strides = [1, 1, 1]} : vector<2x8x96xf32> to vector<2x8x32xf32>
    %24 = arith.addf %22, %23 : vector<2x8x32xf32>
    %25 = arith.negf %24 : vector<2x8x32xf32>
    %26 = math.exp %25 : vector<2x8x32xf32>
    %cst_20 = arith.constant 1.000000e+00 : f32
    %27 = vector.broadcast %cst_20 : f32 to vector<2x8x32xf32>
    %28 = arith.addf %27, %26 : vector<2x8x32xf32>
    %29 = arith.divf %27, %28 : vector<2x8x32xf32>
    %30 = vector.extract_strided_slice %10 {offsets = [0, 0, 64], sizes = [2, 8, 32], strides = [1, 1, 1]} : vector<2x8x96xf32> to vector<2x8x32xf32>
    %31 = vector.extract_strided_slice %13 {offsets = [0, 0, 64], sizes = [2, 8, 32], strides = [1, 1, 1]} : vector<2x8x96xf32> to vector<2x8x32xf32>
    %32 = arith.mulf %21, %31 : vector<2x8x32xf32>
    %33 = arith.addf %30, %32 : vector<2x8x32xf32>
    %34 = math.tanh %33 : vector<2x8x32xf32>
    %cst_21 = arith.constant 1.000000e+00 : f32
    %35 = vector.broadcast %cst_21 : f32 to vector<2x8x32xf32>
    %36 = arith.subf %35, %29 : vector<2x8x32xf32>
    %37 = arith.mulf %36, %34 : vector<2x8x32xf32>
    %38 = arith.mulf %29, %8 : vector<2x8x32xf32>
    %39 = arith.addf %37, %38 : vector<2x8x32xf32>
    %c0_i32_22 = arith.constant 0 : i32
    %40 = arith.addi %7, %c0_i32_22 : i32
    %41 = arith.sitofp %40 : i32 to f32
    %42 = vector.broadcast %41 : f32 to vector<2x8x1xf32>
    %43 = arith.cmpf oge, %42, %5 : vector<2x8x1xf32>
    %44 = vector.broadcast %41 : f32 to vector<2x8x1xf32>
    %45 = arith.cmpf olt, %44, %6 : vector<2x8x1xf32>
    %46 = arith.andi %43, %45 : vector<2x8x1xi1>
    %47 = arith.extui %46 : vector<2x8x1xi1> to vector<2x8x1xi32>
    %48 = arith.sitofp %47 : vector<2x8x1xi32> to vector<2x8x1xf32>
    %49 = vector.broadcast %48 : vector<2x8x1xf32> to vector<2x8x32xf32>
    %50 = arith.mulf %49, %39 : vector<2x8x32xf32>
    %cst_23 = arith.constant 1.000000e+00 : f32
    %51 = vector.broadcast %cst_23 : f32 to vector<2x8x1xf32>
    %52 = arith.subf %51, %48 : vector<2x8x1xf32>
    %53 = vector.broadcast %52 : vector<2x8x1xf32> to vector<2x8x32xf32>
    %54 = arith.mulf %53, %8 : vector<2x8x32xf32>
    %55 = arith.addf %50, %54 : vector<2x8x32xf32>
    %c0_24 = arith.constant 0 : index
    %c0_25 = arith.constant 0 : index
    %c0_26 = arith.constant 0 : index
    %c0_27 = arith.constant 0 : index
    %56 = vector.load %arg7[%c0_24, %c0_25, %c0_26, %c0_27] : memref<3x2x8x32xf32, #tpu.memory_space<vmem>>, vector<1x2x8x32xf32>
    %57 = vector.shape_cast %56 : vector<1x2x8x32xf32> to vector<2x8x32xf32>
    %58 = vector.shape_cast %55 : vector<2x8x32xf32> to vector<1x2x8x32xf32>
    tpu.vector_store %arg7[%c0_24, %c0_25, %c0_26, %c0_27], %58 {strides = array<i32>} : memref<3x2x8x32xf32, #tpu.memory_space<vmem>>, vector<1x2x8x32xf32>,
    %c1 = arith.constant 1 : index
    %c0_28 = arith.constant 0 : index
    %c0_29 = arith.constant 0 : index
    %c0_30 = arith.constant 0 : index
    %59 = vector.load %arg1[%c1, %c0_28, %c0_29, %c0_30] : memref<3x2x8x96xf32, #tpu.memory_space<vmem>>, vector<1x2x8x96xf32>
    %60 = vector.shape_cast %59 : vector<1x2x8x96xf32> to vector<2x8x96xf32>
    "tpu.trace_start"() <{level = 10 : i32, message = "dbh,dhk->dbk"}> : () -> ()
    %cst_31 = arith.constant dense<0.000000e+00> : vector<2x8x96xf32>
    %61 = tpu.matmul %55, %3, %cst_31 {dimension_numbers = #tpu.dot_dimension_numbers<[2], [1], [1], [2], [0, 0, 0, 1, 1, 2], [0], [0]>} : vector<2x8x32xf32>, vector<2x32x96xf32>, vector<2x8x96xf32> -> vector<2x8x96xf32>
    "tpu.trace_stop"() : () -> ()
    %62 = vector.broadcast %4 : vector<2x1x96xf32> to vector<2x8x96xf32>
    %63 = arith.addf %61, %62 : vector<2x8x96xf32>
    %64 = vector.extract_strided_slice %60 {offsets = [0, 0, 0], sizes = [2, 8, 32], strides = [1, 1, 1]} : vector<2x8x96xf32> to vector<2x8x32xf32>
    %65 = vector.extract_strided_slice %63 {offsets = [0, 0, 0], sizes = [2, 8, 32], strides = [1, 1, 1]} : vector<2x8x96xf32> to vector<2x8x32xf32>
    %66 = arith.addf %64, %65 : vector<2x8x32xf32>
    %67 = arith.negf %66 : vector<2x8x32xf32>
    %68 = math.exp %67 : vector<2x8x32xf32>
    %cst_32 = arith.constant 1.000000e+00 : f32
    %69 = vector.broadcast %cst_32 : f32 to vector<2x8x32xf32>
    %70 = arith.addf %69, %68 : vector<2x8x32xf32>
    %71 = arith.divf %69, %70 : vector<2x8x32xf32>
    %72 = vector.extract_strided_slice %60 {offsets = [0, 0, 32], sizes = [2, 8, 32], strides = [1, 1, 1]} : vector<2x8x96xf32> to vector<2x8x32xf32>
    %73 = vector.extract_strided_slice %63 {offsets = [0, 0, 32], sizes = [2, 8, 32], strides = [1, 1, 1]} : vector<2x8x96xf32> to vector<2x8x32xf32>
    %74 = arith.addf %72, %73 : vector<2x8x32xf32>
    %75 = arith.negf %74 : vector<2x8x32xf32>
    %76 = math.exp %75 : vector<2x8x32xf32>
    %cst_33 = arith.constant 1.000000e+00 : f32
    %77 = vector.broadcast %cst_33 : f32 to vector<2x8x32xf32>
    %78 = arith.addf %77, %76 : vector<2x8x32xf32>
    %79 = arith.divf %77, %78 : vector<2x8x32xf32>
    %80 = vector.extract_strided_slice %60 {offsets = [0, 0, 64], sizes = [2, 8, 32], strides = [1, 1, 1]} : vector<2x8x96xf32> to vector<2x8x32xf32>
    %81 = vector.extract_strided_slice %63 {offsets = [0, 0, 64], sizes = [2, 8, 32], strides = [1, 1, 1]} : vector<2x8x96xf32> to vector<2x8x32xf32>
    %82 = arith.mulf %71, %81 : vector<2x8x32xf32>
    %83 = arith.addf %80, %82 : vector<2x8x32xf32>
    %84 = math.tanh %83 : vector<2x8x32xf32>
    %cst_34 = arith.constant 1.000000e+00 : f32
    %85 = vector.broadcast %cst_34 : f32 to vector<2x8x32xf32>
    %86 = arith.subf %85, %79 : vector<2x8x32xf32>
    %87 = arith.mulf %86, %84 : vector<2x8x32xf32>
    %88 = arith.mulf %79, %55 : vector<2x8x32xf32>
    %89 = arith.addf %87, %88 : vector<2x8x32xf32>
    %c1_i32 = arith.constant 1 : i32
    %90 = arith.addi %7, %c1_i32 : i32
    %91 = arith.sitofp %90 : i32 to f32
    %92 = vector.broadcast %91 : f32 to vector<2x8x1xf32>
    %93 = arith.cmpf oge, %92, %5 : vector<2x8x1xf32>
    %94 = vector.broadcast %91 : f32 to vector<2x8x1xf32>
    %95 = arith.cmpf olt, %94, %6 : vector<2x8x1xf32>
    %96 = arith.andi %93, %95 : vector<2x8x1xi1>
    %97 = arith.extui %96 : vector<2x8x1xi1> to vector<2x8x1xi32>
    %98 = arith.sitofp %97 : vector<2x8x1xi32> to vector<2x8x1xf32>
    %99 = vector.broadcast %98 : vector<2x8x1xf32> to vector<2x8x32xf32>
    %100 = arith.mulf %99, %89 : vector<2x8x32xf32>
    %cst_35 = arith.constant 1.000000e+00 : f32
    %101 = vector.broadcast %cst_35 : f32 to vector<2x8x1xf32>
    %102 = arith.subf %101, %98 : vector<2x8x1xf32>
    %103 = vector.broadcast %102 : vector<2x8x1xf32> to vector<2x8x32xf32>
    %104 = arith.mulf %103, %55 : vector<2x8x32xf32>
    %105 = arith.addf %100, %104 : vector<2x8x32xf32>
    %c1_36 = arith.constant 1 : index
    %c0_37 = arith.constant 0 : index
    %c0_38 = arith.constant 0 : index
    %c0_39 = arith.constant 0 : index
    %106 = vector.load %arg7[%c1_36, %c0_37, %c0_38, %c0_39] : memref<3x2x8x32xf32, #tpu.memory_space<vmem>>, vector<1x2x8x32xf32>
    %107 = vector.shape_cast %106 : vector<1x2x8x32xf32> to vector<2x8x32xf32>
    %108 = vector.shape_cast %105 : vector<2x8x32xf32> to vector<1x2x8x32xf32>
    tpu.vector_store %arg7[%c1_36, %c0_37, %c0_38, %c0_39], %108 {strides = array<i32>} : memref<3x2x8x32xf32, #tpu.memory_space<vmem>>, vector<1x2x8x32xf32>,
    %c2 = arith.constant 2 : index
    %c0_40 = arith.constant 0 : index
    %c0_41 = arith.constant 0 : index
    %c0_42 = arith.constant 0 : index
    %109 = vector.load %arg1[%c2, %c0_40, %c0_41, %c0_42] : memref<3x2x8x96xf32, #tpu.memory_space<vmem>>, vector<1x2x8x96xf32>
    %110 = vector.shape_cast %109 : vector<1x2x8x96xf32> to vector<2x8x96xf32>
    "tpu.trace_start"() <{level = 10 : i32, message = "dbh,dhk->dbk"}> : () -> ()
    %cst_43 = arith.constant dense<0.000000e+00> : vector<2x8x96xf32>
    %111 = tpu.matmul %105, %3, %cst_43 {dimension_numbers = #tpu.dot_dimension_numbers<[2], [1], [1], [2], [0, 0, 0, 1, 1, 2], [0], [0]>} : vector<2x8x32xf32>, vector<2x32x96xf32>, vector<2x8x96xf32> -> vector<2x8x96xf32>
    "tpu.trace_stop"() : () -> ()
    %112 = vector.broadcast %4 : vector<2x1x96xf32> to vector<2x8x96xf32>
    %113 = arith.addf %111, %112 : vector<2x8x96xf32>
    %114 = vector.extract_strided_slice %110 {offsets = [0, 0, 0], sizes = [2, 8, 32], strides = [1, 1, 1]} : vector<2x8x96xf32> to vector<2x8x32xf32>
    %115 = vector.extract_strided_slice %113 {offsets = [0, 0, 0], sizes = [2, 8, 32], strides = [1, 1, 1]} : vector<2x8x96xf32> to vector<2x8x32xf32>
    %116 = arith.addf %114, %115 : vector<2x8x32xf32>
    %117 = arith.negf %116 : vector<2x8x32xf32>
    %118 = math.exp %117 : vector<2x8x32xf32>
    %cst_44 = arith.constant 1.000000e+00 : f32
    %119 = vector.broadcast %cst_44 : f32 to vector<2x8x32xf32>
    %120 = arith.addf %119, %118 : vector<2x8x32xf32>
    %121 = arith.divf %119, %120 : vector<2x8x32xf32>
    %122 = vector.extract_strided_slice %110 {offsets = [0, 0, 32], sizes = [2, 8, 32], strides = [1, 1, 1]} : vector<2x8x96xf32> to vector<2x8x32xf32>
    %123 = vector.extract_strided_slice %113 {offsets = [0, 0, 32], sizes = [2, 8, 32], strides = [1, 1, 1]} : vector<2x8x96xf32> to vector<2x8x32xf32>
    %124 = arith.addf %122, %123 : vector<2x8x32xf32>
    %125 = arith.negf %124 : vector<2x8x32xf32>
    %126 = math.exp %125 : vector<2x8x32xf32>
    %cst_45 = arith.constant 1.000000e+00 : f32
    %127 = vector.broadcast %cst_45 : f32 to vector<2x8x32xf32>
    %128 = arith.addf %127, %126 : vector<2x8x32xf32>
    %129 = arith.divf %127, %128 : vector<2x8x32xf32>
    %130 = vector.extract_strided_slice %110 {offsets = [0, 0, 64], sizes = [2, 8, 32], strides = [1, 1, 1]} : vector<2x8x96xf32> to vector<2x8x32xf32>
    %131 = vector.extract_strided_slice %113 {offsets = [0, 0, 64], sizes = [2, 8, 32], strides = [1, 1, 1]} : vector<2x8x96xf32> to vector<2x8x32xf32>
    %132 = arith.mulf %121, %131 : vector<2x8x32xf32>
    %133 = arith.addf %130, %132 : vector<2x8x32xf32>
    %134 = math.tanh %133 : vector<2x8x32xf32>
    %cst_46 = arith.constant 1.000000e+00 : f32
    %135 = vector.broadcast %cst_46 : f32 to vector<2x8x32xf32>
    %136 = arith.subf %135, %129 : vector<2x8x32xf32>
    %137 = arith.mulf %136, %134 : vector<2x8x32xf32>
    %138 = arith.mulf %129, %105 : vector<2x8x32xf32>
    %139 = arith.addf %137, %138 : vector<2x8x32xf32>
    %c2_i32 = arith.constant 2 : i32
    %140 = arith.addi %7, %c2_i32 : i32
    %141 = arith.sitofp %140 : i32 to f32
    %142 = vector.broadcast %141 : f32 to vector<2x8x1xf32>
    %143 = arith.cmpf oge, %142, %5 : vector<2x8x1xf32>
    %144 = vector.broadcast %141 : f32 to vector<2x8x1xf32>
    %145 = arith.cmpf olt, %144, %6 : vector<2x8x1xf32>
    %146 = arith.andi %143, %145 : vector<2x8x1xi1>
    %147 = arith.extui %146 : vector<2x8x1xi1> to vector<2x8x1xi32>
    %148 = arith.sitofp %147 : vector<2x8x1xi32> to vector<2x8x1xf32>
    %149 = vector.broadcast %148 : vector<2x8x1xf32> to vector<2x8x32xf32>
    %150 = arith.mulf %149, %139 : vector<2x8x32xf32>
    %cst_47 = arith.constant 1.000000e+00 : f32
    %151 = vector.broadcast %cst_47 : f32 to vector<2x8x1xf32>
    %152 = arith.subf %151, %148 : vector<2x8x1xf32>
    %153 = vector.broadcast %152 : vector<2x8x1xf32> to vector<2x8x32xf32>
    %154 = arith.mulf %153, %105 : vector<2x8x32xf32>
    %155 = arith.addf %150, %154 : vector<2x8x32xf32>
    %c2_48 = arith.constant 2 : index
    %c0_49 = arith.constant 0 : index
    %c0_50 = arith.constant 0 : index
    %c0_51 = arith.constant 0 : index
    %156 = vector.load %arg7[%c2_48, %c0_49, %c0_50, %c0_51] : memref<3x2x8x32xf32, #tpu.memory_space<vmem>>, vector<1x2x8x32xf32>
    %157 = vector.shape_cast %156 : vector<1x2x8x32xf32> to vector<2x8x32xf32>
    %158 = vector.shape_cast %155 : vector<2x8x32xf32> to vector<1x2x8x32xf32>
    tpu.vector_store %arg7[%c2_48, %c0_49, %c0_50, %c0_51], %158 {strides = array<i32>} : memref<3x2x8x32xf32, #tpu.memory_space<vmem>>, vector<1x2x8x32xf32>,
    %c0_52 = arith.constant 0 : index
    %c0_53 = arith.constant 0 : index
    %c0_54 = arith.constant 0 : index
    %159 = vector.load %arg8[%c0_52, %c0_53, %c0_54] : memref<2x8x32xf32, #tpu.memory_space<vmem>>, vector<2x8x32xf32>
    tpu.vector_store %arg8[%c0_52, %c0_53, %c0_54], %155 {strides = array<i32>} : memref<2x8x32xf32, #tpu.memory_space<vmem>>, vector<2x8x32xf32>,
    return
  }
  func.func @transform_0(%arg0: i32) -> (i32, i32, i32, i32) {
    %c0_i32 = arith.constant 0 : i32
    %c0_i32_0 = arith.constant 0 : i32
    %c0_i32_1 = arith.constant 0 : i32
    %c0_i32_2 = arith.constant 0 : i32
    return %arg0, %c0_i32, %c0_i32_0, %c0_i32_1 : i32, i32, i32, i32
  }
  func.func @transform_1(%arg0: i32) -> (i32, i32, i32) {
    %c0_i32 = arith.constant 0 : i32
    %c0_i32_0 = arith.constant 0 : i32
    %c0_i32_1 = arith.constant 0 : i32
    %c0_i32_2 = arith.constant 0 : i32
    return %c0_i32, %c0_i32_0, %c0_i32_1 : i32, i32, i32
  }
  func.func @transform_2(%arg0: i32) -> (i32, i32, i32) {
    %c0_i32 = arith.constant 0 : i32
    %c0_i32_0 = arith.constant 0 : i32
    %c0_i32_1 = arith.constant 0 : i32
    %c0_i32_2 = arith.constant 0 : i32
    return %c0_i32, %c0_i32_0, %c0_i32_1 : i32, i32, i32
  }
  func.func @transform_3(%arg0: i32) -> (i32, i32, i32) {
    %c0_i32 = arith.constant 0 : i32
    %c0_i32_0 = arith.constant 0 : i32
    %c0_i32_1 = arith.constant 0 : i32
    %c0_i32_2 = arith.constant 0 : i32
    return %c0_i32, %c0_i32_0, %c0_i32_1 : i32, i32, i32
  }
  func.func @transform_4(%arg0: i32) -> (i32, i32, i32) {
    %c0_i32 = arith.constant 0 : i32
    %c0_i32_0 = arith.constant 0 : i32
    %c0_i32_1 = arith.constant 0 : i32
    %c0_i32_2 = arith.constant 0 : i32
    return %c0_i32, %c0_i32_0, %c0_i32_1 : i32, i32, i32
  }
  func.func @transform_5(%arg0: i32) -> (i32, i32, i32) {
    %c0_i32 = arith.constant 0 : i32
    %c0_i32_0 = arith.constant 0 : i32
    %c0_i32_1 = arith.constant 0 : i32
    %c0_i32_2 = arith.constant 0 : i32
    return %c0_i32, %c0_i32_0, %c0_i32_1 : i32, i32, i32
  }
  func.func @transform_6(%arg0: i32) -> (i32, i32, i32, i32) {
    %c0_i32 = arith.constant 0 : i32
    %c0_i32_0 = arith.constant 0 : i32
    %c0_i32_1 = arith.constant 0 : i32
    %c0_i32_2 = arith.constant 0 : i32
    return %arg0, %c0_i32, %c0_i32_0, %c0_i32_1 : i32, i32, i32, i32
  }
  func.func @transform_7(%arg0: i32) -> (i32, i32, i32) {
    %c0_i32 = arith.constant 0 : i32
    %c0_i32_0 = arith.constant 0 : i32
    %c0_i32_1 = arith.constant 0 : i32
    %c0_i32_2 = arith.constant 0 : i32
    return %c0_i32, %c0_i32_0, %c0_i32_1 : i32, i32, i32
  }
}

module attributes {stable_mosaic.version = 11 : i64} {
  func.func @_decoder_seq_kernel(%arg0: i32, %arg1: memref<1x8x96xf32, #tpu.memory_space<vmem>>, %arg2: memref<2x8x32xf32, #tpu.memory_space<vmem>>, %arg3: memref<3x8x32xf32, #tpu.memory_space<vmem>>, %arg4: memref<3x8x32xf32, #tpu.memory_space<vmem>>, %arg5: memref<32x32xf32, #tpu.memory_space<vmem>>, %arg6: memref<1x32xf32, #tpu.memory_space<vmem>>, %arg7: memref<32x96xf32, #tpu.memory_space<vmem>>, %arg8: memref<32x96xf32, #tpu.memory_space<vmem>>, %arg9: memref<1x96xf32, #tpu.memory_space<vmem>>, %arg10: memref<32x96xf32, #tpu.memory_space<vmem>>, %arg11: memref<1x96xf32, #tpu.memory_space<vmem>>, %arg12: memref<32x96xf32, #tpu.memory_space<vmem>>, %arg13: memref<1x96xf32, #tpu.memory_space<vmem>>, %arg14: memref<32x128xf32, #tpu.memory_space<vmem>>, %arg15: memref<1x128xf32, #tpu.memory_space<vmem>>, %arg16: memref<1x8x128xf32, #tpu.memory_space<vmem>>, %arg17: memref<2x8x32xf32, #tpu.memory_space<vmem>>) attributes {dimension_semantics = [#tpu.dimension_semantics<arbitrary>], iteration_bounds = array<i64: 5>, scalar_prefetch = 0 : i64, scratch_operands = 1 : i64, tpu.core_type = #tpu.core_type<tc>, window_params = [{transform_indices = @transform_0, window_bounds = array<i64: 1, 8, 96>}, {pipeline_mode = #tpu.pipeline_mode<synchronous>, transform_indices = @transform_1, window_bounds = array<i64: 2, 8, 32>}, {pipeline_mode = #tpu.pipeline_mode<synchronous>, transform_indices = @transform_2, window_bounds = array<i64: 3, 8, 32>}, {pipeline_mode = #tpu.pipeline_mode<synchronous>, transform_indices = @transform_3, window_bounds = array<i64: 3, 8, 32>}, {pipeline_mode = #tpu.pipeline_mode<synchronous>, transform_indices = @transform_4, window_bounds = array<i64: 32, 32>}, {pipeline_mode = #tpu.pipeline_mode<synchronous>, transform_indices = @transform_5, window_bounds = array<i64: 1, 32>}, {pipeline_mode = #tpu.pipeline_mode<synchronous>, transform_indices = @transform_6, window_bounds = array<i64: 32, 96>}, {pipeline_mode = #tpu.pipeline_mode<synchronous>, transform_indices = @transform_7, window_bounds = array<i64: 32, 96>}, {pipeline_mode = #tpu.pipeline_mode<synchronous>, transform_indices = @transform_8, window_bounds = array<i64: 1, 96>}, {pipeline_mode = #tpu.pipeline_mode<synchronous>, transform_indices = @transform_9, window_bounds = array<i64: 32, 96>}, {pipeline_mode = #tpu.pipeline_mode<synchronous>, transform_indices = @transform_10, window_bounds = array<i64: 1, 96>}, {pipeline_mode = #tpu.pipeline_mode<synchronous>, transform_indices = @transform_11, window_bounds = array<i64: 32, 96>}, {pipeline_mode = #tpu.pipeline_mode<synchronous>, transform_indices = @transform_12, window_bounds = array<i64: 1, 96>}, {pipeline_mode = #tpu.pipeline_mode<synchronous>, transform_indices = @transform_13, window_bounds = array<i64: 32, 128>}, {pipeline_mode = #tpu.pipeline_mode<synchronous>, transform_indices = @transform_14, window_bounds = array<i64: 1, 128>}, {transform_indices = @transform_15, window_bounds = array<i64: 1, 8, 128>}]} {
    %c0_i32 = arith.constant 0 : i32
    %0 = arith.cmpi eq, %arg0, %c0_i32 : i32
    %1 = arith.extui %0 : i1 to i32
    %c0_i32_0 = arith.constant 0 : i32
    %2 = arith.cmpi ne, %1, %c0_i32_0 : i32
    scf.if %2 {
      %c0_62 = arith.constant 0 : index
      %c0_63 = arith.constant 0 : index
      %c0_64 = arith.constant 0 : index
      %131 = vector.load %arg2[%c0_62, %c0_63, %c0_64] : memref<2x8x32xf32, #tpu.memory_space<vmem>>, vector<2x8x32xf32>
      %c0_65 = arith.constant 0 : index
      %c0_66 = arith.constant 0 : index
      %c0_67 = arith.constant 0 : index
      %132 = vector.load %arg17[%c0_65, %c0_66, %c0_67] : memref<2x8x32xf32, #tpu.memory_space<vmem>>, vector<2x8x32xf32>
      tpu.vector_store %arg17[%c0_65, %c0_66, %c0_67], %131 {strides = array<i32>} : memref<2x8x32xf32, #tpu.memory_space<vmem>>, vector<2x8x32xf32>,
    } else {
    }
    %c0 = arith.constant 0 : index
    %c0_1 = arith.constant 0 : index
    %c0_2 = arith.constant 0 : index
    %3 = vector.load %arg17[%c0, %c0_1, %c0_2] : memref<2x8x32xf32, #tpu.memory_space<vmem>>, vector<1x8x32xf32>
    %4 = vector.shape_cast %3 : vector<1x8x32xf32> to vector<8x32xf32>
    %c1 = arith.constant 1 : index
    %c0_3 = arith.constant 0 : index
    %c0_4 = arith.constant 0 : index
    %5 = vector.load %arg17[%c1, %c0_3, %c0_4] : memref<2x8x32xf32, #tpu.memory_space<vmem>>, vector<1x8x32xf32>
    %6 = vector.shape_cast %5 : vector<1x8x32xf32> to vector<8x32xf32>
    %7 = arith.addf %4, %6 : vector<8x32xf32>
    %c0_5 = arith.constant 0 : index
    %c0_6 = arith.constant 0 : index
    %8 = vector.load %arg5[%c0_5, %c0_6] : memref<32x32xf32, #tpu.memory_space<vmem>>, vector<32x32xf32>
    %cst = arith.constant dense<0.000000e+00> : vector<8x32xf32>
    %9 = tpu.matmul %7, %8, %cst {dimension_numbers = #tpu.dot_dimension_numbers<[1], [0], [0], [1], [0, 0, 1, 1], [], []>} : vector<8x32xf32>, vector<32x32xf32>, vector<8x32xf32> -> vector<8x32xf32>
    %10 = vector.shape_cast %9 : vector<8x32xf32> to vector<1x8x32xf32>
    %c0_7 = arith.constant 0 : index
    %c0_8 = arith.constant 0 : index
    %c0_9 = arith.constant 0 : index
    %11 = vector.load %arg3[%c0_7, %c0_8, %c0_9] : memref<3x8x32xf32, #tpu.memory_space<vmem>>, vector<3x8x32xf32>
    %12 = vector.broadcast %10 : vector<1x8x32xf32> to vector<3x8x32xf32>
    %13 = arith.addf %12, %11 : vector<3x8x32xf32>
    %14 = math.tanh %13 : vector<3x8x32xf32>
    %c0_10 = arith.constant 0 : index
    %c0_11 = arith.constant 0 : index
    %15 = vector.load %arg6[%c0_10, %c0_11] : memref<1x32xf32, #tpu.memory_space<vmem>>, vector<1x32xf32>
    %16 = vector.shape_cast %15 : vector<1x32xf32> to vector<1x1x32xf32>
    %17 = vector.broadcast %16 : vector<1x1x32xf32> to vector<3x8x32xf32>
    %18 = arith.mulf %14, %17 : vector<3x8x32xf32>
    %cst_12 = arith.constant dense<0.000000e+00> : vector<3x8xf32>
    %19 = vector.multi_reduction <add>, %18, %cst_12 [2] : vector<3x8x32xf32> to vector<3x8xf32>
    %20 = vector.shape_cast %19 : vector<3x8xf32> to vector<3x8x1xf32>
    %cst_13 = arith.constant dense<0xFF800000> : vector<8x1xf32>
    %21 = vector.multi_reduction <maximumf>, %20, %cst_13 [0] : vector<3x8x1xf32> to vector<8x1xf32>
    %22 = vector.shape_cast %21 : vector<8x1xf32> to vector<1x8x1xf32>
    %23 = vector.broadcast %22 : vector<1x8x1xf32> to vector<3x8x1xf32>
    %24 = arith.subf %20, %23 : vector<3x8x1xf32>
    %25 = math.exp %24 : vector<3x8x1xf32>
    %cst_14 = arith.constant dense<0.000000e+00> : vector<8x1xf32>
    %26 = vector.multi_reduction <add>, %25, %cst_14 [0] : vector<3x8x1xf32> to vector<8x1xf32>
    %27 = vector.shape_cast %26 : vector<8x1xf32> to vector<1x8x1xf32>
    %28 = tpu.reciprocal %27 {approx = true} : vector<1x8x1xf32> -> vector<1x8x1xf32>
    %29 = vector.broadcast %28 : vector<1x8x1xf32> to vector<3x8x1xf32>
    %30 = arith.mulf %25, %29 : vector<3x8x1xf32>
    %c0_15 = arith.constant 0 : index
    %c0_16 = arith.constant 0 : index
    %c0_17 = arith.constant 0 : index
    %31 = vector.load %arg4[%c0_15, %c0_16, %c0_17] : memref<3x8x32xf32, #tpu.memory_space<vmem>>, vector<3x8x32xf32>
    %32 = vector.broadcast %30 : vector<3x8x1xf32> to vector<3x8x32xf32>
    %33 = arith.mulf %32, %31 : vector<3x8x32xf32>
    %cst_18 = arith.constant dense<0.000000e+00> : vector<8x32xf32>
    %34 = vector.multi_reduction <add>, %33, %cst_18 [0] : vector<3x8x32xf32> to vector<8x32xf32>
    %c0_19 = arith.constant 0 : index
    %c0_20 = arith.constant 0 : index
    %c0_21 = arith.constant 0 : index
    %35 = vector.load %arg1[%c0_19, %c0_20, %c0_21] : memref<1x8x96xf32, #tpu.memory_space<vmem>>, vector<1x8x96xf32>
    %36 = vector.shape_cast %35 : vector<1x8x96xf32> to vector<8x96xf32>
    %c0_22 = arith.constant 0 : index
    %c0_23 = arith.constant 0 : index
    %37 = vector.load %arg7[%c0_22, %c0_23] : memref<32x96xf32, #tpu.memory_space<vmem>>, vector<32x96xf32>
    %cst_24 = arith.constant dense<0.000000e+00> : vector<8x96xf32>
    %38 = tpu.matmul %34, %37, %cst_24 {dimension_numbers = #tpu.dot_dimension_numbers<[1], [0], [0], [1], [0, 0, 1, 1], [], []>} : vector<8x32xf32>, vector<32x96xf32>, vector<8x96xf32> -> vector<8x96xf32>
    %39 = arith.addf %36, %38 : vector<8x96xf32>
    %c0_25 = arith.constant 0 : index
    %c0_26 = arith.constant 0 : index
    %40 = vector.load %arg8[%c0_25, %c0_26] : memref<32x96xf32, #tpu.memory_space<vmem>>, vector<32x96xf32>
    %c0_27 = arith.constant 0 : index
    %c0_28 = arith.constant 0 : index
    %41 = vector.load %arg9[%c0_27, %c0_28] : memref<1x96xf32, #tpu.memory_space<vmem>>, vector<1x96xf32>
    %cst_29 = arith.constant dense<0.000000e+00> : vector<8x96xf32>
    %42 = tpu.matmul %4, %40, %cst_29 {dimension_numbers = #tpu.dot_dimension_numbers<[1], [0], [0], [1], [0, 0, 1, 1], [], []>} : vector<8x32xf32>, vector<32x96xf32>, vector<8x96xf32> -> vector<8x96xf32>
    %43 = vector.broadcast %41 : vector<1x96xf32> to vector<8x96xf32>
    %44 = arith.addf %42, %43 : vector<8x96xf32>
    %45 = vector.extract_strided_slice %39 {offsets = [0, 0], sizes = [8, 32], strides = [1, 1]} : vector<8x96xf32> to vector<8x32xf32>
    %46 = vector.extract_strided_slice %44 {offsets = [0, 0], sizes = [8, 32], strides = [1, 1]} : vector<8x96xf32> to vector<8x32xf32>
    %47 = arith.addf %45, %46 : vector<8x32xf32>
    %48 = arith.negf %47 : vector<8x32xf32>
    %49 = math.exp %48 : vector<8x32xf32>
    %cst_30 = arith.constant 1.000000e+00 : f32
    %50 = vector.broadcast %cst_30 : f32 to vector<8x32xf32>
    %51 = arith.addf %50, %49 : vector<8x32xf32>
    %52 = arith.divf %50, %51 : vector<8x32xf32>
    %53 = vector.extract_strided_slice %39 {offsets = [0, 32], sizes = [8, 32], strides = [1, 1]} : vector<8x96xf32> to vector<8x32xf32>
    %54 = vector.extract_strided_slice %44 {offsets = [0, 32], sizes = [8, 32], strides = [1, 1]} : vector<8x96xf32> to vector<8x32xf32>
    %55 = arith.addf %53, %54 : vector<8x32xf32>
    %56 = arith.negf %55 : vector<8x32xf32>
    %57 = math.exp %56 : vector<8x32xf32>
    %cst_31 = arith.constant 1.000000e+00 : f32
    %58 = vector.broadcast %cst_31 : f32 to vector<8x32xf32>
    %59 = arith.addf %58, %57 : vector<8x32xf32>
    %60 = arith.divf %58, %59 : vector<8x32xf32>
    %61 = vector.extract_strided_slice %39 {offsets = [0, 64], sizes = [8, 32], strides = [1, 1]} : vector<8x96xf32> to vector<8x32xf32>
    %62 = vector.extract_strided_slice %44 {offsets = [0, 64], sizes = [8, 32], strides = [1, 1]} : vector<8x96xf32> to vector<8x32xf32>
    %63 = arith.mulf %52, %62 : vector<8x32xf32>
    %64 = arith.addf %61, %63 : vector<8x32xf32>
    %65 = math.tanh %64 : vector<8x32xf32>
    %cst_32 = arith.constant 1.000000e+00 : f32
    %66 = vector.broadcast %cst_32 : f32 to vector<8x32xf32>
    %67 = arith.subf %66, %60 : vector<8x32xf32>
    %68 = arith.mulf %67, %65 : vector<8x32xf32>
    %69 = arith.mulf %60, %4 : vector<8x32xf32>
    %70 = arith.addf %68, %69 : vector<8x32xf32>
    %c0_33 = arith.constant 0 : index
    %c0_34 = arith.constant 0 : index
    %71 = vector.load %arg10[%c0_33, %c0_34] : memref<32x96xf32, #tpu.memory_space<vmem>>, vector<32x96xf32>
    %cst_35 = arith.constant dense<0.000000e+00> : vector<8x96xf32>
    %72 = tpu.matmul %70, %71, %cst_35 {dimension_numbers = #tpu.dot_dimension_numbers<[1], [0], [0], [1], [0, 0, 1, 1], [], []>} : vector<8x32xf32>, vector<32x96xf32>, vector<8x96xf32> -> vector<8x96xf32>
    %c0_36 = arith.constant 0 : index
    %c0_37 = arith.constant 0 : index
    %73 = vector.load %arg11[%c0_36, %c0_37] : memref<1x96xf32, #tpu.memory_space<vmem>>, vector<1x96xf32>
    %74 = vector.broadcast %73 : vector<1x96xf32> to vector<8x96xf32>
    %75 = arith.addf %72, %74 : vector<8x96xf32>
    %c0_38 = arith.constant 0 : index
    %c0_39 = arith.constant 0 : index
    %76 = vector.load %arg12[%c0_38, %c0_39] : memref<32x96xf32, #tpu.memory_space<vmem>>, vector<32x96xf32>
    %c0_40 = arith.constant 0 : index
    %c0_41 = arith.constant 0 : index
    %77 = vector.load %arg13[%c0_40, %c0_41] : memref<1x96xf32, #tpu.memory_space<vmem>>, vector<1x96xf32>
    %cst_42 = arith.constant dense<0.000000e+00> : vector<8x96xf32>
    %78 = tpu.matmul %6, %76, %cst_42 {dimension_numbers = #tpu.dot_dimension_numbers<[1], [0], [0], [1], [0, 0, 1, 1], [], []>} : vector<8x32xf32>, vector<32x96xf32>, vector<8x96xf32> -> vector<8x96xf32>
    %79 = vector.broadcast %77 : vector<1x96xf32> to vector<8x96xf32>
    %80 = arith.addf %78, %79 : vector<8x96xf32>
    %81 = vector.extract_strided_slice %75 {offsets = [0, 0], sizes = [8, 32], strides = [1, 1]} : vector<8x96xf32> to vector<8x32xf32>
    %82 = vector.extract_strided_slice %80 {offsets = [0, 0], sizes = [8, 32], strides = [1, 1]} : vector<8x96xf32> to vector<8x32xf32>
    %83 = arith.addf %81, %82 : vector<8x32xf32>
    %84 = arith.negf %83 : vector<8x32xf32>
    %85 = math.exp %84 : vector<8x32xf32>
    %cst_43 = arith.constant 1.000000e+00 : f32
    %86 = vector.broadcast %cst_43 : f32 to vector<8x32xf32>
    %87 = arith.addf %86, %85 : vector<8x32xf32>
    %88 = arith.divf %86, %87 : vector<8x32xf32>
    %89 = vector.extract_strided_slice %75 {offsets = [0, 32], sizes = [8, 32], strides = [1, 1]} : vector<8x96xf32> to vector<8x32xf32>
    %90 = vector.extract_strided_slice %80 {offsets = [0, 32], sizes = [8, 32], strides = [1, 1]} : vector<8x96xf32> to vector<8x32xf32>
    %91 = arith.addf %89, %90 : vector<8x32xf32>
    %92 = arith.negf %91 : vector<8x32xf32>
    %93 = math.exp %92 : vector<8x32xf32>
    %cst_44 = arith.constant 1.000000e+00 : f32
    %94 = vector.broadcast %cst_44 : f32 to vector<8x32xf32>
    %95 = arith.addf %94, %93 : vector<8x32xf32>
    %96 = arith.divf %94, %95 : vector<8x32xf32>
    %97 = vector.extract_strided_slice %75 {offsets = [0, 64], sizes = [8, 32], strides = [1, 1]} : vector<8x96xf32> to vector<8x32xf32>
    %98 = vector.extract_strided_slice %80 {offsets = [0, 64], sizes = [8, 32], strides = [1, 1]} : vector<8x96xf32> to vector<8x32xf32>
    %99 = arith.mulf %88, %98 : vector<8x32xf32>
    %100 = arith.addf %97, %99 : vector<8x32xf32>
    %101 = math.tanh %100 : vector<8x32xf32>
    %cst_45 = arith.constant 1.000000e+00 : f32
    %102 = vector.broadcast %cst_45 : f32 to vector<8x32xf32>
    %103 = arith.subf %102, %96 : vector<8x32xf32>
    %104 = arith.mulf %103, %101 : vector<8x32xf32>
    %105 = arith.mulf %96, %6 : vector<8x32xf32>
    %106 = arith.addf %104, %105 : vector<8x32xf32>
    %c0_46 = arith.constant 0 : index
    %c0_47 = arith.constant 0 : index
    %107 = vector.load %arg14[%c0_46, %c0_47] : memref<32x128xf32, #tpu.memory_space<vmem>>, vector<32x128xf32>
    %cst_48 = arith.constant dense<0.000000e+00> : vector<8x128xf32>
    %108 = tpu.matmul %106, %107, %cst_48 {dimension_numbers = #tpu.dot_dimension_numbers<[1], [0], [0], [1], [0, 0, 1, 1], [], []>} : vector<8x32xf32>, vector<32x128xf32>, vector<8x128xf32> -> vector<8x128xf32>
    %c0_49 = arith.constant 0 : index
    %c0_50 = arith.constant 0 : index
    %109 = vector.load %arg15[%c0_49, %c0_50] : memref<1x128xf32, #tpu.memory_space<vmem>>, vector<1x128xf32>
    %110 = vector.broadcast %109 : vector<1x128xf32> to vector<8x128xf32>
    %111 = arith.addf %108, %110 : vector<8x128xf32>
    %cst_51 = arith.constant dense<0xFF800000> : vector<8xf32>
    %112 = vector.multi_reduction <maximumf>, %111, %cst_51 [1] : vector<8x128xf32> to vector<8xf32>
    %113 = vector.shape_cast %112 : vector<8xf32> to vector<8x1xf32>
    %114 = vector.broadcast %113 : vector<8x1xf32> to vector<8x128xf32>
    %115 = arith.subf %111, %114 : vector<8x128xf32>
    %116 = math.exp %115 : vector<8x128xf32>
    %cst_52 = arith.constant dense<0.000000e+00> : vector<8xf32>
    %117 = vector.multi_reduction <add>, %116, %cst_52 [1] : vector<8x128xf32> to vector<8xf32>
    %118 = vector.shape_cast %117 : vector<8xf32> to vector<8x1xf32>
    %119 = math.log %118 : vector<8x1xf32>
    %120 = vector.broadcast %119 : vector<8x1xf32> to vector<8x128xf32>
    %121 = arith.subf %115, %120 : vector<8x128xf32>
    %c0_53 = arith.constant 0 : index
    %c0_54 = arith.constant 0 : index
    %c0_55 = arith.constant 0 : index
    %122 = vector.load %arg16[%c0_53, %c0_54, %c0_55] : memref<1x8x128xf32, #tpu.memory_space<vmem>>, vector<1x8x128xf32>
    %123 = vector.shape_cast %122 : vector<1x8x128xf32> to vector<8x128xf32>
    %124 = vector.shape_cast %121 : vector<8x128xf32> to vector<1x8x128xf32>
    tpu.vector_store %arg16[%c0_53, %c0_54, %c0_55], %124 {strides = array<i32>} : memref<1x8x128xf32, #tpu.memory_space<vmem>>, vector<1x8x128xf32>,
    %c0_56 = arith.constant 0 : index
    %c0_57 = arith.constant 0 : index
    %c0_58 = arith.constant 0 : index
    %125 = vector.load %arg17[%c0_56, %c0_57, %c0_58] : memref<2x8x32xf32, #tpu.memory_space<vmem>>, vector<1x8x32xf32>
    %126 = vector.shape_cast %125 : vector<1x8x32xf32> to vector<8x32xf32>
    %127 = vector.shape_cast %70 : vector<8x32xf32> to vector<1x8x32xf32>
    tpu.vector_store %arg17[%c0_56, %c0_57, %c0_58], %127 {strides = array<i32>} : memref<2x8x32xf32, #tpu.memory_space<vmem>>, vector<1x8x32xf32>,
    %c1_59 = arith.constant 1 : index
    %c0_60 = arith.constant 0 : index
    %c0_61 = arith.constant 0 : index
    %128 = vector.load %arg17[%c1_59, %c0_60, %c0_61] : memref<2x8x32xf32, #tpu.memory_space<vmem>>, vector<1x8x32xf32>
    %129 = vector.shape_cast %128 : vector<1x8x32xf32> to vector<8x32xf32>
    %130 = vector.shape_cast %106 : vector<8x32xf32> to vector<1x8x32xf32>
    tpu.vector_store %arg17[%c1_59, %c0_60, %c0_61], %130 {strides = array<i32>} : memref<2x8x32xf32, #tpu.memory_space<vmem>>, vector<1x8x32xf32>,
    return
  }
  func.func @transform_0(%arg0: i32) -> (i32, i32, i32) {
    %c0_i32 = arith.constant 0 : i32
    %c0_i32_0 = arith.constant 0 : i32
    %c0_i32_1 = arith.constant 0 : i32
    return %arg0, %c0_i32, %c0_i32_0 : i32, i32, i32
  }
  func.func @transform_1(%arg0: i32) -> (i32, i32, i32) {
    %c0_i32 = arith.constant 0 : i32
    %c0_i32_0 = arith.constant 0 : i32
    %c0_i32_1 = arith.constant 0 : i32
    %c0_i32_2 = arith.constant 0 : i32
    return %c0_i32, %c0_i32_0, %c0_i32_1 : i32, i32, i32
  }
  func.func @transform_2(%arg0: i32) -> (i32, i32, i32) {
    %c0_i32 = arith.constant 0 : i32
    %c0_i32_0 = arith.constant 0 : i32
    %c0_i32_1 = arith.constant 0 : i32
    %c0_i32_2 = arith.constant 0 : i32
    return %c0_i32, %c0_i32_0, %c0_i32_1 : i32, i32, i32
  }
  func.func @transform_3(%arg0: i32) -> (i32, i32, i32) {
    %c0_i32 = arith.constant 0 : i32
    %c0_i32_0 = arith.constant 0 : i32
    %c0_i32_1 = arith.constant 0 : i32
    %c0_i32_2 = arith.constant 0 : i32
    return %c0_i32, %c0_i32_0, %c0_i32_1 : i32, i32, i32
  }
  func.func @transform_4(%arg0: i32) -> (i32, i32) {
    %c0_i32 = arith.constant 0 : i32
    %c0_i32_0 = arith.constant 0 : i32
    %c0_i32_1 = arith.constant 0 : i32
    return %c0_i32, %c0_i32_0 : i32, i32
  }
  func.func @transform_5(%arg0: i32) -> (i32, i32) {
    %c0_i32 = arith.constant 0 : i32
    %c0_i32_0 = arith.constant 0 : i32
    %c0_i32_1 = arith.constant 0 : i32
    return %c0_i32, %c0_i32_0 : i32, i32
  }
  func.func @transform_6(%arg0: i32) -> (i32, i32) {
    %c0_i32 = arith.constant 0 : i32
    %c0_i32_0 = arith.constant 0 : i32
    %c0_i32_1 = arith.constant 0 : i32
    return %c0_i32, %c0_i32_0 : i32, i32
  }
  func.func @transform_7(%arg0: i32) -> (i32, i32) {
    %c0_i32 = arith.constant 0 : i32
    %c0_i32_0 = arith.constant 0 : i32
    %c0_i32_1 = arith.constant 0 : i32
    return %c0_i32, %c0_i32_0 : i32, i32
  }
  func.func @transform_8(%arg0: i32) -> (i32, i32) {
    %c0_i32 = arith.constant 0 : i32
    %c0_i32_0 = arith.constant 0 : i32
    %c0_i32_1 = arith.constant 0 : i32
    return %c0_i32, %c0_i32_0 : i32, i32
  }
  func.func @transform_9(%arg0: i32) -> (i32, i32) {
    %c0_i32 = arith.constant 0 : i32
    %c0_i32_0 = arith.constant 0 : i32
    %c0_i32_1 = arith.constant 0 : i32
    return %c0_i32, %c0_i32_0 : i32, i32
  }
  func.func @transform_10(%arg0: i32) -> (i32, i32) {
    %c0_i32 = arith.constant 0 : i32
    %c0_i32_0 = arith.constant 0 : i32
    %c0_i32_1 = arith.constant 0 : i32
    return %c0_i32, %c0_i32_0 : i32, i32
  }
  func.func @transform_11(%arg0: i32) -> (i32, i32) {
    %c0_i32 = arith.constant 0 : i32
    %c0_i32_0 = arith.constant 0 : i32
    %c0_i32_1 = arith.constant 0 : i32
    return %c0_i32, %c0_i32_0 : i32, i32
  }
  func.func @transform_12(%arg0: i32) -> (i32, i32) {
    %c0_i32 = arith.constant 0 : i32
    %c0_i32_0 = arith.constant 0 : i32
    %c0_i32_1 = arith.constant 0 : i32
    return %c0_i32, %c0_i32_0 : i32, i32
  }
  func.func @transform_13(%arg0: i32) -> (i32, i32) {
    %c0_i32 = arith.constant 0 : i32
    %c0_i32_0 = arith.constant 0 : i32
    %c0_i32_1 = arith.constant 0 : i32
    return %c0_i32, %c0_i32_0 : i32, i32
  }
  func.func @transform_14(%arg0: i32) -> (i32, i32) {
    %c0_i32 = arith.constant 0 : i32
    %c0_i32_0 = arith.constant 0 : i32
    %c0_i32_1 = arith.constant 0 : i32
    return %c0_i32, %c0_i32_0 : i32, i32
  }
  func.func @transform_15(%arg0: i32) -> (i32, i32, i32) {
    %c0_i32 = arith.constant 0 : i32
    %c0_i32_0 = arith.constant 0 : i32
    %c0_i32_1 = arith.constant 0 : i32
    return %arg0, %c0_i32, %c0_i32_0 : i32, i32, i32
  }
}

</mosaic_0001>

<llo_original>
// kernel: hred_forward.5
$region0: #{hred_forward.5}
  #allocation0 [shape = 'u32[]', space=smem, size = 0x4, offset = 0x4, fixed_abs, tag = 'smem constant byte address 0x4 - core index']
  #allocation1 [shape = 'u32[144,128]{1,0:T(1,128)}', space=vmem, size = 0x12000, scoped, tag = 'internal scratch']
  %s0 = inlined_call_operand.vmem [shape: f32[8,2,8,96], index: 0, kind: input, shape index: {}]
  %s1 = inlined_call_operand.vmem [shape: f32[2,8,32], index: 1, kind: input, shape index: {}]
  %s2 = inlined_call_operand.vmem [shape: f32[2,32,96], index: 2, kind: input, shape index: {}]
  %s3 = inlined_call_operand.vmem [shape: f32[2,1,96], index: 3, kind: input, shape index: {}]
  %s4 = inlined_call_operand.vmem [shape: f32[2,8,1], index: 4, kind: input, shape index: {}]
  %s5 = inlined_call_operand.vmem [shape: f32[2,8,1], index: 5, kind: input, shape index: {}]
  %s6 = inlined_call_operand.hbm [shape: f32[8,2,8,32], index: 6, kind: output, shape index: {0}]
  %s7 = inlined_call_operand.vmem [shape: f32[2,8,32], index: 7, kind: output, shape index: {1}]
  %8 = xla_tuple %s6, %s7
  %s9 = sld [smem:[#allocation0]]
  $region46: #{hred_forward.5} parent=0
    _
  %s11 = ssub.s32 1, %s9
  %s12 = scalar_select 0, %s11, %s9
  $region1: #{hred_forward.5} parent=0
    #allocation2 [shape = 'u8[65536]{0}', space=vmem, size = 0x10000, scoped, tag = 'output window, operand 0, single buffered']
    #allocation3 [shape = 's32[1]{0}', space=sflag, size = 0x4, scoped, tag = 'scoped memory for hred_forward.5']
    %13 = vsyncpa [#allocation3], 0
    // Predicated region
    $region2: #{hred_forward.5} parent=1 // pred_check
      _
    $region3: #{hred_forward.5} parent=1 // pred_check_branch
      %15 = sbr.rel (0) target = $region5
    $region4: #{hred_forward.5} parent=1 // pred_region
      _
    $region5: #{hred_forward.5} parent=1 // pred_fallthru
      _
    // Predicated region
    $region6: #{hred_forward.5} parent=1 // pred_check
      _
    $region7: #{hred_forward.5} parent=1 // pred_check_branch
      %17 = sbr.rel (0) target = $region9
    $region8: #{hred_forward.5} parent=1 // pred_region
      _
    $region9: #{hred_forward.5} parent=1 // pred_fallthru
      _
    // Predicated region
    $region10: #{hred_forward.5} parent=1 // pred_check
      _
    $region11: #{hred_forward.5} parent=1 // pred_check_branch
      %19 = sbr.rel (0) target = $region13
    $region12: #{hred_forward.5} parent=1 // pred_region
      _
    $region13: #{hred_forward.5} parent=1 // pred_fallthru
      _
    // Predicated region
    $region14: #{hred_forward.5} parent=1 // pred_check
      _
    $region15: #{hred_forward.5} parent=1 // pred_check_branch
      %21 = sbr.rel (0) target = $region17
    $region16: #{hred_forward.5} parent=1 // pred_region
      _
    $region17: #{hred_forward.5} parent=1 // pred_fallthru
      _
    // Predicated region
    $region18: #{hred_forward.5} parent=1 // pred_check
      _
    $region19: #{hred_forward.5} parent=1 // pred_check_branch
      %23 = sbr.rel (0) target = $region21
    $region20: #{hred_forward.5} parent=1 // pred_region
      _
    $region21: #{hred_forward.5} parent=1 // pred_fallthru
      _
    // Predicated region
    $region22: #{hred_forward.5} parent=1 // pred_check
      _
    $region23: #{hred_forward.5} parent=1 // pred_check_branch
      %25 = sbr.rel (0) target = $region25
    $region24: #{hred_forward.5} parent=1 // pred_region
      _
    $region25: #{hred_forward.5} parent=1 // pred_fallthru
      _
    %p26 = scmp.eq.s32.totalorder 0, 0
    // Predicated region
    $region26: #{hred_forward.5} parent=1 // pred_check
      %p27 = pneg %p26
    $region27: #{hred_forward.5} parent=1 // pred_check_branch
      %29 = sbr.rel (%p27) target = $region29
    $region28: #{hred_forward.5} parent=1 // pred_region
      %v30 = vld [vmem:[%s1] sm:$0xff]
      %v31 = vld [vmem:[%s1 + $0x8] sm:$0xff]
      %vm32 = vcmask 261120
      %33 = vst.msk [vmem:[%s7] sm:$0xff] %vm32, %v30
      %34 = vst.msk [vmem:[%s7 + $0x8] sm:$0xff] %vm32, %v31
    $region29: #{hred_forward.5} parent=1 // pred_fallthru
      _
    %v35 = vld [vmem:[%s2] sm:$0xff]
    %v36 = vld [vmem:[%s2 + $0x8] sm:$0xff]
    %v37 = vld [vmem:[%s2 + $0x10] sm:$0xff]
    %v38 = vld [vmem:[%s2 + $0x18] sm:$0xff]
    %v39 = vld [vmem:[%s2 + $0x20] sm:$0xff]
    %v40 = vld [vmem:[%s2 + $0x28] sm:$0xff]
    %v41 = vld [vmem:[%s2 + $0x30] sm:$0xff]
    %v42 = vld [vmem:[%s2 + $0x38] sm:$0xff]
    %v43 = vld [vmem:[%s3] sm:$0x1]
    %v44 = vld [vmem:[%s3 + $0x1] sm:$0x1]
    %v45 = vld [vmem:[%s4] sm:$0xff]
    %v46 = vld [vmem:[%s4 + $0x8] sm:$0xff]
    %v47 = vld [vmem:[%s5] sm:$0xff]
    %v48 = vld [vmem:[%s5 + $0x8] sm:$0xff]
    %s49 = smul.u32 0, 8
    %v50 = vld [vmem:[%s7] sm:$0xff]
    %v51 = vld [vmem:[%s7 + $0x8] sm:$0xff]
    %v52 = vld [vmem:[%s0] sm:$0xff]
    %v53 = vld [vmem:[%s0 + $0x8] sm:$0xff]
    %v56 = vlaneseq
    %v57 = vshrl.u32 %v56, 7
    %v58 = vsub.s32 0, %v57
    %v59 = vrot.slane %v43, %v58
    %v60 = vlaneseq
    %v61 = vshrl.u32 %v60, 7
    %v62 = vsub.s32 0, %v61
    %v63 = vrot.slane %v44, %v62
    %vm66 = vcmask 261120
    %v68 = vsel %vm66, %v50, 0
    %70 = vmatprep.subr.mxu0 0.0
    %71 = vmatpush1.msra.mxu0 0.0
    %72 = vmatprep.subr.mxu0 0.0
    %73 = vmatpush1.msra.mxu0 0.0
    %74 = vmatprep.subr.mxu0 0.0
    %75 = vmatpush1.msra.mxu0 0.0
    %76 = vmatprep.subr.mxu0 0.0
    %77 = vmatpush1.msra.mxu0 0.0
    %78 = vmatprep.subr.mxu0 0.0
    %79 = vmatpush1.msra.mxu0 0.0
    %80 = vmatprep.subr.mxu0 0.0
    %81 = vmatpush1.msra.mxu0 0.0
    %82 = vmatprep.subr.mxu0 0.0
    %83 = vmatpush1.msra.mxu0 0.0
    %84 = vmatprep.subr.mxu0 0.0
    %85 = vmatpush1.msra.mxu0 0.0
    %86 = vmatprep.subr.mxu0 0.0
    %87 = vmatpush1.msra.mxu0 0.0
    %88 = vmatprep.subr.mxu0 0.0
    %89 = vmatpush1.msra.mxu0 0.0
    %90 = vmatprep.subr.mxu0 0.0
    %91 = vmatpush1.msra.mxu0 0.0
    %92 = vmatprep.subr.mxu0 0.0
    %93 = vmatpush1.msra.mxu0 0.0
    %94 = vmatprep.subr.mxu0 0.0
    %95 = vmatpush1.msra.mxu0 %v38
    %96 = vmatprep.subr.mxu0 0.0
    %97 = vmatpush1.msra.mxu0 %v37
    %98 = vmatprep.subr.mxu0 0.0
    %99 = vmatpush1.msra.mxu0 %v36
    %100 = vmatprep.subr.mxu0 0.0
    %101 = vmatpush1.msra.mxu0 %v35
    %102 = vmatprep.subr.mxu0 0.0
    %103 = vmatpush2.msra.mxu0 0.0
    %104 = vmatprep.subr.mxu0 0.0
    %105 = vmatpush2.msra.mxu0 0.0
    %106 = vmatprep.subr.mxu0 0.0
    %107 = vmatpush2.msra.mxu0 0.0
    %108 = vmatprep.subr.mxu0 0.0
    %109 = vmatpush2.msra.mxu0 0.0
    %110 = vmatprep.subr.mxu0 0.0
    %111 = vmatpush2.msra.mxu0 0.0
    %112 = vmatprep.subr.mxu0 0.0
    %113 = vmatpush2.msra.mxu0 0.0
    %114 = vmatprep.subr.mxu0 0.0
    %115 = vmatpush2.msra.mxu0 0.0
    %116 = vmatprep.subr.mxu0 0.0
    %117 = vmatpush2.msra.mxu0 0.0
    %118 = vmatprep.subr.mxu0 0.0
    %119 = vmatpush2.msra.mxu0 0.0
    %120 = vmatprep.subr.mxu0 0.0
    %121 = vmatpush2.msra.mxu0 0.0
    %122 = vmatprep.subr.mxu0 0.0
    %123 = vmatpush2.msra.mxu0 0.0
    %124 = vmatprep.subr.mxu0 0.0
    %125 = vmatpush2.msra.mxu0 0.0
    %126 = vmatprep.subr.mxu0 0.0
    %127 = vmatpush2.msra.mxu0 0.0
    %128 = vmatprep.subr.mxu0 0.0
    %129 = vmatpush2.msra.mxu0 0.0
    %130 = vmatprep.subr.mxu0 0.0
    %131 = vmatpush2.msra.mxu0 0.0
    %132 = vmatprep.subr.mxu0 0.0
    %133 = vmatpush2.msra.mxu0 0.0
    %134 = vmatprep.mubr.f32.mxu0 0.0
    %135 = vmatmul.mubr.f32.gmra.mxu0 %v68
    %v136 = vpop.f32.mrf.mxu0
    %v137 = vadd.f32 %v59, %v136
    %v138 = vpop.f32.mrf.mxu0
    %139 = vdwg.mxu0
    %v141 = vsel %vm66, %v51, 0
    %143 = vmatprep.subr.mxu0 0.0
    %144 = vmatpush1.msra.mxu0 0.0
    %145 = vmatprep.subr.mxu0 0.0
    %146 = vmatpush1.msra.mxu0 0.0
    %147 = vmatprep.subr.mxu0 0.0
    %148 = vmatpush1.msra.mxu0 0.0
    %149 = vmatprep.subr.mxu0 0.0
    %150 = vmatpush1.msra.mxu0 0.0
    %151 = vmatprep.subr.mxu0 0.0
    %152 = vmatpush1.msra.mxu0 0.0
    %153 = vmatprep.subr.mxu0 0.0
    %154 = vmatpush1.msra.mxu0 0.0
    %155 = vmatprep.subr.mxu0 0.0
    %156 = vmatpush1.msra.mxu0 0.0
    %157 = vmatprep.subr.mxu0 0.0
    %158 = vmatpush1.msra.mxu0 0.0
    %159 = vmatprep.subr.mxu0 0.0
    %160 = vmatpush1.msra.mxu0 0.0
    %161 = vmatprep.subr.mxu0 0.0
    %162 = vmatpush1.msra.mxu0 0.0
    %163 = vmatprep.subr.mxu0 0.0
    %164 = vmatpush1.msra.mxu0 0.0
    %165 = vmatprep.subr.mxu0 0.0
    %166 = vmatpush1.msra.mxu0 0.0
    %167 = vmatprep.subr.mxu0 0.0
    %168 = vmatpush1.msra.mxu0 %v42
    %169 = vmatprep.subr.mxu0 0.0
    %170 = vmatpush1.msra.mxu0 %v41
    %171 = vmatprep.subr.mxu0 0.0
    %172 = vmatpush1.msra.mxu0 %v40
    %173 = vmatprep.subr.mxu0 0.0
    %174 = vmatpush1.msra.mxu0 %v39
    %175 = vmatprep.subr.mxu0 0.0
    %176 = vmatpush2.msra.mxu0 0.0
    %177 = vmatprep.subr.mxu0 0.0
    %178 = vmatpush2.msra.mxu0 0.0
    %179 = vmatprep.subr.mxu0 0.0
    %180 = vmatpush2.msra.mxu0 0.0
    %181 = vmatprep.subr.mxu0 0.0
    %182 = vmatpush2.msra.mxu0 0.0
    %183 = vmatprep.subr.mxu0 0.0
    %184 = vmatpush2.msra.mxu0 0.0
    %185 = vmatprep.subr.mxu0 0.0
    %186 = vmatpush2.msra.mxu0 0.0
    %187 = vmatprep.subr.mxu0 0.0
    %188 = vmatpush2.msra.mxu0 0.0
    %189 = vmatprep.subr.mxu0 0.0
    %190 = vmatpush2.msra.mxu0 0.0
    %191 = vmatprep.subr.mxu0 0.0
    %192 = vmatpush2.msra.mxu0 0.0
    %193 = vmatprep.subr.mxu0 0.0
    %194 = vmatpush2.msra.mxu0 0.0
    %195 = vmatprep.subr.mxu0 0.0
    %196 = vmatpush2.msra.mxu0 0.0
    %197 = vmatprep.subr.mxu0 0.0
    %198 = vmatpush2.msra.mxu0 0.0
    %199 = vmatprep.subr.mxu0 0.0
    %200 = vmatpush2.msra.mxu0 0.0
    %201 = vmatprep.subr.mxu0 0.0
    %202 = vmatpush2.msra.mxu0 0.0
    %203 = vmatprep.subr.mxu0 0.0
    %204 = vmatpush2.msra.mxu0 0.0
    %205 = vmatprep.subr.mxu0 0.0
    %206 = vmatpush2.msra.mxu0 0.0
    %207 = vmatprep.mubr.f32.mxu0 0.0
    %208 = vmatmul.mubr.f32.gmra.mxu0 %v141
    %v209 = vpop.f32.mrf.mxu0
    %v210 = vadd.f32 %v63, %v209
    %v211 = vpop.f32.mrf.mxu0
    %212 = vdwg.mxu0
    %v213 = vadd.f32 %v52, %v137
    %v214 = vadd.f32 %v53, %v210
    %v215 = vxor.u32 %v213, 2147483648
    %v216 = vxor.u32 %v214, 2147483648
    %v217 = vmul.f32 %v215, 1.442695
    %v218 = vpow.pop %v217
    %v219 = vmul.f32 %v216, 1.442695
    %v220 = vpow.pop %v219
    %v221 = vadd.f32 %v218, 1.0
    %v222 = vadd.f32 %v220, 1.0
    %v223 = vrcp.pop %v221
    %v224 = vmul.f32 1.0, %v223
    %v225 = vrcp.pop %v222
    %v226 = vmul.f32 1.0, %v225
    %229 = vrot.lane.b32.xlu0 %v137, 64
    %v230 = vpop.permute.xlu0 %229
    %231 = vrot.lane.b32.xlu0 %v210, 64
    %v232 = vpop.permute.xlu0 %231
    %v235 = vmul.f32 %v224, %v230
    %v236 = vmul.f32 %v226, %v232
    %239 = vrot.lane.b32.xlu0 %v235, 64
    %v240 = vpop.permute.xlu0 %239
    %241 = vrot.lane.b32.xlu0 %v236, 64
    %v242 = vpop.permute.xlu0 %241
    %v245 = vadd.f32 %v52, %v240
    %v246 = vadd.f32 %v53, %v242
    %v247 = vtanh.pop %v245
    %v248 = vtanh.pop %v246
    %v249 = vsub.f32 1.0, %v224
    %v250 = vsub.f32 1.0, %v226
    %253 = vrot.lane.b32.xlu0 %v247, 96
    %v254 = vpop.permute.xlu0 %253
    %255 = vrot.lane.b32.xlu0 %v248, 96
    %v256 = vpop.permute.xlu0 %255
    %v259 = vmul.f32 %v249, %v254
    %v260 = vmul.f32 %v250, %v256
    %261 = vrot.lane.b32.xlu0 %v50, 32
    %v262 = vpop.permute.xlu0 %261
    %263 = vrot.lane.b32.xlu0 %v51, 32
    %v264 = vpop.permute.xlu0 %263
    %v267 = vmul.f32 %v224, %v262
    %v268 = vmul.f32 %v226, %v264
    %v269 = vadd.f32 %v259, %v267
    %v270 = vadd.f32 %v260, %v268
    %s271 = scvt.s32.f32 %s49
    %v272 = vstv %s271
    %vm273 = vcmp.ge.f32.partialorder %v272, %v45
    %vm274 = vcmp.ge.f32.partialorder %v272, %v46
    %vm275 = vcmp.lt.f32.partialorder %v272, %v47
    %vm276 = vcmp.lt.f32.partialorder %v272, %v48
    %vm277 = vmand %vm273, %vm275
    %vm278 = vmand %vm274, %vm276
    %v279 = vsel %vm277, 1, 0
    %v280 = vsel %vm278, 1, 0
    %v281 = vcvt.s32.f32 %v279
    %v282 = vcvt.s32.f32 %v280
    %284 = vset.pattern.permute.xlu0 0
    %285 = vperm.xlu0 %284, %v281
    %v286 = vpop.permute.xlu0 %285
    %289 = vset.pattern.permute.xlu0 0
    %290 = vperm.xlu0 %289, %v282
    %v291 = vpop.permute.xlu0 %290
    %v293 = vmul.f32 %v286, %v269
    %v294 = vmul.f32 %v291, %v270
    %v295 = vsub.f32 1.0, %v281
    %v296 = vsub.f32 1.0, %v282
    %298 = vset.pattern.permute.xlu0 0
    %299 = vperm.xlu0 %298, %v295
    %v300 = vpop.permute.xlu0 %299
    %303 = vset.pattern.permute.xlu0 0
    %304 = vperm.xlu0 %303, %v296
    %v305 = vpop.permute.xlu0 %304
    %v307 = vmul.f32 %v300, %v50
    %v308 = vmul.f32 %v305, %v51
    %311 = vrot.lane.b32.xlu0 %v307, 32
    %v312 = vpop.permute.xlu0 %311
    %313 = vrot.lane.b32.xlu0 %v308, 32
    %v314 = vpop.permute.xlu0 %313
    %v317 = vadd.f32 %v293, %v312
    %v318 = vadd.f32 %v294, %v314
    %321 = vrot.lane.b32.xlu0 %v317, 96
    %v322 = vpop.permute.xlu0 %321
    %323 = vrot.lane.b32.xlu0 %v318, 96
    %v324 = vpop.permute.xlu0 %323
    %327 = vst.msk [vmem:[#allocation2] sm:$0xff] %vm66, %v322
    %328 = vst.msk [vmem:[#allocation2 + $0x8] sm:$0xff] %vm66, %v324
    %s329 = scalar_lea.vmem %s0, 16
    %v330 = vld [vmem:[%s329] sm:$0xff]
    %v331 = vld [vmem:[%s329 + $0x8] sm:$0xff]
    %v332 = vsel %vm66, %v322, 0
    %334 = vmatprep.subr.mxu0 0.0
    %335 = vmatpush1.msra.mxu0 0.0
    %336 = vmatprep.subr.mxu0 0.0
    %337 = vmatpush1.msra.mxu0 0.0
    %338 = vmatprep.subr.mxu0 0.0
    %339 = vmatpush1.msra.mxu0 0.0
    %340 = vmatprep.subr.mxu0 0.0
    %341 = vmatpush1.msra.mxu0 0.0
    %342 = vmatprep.subr.mxu0 0.0
    %343 = vmatpush1.msra.mxu0 0.0
    %344 = vmatprep.subr.mxu0 0.0
    %345 = vmatpush1.msra.mxu0 0.0
    %346 = vmatprep.subr.mxu0 0.0
    %347 = vmatpush1.msra.mxu0 0.0
    %348 = vmatprep.subr.mxu0 0.0
    %349 = vmatpush1.msra.mxu0 0.0
    %350 = vmatprep.subr.mxu0 0.0
    %351 = vmatpush1.msra.mxu0 0.0
    %352 = vmatprep.subr.mxu0 0.0
    %353 = vmatpush1.msra.mxu0 0.0
    %354 = vmatprep.subr.mxu0 0.0
    %355 = vmatpush1.msra.mxu0 0.0
    %356 = vmatprep.subr.mxu0 0.0
    %357 = vmatpush1.msra.mxu0 0.0
    %358 = vmatprep.subr.mxu0 0.0
    %359 = vmatpush1.msra.mxu0 %v38
    %360 = vmatprep.subr.mxu0 0.0
    %361 = vmatpush1.msra.mxu0 %v37
    %362 = vmatprep.subr.mxu0 0.0
    %363 = vmatpush1.msra.mxu0 %v36
    %364 = vmatprep.subr.mxu0 0.0
    %365 = vmatpush1.msra.mxu0 %v35
    %366 = vmatprep.subr.mxu0 0.0
    %367 = vmatpush2.msra.mxu0 0.0
    %368 = vmatprep.subr.mxu0 0.0
    %369 = vmatpush2.msra.mxu0 0.0
    %370 = vmatprep.subr.mxu0 0.0
    %371 = vmatpush2.msra.mxu0 0.0
    %372 = vmatprep.subr.mxu0 0.0
    %373 = vmatpush2.msra.mxu0 0.0
    %374 = vmatprep.subr.mxu0 0.0
    %375 = vmatpush2.msra.mxu0 0.0
    %376 = vmatprep.subr.mxu0 0.0
    %377 = vmatpush2.msra.mxu0 0.0
    %378 = vmatprep.subr.mxu0 0.0
    %379 = vmatpush2.msra.mxu0 0.0
    %380 = vmatprep.subr.mxu0 0.0
    %381 = vmatpush2.msra.mxu0 0.0
    %382 = vmatprep.subr.mxu0 0.0
    %383 = vmatpush2.msra.mxu0 0.0
    %384 = vmatprep.subr.mxu0 0.0
    %385 = vmatpush2.msra.mxu0 0.0
    %386 = vmatprep.subr.mxu0 0.0
    %387 = vmatpush2.msra.mxu0 0.0
    %388 = vmatprep.subr.mxu0 0.0
    %389 = vmatpush2.msra.mxu0 0.0
    %390 = vmatprep.subr.mxu0 0.0
    %391 = vmatpush2.msra.mxu0 0.0
    %392 = vmatprep.subr.mxu0 0.0
    %393 = vmatpush2.msra.mxu0 0.0
    %394 = vmatprep.subr.mxu0 0.0
    %395 = vmatpush2.msra.mxu0 0.0
    %396 = vmatprep.subr.mxu0 0.0
    %397 = vmatpush2.msra.mxu0 0.0
    %398 = vmatprep.mubr.f32.mxu0 0.0
    %399 = vmatmul.mubr.f32.gmra.mxu0 %v332
    %v400 = vpop.f32.mrf.mxu0
    %v401 = vadd.f32 %v59, %v400
    %v402 = vpop.f32.mrf.mxu0
    %403 = vdwg.mxu0
    %v404 = vsel %vm66, %v324, 0
    %406 = vmatprep.subr.mxu0 0.0
    %407 = vmatpush1.msra.mxu0 0.0
    %408 = vmatprep.subr.mxu0 0.0
    %409 = vmatpush1.msra.mxu0 0.0
    %410 = vmatprep.subr.mxu0 0.0
    %411 = vmatpush1.msra.mxu0 0.0
    %412 = vmatprep.subr.mxu0 0.0
    %413 = vmatpush1.msra.mxu0 0.0
    %414 = vmatprep.subr.mxu0 0.0
    %415 = vmatpush1.msra.mxu0 0.0
    %416 = vmatprep.subr.mxu0 0.0
    %417 = vmatpush1.msra.mxu0 0.0
    %418 = vmatprep.subr.mxu0 0.0
    %419 = vmatpush1.msra.mxu0 0.0
    %420 = vmatprep.subr.mxu0 0.0
    %421 = vmatpush1.msra.mxu0 0.0
    %422 = vmatprep.subr.mxu0 0.0
    %423 = vmatpush1.msra.mxu0 0.0
    %424 = vmatprep.subr.mxu0 0.0
    %425 = vmatpush1.msra.mxu0 0.0
    %426 = vmatprep.subr.mxu0 0.0
    %427 = vmatpush1.msra.mxu0 0.0
    %428 = vmatprep.subr.mxu0 0.0
    %429 = vmatpush1.msra.mxu0 0.0
    %430 = vmatprep.subr.mxu0 0.0
    %431 = vmatpush1.msra.mxu0 %v42
    %432 = vmatprep.subr.mxu0 0.0
    %433 = vmatpush1.msra.mxu0 %v41
    %434 = vmatprep.subr.mxu0 0.0
    %435 = vmatpush1.msra.mxu0 %v40
    %436 = vmatprep.subr.mxu0 0.0
    %437 = vmatpush1.msra.mxu0 %v39
    %438 = vmatprep.subr.mxu0 0.0
    %439 = vmatpush2.msra.mxu0 0.0
    %440 = vmatprep.subr.mxu0 0.0
    %441 = vmatpush2.msra.mxu0 0.0
    %442 = vmatprep.subr.mxu0 0.0
    %443 = vmatpush2.msra.mxu0 0.0
    %444 = vmatprep.subr.mxu0 0.0
    %445 = vmatpush2.msra.mxu0 0.0
    %446 = vmatprep.subr.mxu0 0.0
    %447 = vmatpush2.msra.mxu0 0.0
    %448 = vmatprep.subr.mxu0 0.0
    %449 = vmatpush2.msra.mxu0 0.0
    %450 = vmatprep.subr.mxu0 0.0
    %451 = vmatpush2.msra.mxu0 0.0
    %452 = vmatprep.subr.mxu0 0.0
    %453 = vmatpush2.msra.mxu0 0.0
    %454 = vmatprep.subr.mxu0 0.0
    %455 = vmatpush2.msra.mxu0 0.0
    %456 = vmatprep.subr.mxu0 0.0
    %457 = vmatpush2.msra.mxu0 0.0
    %458 = vmatprep.subr.mxu0 0.0
    %459 = vmatpush2.msra.mxu0 0.0
    %460 = vmatprep.subr.mxu0 0.0
    %461 = vmatpush2.msra.mxu0 0.0
    %462 = vmatprep.subr.mxu0 0.0
    %463 = vmatpush2.msra.mxu0 0.0
    %464 = vmatprep.subr.mxu0 0.0
    %465 = vmatpush2.msra.mxu0 0.0
    %466 = vmatprep.subr.mxu0 0.0
    %467 = vmatpush2.msra.mxu0 0.0
    %468 = vmatprep.subr.mxu0 0.0
    %469 = vmatpush2.msra.mxu0 0.0
    %470 = vmatprep.mubr.f32.mxu0 0.0
    %471 = vmatmul.mubr.f32.gmra.mxu0 %v404
    %v472 = vpop.f32.mrf.mxu0
    %v473 = vadd.f32 %v63, %v472
    %v474 = vpop.f32.mrf.mxu0
    %475 = vdwg.mxu0
    %v476 = vadd.f32 %v330, %v401
    %v477 = vadd.f32 %v331, %v473
    %v478 = vxor.u32 %v476, 2147483648
    %v479 = vxor.u32 %v477, 2147483648
    %v480 = vmul.f32 %v478, 1.442695
    %v481 = vpow.pop %v480
    %v482 = vmul.f32 %v479, 1.442695
    %v483 = vpow.pop %v482
    %v484 = vadd.f32 %v481, 1.0
    %v485 = vadd.f32 %v483, 1.0
    %v486 = vrcp.pop %v484
    %v487 = vmul.f32 1.0, %v486
    %v488 = vrcp.pop %v485
    %v489 = vmul.f32 1.0, %v488
    %492 = vrot.lane.b32.xlu0 %v401, 64
    %v493 = vpop.permute.xlu0 %492
    %494 = vrot.lane.b32.xlu0 %v473, 64
    %v495 = vpop.permute.xlu0 %494
    %v498 = vmul.f32 %v487, %v493
    %v499 = vmul.f32 %v489, %v495
    %502 = vrot.lane.b32.xlu0 %v498, 64
    %v503 = vpop.permute.xlu0 %502
    %504 = vrot.lane.b32.xlu0 %v499, 64
    %v505 = vpop.permute.xlu0 %504
    %v508 = vadd.f32 %v330, %v503
    %v509 = vadd.f32 %v331, %v505
    %v510 = vtanh.pop %v508
    %v511 = vtanh.pop %v509
    %v512 = vsub.f32 1.0, %v487
    %v513 = vsub.f32 1.0, %v489
    %516 = vrot.lane.b32.xlu0 %v510, 96
    %v517 = vpop.permute.xlu0 %516
    %518 = vrot.lane.b32.xlu0 %v511, 96
    %v519 = vpop.permute.xlu0 %518
    %v522 = vmul.f32 %v512, %v517
    %v523 = vmul.f32 %v513, %v519
    %v524 = vmul.f32 %v487, %v317
    %v525 = vmul.f32 %v489, %v318
    %v526 = vadd.f32 %v522, %v524
    %v527 = vadd.f32 %v523, %v525
    %s528 = sadd.s32 %s49, 1
    %s529 = scvt.s32.f32 %s528
    %v530 = vstv %s529
    %vm531 = vcmp.ge.f32.partialorder %v530, %v45
    %vm532 = vcmp.ge.f32.partialorder %v530, %v46
    %vm533 = vcmp.lt.f32.partialorder %v530, %v47
    %vm534 = vcmp.lt.f32.partialorder %v530, %v48
    %vm535 = vmand %vm531, %vm533
    %vm536 = vmand %vm532, %vm534
    %v537 = vsel %vm535, 1, 0
    %v538 = vsel %vm536, 1, 0
    %v539 = vcvt.s32.f32 %v537
    %v540 = vcvt.s32.f32 %v538
    %542 = vset.pattern.permute.xlu0 0
    %543 = vperm.xlu0 %542, %v539
    %v544 = vpop.permute.xlu0 %543
    %547 = vset.pattern.permute.xlu0 0
    %548 = vperm.xlu0 %547, %v540
    %v549 = vpop.permute.xlu0 %548
    %v551 = vmul.f32 %v544, %v526
    %v552 = vmul.f32 %v549, %v527
    %v553 = vsub.f32 1.0, %v539
    %v554 = vsub.f32 1.0, %v540
    %556 = vset.pattern.permute.xlu0 0
    %557 = vperm.xlu0 %556, %v553
    %v558 = vpop.permute.xlu0 %557
    %561 = vset.pattern.permute.xlu0 0
    %562 = vperm.xlu0 %561, %v554
    %v563 = vpop.permute.xlu0 %562
    %v565 = vmul.f32 %v558, %v317
    %v566 = vmul.f32 %v563, %v318
    %v567 = vadd.f32 %v551, %v565
    %v568 = vadd.f32 %v552, %v566
    %571 = vrot.lane.b32.xlu0 %v567, 96
    %v572 = vpop.permute.xlu0 %571
    %573 = vrot.lane.b32.xlu0 %v568, 96
    %v574 = vpop.permute.xlu0 %573
    %s577 = scalar_lea.vmem [#allocation2], 16
    %578 = vst.msk [vmem:[%s577] sm:$0xff] %vm66, %v572
    %579 = vst.msk [vmem:[%s577 + $0x8] sm:$0xff] %vm66, %v574
    %s580 = scalar_lea.vmem %s0, 32
    %v581 = vld [vmem:[%s580] sm:$0xff]
    %v582 = vld [vmem:[%s580 + $0x8] sm:$0xff]
    %v583 = vsel %vm66, %v572, 0
    %585 = vmatprep.subr.mxu0 0.0
    %586 = vmatpush1.msra.mxu0 0.0
    %587 = vmatprep.subr.mxu0 0.0
    %588 = vmatpush1.msra.mxu0 0.0
    %589 = vmatprep.subr.mxu0 0.0
    %590 = vmatpush1.msra.mxu0 0.0
    %591 = vmatprep.subr.mxu0 0.0
    %592 = vmatpush1.msra.mxu0 0.0
    %593 = vmatprep.subr.mxu0 0.0
    %594 = vmatpush1.msra.mxu0 0.0
    %595 = vmatprep.subr.mxu0 0.0
    %596 = vmatpush1.msra.mxu0 0.0
    %597 = vmatprep.subr.mxu0 0.0
    %598 = vmatpush1.msra.mxu0 0.0
    %599 = vmatprep.subr.mxu0 0.0
    %600 = vmatpush1.msra.mxu0 0.0
    %601 = vmatprep.subr.mxu0 0.0
    %602 = vmatpush1.msra.mxu0 0.0
    %603 = vmatprep.subr.mxu0 0.0
    %604 = vmatpush1.msra.mxu0 0.0
    %605 = vmatprep.subr.mxu0 0.0
    %606 = vmatpush1.msra.mxu0 0.0
    %607 = vmatprep.subr.mxu0 0.0
    %608 = vmatpush1.msra.mxu0 0.0
    %609 = vmatprep.subr.mxu0 0.0
    %610 = vmatpush1.msra.mxu0 %v38
    %611 = vmatprep.subr.mxu0 0.0
    %612 = vmatpush1.msra.mxu0 %v37
    %613 = vmatprep.subr.mxu0 0.0
    %614 = vmatpush1.msra.mxu0 %v36
    %615 = vmatprep.subr.mxu0 0.0
    %616 = vmatpush1.msra.mxu0 %v35
    %617 = vmatprep.subr.mxu0 0.0
    %618 = vmatpush2.msra.mxu0 0.0
    %619 = vmatprep.subr.mxu0 0.0
    %620 = vmatpush2.msra.mxu0 0.0
    %621 = vmatprep.subr.mxu0 0.0
    %622 = vmatpush2.msra.mxu0 0.0
    %623 = vmatprep.subr.mxu0 0.0
    %624 = vmatpush2.msra.mxu0 0.0
    %625 = vmatprep.subr.mxu0 0.0
    %626 = vmatpush2.msra.mxu0 0.0
    %627 = vmatprep.subr.mxu0 0.0
    %628 = vmatpush2.msra.mxu0 0.0
    %629 = vmatprep.subr.mxu0 0.0
    %630 = vmatpush2.msra.mxu0 0.0
    %631 = vmatprep.subr.mxu0 0.0
    %632 = vmatpush2.msra.mxu0 0.0
    %633 = vmatprep.subr.mxu0 0.0
    %634 = vmatpush2.msra.mxu0 0.0
    %635 = vmatprep.subr.mxu0 0.0
    %636 = vmatpush2.msra.mxu0 0.0
    %637 = vmatprep.subr.mxu0 0.0
    %638 = vmatpush2.msra.mxu0 0.0
    %639 = vmatprep.subr.mxu0 0.0
    %640 = vmatpush2.msra.mxu0 0.0
    %641 = vmatprep.subr.mxu0 0.0
    %642 = vmatpush2.msra.mxu0 0.0
    %643 = vmatprep.subr.mxu0 0.0
    %644 = vmatpush2.msra.mxu0 0.0
    %645 = vmatprep.subr.mxu0 0.0
    %646 = vmatpush2.msra.mxu0 0.0
    %647 = vmatprep.subr.mxu0 0.0
    %648 = vmatpush2.msra.mxu0 0.0
    %649 = vmatprep.mubr.f32.mxu0 0.0
    %650 = vmatmul.mubr.f32.gmra.mxu0 %v583
    %v651 = vpop.f32.mrf.mxu0
    %v652 = vadd.f32 %v59, %v651
    %v653 = vpop.f32.mrf.mxu0
    %654 = vdwg.mxu0
    %v655 = vsel %vm66, %v574, 0
    %657 = vmatprep.subr.mxu0 0.0
    %658 = vmatpush1.msra.mxu0 0.0
    %659 = vmatprep.subr.mxu0 0.0
    %660 = vmatpush1.msra.mxu0 0.0
    %661 = vmatprep.subr.mxu0 0.0
    %662 = vmatpush1.msra.mxu0 0.0
    %663 = vmatprep.subr.mxu0 0.0
    %664 = vmatpush1.msra.mxu0 0.0
    %665 = vmatprep.subr.mxu0 0.0
    %666 = vmatpush1.msra.mxu0 0.0
    %667 = vmatprep.subr.mxu0 0.0
    %668 = vmatpush1.msra.mxu0 0.0
    %669 = vmatprep.subr.mxu0 0.0
    %670 = vmatpush1.msra.mxu0 0.0
    %671 = vmatprep.subr.mxu0 0.0
    %672 = vmatpush1.msra.mxu0 0.0
    %673 = vmatprep.subr.mxu0 0.0
    %674 = vmatpush1.msra.mxu0 0.0
    %675 = vmatprep.subr.mxu0 0.0
    %676 = vmatpush1.msra.mxu0 0.0
    %677 = vmatprep.subr.mxu0 0.0
    %678 = vmatpush1.msra.mxu0 0.0
    %679 = vmatprep.subr.mxu0 0.0
    %680 = vmatpush1.msra.mxu0 0.0
    %681 = vmatprep.subr.mxu0 0.0
    %682 = vmatpush1.msra.mxu0 %v42
    %683 = vmatprep.subr.mxu0 0.0
    %684 = vmatpush1.msra.mxu0 %v41
    %685 = vmatprep.subr.mxu0 0.0
    %686 = vmatpush1.msra.mxu0 %v40
    %687 = vmatprep.subr.mxu0 0.0
    %688 = vmatpush1.msra.mxu0 %v39
    %689 = vmatprep.subr.mxu0 0.0
    %690 = vmatpush2.msra.mxu0 0.0
    %691 = vmatprep.subr.mxu0 0.0
    %692 = vmatpush2.msra.mxu0 0.0
    %693 = vmatprep.subr.mxu0 0.0
    %694 = vmatpush2.msra.mxu0 0.0
    %695 = vmatprep.subr.mxu0 0.0
    %696 = vmatpush2.msra.mxu0 0.0
    %697 = vmatprep.subr.mxu0 0.0
    %698 = vmatpush2.msra.mxu0 0.0
    %699 = vmatprep.subr.mxu0 0.0
    %700 = vmatpush2.msra.mxu0 0.0
    %701 = vmatprep.subr.mxu0 0.0
    %702 = vmatpush2.msra.mxu0 0.0
    %703 = vmatprep.subr.mxu0 0.0
    %704 = vmatpush2.msra.mxu0 0.0
    %705 = vmatprep.subr.mxu0 0.0
    %706 = vmatpush2.msra.mxu0 0.0
    %707 = vmatprep.subr.mxu0 0.0
    %708 = vmatpush2.msra.mxu0 0.0
    %709 = vmatprep.subr.mxu0 0.0
    %710 = vmatpush2.msra.mxu0 0.0
    %711 = vmatprep.subr.mxu0 0.0
    %712 = vmatpush2.msra.mxu0 0.0
    %713 = vmatprep.subr.mxu0 0.0
    %714 = vmatpush2.msra.mxu0 0.0
    %715 = vmatprep.subr.mxu0 0.0
    %716 = vmatpush2.msra.mxu0 0.0
    %717 = vmatprep.subr.mxu0 0.0
    %718 = vmatpush2.msra.mxu0 0.0
    %719 = vmatprep.subr.mxu0 0.0
    %720 = vmatpush2.msra.mxu0 0.0
    %721 = vmatprep.mubr.f32.mxu0 0.0
    %722 = vmatmul.mubr.f32.gmra.mxu0 %v655
    %v723 = vpop.f32.mrf.mxu0
    %v724 = vadd.f32 %v63, %v723
    %v725 = vpop.f32.mrf.mxu0
    %726 = vdwg.mxu0
    %v727 = vadd.f32 %v581, %v652
    %v728 = vadd.f32 %v582, %v724
    %v729 = vxor.u32 %v727, 2147483648
    %v730 = vxor.u32 %v728, 2147483648
    %v731 = vmul.f32 %v729, 1.442695
    %v732 = vpow.pop %v731
    %v733 = vmul.f32 %v730, 1.442695
    %v734 = vpow.pop %v733
    %v735 = vadd.f32 %v732, 1.0
    %v736 = vadd.f32 %v734, 1.0
    %v737 = vrcp.pop %v735
    %v738 = vmul.f32 1.0, %v737
    %v739 = vrcp.pop %v736
    %v740 = vmul.f32 1.0, %v739
    %743 = vrot.lane.b32.xlu0 %v652, 64
    %v744 = vpop.permute.xlu0 %743
    %745 = vrot.lane.b32.xlu0 %v724, 64
    %v746 = vpop.permute.xlu0 %745
    %v749 = vmul.f32 %v738, %v744
    %v750 = vmul.f32 %v740, %v746
    %753 = vrot.lane.b32.xlu0 %v749, 64
    %v754 = vpop.permute.xlu0 %753
    %755 = vrot.lane.b32.xlu0 %v750, 64
    %v756 = vpop.permute.xlu0 %755
    %v759 = vadd.f32 %v581, %v754
    %v760 = vadd.f32 %v582, %v756
    %v761 = vtanh.pop %v759
    %v762 = vtanh.pop %v760
    %v763 = vsub.f32 1.0, %v738
    %v764 = vsub.f32 1.0, %v740
    %767 = vrot.lane.b32.xlu0 %v761, 96
    %v768 = vpop.permute.xlu0 %767
    %769 = vrot.lane.b32.xlu0 %v762, 96
    %v770 = vpop.permute.xlu0 %769
    %v773 = vmul.f32 %v763, %v768
    %v774 = vmul.f32 %v764, %v770
    %v775 = vmul.f32 %v738, %v567
    %v776 = vmul.f32 %v740, %v568
    %v777 = vadd.f32 %v773, %v775
    %v778 = vadd.f32 %v774, %v776
    %s779 = sadd.s32 %s49, 2
    %s780 = scvt.s32.f32 %s779
    %v781 = vstv %s780
    %vm782 = vcmp.ge.f32.partialorder %v781, %v45
    %vm783 = vcmp.ge.f32.partialorder %v781, %v46
    %vm784 = vcmp.lt.f32.partialorder %v781, %v47
    %vm785 = vcmp.lt.f32.partialorder %v781, %v48
    %vm786 = vmand %vm782, %vm784
    %vm787 = vmand %vm783, %vm785
    %v788 = vsel %vm786, 1, 0
    %v789 = vsel %vm787, 1, 0
    %v790 = vcvt.s32.f32 %v788
    %v791 = vcvt.s32.f32 %v789
    %793 = vset.pattern.permute.xlu0 0
    %794 = vperm.xlu0 %793, %v790
    %v795 = vpop.permute.xlu0 %794
    %798 = vset.pattern.permute.xlu0 0
    %799 = vperm.xlu0 %798, %v791
    %v800 = vpop.permute.xlu0 %799
    %v802 = vmul.f32 %v795, %v777
    %v803 = vmul.f32 %v800, %v778
    %v804 = vsub.f32 1.0, %v790
    %v805 = vsub.f32 1.0, %v791
    %807 = vset.pattern.permute.xlu0 0
    %808 = vperm.xlu0 %807, %v804
    %v809 = vpop.permute.xlu0 %808
    %812 = vset.pattern.permute.xlu0 0
    %813 = vperm.xlu0 %812, %v805
    %v814 = vpop.permute.xlu0 %813
    %v816 = vmul.f32 %v809, %v567
    %v817 = vmul.f32 %v814, %v568
    %v818 = vadd.f32 %v802, %v816
    %v819 = vadd.f32 %v803, %v817
    %822 = vrot.lane.b32.xlu0 %v818, 96
    %v823 = vpop.permute.xlu0 %822
    %824 = vrot.lane.b32.xlu0 %v819, 96
    %v825 = vpop.permute.xlu0 %824
    %s828 = scalar_lea.vmem [#allocation2], 32
    %829 = vst.msk [vmem:[%s828] sm:$0xff] %vm66, %v823
    %830 = vst.msk [vmem:[%s828 + $0x8] sm:$0xff] %vm66, %v825
    %s831 = scalar_lea.vmem %s0, 48
    %v832 = vld [vmem:[%s831] sm:$0xff]
    %v833 = vld [vmem:[%s831 + $0x8] sm:$0xff]
    %v834 = vsel %vm66, %v823, 0
    %836 = vmatprep.subr.mxu0 0.0
    %837 = vmatpush1.msra.mxu0 0.0
    %838 = vmatprep.subr.mxu0 0.0
    %839 = vmatpush1.msra.mxu0 0.0
    %840 = vmatprep.subr.mxu0 0.0
    %841 = vmatpush1.msra.mxu0 0.0
    %842 = vmatprep.subr.mxu0 0.0
    %843 = vmatpush1.msra.mxu0 0.0
    %844 = vmatprep.subr.mxu0 0.0
    %845 = vmatpush1.msra.mxu0 0.0
    %846 = vmatprep.subr.mxu0 0.0
    %847 = vmatpush1.msra.mxu0 0.0
    %848 = vmatprep.subr.mxu0 0.0
    %849 = vmatpush1.msra.mxu0 0.0
    %850 = vmatprep.subr.mxu0 0.0
    %851 = vmatpush1.msra.mxu0 0.0
    %852 = vmatprep.subr.mxu0 0.0
    %853 = vmatpush1.msra.mxu0 0.0
    %854 = vmatprep.subr.mxu0 0.0
    %855 = vmatpush1.msra.mxu0 0.0
    %856 = vmatprep.subr.mxu0 0.0
    %857 = vmatpush1.msra.mxu0 0.0
    %858 = vmatprep.subr.mxu0 0.0
    %859 = vmatpush1.msra.mxu0 0.0
    %860 = vmatprep.subr.mxu0 0.0
    %861 = vmatpush1.msra.mxu0 %v38
    %862 = vmatprep.subr.mxu0 0.0
    %863 = vmatpush1.msra.mxu0 %v37
    %864 = vmatprep.subr.mxu0 0.0
    %865 = vmatpush1.msra.mxu0 %v36
    %866 = vmatprep.subr.mxu0 0.0
    %867 = vmatpush1.msra.mxu0 %v35
    %868 = vmatprep.subr.mxu0 0.0
    %869 = vmatpush2.msra.mxu0 0.0
    %870 = vmatprep.subr.mxu0 0.0
    %871 = vmatpush2.msra.mxu0 0.0
    %872 = vmatprep.subr.mxu0 0.0
    %873 = vmatpush2.msra.mxu0 0.0
    %874 = vmatprep.subr.mxu0 0.0
    %875 = vmatpush2.msra.mxu0 0.0
    %876 = vmatprep.subr.mxu0 0.0
    %877 = vmatpush2.msra.mxu0 0.0
    %878 = vmatprep.subr.mxu0 0.0
    %879 = vmatpush2.msra.mxu0 0.0
    %880 = vmatprep.subr.mxu0 0.0
    %881 = vmatpush2.msra.mxu0 0.0
    %882 = vmatprep.subr.mxu0 0.0
    %883 = vmatpush2.msra.mxu0 0.0
    %884 = vmatprep.subr.mxu0 0.0
    %885 = vmatpush2.msra.mxu0 0.0
    %886 = vmatprep.subr.mxu0 0.0
    %887 = vmatpush2.msra.mxu0 0.0
    %888 = vmatprep.subr.mxu0 0.0
    %889 = vmatpush2.msra.mxu0 0.0
    %890 = vmatprep.subr.mxu0 0.0
    %891 = vmatpush2.msra.mxu0 0.0
    %892 = vmatprep.subr.mxu0 0.0
    %893 = vmatpush2.msra.mxu0 0.0
    %894 = vmatprep.subr.mxu0 0.0
    %895 = vmatpush2.msra.mxu0 0.0
    %896 = vmatprep.subr.mxu0 0.0
    %897 = vmatpush2.msra.mxu0 0.0
    %898 = vmatprep.subr.mxu0 0.0
    %899 = vmatpush2.msra.mxu0 0.0
    %900 = vmatprep.mubr.f32.mxu0 0.0
    %901 = vmatmul.mubr.f32.gmra.mxu0 %v834
    %v902 = vpop.f32.mrf.mxu0
    %v903 = vadd.f32 %v59, %v902
    %v904 = vpop.f32.mrf.mxu0
    %905 = vdwg.mxu0
    %v906 = vsel %vm66, %v825, 0
    %908 = vmatprep.subr.mxu0 0.0
    %909 = vmatpush1.msra.mxu0 0.0
    %910 = vmatprep.subr.mxu0 0.0
    %911 = vmatpush1.msra.mxu0 0.0
    %912 = vmatprep.subr.mxu0 0.0
    %913 = vmatpush1.msra.mxu0 0.0
    %914 = vmatprep.subr.mxu0 0.0
    %915 = vmatpush1.msra.mxu0 0.0
    %916 = vmatprep.subr.mxu0 0.0
    %917 = vmatpush1.msra.mxu0 0.0
    %918 = vmatprep.subr.mxu0 0.0
    %919 = vmatpush1.msra.mxu0 0.0
    %920 = vmatprep.subr.mxu0 0.0
    %921 = vmatpush1.msra.mxu0 0.0
    %922 = vmatprep.subr.mxu0 0.0
    %923 = vmatpush1.msra.mxu0 0.0
    %924 = vmatprep.subr.mxu0 0.0
    %925 = vmatpush1.msra.mxu0 0.0
    %926 = vmatprep.subr.mxu0 0.0
    %927 = vmatpush1.msra.mxu0 0.0
    %928 = vmatprep.subr.mxu0 0.0
    %929 = vmatpush1.msra.mxu0 0.0
    %930 = vmatprep.subr.mxu0 0.0
    %931 = vmatpush1.msra.mxu0 0.0
    %932 = vmatprep.subr.mxu0 0.0
    %933 = vmatpush1.msra.mxu0 %v42
    %934 = vmatprep.subr.mxu0 0.0
    %935 = vmatpush1.msra.mxu0 %v41
    %936 = vmatprep.subr.mxu0 0.0
    %937 = vmatpush1.msra.mxu0 %v40
    %938 = vmatprep.subr.mxu0 0.0
    %939 = vmatpush1.msra.mxu0 %v39
    %940 = vmatprep.subr.mxu0 0.0
    %941 = vmatpush2.msra.mxu0 0.0
    %942 = vmatprep.subr.mxu0 0.0
    %943 = vmatpush2.msra.mxu0 0.0
    %944 = vmatprep.subr.mxu0 0.0
    %945 = vmatpush2.msra.mxu0 0.0
    %946 = vmatprep.subr.mxu0 0.0
    %947 = vmatpush2.msra.mxu0 0.0
    %948 = vmatprep.subr.mxu0 0.0
    %949 = vmatpush2.msra.mxu0 0.0
    %950 = vmatprep.subr.mxu0 0.0
    %951 = vmatpush2.msra.mxu0 0.0
    %952 = vmatprep.subr.mxu0 0.0
    %953 = vmatpush2.msra.mxu0 0.0
    %954 = vmatprep.subr.mxu0 0.0
    %955 = vmatpush2.msra.mxu0 0.0
    %956 = vmatprep.subr.mxu0 0.0
    %957 = vmatpush2.msra.mxu0 0.0
    %958 = vmatprep.subr.mxu0 0.0
    %959 = vmatpush2.msra.mxu0 0.0
    %960 = vmatprep.subr.mxu0 0.0
    %961 = vmatpush2.msra.mxu0 0.0
    %962 = vmatprep.subr.mxu0 0.0
    %963 = vmatpush2.msra.mxu0 0.0
    %964 = vmatprep.subr.mxu0 0.0
    %965 = vmatpush2.msra.mxu0 0.0
    %966 = vmatprep.subr.mxu0 0.0
    %967 = vmatpush2.msra.mxu0 0.0
    %968 = vmatprep.subr.mxu0 0.0
    %969 = vmatpush2.msra.mxu0 0.0
    %970 = vmatprep.subr.mxu0 0.0
    %971 = vmatpush2.msra.mxu0 0.0
    %972 = vmatprep.mubr.f32.mxu0 0.0
    %973 = vmatmul.mubr.f32.gmra.mxu0 %v906
    %v974 = vpop.f32.mrf.mxu0
    %v975 = vadd.f32 %v63, %v974
    %v976 = vpop.f32.mrf.mxu0
    %977 = vdwg.mxu0
    %v978 = vadd.f32 %v832, %v903
    %v979 = vadd.f32 %v833, %v975
    %v980 = vxor.u32 %v978, 2147483648
    %v981 = vxor.u32 %v979, 2147483648
    %v982 = vmul.f32 %v980, 1.442695
    %v983 = vpow.pop %v982
    %v984 = vmul.f32 %v981, 1.442695
    %v985 = vpow.pop %v984
    %v986 = vadd.f32 %v983, 1.0
    %v987 = vadd.f32 %v985, 1.0
    %v988 = vrcp.pop %v986
    %v989 = vmul.f32 1.0, %v988
    %v990 = vrcp.pop %v987
    %v991 = vmul.f32 1.0, %v990
    %994 = vrot.lane.b32.xlu0 %v903, 64
    %v995 = vpop.permute.xlu0 %994
    %996 = vrot.lane.b32.xlu0 %v975, 64
    %v997 = vpop.permute.xlu0 %996
    %v1000 = vmul.f32 %v989, %v995
    %v1001 = vmul.f32 %v991, %v997
    %1004 = vrot.lane.b32.xlu0 %v1000, 64
    %v1005 = vpop.permute.xlu0 %1004
    %1006 = vrot.lane.b32.xlu0 %v1001, 64
    %v1007 = vpop.permute.xlu0 %1006
    %v1010 = vadd.f32 %v832, %v1005
    %v1011 = vadd.f32 %v833, %v1007
    %v1012 = vtanh.pop %v1010
    %v1013 = vtanh.pop %v1011
    %v1014 = vsub.f32 1.0, %v989
    %v1015 = vsub.f32 1.0, %v991
    %1018 = vrot.lane.b32.xlu0 %v1012, 96
    %v1019 = vpop.permute.xlu0 %1018
    %1020 = vrot.lane.b32.xlu0 %v1013, 96
    %v1021 = vpop.permute.xlu0 %1020
    %v1024 = vmul.f32 %v1014, %v1019
    %v1025 = vmul.f32 %v1015, %v1021
    %v1026 = vmul.f32 %v989, %v818
    %v1027 = vmul.f32 %v991, %v819
    %v1028 = vadd.f32 %v1024, %v1026
    %v1029 = vadd.f32 %v1025, %v1027
    %s1030 = sadd.s32 %s49, 3
    %s1031 = scvt.s32.f32 %s1030
    %v1032 = vstv %s1031
    %vm1033 = vcmp.ge.f32.partialorder %v1032, %v45
    %vm1034 = vcmp.ge.f32.partialorder %v1032, %v46
    %vm1035 = vcmp.lt.f32.partialorder %v1032, %v47
    %vm1036 = vcmp.lt.f32.partialorder %v1032, %v48
    %vm1037 = vmand %vm1033, %vm1035
    %vm1038 = vmand %vm1034, %vm1036
    %v1039 = vsel %vm1037, 1, 0
    %v1040 = vsel %vm1038, 1, 0
    %v1041 = vcvt.s32.f32 %v1039
    %v1042 = vcvt.s32.f32 %v1040
    %1044 = vset.pattern.permute.xlu0 0
    %1045 = vperm.xlu0 %1044, %v1041
    %v1046 = vpop.permute.xlu0 %1045
    %1049 = vset.pattern.permute.xlu0 0
    %1050 = vperm.xlu0 %1049, %v1042
    %v1051 = vpop.permute.xlu0 %1050
    %v1053 = vmul.f32 %v1046, %v1028
    %v1054 = vmul.f32 %v1051, %v1029
    %v1055 = vsub.f32 1.0, %v1041
    %v1056 = vsub.f32 1.0, %v1042
    %1058 = vset.pattern.permute.xlu0 0
    %1059 = vperm.xlu0 %1058, %v1055
    %v1060 = vpop.permute.xlu0 %1059
    %1063 = vset.pattern.permute.xlu0 0
    %1064 = vperm.xlu0 %1063, %v1056
    %v1065 = vpop.permute.xlu0 %1064
    %v1067 = vmul.f32 %v1060, %v818
    %v1068 = vmul.f32 %v1065, %v819
    %v1069 = vadd.f32 %v1053, %v1067
    %v1070 = vadd.f32 %v1054, %v1068
    %1073 = vrot.lane.b32.xlu0 %v1069, 96
    %v1074 = vpop.permute.xlu0 %1073
    %1075 = vrot.lane.b32.xlu0 %v1070, 96
    %v1076 = vpop.permute.xlu0 %1075
    %s1079 = scalar_lea.vmem [#allocation2], 48
    %1080 = vst.msk [vmem:[%s1079] sm:$0xff] %vm66, %v1074
    %1081 = vst.msk [vmem:[%s1079 + $0x8] sm:$0xff] %vm66, %v1076
    %s1082 = scalar_lea.vmem %s0, 64
    %v1083 = vld [vmem:[%s1082] sm:$0xff]
    %v1084 = vld [vmem:[%s1082 + $0x8] sm:$0xff]
    %v1085 = vsel %vm66, %v1074, 0
    %1087 = vmatprep.subr.mxu0 0.0
    %1088 = vmatpush1.msra.mxu0 0.0
    %1089 = vmatprep.subr.mxu0 0.0
    %1090 = vmatpush1.msra.mxu0 0.0
    %1091 = vmatprep.subr.mxu0 0.0
    %1092 = vmatpush1.msra.mxu0 0.0
    %1093 = vmatprep.subr.mxu0 0.0
    %1094 = vmatpush1.msra.mxu0 0.0
    %1095 = vmatprep.subr.mxu0 0.0
    %1096 = vmatpush1.msra.mxu0 0.0
    %1097 = vmatprep.subr.mxu0 0.0
    %1098 = vmatpush1.msra.mxu0 0.0
    %1099 = vmatprep.subr.mxu0 0.0
    %1100 = vmatpush1.msra.mxu0 0.0
    %1101 = vmatprep.subr.mxu0 0.0
    %1102 = vmatpush1.msra.mxu0 0.0
    %1103 = vmatprep.subr.mxu0 0.0
    %1104 = vmatpush1.msra.mxu0 0.0
    %1105 = vmatprep.subr.mxu0 0.0
    %1106 = vmatpush1.msra.mxu0 0.0
    %1107 = vmatprep.subr.mxu0 0.0
    %1108 = vmatpush1.msra.mxu0 0.0
    %1109 = vmatprep.subr.mxu0 0.0
    %1110 = vmatpush1.msra.mxu0 0.0
    %1111 = vmatprep.subr.mxu0 0.0
    %1112 = vmatpush1.msra.mxu0 %v38
    %1113 = vmatprep.subr.mxu0 0.0
    %1114 = vmatpush1.msra.mxu0 %v37
    %1115 = vmatprep.subr.mxu0 0.0
    %1116 = vmatpush1.msra.mxu0 %v36
    %1117 = vmatprep.subr.mxu0 0.0
    %1118 = vmatpush1.msra.mxu0 %v35
    %1119 = vmatprep.subr.mxu0 0.0
    %1120 = vmatpush2.msra.mxu0 0.0
    %1121 = vmatprep.subr.mxu0 0.0
    %1122 = vmatpush2.msra.mxu0 0.0
    %1123 = vmatprep.subr.mxu0 0.0
    %1124 = vmatpush2.msra.mxu0 0.0
    %1125 = vmatprep.subr.mxu0 0.0
    %1126 = vmatpush2.msra.mxu0 0.0
    %1127 = vmatprep.subr.mxu0 0.0
    %1128 = vmatpush2.msra.mxu0 0.0
    %1129 = vmatprep.subr.mxu0 0.0
    %1130 = vmatpush2.msra.mxu0 0.0
    %1131 = vmatprep.subr.mxu0 0.0
    %1132 = vmatpush2.msra.mxu0 0.0
    %1133 = vmatprep.subr.mxu0 0.0
    %1134 = vmatpush2.msra.mxu0 0.0
    %1135 = vmatprep.subr.mxu0 0.0
    %1136 = vmatpush2.msra.mxu0 0.0
    %1137 = vmatprep.subr.mxu0 0.0
    %1138 = vmatpush2.msra.mxu0 0.0
    %1139 = vmatprep.subr.mxu0 0.0
    %1140 = vmatpush2.msra.mxu0 0.0
    %1141 = vmatprep.subr.mxu0 0.0
    %1142 = vmatpush2.msra.mxu0 0.0
    %1143 = vmatprep.subr.mxu0 0.0
    %1144 = vmatpush2.msra.mxu0 0.0
    %1145 = vmatprep.subr.mxu0 0.0
    %1146 = vmatpush2.msra.mxu0 0.0
    %1147 = vmatprep.subr.mxu0 0.0
    %1148 = vmatpush2.msra.mxu0 0.0
    %1149 = vmatprep.subr.mxu0 0.0
    %1150 = vmatpush2.msra.mxu0 0.0
    %1151 = vmatprep.mubr.f32.mxu0 0.0
    %1152 = vmatmul.mubr.f32.gmra.mxu0 %v1085
    %v1153 = vpop.f32.mrf.mxu0
    %v1154 = vadd.f32 %v59, %v1153
    %v1155 = vpop.f32.mrf.mxu0
    %1156 = vdwg.mxu0
    %v1157 = vsel %vm66, %v1076, 0
    %1159 = vmatprep.subr.mxu0 0.0
    %1160 = vmatpush1.msra.mxu0 0.0
    %1161 = vmatprep.subr.mxu0 0.0
    %1162 = vmatpush1.msra.mxu0 0.0
    %1163 = vmatprep.subr.mxu0 0.0
    %1164 = vmatpush1.msra.mxu0 0.0
    %1165 = vmatprep.subr.mxu0 0.0
    %1166 = vmatpush1.msra.mxu0 0.0
    %1167 = vmatprep.subr.mxu0 0.0
    %1168 = vmatpush1.msra.mxu0 0.0
    %1169 = vmatprep.subr.mxu0 0.0
    %1170 = vmatpush1.msra.mxu0 0.0
    %1171 = vmatprep.subr.mxu0 0.0
    %1172 = vmatpush1.msra.mxu0 0.0
    %1173 = vmatprep.subr.mxu0 0.0
    %1174 = vmatpush1.msra.mxu0 0.0
    %1175 = vmatprep.subr.mxu0 0.0
    %1176 = vmatpush1.msra.mxu0 0.0
    %1177 = vmatprep.subr.mxu0 0.0
    %1178 = vmatpush1.msra.mxu0 0.0
    %1179 = vmatprep.subr.mxu0 0.0
    %1180 = vmatpush1.msra.mxu0 0.0
    %1181 = vmatprep.subr.mxu0 0.0
    %1182 = vmatpush1.msra.mxu0 0.0
    %1183 = vmatprep.subr.mxu0 0.0
    %1184 = vmatpush1.msra.mxu0 %v42
    %1185 = vmatprep.subr.mxu0 0.0
    %1186 = vmatpush1.msra.mxu0 %v41
    %1187 = vmatprep.subr.mxu0 0.0
    %1188 = vmatpush1.msra.mxu0 %v40
    %1189 = vmatprep.subr.mxu0 0.0
    %1190 = vmatpush1.msra.mxu0 %v39
    %1191 = vmatprep.subr.mxu0 0.0
    %1192 = vmatpush2.msra.mxu0 0.0
    %1193 = vmatprep.subr.mxu0 0.0
    %1194 = vmatpush2.msra.mxu0 0.0
    %1195 = vmatprep.subr.mxu0 0.0
    %1196 = vmatpush2.msra.mxu0 0.0
    %1197 = vmatprep.subr.mxu0 0.0
    %1198 = vmatpush2.msra.mxu0 0.0
    %1199 = vmatprep.subr.mxu0 0.0
    %1200 = vmatpush2.msra.mxu0 0.0
    %1201 = vmatprep.subr.mxu0 0.0
    %1202 = vmatpush2.msra.mxu0 0.0
    %1203 = vmatprep.subr.mxu0 0.0
    %1204 = vmatpush2.msra.mxu0 0.0
    %1205 = vmatprep.subr.mxu0 0.0
    %1206 = vmatpush2.msra.mxu0 0.0
    %1207 = vmatprep.subr.mxu0 0.0
    %1208 = vmatpush2.msra.mxu0 0.0
    %1209 = vmatprep.subr.mxu0 0.0
    %1210 = vmatpush2.msra.mxu0 0.0
    %1211 = vmatprep.subr.mxu0 0.0
    %1212 = vmatpush2.msra.mxu0 0.0
    %1213 = vmatprep.subr.mxu0 0.0
    %1214 = vmatpush2.msra.mxu0 0.0
    %1215 = vmatprep.subr.mxu0 0.0
    %1216 = vmatpush2.msra.mxu0 0.0
    %1217 = vmatprep.subr.mxu0 0.0
    %1218 = vmatpush2.msra.mxu0 0.0
    %1219 = vmatprep.subr.mxu0 0.0
    %1220 = vmatpush2.msra.mxu0 0.0
    %1221 = vmatprep.subr.mxu0 0.0
    %1222 = vmatpush2.msra.mxu0 0.0
    %1223 = vmatprep.mubr.f32.mxu0 0.0
    %1224 = vmatmul.mubr.f32.gmra.mxu0 %v1157
    %v1225 = vpop.f32.mrf.mxu0
    %v1226 = vadd.f32 %v63, %v1225
    %v1227 = vpop.f32.mrf.mxu0
    %1228 = vdwg.mxu0
    %v1229 = vadd.f32 %v1083, %v1154
    %v1230 = vadd.f32 %v1084, %v1226
    %v1231 = vxor.u32 %v1229, 2147483648
    %v1232 = vxor.u32 %v1230, 2147483648
    %v1233 = vmul.f32 %v1231, 1.442695
    %v1234 = vpow.pop %v1233
    %v1235 = vmul.f32 %v1232, 1.442695
    %v1236 = vpow.pop %v1235
    %v1237 = vadd.f32 %v1234, 1.0
    %v1238 = vadd.f32 %v1236, 1.0
    %v1239 = vrcp.pop %v1237
    %v1240 = vmul.f32 1.0, %v1239
    %v1241 = vrcp.pop %v1238
    %v1242 = vmul.f32 1.0, %v1241
    %1245 = vrot.lane.b32.xlu0 %v1154, 64
    %v1246 = vpop.permute.xlu0 %1245
    %1247 = vrot.lane.b32.xlu0 %v1226, 64
    %v1248 = vpop.permute.xlu0 %1247
    %v1251 = vmul.f32 %v1240, %v1246
    %v1252 = vmul.f32 %v1242, %v1248
    %1255 = vrot.lane.b32.xlu0 %v1251, 64
    %v1256 = vpop.permute.xlu0 %1255
    %1257 = vrot.lane.b32.xlu0 %v1252, 64
    %v1258 = vpop.permute.xlu0 %1257
    %v1261 = vadd.f32 %v1083, %v1256
    %v1262 = vadd.f32 %v1084, %v1258
    %v1263 = vtanh.pop %v1261
    %v1264 = vtanh.pop %v1262
    %v1265 = vsub.f32 1.0, %v1240
    %v1266 = vsub.f32 1.0, %v1242
    %1269 = vrot.lane.b32.xlu0 %v1263, 96
    %v1270 = vpop.permute.xlu0 %1269
    %1271 = vrot.lane.b32.xlu0 %v1264, 96
    %v1272 = vpop.permute.xlu0 %1271
    %v1275 = vmul.f32 %v1265, %v1270
    %v1276 = vmul.f32 %v1266, %v1272
    %v1277 = vmul.f32 %v1240, %v1069
    %v1278 = vmul.f32 %v1242, %v1070
    %v1279 = vadd.f32 %v1275, %v1277
    %v1280 = vadd.f32 %v1276, %v1278
    %s1281 = sadd.s32 %s49, 4
    %s1282 = scvt.s32.f32 %s1281
    %v1283 = vstv %s1282
    %vm1284 = vcmp.ge.f32.partialorder %v1283, %v45
    %vm1285 = vcmp.ge.f32.partialorder %v1283, %v46
    %vm1286 = vcmp.lt.f32.partialorder %v1283, %v47
    %vm1287 = vcmp.lt.f32.partialorder %v1283, %v48
    %vm1288 = vmand %vm1284, %vm1286
    %vm1289 = vmand %vm1285, %vm1287
    %v1290 = vsel %vm1288, 1, 0
    %v1291 = vsel %vm1289, 1, 0
    %v1292 = vcvt.s32.f32 %v1290
    %v1293 = vcvt.s32.f32 %v1291
    %1295 = vset.pattern.permute.xlu0 0
    %1296 = vperm.xlu0 %1295, %v1292
    %v1297 = vpop.permute.xlu0 %1296
    %1300 = vset.pattern.permute.xlu0 0
    %1301 = vperm.xlu0 %1300, %v1293
    %v1302 = vpop.permute.xlu0 %1301
    %v1304 = vmul.f32 %v1297, %v1279
    %v1305 = vmul.f32 %v1302, %v1280
    %v1306 = vsub.f32 1.0, %v1292
    %v1307 = vsub.f32 1.0, %v1293
    %1309 = vset.pattern.permute.xlu0 0
    %1310 = vperm.xlu0 %1309, %v1306
    %v1311 = vpop.permute.xlu0 %1310
    %1314 = vset.pattern.permute.xlu0 0
    %1315 = vperm.xlu0 %1314, %v1307
    %v1316 = vpop.permute.xlu0 %1315
    %v1318 = vmul.f32 %v1311, %v1069
    %v1319 = vmul.f32 %v1316, %v1070
    %v1320 = vadd.f32 %v1304, %v1318
    %v1321 = vadd.f32 %v1305, %v1319
    %1324 = vrot.lane.b32.xlu0 %v1320, 96
    %v1325 = vpop.permute.xlu0 %1324
    %1326 = vrot.lane.b32.xlu0 %v1321, 96
    %v1327 = vpop.permute.xlu0 %1326
    %s1330 = scalar_lea.vmem [#allocation2], 64
    %1331 = vst.msk [vmem:[%s1330] sm:$0xff] %vm66, %v1325
    %1332 = vst.msk [vmem:[%s1330 + $0x8] sm:$0xff] %vm66, %v1327
    %s1333 = scalar_lea.vmem %s0, 80
    %v1334 = vld [vmem:[%s1333] sm:$0xff]
    %v1335 = vld [vmem:[%s1333 + $0x8] sm:$0xff]
    %v1336 = vsel %vm66, %v1325, 0
    %1338 = vmatprep.subr.mxu0 0.0
    %1339 = vmatpush1.msra.mxu0 0.0
    %1340 = vmatprep.subr.mxu0 0.0
    %1341 = vmatpush1.msra.mxu0 0.0
    %1342 = vmatprep.subr.mxu0 0.0
    %1343 = vmatpush1.msra.mxu0 0.0
    %1344 = vmatprep.subr.mxu0 0.0
    %1345 = vmatpush1.msra.mxu0 0.0
    %1346 = vmatprep.subr.mxu0 0.0
    %1347 = vmatpush1.msra.mxu0 0.0
    %1348 = vmatprep.subr.mxu0 0.0
    %1349 = vmatpush1.msra.mxu0 0.0
    %1350 = vmatprep.subr.mxu0 0.0
    %1351 = vmatpush1.msra.mxu0 0.0
    %1352 = vmatprep.subr.mxu0 0.0
    %1353 = vmatpush1.msra.mxu0 0.0
    %1354 = vmatprep.subr.mxu0 0.0
    %1355 = vmatpush1.msra.mxu0 0.0
    %1356 = vmatprep.subr.mxu0 0.0
    %1357 = vmatpush1.msra.mxu0 0.0
    %1358 = vmatprep.subr.mxu0 0.0
    %1359 = vmatpush1.msra.mxu0 0.0
    %1360 = vmatprep.subr.mxu0 0.0
    %1361 = vmatpush1.msra.mxu0 0.0
    %1362 = vmatprep.subr.mxu0 0.0
    %1363 = vmatpush1.msra.mxu0 %v38
    %1364 = vmatprep.subr.mxu0 0.0
    %1365 = vmatpush1.msra.mxu0 %v37
    %1366 = vmatprep.subr.mxu0 0.0
    %1367 = vmatpush1.msra.mxu0 %v36
    %1368 = vmatprep.subr.mxu0 0.0
    %1369 = vmatpush1.msra.mxu0 %v35
    %1370 = vmatprep.subr.mxu0 0.0
    %1371 = vmatpush2.msra.mxu0 0.0
    %1372 = vmatprep.subr.mxu0 0.0
    %1373 = vmatpush2.msra.mxu0 0.0
    %1374 = vmatprep.subr.mxu0 0.0
    %1375 = vmatpush2.msra.mxu0 0.0
    %1376 = vmatprep.subr.mxu0 0.0
    %1377 = vmatpush2.msra.mxu0 0.0
    %1378 = vmatprep.subr.mxu0 0.0
    %1379 = vmatpush2.msra.mxu0 0.0
    %1380 = vmatprep.subr.mxu0 0.0
    %1381 = vmatpush2.msra.mxu0 0.0
    %1382 = vmatprep.subr.mxu0 0.0
    %1383 = vmatpush2.msra.mxu0 0.0
    %1384 = vmatprep.subr.mxu0 0.0
    %1385 = vmatpush2.msra.mxu0 0.0
    %1386 = vmatprep.subr.mxu0 0.0
    %1387 = vmatpush2.msra.mxu0 0.0
    %1388 = vmatprep.subr.mxu0 0.0
    %1389 = vmatpush2.msra.mxu0 0.0
    %1390 = vmatprep.subr.mxu0 0.0
    %1391 = vmatpush2.msra.mxu0 0.0
    %1392 = vmatprep.subr.mxu0 0.0
    %1393 = vmatpush2.msra.mxu0 0.0
    %1394 = vmatprep.subr.mxu0 0.0
    %1395 = vmatpush2.msra.mxu0 0.0
    %1396 = vmatprep.subr.mxu0 0.0
    %1397 = vmatpush2.msra.mxu0 0.0
    %1398 = vmatprep.subr.mxu0 0.0
    %1399 = vmatpush2.msra.mxu0 0.0
    %1400 = vmatprep.subr.mxu0 0.0
    %1401 = vmatpush2.msra.mxu0 0.0
    %1402 = vmatprep.mubr.f32.mxu0 0.0
    %1403 = vmatmul.mubr.f32.gmra.mxu0 %v1336
    %v1404 = vpop.f32.mrf.mxu0
    %v1405 = vadd.f32 %v59, %v1404
    %v1406 = vpop.f32.mrf.mxu0
    %1407 = vdwg.mxu0
    %v1408 = vsel %vm66, %v1327, 0
    %1410 = vmatprep.subr.mxu0 0.0
    %1411 = vmatpush1.msra.mxu0 0.0
    %1412 = vmatprep.subr.mxu0 0.0
    %1413 = vmatpush1.msra.mxu0 0.0
    %1414 = vmatprep.subr.mxu0 0.0
    %1415 = vmatpush1.msra.mxu0 0.0
    %1416 = vmatprep.subr.mxu0 0.0
    %1417 = vmatpush1.msra.mxu0 0.0
    %1418 = vmatprep.subr.mxu0 0.0
    %1419 = vmatpush1.msra.mxu0 0.0
    %1420 = vmatprep.subr.mxu0 0.0
    %1421 = vmatpush1.msra.mxu0 0.0
    %1422 = vmatprep.subr.mxu0 0.0
    %1423 = vmatpush1.msra.mxu0 0.0
    %1424 = vmatprep.subr.mxu0 0.0
    %1425 = vmatpush1.msra.mxu0 0.0
    %1426 = vmatprep.subr.mxu0 0.0
    %1427 = vmatpush1.msra.mxu0 0.0
    %1428 = vmatprep.subr.mxu0 0.0
    %1429 = vmatpush1.msra.mxu0 0.0
    %1430 = vmatprep.subr.mxu0 0.0
    %1431 = vmatpush1.msra.mxu0 0.0
    %1432 = vmatprep.subr.mxu0 0.0
    %1433 = vmatpush1.msra.mxu0 0.0
    %1434 = vmatprep.subr.mxu0 0.0
    %1435 = vmatpush1.msra.mxu0 %v42
    %1436 = vmatprep.subr.mxu0 0.0
    %1437 = vmatpush1.msra.mxu0 %v41
    %1438 = vmatprep.subr.mxu0 0.0
    %1439 = vmatpush1.msra.mxu0 %v40
    %1440 = vmatprep.subr.mxu0 0.0
    %1441 = vmatpush1.msra.mxu0 %v39
    %1442 = vmatprep.subr.mxu0 0.0
    %1443 = vmatpush2.msra.mxu0 0.0
    %1444 = vmatprep.subr.mxu0 0.0
    %1445 = vmatpush2.msra.mxu0 0.0
    %1446 = vmatprep.subr.mxu0 0.0
    %1447 = vmatpush2.msra.mxu0 0.0
    %1448 = vmatprep.subr.mxu0 0.0
    %1449 = vmatpush2.msra.mxu0 0.0
    %1450 = vmatprep.subr.mxu0 0.0
    %1451 = vmatpush2.msra.mxu0 0.0
    %1452 = vmatprep.subr.mxu0 0.0
    %1453 = vmatpush2.msra.mxu0 0.0
    %1454 = vmatprep.subr.mxu0 0.0
    %1455 = vmatpush2.msra.mxu0 0.0
    %1456 = vmatprep.subr.mxu0 0.0
    %1457 = vmatpush2.msra.mxu0 0.0
    %1458 = vmatprep.subr.mxu0 0.0
    %1459 = vmatpush2.msra.mxu0 0.0
    %1460 = vmatprep.subr.mxu0 0.0
    %1461 = vmatpush2.msra.mxu0 0.0
    %1462 = vmatprep.subr.mxu0 0.0
    %1463 = vmatpush2.msra.mxu0 0.0
    %1464 = vmatprep.subr.mxu0 0.0
    %1465 = vmatpush2.msra.mxu0 0.0
    %1466 = vmatprep.subr.mxu0 0.0
    %1467 = vmatpush2.msra.mxu0 0.0
    %1468 = vmatprep.subr.mxu0 0.0
    %1469 = vmatpush2.msra.mxu0 0.0
    %1470 = vmatprep.subr.mxu0 0.0
    %1471 = vmatpush2.msra.mxu0 0.0
    %1472 = vmatprep.subr.mxu0 0.0
    %1473 = vmatpush2.msra.mxu0 0.0
    %1474 = vmatprep.mubr.f32.mxu0 0.0
    %1475 = vmatmul.mubr.f32.gmra.mxu0 %v1408
    %v1476 = vpop.f32.mrf.mxu0
    %v1477 = vadd.f32 %v63, %v1476
    %v1478 = vpop.f32.mrf.mxu0
    %1479 = vdwg.mxu0
    %v1480 = vadd.f32 %v1334, %v1405
    %v1481 = vadd.f32 %v1335, %v1477
    %v1482 = vxor.u32 %v1480, 2147483648
    %v1483 = vxor.u32 %v1481, 2147483648
    %v1484 = vmul.f32 %v1482, 1.442695
    %v1485 = vpow.pop %v1484
    %v1486 = vmul.f32 %v1483, 1.442695
    %v1487 = vpow.pop %v1486
    %v1488 = vadd.f32 %v1485, 1.0
    %v1489 = vadd.f32 %v1487, 1.0
    %v1490 = vrcp.pop %v1488
    %v1491 = vmul.f32 1.0, %v1490
    %v1492 = vrcp.pop %v1489
    %v1493 = vmul.f32 1.0, %v1492
    %1496 = vrot.lane.b32.xlu0 %v1405, 64
    %v1497 = vpop.permute.xlu0 %1496
    %1498 = vrot.lane.b32.xlu0 %v1477, 64
    %v1499 = vpop.permute.xlu0 %1498
    %v1502 = vmul.f32 %v1491, %v1497
    %v1503 = vmul.f32 %v1493, %v1499
    %1506 = vrot.lane.b32.xlu0 %v1502, 64
    %v1507 = vpop.permute.xlu0 %1506
    %1508 = vrot.lane.b32.xlu0 %v1503, 64
    %v1509 = vpop.permute.xlu0 %1508
    %v1512 = vadd.f32 %v1334, %v1507
    %v1513 = vadd.f32 %v1335, %v1509
    %v1514 = vtanh.pop %v1512
    %v1515 = vtanh.pop %v1513
    %v1516 = vsub.f32 1.0, %v1491
    %v1517 = vsub.f32 1.0, %v1493
    %1520 = vrot.lane.b32.xlu0 %v1514, 96
    %v1521 = vpop.permute.xlu0 %1520
    %1522 = vrot.lane.b32.xlu0 %v1515, 96
    %v1523 = vpop.permute.xlu0 %1522
    %v1526 = vmul.f32 %v1516, %v1521
    %v1527 = vmul.f32 %v1517, %v1523
    %v1528 = vmul.f32 %v1491, %v1320
    %v1529 = vmul.f32 %v1493, %v1321
    %v1530 = vadd.f32 %v1526, %v1528
    %v1531 = vadd.f32 %v1527, %v1529
    %s1532 = sadd.s32 %s49, 5
    %s1533 = scvt.s32.f32 %s1532
    %v1534 = vstv %s1533
    %vm1535 = vcmp.ge.f32.partialorder %v1534, %v45
    %vm1536 = vcmp.ge.f32.partialorder %v1534, %v46
    %vm1537 = vcmp.lt.f32.partialorder %v1534, %v47
    %vm1538 = vcmp.lt.f32.partialorder %v1534, %v48
    %vm1539 = vmand %vm1535, %vm1537
    %vm1540 = vmand %vm1536, %vm1538
    %v1541 = vsel %vm1539, 1, 0
    %v1542 = vsel %vm1540, 1, 0
    %v1543 = vcvt.s32.f32 %v1541
    %v1544 = vcvt.s32.f32 %v1542
    %1546 = vset.pattern.permute.xlu0 0
    %1547 = vperm.xlu0 %1546, %v1543
    %v1548 = vpop.permute.xlu0 %1547
    %1551 = vset.pattern.permute.xlu0 0
    %1552 = vperm.xlu0 %1551, %v1544
    %v1553 = vpop.permute.xlu0 %1552
    %v1555 = vmul.f32 %v1548, %v1530
    %v1556 = vmul.f32 %v1553, %v1531
    %v1557 = vsub.f32 1.0, %v1543
    %v1558 = vsub.f32 1.0, %v1544
    %1560 = vset.pattern.permute.xlu0 0
    %1561 = vperm.xlu0 %1560, %v1557
    %v1562 = vpop.permute.xlu0 %1561
    %1565 = vset.pattern.permute.xlu0 0
    %1566 = vperm.xlu0 %1565, %v1558
    %v1567 = vpop.permute.xlu0 %1566
    %v1569 = vmul.f32 %v1562, %v1320
    %v1570 = vmul.f32 %v1567, %v1321
    %v1571 = vadd.f32 %v1555, %v1569
    %v1572 = vadd.f32 %v1556, %v1570
    %1575 = vrot.lane.b32.xlu0 %v1571, 96
    %v1576 = vpop.permute.xlu0 %1575
    %1577 = vrot.lane.b32.xlu0 %v1572, 96
    %v1578 = vpop.permute.xlu0 %1577
    %s1581 = scalar_lea.vmem [#allocation2], 80
    %1582 = vst.msk [vmem:[%s1581] sm:$0xff] %vm66, %v1576
    %1583 = vst.msk [vmem:[%s1581 + $0x8] sm:$0xff] %vm66, %v1578
    %s1584 = scalar_lea.vmem %s0, 96
    %v1585 = vld [vmem:[%s1584] sm:$0xff]
    %v1586 = vld [vmem:[%s1584 + $0x8] sm:$0xff]
    %v1587 = vsel %vm66, %v1576, 0
    %1589 = vmatprep.subr.mxu0 0.0
    %1590 = vmatpush1.msra.mxu0 0.0
    %1591 = vmatprep.subr.mxu0 0.0
    %1592 = vmatpush1.msra.mxu0 0.0
    %1593 = vmatprep.subr.mxu0 0.0
    %1594 = vmatpush1.msra.mxu0 0.0
    %1595 = vmatprep.subr.mxu0 0.0
    %1596 = vmatpush1.msra.mxu0 0.0
    %1597 = vmatprep.subr.mxu0 0.0
    %1598 = vmatpush1.msra.mxu0 0.0
    %1599 = vmatprep.subr.mxu0 0.0
    %1600 = vmatpush1.msra.mxu0 0.0
    %1601 = vmatprep.subr.mxu0 0.0
    %1602 = vmatpush1.msra.mxu0 0.0
    %1603 = vmatprep.subr.mxu0 0.0
    %1604 = vmatpush1.msra.mxu0 0.0
    %1605 = vmatprep.subr.mxu0 0.0
    %1606 = vmatpush1.msra.mxu0 0.0
    %1607 = vmatprep.subr.mxu0 0.0
    %1608 = vmatpush1.msra.mxu0 0.0
    %1609 = vmatprep.subr.mxu0 0.0
    %1610 = vmatpush1.msra.mxu0 0.0
    %1611 = vmatprep.subr.mxu0 0.0
    %1612 = vmatpush1.msra.mxu0 0.0
    %1613 = vmatprep.subr.mxu0 0.0
    %1614 = vmatpush1.msra.mxu0 %v38
    %1615 = vmatprep.subr.mxu0 0.0
    %1616 = vmatpush1.msra.mxu0 %v37
    %1617 = vmatprep.subr.mxu0 0.0
    %1618 = vmatpush1.msra.mxu0 %v36
    %1619 = vmatprep.subr.mxu0 0.0
    %1620 = vmatpush1.msra.mxu0 %v35
    %1621 = vmatprep.subr.mxu0 0.0
    %1622 = vmatpush2.msra.mxu0 0.0
    %1623 = vmatprep.subr.mxu0 0.0
    %1624 = vmatpush2.msra.mxu0 0.0
    %1625 = vmatprep.subr.mxu0 0.0
    %1626 = vmatpush2.msra.mxu0 0.0
    %1627 = vmatprep.subr.mxu0 0.0
    %1628 = vmatpush2.msra.mxu0 0.0
    %1629 = vmatprep.subr.mxu0 0.0
    %1630 = vmatpush2.msra.mxu0 0.0
    %1631 = vmatprep.subr.mxu0 0.0
    %1632 = vmatpush2.msra.mxu0 0.0
    %1633 = vmatprep.subr.mxu0 0.0
    %1634 = vmatpush2.msra.mxu0 0.0
    %1635 = vmatprep.subr.mxu0 0.0
    %1636 = vmatpush2.msra.mxu0 0.0
    %1637 = vmatprep.subr.mxu0 0.0
    %1638 = vmatpush2.msra.mxu0 0.0
    %1639 = vmatprep.subr.mxu0 0.0
    %1640 = vmatpush2.msra.mxu0 0.0
    %1641 = vmatprep.subr.mxu0 0.0
    %1642 = vmatpush2.msra.mxu0 0.0
    %1643 = vmatprep.subr.mxu0 0.0
    %1644 = vmatpush2.msra.mxu0 0.0
    %1645 = vmatprep.subr.mxu0 0.0
    %1646 = vmatpush2.msra.mxu0 0.0
    %1647 = vmatprep.subr.mxu0 0.0
    %1648 = vmatpush2.msra.mxu0 0.0
    %1649 = vmatprep.subr.mxu0 0.0
    %1650 = vmatpush2.msra.mxu0 0.0
    %1651 = vmatprep.subr.mxu0 0.0
    %1652 = vmatpush2.msra.mxu0 0.0
    %1653 = vmatprep.mubr.f32.mxu0 0.0
    %1654 = vmatmul.mubr.f32.gmra.mxu0 %v1587
    %v1655 = vpop.f32.mrf.mxu0
    %v1656 = vadd.f32 %v59, %v1655
    %v1657 = vpop.f32.mrf.mxu0
    %1658 = vdwg.mxu0
    %v1659 = vsel %vm66, %v1578, 0
    %1661 = vmatprep.subr.mxu0 0.0
    %1662 = vmatpush1.msra.mxu0 0.0
    %1663 = vmatprep.subr.mxu0 0.0
    %1664 = vmatpush1.msra.mxu0 0.0
    %1665 = vmatprep.subr.mxu0 0.0
    %1666 = vmatpush1.msra.mxu0 0.0
    %1667 = vmatprep.subr.mxu0 0.0
    %1668 = vmatpush1.msra.mxu0 0.0
    %1669 = vmatprep.subr.mxu0 0.0
    %1670 = vmatpush1.msra.mxu0 0.0
    %1671 = vmatprep.subr.mxu0 0.0
    %1672 = vmatpush1.msra.mxu0 0.0
    %1673 = vmatprep.subr.mxu0 0.0
    %1674 = vmatpush1.msra.mxu0 0.0
    %1675 = vmatprep.subr.mxu0 0.0
    %1676 = vmatpush1.msra.mxu0 0.0
    %1677 = vmatprep.subr.mxu0 0.0
    %1678 = vmatpush1.msra.mxu0 0.0
    %1679 = vmatprep.subr.mxu0 0.0
    %1680 = vmatpush1.msra.mxu0 0.0
    %1681 = vmatprep.subr.mxu0 0.0
    %1682 = vmatpush1.msra.mxu0 0.0
    %1683 = vmatprep.subr.mxu0 0.0
    %1684 = vmatpush1.msra.mxu0 0.0
    %1685 = vmatprep.subr.mxu0 0.0
    %1686 = vmatpush1.msra.mxu0 %v42
    %1687 = vmatprep.subr.mxu0 0.0
    %1688 = vmatpush1.msra.mxu0 %v41
    %1689 = vmatprep.subr.mxu0 0.0
    %1690 = vmatpush1.msra.mxu0 %v40
    %1691 = vmatprep.subr.mxu0 0.0
    %1692 = vmatpush1.msra.mxu0 %v39
    %1693 = vmatprep.subr.mxu0 0.0
    %1694 = vmatpush2.msra.mxu0 0.0
    %1695 = vmatprep.subr.mxu0 0.0
    %1696 = vmatpush2.msra.mxu0 0.0
    %1697 = vmatprep.subr.mxu0 0.0
    %1698 = vmatpush2.msra.mxu0 0.0
    %1699 = vmatprep.subr.mxu0 0.0
    %1700 = vmatpush2.msra.mxu0 0.0
    %1701 = vmatprep.subr.mxu0 0.0
    %1702 = vmatpush2.msra.mxu0 0.0
    %1703 = vmatprep.subr.mxu0 0.0
    %1704 = vmatpush2.msra.mxu0 0.0
    %1705 = vmatprep.subr.mxu0 0.0
    %1706 = vmatpush2.msra.mxu0 0.0
    %1707 = vmatprep.subr.mxu0 0.0
    %1708 = vmatpush2.msra.mxu0 0.0
    %1709 = vmatprep.subr.mxu0 0.0
    %1710 = vmatpush2.msra.mxu0 0.0
    %1711 = vmatprep.subr.mxu0 0.0
    %1712 = vmatpush2.msra.mxu0 0.0
    %1713 = vmatprep.subr.mxu0 0.0
    %1714 = vmatpush2.msra.mxu0 0.0
    %1715 = vmatprep.subr.mxu0 0.0
    %1716 = vmatpush2.msra.mxu0 0.0
    %1717 = vmatprep.subr.mxu0 0.0
    %1718 = vmatpush2.msra.mxu0 0.0
    %1719 = vmatprep.subr.mxu0 0.0
    %1720 = vmatpush2.msra.mxu0 0.0
    %1721 = vmatprep.subr.mxu0 0.0
    %1722 = vmatpush2.msra.mxu0 0.0
    %1723 = vmatprep.subr.mxu0 0.0
    %1724 = vmatpush2.msra.mxu0 0.0
    %1725 = vmatprep.mubr.f32.mxu0 0.0
    %1726 = vmatmul.mubr.f32.gmra.mxu0 %v1659
    %v1727 = vpop.f32.mrf.mxu0
    %v1728 = vadd.f32 %v63, %v1727
    %v1729 = vpop.f32.mrf.mxu0
    %1730 = vdwg.mxu0
    %v1731 = vadd.f32 %v1585, %v1656
    %v1732 = vadd.f32 %v1586, %v1728
    %v1733 = vxor.u32 %v1731, 2147483648
    %v1734 = vxor.u32 %v1732, 2147483648
    %v1735 = vmul.f32 %v1733, 1.442695
    %v1736 = vpow.pop %v1735
    %v1737 = vmul.f32 %v1734, 1.442695
    %v1738 = vpow.pop %v1737
    %v1739 = vadd.f32 %v1736, 1.0
    %v1740 = vadd.f32 %v1738, 1.0
    %v1741 = vrcp.pop %v1739
    %v1742 = vmul.f32 1.0, %v1741
    %v1743 = vrcp.pop %v1740
    %v1744 = vmul.f32 1.0, %v1743
    %1747 = vrot.lane.b32.xlu0 %v1656, 64
    %v1748 = vpop.permute.xlu0 %1747
    %1749 = vrot.lane.b32.xlu0 %v1728, 64
    %v1750 = vpop.permute.xlu0 %1749
    %v1753 = vmul.f32 %v1742, %v1748
    %v1754 = vmul.f32 %v1744, %v1750
    %1757 = vrot.lane.b32.xlu0 %v1753, 64
    %v1758 = vpop.permute.xlu0 %1757
    %1759 = vrot.lane.b32.xlu0 %v1754, 64
    %v1760 = vpop.permute.xlu0 %1759
    %v1763 = vadd.f32 %v1585, %v1758
    %v1764 = vadd.f32 %v1586, %v1760
    %v1765 = vtanh.pop %v1763
    %v1766 = vtanh.pop %v1764
    %v1767 = vsub.f32 1.0, %v1742
    %v1768 = vsub.f32 1.0, %v1744
    %1771 = vrot.lane.b32.xlu0 %v1765, 96
    %v1772 = vpop.permute.xlu0 %1771
    %1773 = vrot.lane.b32.xlu0 %v1766, 96
    %v1774 = vpop.permute.xlu0 %1773
    %v1777 = vmul.f32 %v1767, %v1772
    %v1778 = vmul.f32 %v1768, %v1774
    %v1779 = vmul.f32 %v1742, %v1571
    %v1780 = vmul.f32 %v1744, %v1572
    %v1781 = vadd.f32 %v1777, %v1779
    %v1782 = vadd.f32 %v1778, %v1780
    %s1783 = sadd.s32 %s49, 6
    %s1784 = scvt.s32.f32 %s1783
    %v1785 = vstv %s1784
    %vm1786 = vcmp.ge.f32.partialorder %v1785, %v45
    %vm1787 = vcmp.ge.f32.partialorder %v1785, %v46
    %vm1788 = vcmp.lt.f32.partialorder %v1785, %v47
    %vm1789 = vcmp.lt.f32.partialorder %v1785, %v48
    %vm1790 = vmand %vm1786, %vm1788
    %vm1791 = vmand %vm1787, %vm1789
    %v1792 = vsel %vm1790, 1, 0
    %v1793 = vsel %vm1791, 1, 0
    %v1794 = vcvt.s32.f32 %v1792
    %v1795 = vcvt.s32.f32 %v1793
    %1797 = vset.pattern.permute.xlu0 0
    %1798 = vperm.xlu0 %1797, %v1794
    %v1799 = vpop.permute.xlu0 %1798
    %1802 = vset.pattern.permute.xlu0 0
    %1803 = vperm.xlu0 %1802, %v1795
    %v1804 = vpop.permute.xlu0 %1803
    %v1806 = vmul.f32 %v1799, %v1781
    %v1807 = vmul.f32 %v1804, %v1782
    %v1808 = vsub.f32 1.0, %v1794
    %v1809 = vsub.f32 1.0, %v1795
    %1811 = vset.pattern.permute.xlu0 0
    %1812 = vperm.xlu0 %1811, %v1808
    %v1813 = vpop.permute.xlu0 %1812
    %1816 = vset.pattern.permute.xlu0 0
    %1817 = vperm.xlu0 %1816, %v1809
    %v1818 = vpop.permute.xlu0 %1817
    %v1820 = vmul.f32 %v1813, %v1571
    %v1821 = vmul.f32 %v1818, %v1572
    %v1822 = vadd.f32 %v1806, %v1820
    %v1823 = vadd.f32 %v1807, %v1821
    %1826 = vrot.lane.b32.xlu0 %v1822, 96
    %v1827 = vpop.permute.xlu0 %1826
    %1828 = vrot.lane.b32.xlu0 %v1823, 96
    %v1829 = vpop.permute.xlu0 %1828
    %s1832 = scalar_lea.vmem [#allocation2], 96
    %1833 = vst.msk [vmem:[%s1832] sm:$0xff] %vm66, %v1827
    %1834 = vst.msk [vmem:[%s1832 + $0x8] sm:$0xff] %vm66, %v1829
    %s1835 = scalar_lea.vmem %s0, 112
    %v1836 = vld [vmem:[%s1835] sm:$0xff]
    %v1837 = vld [vmem:[%s1835 + $0x8] sm:$0xff]
    %v1838 = vsel %vm66, %v1827, 0
    %1840 = vmatprep.subr.mxu0 0.0
    %1841 = vmatpush1.msra.mxu0 0.0
    %1842 = vmatprep.subr.mxu0 0.0
    %1843 = vmatpush1.msra.mxu0 0.0
    %1844 = vmatprep.subr.mxu0 0.0
    %1845 = vmatpush1.msra.mxu0 0.0
    %1846 = vmatprep.subr.mxu0 0.0
    %1847 = vmatpush1.msra.mxu0 0.0
    %1848 = vmatprep.subr.mxu0 0.0
    %1849 = vmatpush1.msra.mxu0 0.0
    %1850 = vmatprep.subr.mxu0 0.0
    %1851 = vmatpush1.msra.mxu0 0.0
    %1852 = vmatprep.subr.mxu0 0.0
    %1853 = vmatpush1.msra.mxu0 0.0
    %1854 = vmatprep.subr.mxu0 0.0
    %1855 = vmatpush1.msra.mxu0 0.0
    %1856 = vmatprep.subr.mxu0 0.0
    %1857 = vmatpush1.msra.mxu0 0.0
    %1858 = vmatprep.subr.mxu0 0.0
    %1859 = vmatpush1.msra.mxu0 0.0
    %1860 = vmatprep.subr.mxu0 0.0
    %1861 = vmatpush1.msra.mxu0 0.0
    %1862 = vmatprep.subr.mxu0 0.0
    %1863 = vmatpush1.msra.mxu0 0.0
    %1864 = vmatprep.subr.mxu0 0.0
    %1865 = vmatpush1.msra.mxu0 %v38
    %1866 = vmatprep.subr.mxu0 0.0
    %1867 = vmatpush1.msra.mxu0 %v37
    %1868 = vmatprep.subr.mxu0 0.0
    %1869 = vmatpush1.msra.mxu0 %v36
    %1870 = vmatprep.subr.mxu0 0.0
    %1871 = vmatpush1.msra.mxu0 %v35
    %1872 = vmatprep.subr.mxu0 0.0
    %1873 = vmatpush2.msra.mxu0 0.0
    %1874 = vmatprep.subr.mxu0 0.0
    %1875 = vmatpush2.msra.mxu0 0.0
    %1876 = vmatprep.subr.mxu0 0.0
    %1877 = vmatpush2.msra.mxu0 0.0
    %1878 = vmatprep.subr.mxu0 0.0
    %1879 = vmatpush2.msra.mxu0 0.0
    %1880 = vmatprep.subr.mxu0 0.0
    %1881 = vmatpush2.msra.mxu0 0.0
    %1882 = vmatprep.subr.mxu0 0.0
    %1883 = vmatpush2.msra.mxu0 0.0
    %1884 = vmatprep.subr.mxu0 0.0
    %1885 = vmatpush2.msra.mxu0 0.0
    %1886 = vmatprep.subr.mxu0 0.0
    %1887 = vmatpush2.msra.mxu0 0.0
    %1888 = vmatprep.subr.mxu0 0.0
    %1889 = vmatpush2.msra.mxu0 0.0
    %1890 = vmatprep.subr.mxu0 0.0
    %1891 = vmatpush2.msra.mxu0 0.0
    %1892 = vmatprep.subr.mxu0 0.0
    %1893 = vmatpush2.msra.mxu0 0.0
    %1894 = vmatprep.subr.mxu0 0.0
    %1895 = vmatpush2.msra.mxu0 0.0
    %1896 = vmatprep.subr.mxu0 0.0
    %1897 = vmatpush2.msra.mxu0 0.0
    %1898 = vmatprep.subr.mxu0 0.0
    %1899 = vmatpush2.msra.mxu0 0.0
    %1900 = vmatprep.subr.mxu0 0.0
    %1901 = vmatpush2.msra.mxu0 0.0
    %1902 = vmatprep.subr.mxu0 0.0
    %1903 = vmatpush2.msra.mxu0 0.0
    %1904 = vmatprep.mubr.f32.mxu0 0.0
    %1905 = vmatmul.mubr.f32.gmra.mxu0 %v1838
    %v1906 = vpop.f32.mrf.mxu0
    %v1907 = vadd.f32 %v59, %v1906
    %v1908 = vpop.f32.mrf.mxu0
    %1909 = vdwg.mxu0
    %v1910 = vsel %vm66, %v1829, 0
    %1912 = vmatprep.subr.mxu0 0.0
    %1913 = vmatpush1.msra.mxu0 0.0
    %1914 = vmatprep.subr.mxu0 0.0
    %1915 = vmatpush1.msra.mxu0 0.0
    %1916 = vmatprep.subr.mxu0 0.0
    %1917 = vmatpush1.msra.mxu0 0.0
    %1918 = vmatprep.subr.mxu0 0.0
    %1919 = vmatpush1.msra.mxu0 0.0
    %1920 = vmatprep.subr.mxu0 0.0
    %1921 = vmatpush1.msra.mxu0 0.0
    %1922 = vmatprep.subr.mxu0 0.0
    %1923 = vmatpush1.msra.mxu0 0.0
    %1924 = vmatprep.subr.mxu0 0.0
    %1925 = vmatpush1.msra.mxu0 0.0
    %1926 = vmatprep.subr.mxu0 0.0
    %1927 = vmatpush1.msra.mxu0 0.0
    %1928 = vmatprep.subr.mxu0 0.0
    %1929 = vmatpush1.msra.mxu0 0.0
    %1930 = vmatprep.subr.mxu0 0.0
    %1931 = vmatpush1.msra.mxu0 0.0
    %1932 = vmatprep.subr.mxu0 0.0
    %1933 = vmatpush1.msra.mxu0 0.0
    %1934 = vmatprep.subr.mxu0 0.0
    %1935 = vmatpush1.msra.mxu0 0.0
    %1936 = vmatprep.subr.mxu0 0.0
    %1937 = vmatpush1.msra.mxu0 %v42
    %1938 = vmatprep.subr.mxu0 0.0
    %1939 = vmatpush1.msra.mxu0 %v41
    %1940 = vmatprep.subr.mxu0 0.0
    %1941 = vmatpush1.msra.mxu0 %v40
    %1942 = vmatprep.subr.mxu0 0.0
    %1943 = vmatpush1.msra.mxu0 %v39
    %1944 = vmatprep.subr.mxu0 0.0
    %1945 = vmatpush2.msra.mxu0 0.0
    %1946 = vmatprep.subr.mxu0 0.0
    %1947 = vmatpush2.msra.mxu0 0.0
    %1948 = vmatprep.subr.mxu0 0.0
    %1949 = vmatpush2.msra.mxu0 0.0
    %1950 = vmatprep.subr.mxu0 0.0
    %1951 = vmatpush2.msra.mxu0 0.0
    %1952 = vmatprep.subr.mxu0 0.0
    %1953 = vmatpush2.msra.mxu0 0.0
    %1954 = vmatprep.subr.mxu0 0.0
    %1955 = vmatpush2.msra.mxu0 0.0
    %1956 = vmatprep.subr.mxu0 0.0
    %1957 = vmatpush2.msra.mxu0 0.0
    %1958 = vmatprep.subr.mxu0 0.0
    %1959 = vmatpush2.msra.mxu0 0.0
    %1960 = vmatprep.subr.mxu0 0.0
    %1961 = vmatpush2.msra.mxu0 0.0
    %1962 = vmatprep.subr.mxu0 0.0
    %1963 = vmatpush2.msra.mxu0 0.0
    %1964 = vmatprep.subr.mxu0 0.0
    %1965 = vmatpush2.msra.mxu0 0.0
    %1966 = vmatprep.subr.mxu0 0.0
    %1967 = vmatpush2.msra.mxu0 0.0
    %1968 = vmatprep.subr.mxu0 0.0
    %1969 = vmatpush2.msra.mxu0 0.0
    %1970 = vmatprep.subr.mxu0 0.0
    %1971 = vmatpush2.msra.mxu0 0.0
    %1972 = vmatprep.subr.mxu0 0.0
    %1973 = vmatpush2.msra.mxu0 0.0
    %1974 = vmatprep.subr.mxu0 0.0
    %1975 = vmatpush2.msra.mxu0 0.0
    %1976 = vmatprep.mubr.f32.mxu0 0.0
    %1977 = vmatmul.mubr.f32.gmra.mxu0 %v1910
    %v1978 = vpop.f32.mrf.mxu0
    %v1979 = vadd.f32 %v63, %v1978
    %v1980 = vpop.f32.mrf.mxu0
    %1981 = vdwg.mxu0
    %v1982 = vadd.f32 %v1836, %v1907
    %v1983 = vadd.f32 %v1837, %v1979
    %v1984 = vxor.u32 %v1982, 2147483648
    %v1985 = vxor.u32 %v1983, 2147483648
    %v1986 = vmul.f32 %v1984, 1.442695
    %v1987 = vpow.pop %v1986
    %v1988 = vmul.f32 %v1985, 1.442695
    %v1989 = vpow.pop %v1988
    %v1990 = vadd.f32 %v1987, 1.0
    %v1991 = vadd.f32 %v1989, 1.0
    %v1992 = vrcp.pop %v1990
    %v1993 = vmul.f32 1.0, %v1992
    %v1994 = vrcp.pop %v1991
    %v1995 = vmul.f32 1.0, %v1994
    %1998 = vrot.lane.b32.xlu0 %v1907, 64
    %v1999 = vpop.permute.xlu0 %1998
    %2000 = vrot.lane.b32.xlu0 %v1979, 64
    %v2001 = vpop.permute.xlu0 %2000
    %v2004 = vmul.f32 %v1993, %v1999
    %v2005 = vmul.f32 %v1995, %v2001
    %2008 = vrot.lane.b32.xlu0 %v2004, 64
    %v2009 = vpop.permute.xlu0 %2008
    %2010 = vrot.lane.b32.xlu0 %v2005, 64
    %v2011 = vpop.permute.xlu0 %2010
    %v2014 = vadd.f32 %v1836, %v2009
    %v2015 = vadd.f32 %v1837, %v2011
    %v2016 = vtanh.pop %v2014
    %v2017 = vtanh.pop %v2015
    %v2018 = vsub.f32 1.0, %v1993
    %v2019 = vsub.f32 1.0, %v1995
    %2022 = vrot.lane.b32.xlu0 %v2016, 96
    %v2023 = vpop.permute.xlu0 %2022
    %2024 = vrot.lane.b32.xlu0 %v2017, 96
    %v2025 = vpop.permute.xlu0 %2024
    %v2028 = vmul.f32 %v2018, %v2023
    %v2029 = vmul.f32 %v2019, %v2025
    %v2030 = vmul.f32 %v1993, %v1822
    %v2031 = vmul.f32 %v1995, %v1823
    %v2032 = vadd.f32 %v2028, %v2030
    %v2033 = vadd.f32 %v2029, %v2031
    %s2034 = sadd.s32 %s49, 7
    %s2035 = scvt.s32.f32 %s2034
    %v2036 = vstv %s2035
    %vm2037 = vcmp.ge.f32.partialorder %v2036, %v45
    %vm2038 = vcmp.ge.f32.partialorder %v2036, %v46
    %vm2039 = vcmp.lt.f32.partialorder %v2036, %v47
    %vm2040 = vcmp.lt.f32.partialorder %v2036, %v48
    %vm2041 = vmand %vm2037, %vm2039
    %vm2042 = vmand %vm2038, %vm2040
    %v2043 = vsel %vm2041, 1, 0
    %v2044 = vsel %vm2042, 1, 0
    %v2045 = vcvt.s32.f32 %v2043
    %v2046 = vcvt.s32.f32 %v2044
    %2048 = vset.pattern.permute.xlu0 0
    %2049 = vperm.xlu0 %2048, %v2045
    %v2050 = vpop.permute.xlu0 %2049
    %2053 = vset.pattern.permute.xlu0 0
    %2054 = vperm.xlu0 %2053, %v2046
    %v2055 = vpop.permute.xlu0 %2054
    %v2057 = vmul.f32 %v2050, %v2032
    %v2058 = vmul.f32 %v2055, %v2033
    %v2059 = vsub.f32 1.0, %v2045
    %v2060 = vsub.f32 1.0, %v2046
    %2062 = vset.pattern.permute.xlu0 0
    %2063 = vperm.xlu0 %2062, %v2059
    %v2064 = vpop.permute.xlu0 %2063
    %2067 = vset.pattern.permute.xlu0 0
    %2068 = vperm.xlu0 %2067, %v2060
    %v2069 = vpop.permute.xlu0 %2068
    %v2071 = vmul.f32 %v2064, %v1822
    %v2072 = vmul.f32 %v2069, %v1823
    %v2073 = vadd.f32 %v2057, %v2071
    %v2074 = vadd.f32 %v2058, %v2072
    %2077 = vrot.lane.b32.xlu0 %v2073, 96
    %v2078 = vpop.permute.xlu0 %2077
    %2079 = vrot.lane.b32.xlu0 %v2074, 96
    %v2080 = vpop.permute.xlu0 %2079
    %s2083 = scalar_lea.vmem [#allocation2], 112
    %2084 = vst.msk [vmem:[%s2083] sm:$0xff] %vm66, %v2078
    %2085 = vst.msk [vmem:[%s2083 + $0x8] sm:$0xff] %vm66, %v2080
    %2086 = vst.msk [vmem:[%s7] sm:$0xff] %vm66, %v2078
    %2087 = vst.msk [vmem:[%s7 + $0x8] sm:$0xff] %vm66, %v2080
    // Predicated region
    $region30: #{hred_forward.5} parent=1 // pred_check
      _
    $region31: #{hred_forward.5} parent=1 // pred_check_branch
      %2089 = sbr.rel (0) target = $region33
    $region32: #{hred_forward.5} parent=1 // pred_region
      %s2091 = ssub.s32 2048, 2048
      %2092 = vsyncadd [#allocation3], %s2091
      %s2093 = sshll.u32 [#allocation2], 4
      %s2094 = int_to_ptr.vmem [resolvable:$true] %s2093
      %2099 = dma.vmem_to_hbm [thread:$0]  %s2094, 2048, %s6, [#allocation3], 128, 128, 8
    $region33: #{hred_forward.5} parent=1 // pred_fallthru
      _
    // Predicated region
    $region34: #{hred_forward.5} parent=1 // pred_check
      _
    $region35: #{hred_forward.5} parent=1 // pred_check_branch
      %2101 = sbr.rel (0) target = $region37
    $region36: #{hred_forward.5} parent=1 // pred_region
      _
    $region37: #{hred_forward.5} parent=1 // pred_fallthru
      _
    // Predicated region
    $region38: #{hred_forward.5} parent=1 // pred_check
      _
    $region39: #{hred_forward.5} parent=1 // pred_check_branch
      %2103 = sbr.rel (0) target = $region41
    $region40: #{hred_forward.5} parent=1 // pred_region
      %2104 = dma.done [#allocation3], 2048
    $region41: #{hred_forward.5} parent=1 // pred_fallthru
      _
    // Predicated region
    $region42: #{hred_forward.5} parent=1 // pred_check
      _
    $region43: #{hred_forward.5} parent=1 // pred_check_branch
      %2106 = sbr.rel (0) target = $region45
    $region44: #{hred_forward.5} parent=1 // pred_region
      _
    $region45: #{hred_forward.5} parent=1 // pred_fallthru
      _
    %2107 = vsyncpa [#allocation3], 1

// kernel: hred_forward.6
$region0: #{hred_forward.6}
  #allocation0 [shape = 'u32[]', space=smem, size = 0x4, offset = 0x4, fixed_abs, tag = 'smem constant byte address 0x4 - core index']
  #allocation1 [shape = 'u32[144,128]{1,0:T(1,128)}', space=vmem, size = 0x12000, scoped, tag = 'internal scratch']
  %s0 = inlined_call_operand.vmem [shape: f32[3,2,8,96], index: 0, kind: input, shape index: {}]
  %s1 = inlined_call_operand.vmem [shape: f32[2,8,32], index: 1, kind: input, shape index: {}]
  %s2 = inlined_call_operand.vmem [shape: f32[2,32,96], index: 2, kind: input, shape index: {}]
  %s3 = inlined_call_operand.vmem [shape: f32[2,1,96], index: 3, kind: input, shape index: {}]
  %s4 = inlined_call_operand.vmem [shape: f32[2,8,1], index: 4, kind: input, shape index: {}]
  %s5 = inlined_call_operand.vmem [shape: f32[2,8,1], index: 5, kind: input, shape index: {}]
  %s6 = inlined_call_operand.vmem [shape: f32[3,2,8,32], index: 6, kind: output, shape index: {0}]
  %s7 = inlined_call_operand.vmem [shape: f32[2,8,32], index: 7, kind: output, shape index: {1}]
  %8 = xla_tuple %s6, %s7
  %s9 = sld [smem:[#allocation0]]
  $region46: #{hred_forward.6} parent=0
    _
  %s11 = ssub.s32 1, %s9
  %s12 = scalar_select 0, %s11, %s9
  // Predicated region
  $region2: #{hred_forward.6} parent=0 // pred_check
    _
  $region3: #{hred_forward.6} parent=0 // pred_check_branch
    %14 = sbr.rel (0) target = $region5
  $region4: #{hred_forward.6} parent=0 // pred_region
    _
  $region5: #{hred_forward.6} parent=0 // pred_fallthru
    _
  // Predicated region
  $region6: #{hred_forward.6} parent=0 // pred_check
    _
  $region7: #{hred_forward.6} parent=0 // pred_check_branch
    %16 = sbr.rel (0) target = $region9
  $region8: #{hred_forward.6} parent=0 // pred_region
    _
  $region9: #{hred_forward.6} parent=0 // pred_fallthru
    _
  // Predicated region
  $region10: #{hred_forward.6} parent=0 // pred_check
    _
  $region11: #{hred_forward.6} parent=0 // pred_check_branch
    %18 = sbr.rel (0) target = $region13
  $region12: #{hred_forward.6} parent=0 // pred_region
    _
  $region13: #{hred_forward.6} parent=0 // pred_fallthru
    _
  // Predicated region
  $region14: #{hred_forward.6} parent=0 // pred_check
    _
  $region15: #{hred_forward.6} parent=0 // pred_check_branch
    %20 = sbr.rel (0) target = $region17
  $region16: #{hred_forward.6} parent=0 // pred_region
    _
  $region17: #{hred_forward.6} parent=0 // pred_fallthru
    _
  // Predicated region
  $region18: #{hred_forward.6} parent=0 // pred_check
    _
  $region19: #{hred_forward.6} parent=0 // pred_check_branch
    %22 = sbr.rel (0) target = $region21
  $region20: #{hred_forward.6} parent=0 // pred_region
    _
  $region21: #{hred_forward.6} parent=0 // pred_fallthru
    _
  // Predicated region
  $region22: #{hred_forward.6} parent=0 // pred_check
    _
  $region23: #{hred_forward.6} parent=0 // pred_check_branch
    %24 = sbr.rel (0) target = $region25
  $region24: #{hred_forward.6} parent=0 // pred_region
    _
  $region25: #{hred_forward.6} parent=0 // pred_fallthru
    _
  %p25 = scmp.eq.s32.totalorder 0, 0
  // Predicated region
  $region26: #{hred_forward.6} parent=0 // pred_check
    %p26 = pneg %p25
  $region27: #{hred_forward.6} parent=0 // pred_check_branch
    %28 = sbr.rel (%p26) target = $region29
  $region28: #{hred_forward.6} parent=0 // pred_region
    %v29 = vld [vmem:[%s1] sm:$0xff]
    %v30 = vld [vmem:[%s1 + $0x8] sm:$0xff]
    %vm31 = vcmask 261120
    %32 = vst.msk [vmem:[%s7] sm:$0xff] %vm31, %v29
    %33 = vst.msk [vmem:[%s7 + $0x8] sm:$0xff] %vm31, %v30
  $region29: #{hred_forward.6} parent=0 // pred_fallthru
    _
  %v34 = vld [vmem:[%s2] sm:$0xff]
  %v35 = vld [vmem:[%s2 + $0x8] sm:$0xff]
  %v36 = vld [vmem:[%s2 + $0x10] sm:$0xff]
  %v37 = vld [vmem:[%s2 + $0x18] sm:$0xff]
  %v38 = vld [vmem:[%s2 + $0x20] sm:$0xff]
  %v39 = vld [vmem:[%s2 + $0x28] sm:$0xff]
  %v40 = vld [vmem:[%s2 + $0x30] sm:$0xff]
  %v41 = vld [vmem:[%s2 + $0x38] sm:$0xff]
  %v42 = vld [vmem:[%s3] sm:$0x1]
  %v43 = vld [vmem:[%s3 + $0x1] sm:$0x1]
  %v44 = vld [vmem:[%s4] sm:$0xff]
  %v45 = vld [vmem:[%s4 + $0x8] sm:$0xff]
  %v46 = vld [vmem:[%s5] sm:$0xff]
  %v47 = vld [vmem:[%s5 + $0x8] sm:$0xff]
  %s48 = smul.u32 0, 3
  %v49 = vld [vmem:[%s7] sm:$0xff]
  %v50 = vld [vmem:[%s7 + $0x8] sm:$0xff]
  %v51 = vld [vmem:[%s0] sm:$0xff]
  %v52 = vld [vmem:[%s0 + $0x8] sm:$0xff]
  %v55 = vlaneseq
  %v56 = vshrl.u32 %v55, 7
  %v57 = vsub.s32 0, %v56
  %v58 = vrot.slane %v42, %v57
  %v59 = vlaneseq
  %v60 = vshrl.u32 %v59, 7
  %v61 = vsub.s32 0, %v60
  %v62 = vrot.slane %v43, %v61
  %vm65 = vcmask 261120
  %v67 = vsel %vm65, %v49, 0
  %69 = vmatprep.subr.mxu0 0.0
  %70 = vmatpush1.msra.mxu0 0.0
  %71 = vmatprep.subr.mxu0 0.0
  %72 = vmatpush1.msra.mxu0 0.0
  %73 = vmatprep.subr.mxu0 0.0
  %74 = vmatpush1.msra.mxu0 0.0
  %75 = vmatprep.subr.mxu0 0.0
  %76 = vmatpush1.msra.mxu0 0.0
  %77 = vmatprep.subr.mxu0 0.0
  %78 = vmatpush1.msra.mxu0 0.0
  %79 = vmatprep.subr.mxu0 0.0
  %80 = vmatpush1.msra.mxu0 0.0
  %81 = vmatprep.subr.mxu0 0.0
  %82 = vmatpush1.msra.mxu0 0.0
  %83 = vmatprep.subr.mxu0 0.0
  %84 = vmatpush1.msra.mxu0 0.0
  %85 = vmatprep.subr.mxu0 0.0
  %86 = vmatpush1.msra.mxu0 0.0
  %87 = vmatprep.subr.mxu0 0.0
  %88 = vmatpush1.msra.mxu0 0.0
  %89 = vmatprep.subr.mxu0 0.0
  %90 = vmatpush1.msra.mxu0 0.0
  %91 = vmatprep.subr.mxu0 0.0
  %92 = vmatpush1.msra.mxu0 0.0
  %93 = vmatprep.subr.mxu0 0.0
  %94 = vmatpush1.msra.mxu0 %v37
  %95 = vmatprep.subr.mxu0 0.0
  %96 = vmatpush1.msra.mxu0 %v36
  %97 = vmatprep.subr.mxu0 0.0
  %98 = vmatpush1.msra.mxu0 %v35
  %99 = vmatprep.subr.mxu0 0.0
  %100 = vmatpush1.msra.mxu0 %v34
  %101 = vmatprep.subr.mxu0 0.0
  %102 = vmatpush2.msra.mxu0 0.0
  %103 = vmatprep.subr.mxu0 0.0
  %104 = vmatpush2.msra.mxu0 0.0
  %105 = vmatprep.subr.mxu0 0.0
  %106 = vmatpush2.msra.mxu0 0.0
  %107 = vmatprep.subr.mxu0 0.0
  %108 = vmatpush2.msra.mxu0 0.0
  %109 = vmatprep.subr.mxu0 0.0
  %110 = vmatpush2.msra.mxu0 0.0
  %111 = vmatprep.subr.mxu0 0.0
  %112 = vmatpush2.msra.mxu0 0.0
  %113 = vmatprep.subr.mxu0 0.0
  %114 = vmatpush2.msra.mxu0 0.0
  %115 = vmatprep.subr.mxu0 0.0
  %116 = vmatpush2.msra.mxu0 0.0
  %117 = vmatprep.subr.mxu0 0.0
  %118 = vmatpush2.msra.mxu0 0.0
  %119 = vmatprep.subr.mxu0 0.0
  %120 = vmatpush2.msra.mxu0 0.0
  %121 = vmatprep.subr.mxu0 0.0
  %122 = vmatpush2.msra.mxu0 0.0
  %123 = vmatprep.subr.mxu0 0.0
  %124 = vmatpush2.msra.mxu0 0.0
  %125 = vmatprep.subr.mxu0 0.0
  %126 = vmatpush2.msra.mxu0 0.0
  %127 = vmatprep.subr.mxu0 0.0
  %128 = vmatpush2.msra.mxu0 0.0
  %129 = vmatprep.subr.mxu0 0.0
  %130 = vmatpush2.msra.mxu0 0.0
  %131 = vmatprep.subr.mxu0 0.0
  %132 = vmatpush2.msra.mxu0 0.0
  %133 = vmatprep.mubr.f32.mxu0 0.0
  %134 = vmatmul.mubr.f32.gmra.mxu0 %v67
  %v135 = vpop.f32.mrf.mxu0
  %v136 = vadd.f32 %v58, %v135
  %v137 = vpop.f32.mrf.mxu0
  %138 = vdwg.mxu0
  %v140 = vsel %vm65, %v50, 0
  %142 = vmatprep.subr.mxu0 0.0
  %143 = vmatpush1.msra.mxu0 0.0
  %144 = vmatprep.subr.mxu0 0.0
  %145 = vmatpush1.msra.mxu0 0.0
  %146 = vmatprep.subr.mxu0 0.0
  %147 = vmatpush1.msra.mxu0 0.0
  %148 = vmatprep.subr.mxu0 0.0
  %149 = vmatpush1.msra.mxu0 0.0
  %150 = vmatprep.subr.mxu0 0.0
  %151 = vmatpush1.msra.mxu0 0.0
  %152 = vmatprep.subr.mxu0 0.0
  %153 = vmatpush1.msra.mxu0 0.0
  %154 = vmatprep.subr.mxu0 0.0
  %155 = vmatpush1.msra.mxu0 0.0
  %156 = vmatprep.subr.mxu0 0.0
  %157 = vmatpush1.msra.mxu0 0.0
  %158 = vmatprep.subr.mxu0 0.0
  %159 = vmatpush1.msra.mxu0 0.0
  %160 = vmatprep.subr.mxu0 0.0
  %161 = vmatpush1.msra.mxu0 0.0
  %162 = vmatprep.subr.mxu0 0.0
  %163 = vmatpush1.msra.mxu0 0.0
  %164 = vmatprep.subr.mxu0 0.0
  %165 = vmatpush1.msra.mxu0 0.0
  %166 = vmatprep.subr.mxu0 0.0
  %167 = vmatpush1.msra.mxu0 %v41
  %168 = vmatprep.subr.mxu0 0.0
  %169 = vmatpush1.msra.mxu0 %v40
  %170 = vmatprep.subr.mxu0 0.0
  %171 = vmatpush1.msra.mxu0 %v39
  %172 = vmatprep.subr.mxu0 0.0
  %173 = vmatpush1.msra.mxu0 %v38
  %174 = vmatprep.subr.mxu0 0.0
  %175 = vmatpush2.msra.mxu0 0.0
  %176 = vmatprep.subr.mxu0 0.0
  %177 = vmatpush2.msra.mxu0 0.0
  %178 = vmatprep.subr.mxu0 0.0
  %179 = vmatpush2.msra.mxu0 0.0
  %180 = vmatprep.subr.mxu0 0.0
  %181 = vmatpush2.msra.mxu0 0.0
  %182 = vmatprep.subr.mxu0 0.0
  %183 = vmatpush2.msra.mxu0 0.0
  %184 = vmatprep.subr.mxu0 0.0
  %185 = vmatpush2.msra.mxu0 0.0
  %186 = vmatprep.subr.mxu0 0.0
  %187 = vmatpush2.msra.mxu0 0.0
  %188 = vmatprep.subr.mxu0 0.0
  %189 = vmatpush2.msra.mxu0 0.0
  %190 = vmatprep.subr.mxu0 0.0
  %191 = vmatpush2.msra.mxu0 0.0
  %192 = vmatprep.subr.mxu0 0.0
  %193 = vmatpush2.msra.mxu0 0.0
  %194 = vmatprep.subr.mxu0 0.0
  %195 = vmatpush2.msra.mxu0 0.0
  %196 = vmatprep.subr.mxu0 0.0
  %197 = vmatpush2.msra.mxu0 0.0
  %198 = vmatprep.subr.mxu0 0.0
  %199 = vmatpush2.msra.mxu0 0.0
  %200 = vmatprep.subr.mxu0 0.0
  %201 = vmatpush2.msra.mxu0 0.0
  %202 = vmatprep.subr.mxu0 0.0
  %203 = vmatpush2.msra.mxu0 0.0
  %204 = vmatprep.subr.mxu0 0.0
  %205 = vmatpush2.msra.mxu0 0.0
  %206 = vmatprep.mubr.f32.mxu0 0.0
  %207 = vmatmul.mubr.f32.gmra.mxu0 %v140
  %v208 = vpop.f32.mrf.mxu0
  %v209 = vadd.f32 %v62, %v208
  %v210 = vpop.f32.mrf.mxu0
  %211 = vdwg.mxu0
  %v212 = vadd.f32 %v51, %v136
  %v213 = vadd.f32 %v52, %v209
  %v214 = vxor.u32 %v212, 2147483648
  %v215 = vxor.u32 %v213, 2147483648
  %v216 = vmul.f32 %v214, 1.442695
  %v217 = vpow.pop %v216
  %v218 = vmul.f32 %v215, 1.442695
  %v219 = vpow.pop %v218
  %v220 = vadd.f32 %v217, 1.0
  %v221 = vadd.f32 %v219, 1.0
  %v222 = vrcp.pop %v220
  %v223 = vmul.f32 1.0, %v222
  %v224 = vrcp.pop %v221
  %v225 = vmul.f32 1.0, %v224
  %228 = vrot.lane.b32.xlu0 %v136, 64
  %v229 = vpop.permute.xlu0 %228
  %230 = vrot.lane.b32.xlu0 %v209, 64
  %v231 = vpop.permute.xlu0 %230
  %v234 = vmul.f32 %v223, %v229
  %v235 = vmul.f32 %v225, %v231
  %238 = vrot.lane.b32.xlu0 %v234, 64
  %v239 = vpop.permute.xlu0 %238
  %240 = vrot.lane.b32.xlu0 %v235, 64
  %v241 = vpop.permute.xlu0 %240
  %v244 = vadd.f32 %v51, %v239
  %v245 = vadd.f32 %v52, %v241
  %v246 = vtanh.pop %v244
  %v247 = vtanh.pop %v245
  %v248 = vsub.f32 1.0, %v223
  %v249 = vsub.f32 1.0, %v225
  %252 = vrot.lane.b32.xlu0 %v246, 96
  %v253 = vpop.permute.xlu0 %252
  %254 = vrot.lane.b32.xlu0 %v247, 96
  %v255 = vpop.permute.xlu0 %254
  %v258 = vmul.f32 %v248, %v253
  %v259 = vmul.f32 %v249, %v255
  %260 = vrot.lane.b32.xlu0 %v49, 32
  %v261 = vpop.permute.xlu0 %260
  %262 = vrot.lane.b32.xlu0 %v50, 32
  %v263 = vpop.permute.xlu0 %262
  %v266 = vmul.f32 %v223, %v261
  %v267 = vmul.f32 %v225, %v263
  %v268 = vadd.f32 %v258, %v266
  %v269 = vadd.f32 %v259, %v267
  %s270 = scvt.s32.f32 %s48
  %v271 = vstv %s270
  %vm272 = vcmp.ge.f32.partialorder %v271, %v44
  %vm273 = vcmp.ge.f32.partialorder %v271, %v45
  %vm274 = vcmp.lt.f32.partialorder %v271, %v46
  %vm275 = vcmp.lt.f32.partialorder %v271, %v47
  %vm276 = vmand %vm272, %vm274
  %vm277 = vmand %vm273, %vm275
  %v278 = vsel %vm276, 1, 0
  %v279 = vsel %vm277, 1, 0
  %v280 = vcvt.s32.f32 %v278
  %v281 = vcvt.s32.f32 %v279
  %283 = vset.pattern.permute.xlu0 0
  %284 = vperm.xlu0 %283, %v280
  %v285 = vpop.permute.xlu0 %284
  %288 = vset.pattern.permute.xlu0 0
  %289 = vperm.xlu0 %288, %v281
  %v290 = vpop.permute.xlu0 %289
  %v292 = vmul.f32 %v285, %v268
  %v293 = vmul.f32 %v290, %v269
  %v294 = vsub.f32 1.0, %v280
  %v295 = vsub.f32 1.0, %v281
  %297 = vset.pattern.permute.xlu0 0
  %298 = vperm.xlu0 %297, %v294
  %v299 = vpop.permute.xlu0 %298
  %302 = vset.pattern.permute.xlu0 0
  %303 = vperm.xlu0 %302, %v295
  %v304 = vpop.permute.xlu0 %303
  %v306 = vmul.f32 %v299, %v49
  %v307 = vmul.f32 %v304, %v50
  %310 = vrot.lane.b32.xlu0 %v306, 32
  %v311 = vpop.permute.xlu0 %310
  %312 = vrot.lane.b32.xlu0 %v307, 32
  %v313 = vpop.permute.xlu0 %312
  %v316 = vadd.f32 %v292, %v311
  %v317 = vadd.f32 %v293, %v313
  %320 = vrot.lane.b32.xlu0 %v316, 96
  %v321 = vpop.permute.xlu0 %320
  %322 = vrot.lane.b32.xlu0 %v317, 96
  %v323 = vpop.permute.xlu0 %322
  %326 = vst.msk [vmem:[%s6] sm:$0xff] %vm65, %v321
  %327 = vst.msk [vmem:[%s6 + $0x8] sm:$0xff] %vm65, %v323
  %s328 = scalar_lea.vmem %s0, 16
  %v329 = vld [vmem:[%s328] sm:$0xff]
  %v330 = vld [vmem:[%s328 + $0x8] sm:$0xff]
  %v331 = vsel %vm65, %v321, 0
  %333 = vmatprep.subr.mxu0 0.0
  %334 = vmatpush1.msra.mxu0 0.0
  %335 = vmatprep.subr.mxu0 0.0
  %336 = vmatpush1.msra.mxu0 0.0
  %337 = vmatprep.subr.mxu0 0.0
  %338 = vmatpush1.msra.mxu0 0.0
  %339 = vmatprep.subr.mxu0 0.0
  %340 = vmatpush1.msra.mxu0 0.0
  %341 = vmatprep.subr.mxu0 0.0
  %342 = vmatpush1.msra.mxu0 0.0
  %343 = vmatprep.subr.mxu0 0.0
  %344 = vmatpush1.msra.mxu0 0.0
  %345 = vmatprep.subr.mxu0 0.0
  %346 = vmatpush1.msra.mxu0 0.0
  %347 = vmatprep.subr.mxu0 0.0
  %348 = vmatpush1.msra.mxu0 0.0
  %349 = vmatprep.subr.mxu0 0.0
  %350 = vmatpush1.msra.mxu0 0.0
  %351 = vmatprep.subr.mxu0 0.0
  %352 = vmatpush1.msra.mxu0 0.0
  %353 = vmatprep.subr.mxu0 0.0
  %354 = vmatpush1.msra.mxu0 0.0
  %355 = vmatprep.subr.mxu0 0.0
  %356 = vmatpush1.msra.mxu0 0.0
  %357 = vmatprep.subr.mxu0 0.0
  %358 = vmatpush1.msra.mxu0 %v37
  %359 = vmatprep.subr.mxu0 0.0
  %360 = vmatpush1.msra.mxu0 %v36
  %361 = vmatprep.subr.mxu0 0.0
  %362 = vmatpush1.msra.mxu0 %v35
  %363 = vmatprep.subr.mxu0 0.0
  %364 = vmatpush1.msra.mxu0 %v34
  %365 = vmatprep.subr.mxu0 0.0
  %366 = vmatpush2.msra.mxu0 0.0
  %367 = vmatprep.subr.mxu0 0.0
  %368 = vmatpush2.msra.mxu0 0.0
  %369 = vmatprep.subr.mxu0 0.0
  %370 = vmatpush2.msra.mxu0 0.0
  %371 = vmatprep.subr.mxu0 0.0
  %372 = vmatpush2.msra.mxu0 0.0
  %373 = vmatprep.subr.mxu0 0.0
  %374 = vmatpush2.msra.mxu0 0.0
  %375 = vmatprep.subr.mxu0 0.0
  %376 = vmatpush2.msra.mxu0 0.0
  %377 = vmatprep.subr.mxu0 0.0
  %378 = vmatpush2.msra.mxu0 0.0
  %379 = vmatprep.subr.mxu0 0.0
  %380 = vmatpush2.msra.mxu0 0.0
  %381 = vmatprep.subr.mxu0 0.0
  %382 = vmatpush2.msra.mxu0 0.0
  %383 = vmatprep.subr.mxu0 0.0
  %384 = vmatpush2.msra.mxu0 0.0
  %385 = vmatprep.subr.mxu0 0.0
  %386 = vmatpush2.msra.mxu0 0.0
  %387 = vmatprep.subr.mxu0 0.0
  %388 = vmatpush2.msra.mxu0 0.0
  %389 = vmatprep.subr.mxu0 0.0
  %390 = vmatpush2.msra.mxu0 0.0
  %391 = vmatprep.subr.mxu0 0.0
  %392 = vmatpush2.msra.mxu0 0.0
  %393 = vmatprep.subr.mxu0 0.0
  %394 = vmatpush2.msra.mxu0 0.0
  %395 = vmatprep.subr.mxu0 0.0
  %396 = vmatpush2.msra.mxu0 0.0
  %397 = vmatprep.mubr.f32.mxu0 0.0
  %398 = vmatmul.mubr.f32.gmra.mxu0 %v331
  %v399 = vpop.f32.mrf.mxu0
  %v400 = vadd.f32 %v58, %v399
  %v401 = vpop.f32.mrf.mxu0
  %402 = vdwg.mxu0
  %v403 = vsel %vm65, %v323, 0
  %405 = vmatprep.subr.mxu0 0.0
  %406 = vmatpush1.msra.mxu0 0.0
  %407 = vmatprep.subr.mxu0 0.0
  %408 = vmatpush1.msra.mxu0 0.0
  %409 = vmatprep.subr.mxu0 0.0
  %410 = vmatpush1.msra.mxu0 0.0
  %411 = vmatprep.subr.mxu0 0.0
  %412 = vmatpush1.msra.mxu0 0.0
  %413 = vmatprep.subr.mxu0 0.0
  %414 = vmatpush1.msra.mxu0 0.0
  %415 = vmatprep.subr.mxu0 0.0
  %416 = vmatpush1.msra.mxu0 0.0
  %417 = vmatprep.subr.mxu0 0.0
  %418 = vmatpush1.msra.mxu0 0.0
  %419 = vmatprep.subr.mxu0 0.0
  %420 = vmatpush1.msra.mxu0 0.0
  %421 = vmatprep.subr.mxu0 0.0
  %422 = vmatpush1.msra.mxu0 0.0
  %423 = vmatprep.subr.mxu0 0.0
  %424 = vmatpush1.msra.mxu0 0.0
  %425 = vmatprep.subr.mxu0 0.0
  %426 = vmatpush1.msra.mxu0 0.0
  %427 = vmatprep.subr.mxu0 0.0
  %428 = vmatpush1.msra.mxu0 0.0
  %429 = vmatprep.subr.mxu0 0.0
  %430 = vmatpush1.msra.mxu0 %v41
  %431 = vmatprep.subr.mxu0 0.0
  %432 = vmatpush1.msra.mxu0 %v40
  %433 = vmatprep.subr.mxu0 0.0
  %434 = vmatpush1.msra.mxu0 %v39
  %435 = vmatprep.subr.mxu0 0.0
  %436 = vmatpush1.msra.mxu0 %v38
  %437 = vmatprep.subr.mxu0 0.0
  %438 = vmatpush2.msra.mxu0 0.0
  %439 = vmatprep.subr.mxu0 0.0
  %440 = vmatpush2.msra.mxu0 0.0
  %441 = vmatprep.subr.mxu0 0.0
  %442 = vmatpush2.msra.mxu0 0.0
  %443 = vmatprep.subr.mxu0 0.0
  %444 = vmatpush2.msra.mxu0 0.0
  %445 = vmatprep.subr.mxu0 0.0
  %446 = vmatpush2.msra.mxu0 0.0
  %447 = vmatprep.subr.mxu0 0.0
  %448 = vmatpush2.msra.mxu0 0.0
  %449 = vmatprep.subr.mxu0 0.0
  %450 = vmatpush2.msra.mxu0 0.0
  %451 = vmatprep.subr.mxu0 0.0
  %452 = vmatpush2.msra.mxu0 0.0
  %453 = vmatprep.subr.mxu0 0.0
  %454 = vmatpush2.msra.mxu0 0.0
  %455 = vmatprep.subr.mxu0 0.0
  %456 = vmatpush2.msra.mxu0 0.0
  %457 = vmatprep.subr.mxu0 0.0
  %458 = vmatpush2.msra.mxu0 0.0
  %459 = vmatprep.subr.mxu0 0.0
  %460 = vmatpush2.msra.mxu0 0.0
  %461 = vmatprep.subr.mxu0 0.0
  %462 = vmatpush2.msra.mxu0 0.0
  %463 = vmatprep.subr.mxu0 0.0
  %464 = vmatpush2.msra.mxu0 0.0
  %465 = vmatprep.subr.mxu0 0.0
  %466 = vmatpush2.msra.mxu0 0.0
  %467 = vmatprep.subr.mxu0 0.0
  %468 = vmatpush2.msra.mxu0 0.0
  %469 = vmatprep.mubr.f32.mxu0 0.0
  %470 = vmatmul.mubr.f32.gmra.mxu0 %v403
  %v471 = vpop.f32.mrf.mxu0
  %v472 = vadd.f32 %v62, %v471
  %v473 = vpop.f32.mrf.mxu0
  %474 = vdwg.mxu0
  %v475 = vadd.f32 %v329, %v400
  %v476 = vadd.f32 %v330, %v472
  %v477 = vxor.u32 %v475, 2147483648
  %v478 = vxor.u32 %v476, 2147483648
  %v479 = vmul.f32 %v477, 1.442695
  %v480 = vpow.pop %v479
  %v481 = vmul.f32 %v478, 1.442695
  %v482 = vpow.pop %v481
  %v483 = vadd.f32 %v480, 1.0
  %v484 = vadd.f32 %v482, 1.0
  %v485 = vrcp.pop %v483
  %v486 = vmul.f32 1.0, %v485
  %v487 = vrcp.pop %v484
  %v488 = vmul.f32 1.0, %v487
  %491 = vrot.lane.b32.xlu0 %v400, 64
  %v492 = vpop.permute.xlu0 %491
  %493 = vrot.lane.b32.xlu0 %v472, 64
  %v494 = vpop.permute.xlu0 %493
  %v497 = vmul.f32 %v486, %v492
  %v498 = vmul.f32 %v488, %v494
  %501 = vrot.lane.b32.xlu0 %v497, 64
  %v502 = vpop.permute.xlu0 %501
  %503 = vrot.lane.b32.xlu0 %v498, 64
  %v504 = vpop.permute.xlu0 %503
  %v507 = vadd.f32 %v329, %v502
  %v508 = vadd.f32 %v330, %v504
  %v509 = vtanh.pop %v507
  %v510 = vtanh.pop %v508
  %v511 = vsub.f32 1.0, %v486
  %v512 = vsub.f32 1.0, %v488
  %515 = vrot.lane.b32.xlu0 %v509, 96
  %v516 = vpop.permute.xlu0 %515
  %517 = vrot.lane.b32.xlu0 %v510, 96
  %v518 = vpop.permute.xlu0 %517
  %v521 = vmul.f32 %v511, %v516
  %v522 = vmul.f32 %v512, %v518
  %v523 = vmul.f32 %v486, %v316
  %v524 = vmul.f32 %v488, %v317
  %v525 = vadd.f32 %v521, %v523
  %v526 = vadd.f32 %v522, %v524
  %s527 = sadd.s32 %s48, 1
  %s528 = scvt.s32.f32 %s527
  %v529 = vstv %s528
  %vm530 = vcmp.ge.f32.partialorder %v529, %v44
  %vm531 = vcmp.ge.f32.partialorder %v529, %v45
  %vm532 = vcmp.lt.f32.partialorder %v529, %v46
  %vm533 = vcmp.lt.f32.partialorder %v529, %v47
  %vm534 = vmand %vm530, %vm532
  %vm535 = vmand %vm531, %vm533
  %v536 = vsel %vm534, 1, 0
  %v537 = vsel %vm535, 1, 0
  %v538 = vcvt.s32.f32 %v536
  %v539 = vcvt.s32.f32 %v537
  %541 = vset.pattern.permute.xlu0 0
  %542 = vperm.xlu0 %541, %v538
  %v543 = vpop.permute.xlu0 %542
  %546 = vset.pattern.permute.xlu0 0
  %547 = vperm.xlu0 %546, %v539
  %v548 = vpop.permute.xlu0 %547
  %v550 = vmul.f32 %v543, %v525
  %v551 = vmul.f32 %v548, %v526
  %v552 = vsub.f32 1.0, %v538
  %v553 = vsub.f32 1.0, %v539
  %555 = vset.pattern.permute.xlu0 0
  %556 = vperm.xlu0 %555, %v552
  %v557 = vpop.permute.xlu0 %556
  %560 = vset.pattern.permute.xlu0 0
  %561 = vperm.xlu0 %560, %v553
  %v562 = vpop.permute.xlu0 %561
  %v564 = vmul.f32 %v557, %v316
  %v565 = vmul.f32 %v562, %v317
  %v566 = vadd.f32 %v550, %v564
  %v567 = vadd.f32 %v551, %v565
  %570 = vrot.lane.b32.xlu0 %v566, 96
  %v571 = vpop.permute.xlu0 %570
  %572 = vrot.lane.b32.xlu0 %v567, 96
  %v573 = vpop.permute.xlu0 %572
  %s576 = scalar_lea.vmem %s6, 16
  %577 = vst.msk [vmem:[%s576] sm:$0xff] %vm65, %v571
  %578 = vst.msk [vmem:[%s576 + $0x8] sm:$0xff] %vm65, %v573
  %s579 = scalar_lea.vmem %s0, 32
  %v580 = vld [vmem:[%s579] sm:$0xff]
  %v581 = vld [vmem:[%s579 + $0x8] sm:$0xff]
  %v582 = vsel %vm65, %v571, 0
  %584 = vmatprep.subr.mxu0 0.0
  %585 = vmatpush1.msra.mxu0 0.0
  %586 = vmatprep.subr.mxu0 0.0
  %587 = vmatpush1.msra.mxu0 0.0
  %588 = vmatprep.subr.mxu0 0.0
  %589 = vmatpush1.msra.mxu0 0.0
  %590 = vmatprep.subr.mxu0 0.0
  %591 = vmatpush1.msra.mxu0 0.0
  %592 = vmatprep.subr.mxu0 0.0
  %593 = vmatpush1.msra.mxu0 0.0
  %594 = vmatprep.subr.mxu0 0.0
  %595 = vmatpush1.msra.mxu0 0.0
  %596 = vmatprep.subr.mxu0 0.0
  %597 = vmatpush1.msra.mxu0 0.0
  %598 = vmatprep.subr.mxu0 0.0
  %599 = vmatpush1.msra.mxu0 0.0
  %600 = vmatprep.subr.mxu0 0.0
  %601 = vmatpush1.msra.mxu0 0.0
  %602 = vmatprep.subr.mxu0 0.0
  %603 = vmatpush1.msra.mxu0 0.0
  %604 = vmatprep.subr.mxu0 0.0
  %605 = vmatpush1.msra.mxu0 0.0
  %606 = vmatprep.subr.mxu0 0.0
  %607 = vmatpush1.msra.mxu0 0.0
  %608 = vmatprep.subr.mxu0 0.0
  %609 = vmatpush1.msra.mxu0 %v37
  %610 = vmatprep.subr.mxu0 0.0
  %611 = vmatpush1.msra.mxu0 %v36
  %612 = vmatprep.subr.mxu0 0.0
  %613 = vmatpush1.msra.mxu0 %v35
  %614 = vmatprep.subr.mxu0 0.0
  %615 = vmatpush1.msra.mxu0 %v34
  %616 = vmatprep.subr.mxu0 0.0
  %617 = vmatpush2.msra.mxu0 0.0
  %618 = vmatprep.subr.mxu0 0.0
  %619 = vmatpush2.msra.mxu0 0.0
  %620 = vmatprep.subr.mxu0 0.0
  %621 = vmatpush2.msra.mxu0 0.0
  %622 = vmatprep.subr.mxu0 0.0
  %623 = vmatpush2.msra.mxu0 0.0
  %624 = vmatprep.subr.mxu0 0.0
  %625 = vmatpush2.msra.mxu0 0.0
  %626 = vmatprep.subr.mxu0 0.0
  %627 = vmatpush2.msra.mxu0 0.0
  %628 = vmatprep.subr.mxu0 0.0
  %629 = vmatpush2.msra.mxu0 0.0
  %630 = vmatprep.subr.mxu0 0.0
  %631 = vmatpush2.msra.mxu0 0.0
  %632 = vmatprep.subr.mxu0 0.0
  %633 = vmatpush2.msra.mxu0 0.0
  %634 = vmatprep.subr.mxu0 0.0
  %635 = vmatpush2.msra.mxu0 0.0
  %636 = vmatprep.subr.mxu0 0.0
  %637 = vmatpush2.msra.mxu0 0.0
  %638 = vmatprep.subr.mxu0 0.0
  %639 = vmatpush2.msra.mxu0 0.0
  %640 = vmatprep.subr.mxu0 0.0
  %641 = vmatpush2.msra.mxu0 0.0
  %642 = vmatprep.subr.mxu0 0.0
  %643 = vmatpush2.msra.mxu0 0.0
  %644 = vmatprep.subr.mxu0 0.0
  %645 = vmatpush2.msra.mxu0 0.0
  %646 = vmatprep.subr.mxu0 0.0
  %647 = vmatpush2.msra.mxu0 0.0
  %648 = vmatprep.mubr.f32.mxu0 0.0
  %649 = vmatmul.mubr.f32.gmra.mxu0 %v582
  %v650 = vpop.f32.mrf.mxu0
  %v651 = vadd.f32 %v58, %v650
  %v652 = vpop.f32.mrf.mxu0
  %653 = vdwg.mxu0
  %v654 = vsel %vm65, %v573, 0
  %656 = vmatprep.subr.mxu0 0.0
  %657 = vmatpush1.msra.mxu0 0.0
  %658 = vmatprep.subr.mxu0 0.0
  %659 = vmatpush1.msra.mxu0 0.0
  %660 = vmatprep.subr.mxu0 0.0
  %661 = vmatpush1.msra.mxu0 0.0
  %662 = vmatprep.subr.mxu0 0.0
  %663 = vmatpush1.msra.mxu0 0.0
  %664 = vmatprep.subr.mxu0 0.0
  %665 = vmatpush1.msra.mxu0 0.0
  %666 = vmatprep.subr.mxu0 0.0
  %667 = vmatpush1.msra.mxu0 0.0
  %668 = vmatprep.subr.mxu0 0.0
  %669 = vmatpush1.msra.mxu0 0.0
  %670 = vmatprep.subr.mxu0 0.0
  %671 = vmatpush1.msra.mxu0 0.0
  %672 = vmatprep.subr.mxu0 0.0
  %673 = vmatpush1.msra.mxu0 0.0
  %674 = vmatprep.subr.mxu0 0.0
  %675 = vmatpush1.msra.mxu0 0.0
  %676 = vmatprep.subr.mxu0 0.0
  %677 = vmatpush1.msra.mxu0 0.0
  %678 = vmatprep.subr.mxu0 0.0
  %679 = vmatpush1.msra.mxu0 0.0
  %680 = vmatprep.subr.mxu0 0.0
  %681 = vmatpush1.msra.mxu0 %v41
  %682 = vmatprep.subr.mxu0 0.0
  %683 = vmatpush1.msra.mxu0 %v40
  %684 = vmatprep.subr.mxu0 0.0
  %685 = vmatpush1.msra.mxu0 %v39
  %686 = vmatprep.subr.mxu0 0.0
  %687 = vmatpush1.msra.mxu0 %v38
  %688 = vmatprep.subr.mxu0 0.0
  %689 = vmatpush2.msra.mxu0 0.0
  %690 = vmatprep.subr.mxu0 0.0
  %691 = vmatpush2.msra.mxu0 0.0
  %692 = vmatprep.subr.mxu0 0.0
  %693 = vmatpush2.msra.mxu0 0.0
  %694 = vmatprep.subr.mxu0 0.0
  %695 = vmatpush2.msra.mxu0 0.0
  %696 = vmatprep.subr.mxu0 0.0
  %697 = vmatpush2.msra.mxu0 0.0
  %698 = vmatprep.subr.mxu0 0.0
  %699 = vmatpush2.msra.mxu0 0.0
  %700 = vmatprep.subr.mxu0 0.0
  %701 = vmatpush2.msra.mxu0 0.0
  %702 = vmatprep.subr.mxu0 0.0
  %703 = vmatpush2.msra.mxu0 0.0
  %704 = vmatprep.subr.mxu0 0.0
  %705 = vmatpush2.msra.mxu0 0.0
  %706 = vmatprep.subr.mxu0 0.0
  %707 = vmatpush2.msra.mxu0 0.0
  %708 = vmatprep.subr.mxu0 0.0
  %709 = vmatpush2.msra.mxu0 0.0
  %710 = vmatprep.subr.mxu0 0.0
  %711 = vmatpush2.msra.mxu0 0.0
  %712 = vmatprep.subr.mxu0 0.0
  %713 = vmatpush2.msra.mxu0 0.0
  %714 = vmatprep.subr.mxu0 0.0
  %715 = vmatpush2.msra.mxu0 0.0
  %716 = vmatprep.subr.mxu0 0.0
  %717 = vmatpush2.msra.mxu0 0.0
  %718 = vmatprep.subr.mxu0 0.0
  %719 = vmatpush2.msra.mxu0 0.0
  %720 = vmatprep.mubr.f32.mxu0 0.0
  %721 = vmatmul.mubr.f32.gmra.mxu0 %v654
  %v722 = vpop.f32.mrf.mxu0
  %v723 = vadd.f32 %v62, %v722
  %v724 = vpop.f32.mrf.mxu0
  %725 = vdwg.mxu0
  %v726 = vadd.f32 %v580, %v651
  %v727 = vadd.f32 %v581, %v723
  %v728 = vxor.u32 %v726, 2147483648
  %v729 = vxor.u32 %v727, 2147483648
  %v730 = vmul.f32 %v728, 1.442695
  %v731 = vpow.pop %v730
  %v732 = vmul.f32 %v729, 1.442695
  %v733 = vpow.pop %v732
  %v734 = vadd.f32 %v731, 1.0
  %v735 = vadd.f32 %v733, 1.0
  %v736 = vrcp.pop %v734
  %v737 = vmul.f32 1.0, %v736
  %v738 = vrcp.pop %v735
  %v739 = vmul.f32 1.0, %v738
  %742 = vrot.lane.b32.xlu0 %v651, 64
  %v743 = vpop.permute.xlu0 %742
  %744 = vrot.lane.b32.xlu0 %v723, 64
  %v745 = vpop.permute.xlu0 %744
  %v748 = vmul.f32 %v737, %v743
  %v749 = vmul.f32 %v739, %v745
  %752 = vrot.lane.b32.xlu0 %v748, 64
  %v753 = vpop.permute.xlu0 %752
  %754 = vrot.lane.b32.xlu0 %v749, 64
  %v755 = vpop.permute.xlu0 %754
  %v758 = vadd.f32 %v580, %v753
  %v759 = vadd.f32 %v581, %v755
  %v760 = vtanh.pop %v758
  %v761 = vtanh.pop %v759
  %v762 = vsub.f32 1.0, %v737
  %v763 = vsub.f32 1.0, %v739
  %766 = vrot.lane.b32.xlu0 %v760, 96
  %v767 = vpop.permute.xlu0 %766
  %768 = vrot.lane.b32.xlu0 %v761, 96
  %v769 = vpop.permute.xlu0 %768
  %v772 = vmul.f32 %v762, %v767
  %v773 = vmul.f32 %v763, %v769
  %v774 = vmul.f32 %v737, %v566
  %v775 = vmul.f32 %v739, %v567
  %v776 = vadd.f32 %v772, %v774
  %v777 = vadd.f32 %v773, %v775
  %s778 = sadd.s32 %s48, 2
  %s779 = scvt.s32.f32 %s778
  %v780 = vstv %s779
  %vm781 = vcmp.ge.f32.partialorder %v780, %v44
  %vm782 = vcmp.ge.f32.partialorder %v780, %v45
  %vm783 = vcmp.lt.f32.partialorder %v780, %v46
  %vm784 = vcmp.lt.f32.partialorder %v780, %v47
  %vm785 = vmand %vm781, %vm783
  %vm786 = vmand %vm782, %vm784
  %v787 = vsel %vm785, 1, 0
  %v788 = vsel %vm786, 1, 0
  %v789 = vcvt.s32.f32 %v787
  %v790 = vcvt.s32.f32 %v788
  %792 = vset.pattern.permute.xlu0 0
  %793 = vperm.xlu0 %792, %v789
  %v794 = vpop.permute.xlu0 %793
  %797 = vset.pattern.permute.xlu0 0
  %798 = vperm.xlu0 %797, %v790
  %v799 = vpop.permute.xlu0 %798
  %v801 = vmul.f32 %v794, %v776
  %v802 = vmul.f32 %v799, %v777
  %v803 = vsub.f32 1.0, %v789
  %v804 = vsub.f32 1.0, %v790
  %806 = vset.pattern.permute.xlu0 0
  %807 = vperm.xlu0 %806, %v803
  %v808 = vpop.permute.xlu0 %807
  %811 = vset.pattern.permute.xlu0 0
  %812 = vperm.xlu0 %811, %v804
  %v813 = vpop.permute.xlu0 %812
  %v815 = vmul.f32 %v808, %v566
  %v816 = vmul.f32 %v813, %v567
  %v817 = vadd.f32 %v801, %v815
  %v818 = vadd.f32 %v802, %v816
  %821 = vrot.lane.b32.xlu0 %v817, 96
  %v822 = vpop.permute.xlu0 %821
  %823 = vrot.lane.b32.xlu0 %v818, 96
  %v824 = vpop.permute.xlu0 %823
  %s827 = scalar_lea.vmem %s6, 32
  %828 = vst.msk [vmem:[%s827] sm:$0xff] %vm65, %v822
  %829 = vst.msk [vmem:[%s827 + $0x8] sm:$0xff] %vm65, %v824
  %830 = vst.msk [vmem:[%s7] sm:$0xff] %vm65, %v822
  %831 = vst.msk [vmem:[%s7 + $0x8] sm:$0xff] %vm65, %v824
  // Predicated region
  $region30: #{hred_forward.6} parent=0 // pred_check
    _
  $region31: #{hred_forward.6} parent=0 // pred_check_branch
    %833 = sbr.rel (0) target = $region33
  $region32: #{hred_forward.6} parent=0 // pred_region
    _
  $region33: #{hred_forward.6} parent=0 // pred_fallthru
    _
  // Predicated region
  $region34: #{hred_forward.6} parent=0 // pred_check
    _
  $region35: #{hred_forward.6} parent=0 // pred_check_branch
    %835 = sbr.rel (0) target = $region37
  $region36: #{hred_forward.6} parent=0 // pred_region
    _
  $region37: #{hred_forward.6} parent=0 // pred_fallthru
    _
  // Predicated region
  $region38: #{hred_forward.6} parent=0 // pred_check
    _
  $region39: #{hred_forward.6} parent=0 // pred_check_branch
    %837 = sbr.rel (0) target = $region41
  $region40: #{hred_forward.6} parent=0 // pred_region
    _
  $region41: #{hred_forward.6} parent=0 // pred_fallthru
    _
  // Predicated region
  $region42: #{hred_forward.6} parent=0 // pred_check
    _
  $region43: #{hred_forward.6} parent=0 // pred_check_branch
    %839 = sbr.rel (0) target = $region45
  $region44: #{hred_forward.6} parent=0 // pred_region
    _
  $region45: #{hred_forward.6} parent=0 // pred_fallthru
    _

// kernel: hred_forward.4
$region0: #{hred_forward.4}
  #allocation0 [shape = 'u32[]', space=smem, size = 0x4, offset = 0x4, fixed_abs, tag = 'smem constant byte address 0x4 - core index']
  #allocation1 [shape = 'u32[144,128]{1,0:T(1,128)}', space=vmem, size = 0x12000, scoped, tag = 'internal scratch']
  %s0 = inlined_call_operand.vmem [shape: f32[8,2,8,96], index: 0, kind: input, shape index: {}]
  %s1 = inlined_call_operand.vmem [shape: f32[2,8,32], index: 1, kind: input, shape index: {}]
  %s2 = inlined_call_operand.vmem [shape: f32[2,32,96], index: 2, kind: input, shape index: {}]
  %s3 = inlined_call_operand.vmem [shape: f32[2,1,96], index: 3, kind: input, shape index: {}]
  %s4 = inlined_call_operand.vmem [shape: f32[2,8,1], index: 4, kind: input, shape index: {}]
  %s5 = inlined_call_operand.vmem [shape: f32[2,8,1], index: 5, kind: input, shape index: {}]
  %s6 = inlined_call_operand.vmem [shape: f32[8,2,8,32], index: 6, kind: output, shape index: {0}]
  %s7 = inlined_call_operand.vmem [shape: f32[2,8,32], index: 7, kind: output, shape index: {1}]
  %8 = xla_tuple %s6, %s7
  %s9 = sld [smem:[#allocation0]]
  $region46: #{hred_forward.4} parent=0
    _
  %s11 = ssub.s32 1, %s9
  %s12 = scalar_select 0, %s11, %s9
  // Predicated region
  $region2: #{hred_forward.4} parent=0 // pred_check
    _
  $region3: #{hred_forward.4} parent=0 // pred_check_branch
    %14 = sbr.rel (0) target = $region5
  $region4: #{hred_forward.4} parent=0 // pred_region
    _
  $region5: #{hred_forward.4} parent=0 // pred_fallthru
    _
  // Predicated region
  $region6: #{hred_forward.4} parent=0 // pred_check
    _
  $region7: #{hred_forward.4} parent=0 // pred_check_branch
    %16 = sbr.rel (0) target = $region9
  $region8: #{hred_forward.4} parent=0 // pred_region
    _
  $region9: #{hred_forward.4} parent=0 // pred_fallthru
    _
  // Predicated region
  $region10: #{hred_forward.4} parent=0 // pred_check
    _
  $region11: #{hred_forward.4} parent=0 // pred_check_branch
    %18 = sbr.rel (0) target = $region13
  $region12: #{hred_forward.4} parent=0 // pred_region
    _
  $region13: #{hred_forward.4} parent=0 // pred_fallthru
    _
  // Predicated region
  $region14: #{hred_forward.4} parent=0 // pred_check
    _
  $region15: #{hred_forward.4} parent=0 // pred_check_branch
    %20 = sbr.rel (0) target = $region17
  $region16: #{hred_forward.4} parent=0 // pred_region
    _
  $region17: #{hred_forward.4} parent=0 // pred_fallthru
    _
  // Predicated region
  $region18: #{hred_forward.4} parent=0 // pred_check
    _
  $region19: #{hred_forward.4} parent=0 // pred_check_branch
    %22 = sbr.rel (0) target = $region21
  $region20: #{hred_forward.4} parent=0 // pred_region
    _
  $region21: #{hred_forward.4} parent=0 // pred_fallthru
    _
  // Predicated region
  $region22: #{hred_forward.4} parent=0 // pred_check
    _
  $region23: #{hred_forward.4} parent=0 // pred_check_branch
    %24 = sbr.rel (0) target = $region25
  $region24: #{hred_forward.4} parent=0 // pred_region
    _
  $region25: #{hred_forward.4} parent=0 // pred_fallthru
    _
  %p25 = scmp.eq.s32.totalorder 0, 0
  // Predicated region
  $region26: #{hred_forward.4} parent=0 // pred_check
    %p26 = pneg %p25
  $region27: #{hred_forward.4} parent=0 // pred_check_branch
    %28 = sbr.rel (%p26) target = $region29
  $region28: #{hred_forward.4} parent=0 // pred_region
    %v29 = vld [vmem:[%s1] sm:$0xff]
    %v30 = vld [vmem:[%s1 + $0x8] sm:$0xff]
    %vm31 = vcmask 261120
    %32 = vst.msk [vmem:[%s7] sm:$0xff] %vm31, %v29
    %33 = vst.msk [vmem:[%s7 + $0x8] sm:$0xff] %vm31, %v30
  $region29: #{hred_forward.4} parent=0 // pred_fallthru
    _
  %v34 = vld [vmem:[%s2] sm:$0xff]
  %v35 = vld [vmem:[%s2 + $0x8] sm:$0xff]
  %v36 = vld [vmem:[%s2 + $0x10] sm:$0xff]
  %v37 = vld [vmem:[%s2 + $0x18] sm:$0xff]
  %v38 = vld [vmem:[%s2 + $0x20] sm:$0xff]
  %v39 = vld [vmem:[%s2 + $0x28] sm:$0xff]
  %v40 = vld [vmem:[%s2 + $0x30] sm:$0xff]
  %v41 = vld [vmem:[%s2 + $0x38] sm:$0xff]
  %v42 = vld [vmem:[%s3] sm:$0x1]
  %v43 = vld [vmem:[%s3 + $0x1] sm:$0x1]
  %v44 = vld [vmem:[%s4] sm:$0xff]
  %v45 = vld [vmem:[%s4 + $0x8] sm:$0xff]
  %v46 = vld [vmem:[%s5] sm:$0xff]
  %v47 = vld [vmem:[%s5 + $0x8] sm:$0xff]
  %s48 = smul.u32 0, 8
  %v49 = vld [vmem:[%s7] sm:$0xff]
  %v50 = vld [vmem:[%s7 + $0x8] sm:$0xff]
  %v51 = vld [vmem:[%s0] sm:$0xff]
  %v52 = vld [vmem:[%s0 + $0x8] sm:$0xff]
  %v55 = vlaneseq
  %v56 = vshrl.u32 %v55, 7
  %v57 = vsub.s32 0, %v56
  %v58 = vrot.slane %v42, %v57
  %v59 = vlaneseq
  %v60 = vshrl.u32 %v59, 7
  %v61 = vsub.s32 0, %v60
  %v62 = vrot.slane %v43, %v61
  %vm65 = vcmask 261120
  %v67 = vsel %vm65, %v49, 0
  %69 = vmatprep.subr.mxu0 0.0
  %70 = vmatpush1.msra.mxu0 0.0
  %71 = vmatprep.subr.mxu0 0.0
  %72 = vmatpush1.msra.mxu0 0.0
  %73 = vmatprep.subr.mxu0 0.0
  %74 = vmatpush1.msra.mxu0 0.0
  %75 = vmatprep.subr.mxu0 0.0
  %76 = vmatpush1.msra.mxu0 0.0
  %77 = vmatprep.subr.mxu0 0.0
  %78 = vmatpush1.msra.mxu0 0.0
  %79 = vmatprep.subr.mxu0 0.0
  %80 = vmatpush1.msra.mxu0 0.0
  %81 = vmatprep.subr.mxu0 0.0
  %82 = vmatpush1.msra.mxu0 0.0
  %83 = vmatprep.subr.mxu0 0.0
  %84 = vmatpush1.msra.mxu0 0.0
  %85 = vmatprep.subr.mxu0 0.0
  %86 = vmatpush1.msra.mxu0 0.0
  %87 = vmatprep.subr.mxu0 0.0
  %88 = vmatpush1.msra.mxu0 0.0
  %89 = vmatprep.subr.mxu0 0.0
  %90 = vmatpush1.msra.mxu0 0.0
  %91 = vmatprep.subr.mxu0 0.0
  %92 = vmatpush1.msra.mxu0 0.0
  %93 = vmatprep.subr.mxu0 0.0
  %94 = vmatpush1.msra.mxu0 %v37
  %95 = vmatprep.subr.mxu0 0.0
  %96 = vmatpush1.msra.mxu0 %v36
  %97 = vmatprep.subr.mxu0 0.0
  %98 = vmatpush1.msra.mxu0 %v35
  %99 = vmatprep.subr.mxu0 0.0
  %100 = vmatpush1.msra.mxu0 %v34
  %101 = vmatprep.subr.mxu0 0.0
  %102 = vmatpush2.msra.mxu0 0.0
  %103 = vmatprep.subr.mxu0 0.0
  %104 = vmatpush2.msra.mxu0 0.0
  %105 = vmatprep.subr.mxu0 0.0
  %106 = vmatpush2.msra.mxu0 0.0
  %107 = vmatprep.subr.mxu0 0.0
  %108 = vmatpush2.msra.mxu0 0.0
  %109 = vmatprep.subr.mxu0 0.0
  %110 = vmatpush2.msra.mxu0 0.0
  %111 = vmatprep.subr.mxu0 0.0
  %112 = vmatpush2.msra.mxu0 0.0
  %113 = vmatprep.subr.mxu0 0.0
  %114 = vmatpush2.msra.mxu0 0.0
  %115 = vmatprep.subr.mxu0 0.0
  %116 = vmatpush2.msra.mxu0 0.0
  %117 = vmatprep.subr.mxu0 0.0
  %118 = vmatpush2.msra.mxu0 0.0
  %119 = vmatprep.subr.mxu0 0.0
  %120 = vmatpush2.msra.mxu0 0.0
  %121 = vmatprep.subr.mxu0 0.0
  %122 = vmatpush2.msra.mxu0 0.0
  %123 = vmatprep.subr.mxu0 0.0
  %124 = vmatpush2.msra.mxu0 0.0
  %125 = vmatprep.subr.mxu0 0.0
  %126 = vmatpush2.msra.mxu0 0.0
  %127 = vmatprep.subr.mxu0 0.0
  %128 = vmatpush2.msra.mxu0 0.0
  %129 = vmatprep.subr.mxu0 0.0
  %130 = vmatpush2.msra.mxu0 0.0
  %131 = vmatprep.subr.mxu0 0.0
  %132 = vmatpush2.msra.mxu0 0.0
  %133 = vmatprep.mubr.f32.mxu0 0.0
  %134 = vmatmul.mubr.f32.gmra.mxu0 %v67
  %v135 = vpop.f32.mrf.mxu0
  %v136 = vadd.f32 %v58, %v135
  %v137 = vpop.f32.mrf.mxu0
  %138 = vdwg.mxu0
  %v140 = vsel %vm65, %v50, 0
  %142 = vmatprep.subr.mxu0 0.0
  %143 = vmatpush1.msra.mxu0 0.0
  %144 = vmatprep.subr.mxu0 0.0
  %145 = vmatpush1.msra.mxu0 0.0
  %146 = vmatprep.subr.mxu0 0.0
  %147 = vmatpush1.msra.mxu0 0.0
  %148 = vmatprep.subr.mxu0 0.0
  %149 = vmatpush1.msra.mxu0 0.0
  %150 = vmatprep.subr.mxu0 0.0
  %151 = vmatpush1.msra.mxu0 0.0
  %152 = vmatprep.subr.mxu0 0.0
  %153 = vmatpush1.msra.mxu0 0.0
  %154 = vmatprep.subr.mxu0 0.0
  %155 = vmatpush1.msra.mxu0 0.0
  %156 = vmatprep.subr.mxu0 0.0
  %157 = vmatpush1.msra.mxu0 0.0
  %158 = vmatprep.subr.mxu0 0.0
  %159 = vmatpush1.msra.mxu0 0.0
  %160 = vmatprep.subr.mxu0 0.0
  %161 = vmatpush1.msra.mxu0 0.0
  %162 = vmatprep.subr.mxu0 0.0
  %163 = vmatpush1.msra.mxu0 0.0
  %164 = vmatprep.subr.mxu0 0.0
  %165 = vmatpush1.msra.mxu0 0.0
  %166 = vmatprep.subr.mxu0 0.0
  %167 = vmatpush1.msra.mxu0 %v41
  %168 = vmatprep.subr.mxu0 0.0
  %169 = vmatpush1.msra.mxu0 %v40
  %170 = vmatprep.subr.mxu0 0.0
  %171 = vmatpush1.msra.mxu0 %v39
  %172 = vmatprep.subr.mxu0 0.0
  %173 = vmatpush1.msra.mxu0 %v38
  %174 = vmatprep.subr.mxu0 0.0
  %175 = vmatpush2.msra.mxu0 0.0
  %176 = vmatprep.subr.mxu0 0.0
  %177 = vmatpush2.msra.mxu0 0.0
  %178 = vmatprep.subr.mxu0 0.0
  %179 = vmatpush2.msra.mxu0 0.0
  %180 = vmatprep.subr.mxu0 0.0
  %181 = vmatpush2.msra.mxu0 0.0
  %182 = vmatprep.subr.mxu0 0.0
  %183 = vmatpush2.msra.mxu0 0.0
  %184 = vmatprep.subr.mxu0 0.0
  %185 = vmatpush2.msra.mxu0 0.0
  %186 = vmatprep.subr.mxu0 0.0
  %187 = vmatpush2.msra.mxu0 0.0
  %188 = vmatprep.subr.mxu0 0.0
  %189 = vmatpush2.msra.mxu0 0.0
  %190 = vmatprep.subr.mxu0 0.0
  %191 = vmatpush2.msra.mxu0 0.0
  %192 = vmatprep.subr.mxu0 0.0
  %193 = vmatpush2.msra.mxu0 0.0
  %194 = vmatprep.subr.mxu0 0.0
  %195 = vmatpush2.msra.mxu0 0.0
  %196 = vmatprep.subr.mxu0 0.0
  %197 = vmatpush2.msra.mxu0 0.0
  %198 = vmatprep.subr.mxu0 0.0
  %199 = vmatpush2.msra.mxu0 0.0
  %200 = vmatprep.subr.mxu0 0.0
  %201 = vmatpush2.msra.mxu0 0.0
  %202 = vmatprep.subr.mxu0 0.0
  %203 = vmatpush2.msra.mxu0 0.0
  %204 = vmatprep.subr.mxu0 0.0
  %205 = vmatpush2.msra.mxu0 0.0
  %206 = vmatprep.mubr.f32.mxu0 0.0
  %207 = vmatmul.mubr.f32.gmra.mxu0 %v140
  %v208 = vpop.f32.mrf.mxu0
  %v209 = vadd.f32 %v62, %v208
  %v210 = vpop.f32.mrf.mxu0
  %211 = vdwg.mxu0
  %v212 = vadd.f32 %v51, %v136
  %v213 = vadd.f32 %v52, %v209
  %v214 = vxor.u32 %v212, 2147483648
  %v215 = vxor.u32 %v213, 2147483648
  %v216 = vmul.f32 %v214, 1.442695
  %v217 = vpow.pop %v216
  %v218 = vmul.f32 %v215, 1.442695
  %v219 = vpow.pop %v218
  %v220 = vadd.f32 %v217, 1.0
  %v221 = vadd.f32 %v219, 1.0
  %v222 = vrcp.pop %v220
  %v223 = vmul.f32 1.0, %v222
  %v224 = vrcp.pop %v221
  %v225 = vmul.f32 1.0, %v224
  %228 = vrot.lane.b32.xlu0 %v136, 64
  %v229 = vpop.permute.xlu0 %228
  %230 = vrot.lane.b32.xlu0 %v209, 64
  %v231 = vpop.permute.xlu0 %230
  %v234 = vmul.f32 %v223, %v229
  %v235 = vmul.f32 %v225, %v231
  %238 = vrot.lane.b32.xlu0 %v234, 64
  %v239 = vpop.permute.xlu0 %238
  %240 = vrot.lane.b32.xlu0 %v235, 64
  %v241 = vpop.permute.xlu0 %240
  %v244 = vadd.f32 %v51, %v239
  %v245 = vadd.f32 %v52, %v241
  %v246 = vtanh.pop %v244
  %v247 = vtanh.pop %v245
  %v248 = vsub.f32 1.0, %v223
  %v249 = vsub.f32 1.0, %v225
  %252 = vrot.lane.b32.xlu0 %v246, 96
  %v253 = vpop.permute.xlu0 %252
  %254 = vrot.lane.b32.xlu0 %v247, 96
  %v255 = vpop.permute.xlu0 %254
  %v258 = vmul.f32 %v248, %v253
  %v259 = vmul.f32 %v249, %v255
  %260 = vrot.lane.b32.xlu0 %v49, 32
  %v261 = vpop.permute.xlu0 %260
  %262 = vrot.lane.b32.xlu0 %v50, 32
  %v263 = vpop.permute.xlu0 %262
  %v266 = vmul.f32 %v223, %v261
  %v267 = vmul.f32 %v225, %v263
  %v268 = vadd.f32 %v258, %v266
  %v269 = vadd.f32 %v259, %v267
  %s270 = scvt.s32.f32 %s48
  %v271 = vstv %s270
  %vm272 = vcmp.ge.f32.partialorder %v271, %v44
  %vm273 = vcmp.ge.f32.partialorder %v271, %v45
  %vm274 = vcmp.lt.f32.partialorder %v271, %v46
  %vm275 = vcmp.lt.f32.partialorder %v271, %v47
  %vm276 = vmand %vm272, %vm274
  %vm277 = vmand %vm273, %vm275
  %v278 = vsel %vm276, 1, 0
  %v279 = vsel %vm277, 1, 0
  %v280 = vcvt.s32.f32 %v278
  %v281 = vcvt.s32.f32 %v279
  %283 = vset.pattern.permute.xlu0 0
  %284 = vperm.xlu0 %283, %v280
  %v285 = vpop.permute.xlu0 %284
  %288 = vset.pattern.permute.xlu0 0
  %289 = vperm.xlu0 %288, %v281
  %v290 = vpop.permute.xlu0 %289
  %v292 = vmul.f32 %v285, %v268
  %v293 = vmul.f32 %v290, %v269
  %v294 = vsub.f32 1.0, %v280
  %v295 = vsub.f32 1.0, %v281
  %297 = vset.pattern.permute.xlu0 0
  %298 = vperm.xlu0 %297, %v294
  %v299 = vpop.permute.xlu0 %298
  %302 = vset.pattern.permute.xlu0 0
  %303 = vperm.xlu0 %302, %v295
  %v304 = vpop.permute.xlu0 %303
  %v306 = vmul.f32 %v299, %v49
  %v307 = vmul.f32 %v304, %v50
  %310 = vrot.lane.b32.xlu0 %v306, 32
  %v311 = vpop.permute.xlu0 %310
  %312 = vrot.lane.b32.xlu0 %v307, 32
  %v313 = vpop.permute.xlu0 %312
  %v316 = vadd.f32 %v292, %v311
  %v317 = vadd.f32 %v293, %v313
  %320 = vrot.lane.b32.xlu0 %v316, 96
  %v321 = vpop.permute.xlu0 %320
  %322 = vrot.lane.b32.xlu0 %v317, 96
  %v323 = vpop.permute.xlu0 %322
  %326 = vst.msk [vmem:[%s6] sm:$0xff] %vm65, %v321
  %327 = vst.msk [vmem:[%s6 + $0x8] sm:$0xff] %vm65, %v323
  %s328 = scalar_lea.vmem %s0, 16
  %v329 = vld [vmem:[%s328] sm:$0xff]
  %v330 = vld [vmem:[%s328 + $0x8] sm:$0xff]
  %v331 = vsel %vm65, %v321, 0
  %333 = vmatprep.subr.mxu0 0.0
  %334 = vmatpush1.msra.mxu0 0.0
  %335 = vmatprep.subr.mxu0 0.0
  %336 = vmatpush1.msra.mxu0 0.0
  %337 = vmatprep.subr.mxu0 0.0
  %338 = vmatpush1.msra.mxu0 0.0
  %339 = vmatprep.subr.mxu0 0.0
  %340 = vmatpush1.msra.mxu0 0.0
  %341 = vmatprep.subr.mxu0 0.0
  %342 = vmatpush1.msra.mxu0 0.0
  %343 = vmatprep.subr.mxu0 0.0
  %344 = vmatpush1.msra.mxu0 0.0
  %345 = vmatprep.subr.mxu0 0.0
  %346 = vmatpush1.msra.mxu0 0.0
  %347 = vmatprep.subr.mxu0 0.0
  %348 = vmatpush1.msra.mxu0 0.0
  %349 = vmatprep.subr.mxu0 0.0
  %350 = vmatpush1.msra.mxu0 0.0
  %351 = vmatprep.subr.mxu0 0.0
  %352 = vmatpush1.msra.mxu0 0.0
  %353 = vmatprep.subr.mxu0 0.0
  %354 = vmatpush1.msra.mxu0 0.0
  %355 = vmatprep.subr.mxu0 0.0
  %356 = vmatpush1.msra.mxu0 0.0
  %357 = vmatprep.subr.mxu0 0.0
  %358 = vmatpush1.msra.mxu0 %v37
  %359 = vmatprep.subr.mxu0 0.0
  %360 = vmatpush1.msra.mxu0 %v36
  %361 = vmatprep.subr.mxu0 0.0
  %362 = vmatpush1.msra.mxu0 %v35
  %363 = vmatprep.subr.mxu0 0.0
  %364 = vmatpush1.msra.mxu0 %v34
  %365 = vmatprep.subr.mxu0 0.0
  %366 = vmatpush2.msra.mxu0 0.0
  %367 = vmatprep.subr.mxu0 0.0
  %368 = vmatpush2.msra.mxu0 0.0
  %369 = vmatprep.subr.mxu0 0.0
  %370 = vmatpush2.msra.mxu0 0.0
  %371 = vmatprep.subr.mxu0 0.0
  %372 = vmatpush2.msra.mxu0 0.0
  %373 = vmatprep.subr.mxu0 0.0
  %374 = vmatpush2.msra.mxu0 0.0
  %375 = vmatprep.subr.mxu0 0.0
  %376 = vmatpush2.msra.mxu0 0.0
  %377 = vmatprep.subr.mxu0 0.0
  %378 = vmatpush2.msra.mxu0 0.0
  %379 = vmatprep.subr.mxu0 0.0
  %380 = vmatpush2.msra.mxu0 0.0
  %381 = vmatprep.subr.mxu0 0.0
  %382 = vmatpush2.msra.mxu0 0.0
  %383 = vmatprep.subr.mxu0 0.0
  %384 = vmatpush2.msra.mxu0 0.0
  %385 = vmatprep.subr.mxu0 0.0
  %386 = vmatpush2.msra.mxu0 0.0
  %387 = vmatprep.subr.mxu0 0.0
  %388 = vmatpush2.msra.mxu0 0.0
  %389 = vmatprep.subr.mxu0 0.0
  %390 = vmatpush2.msra.mxu0 0.0
  %391 = vmatprep.subr.mxu0 0.0
  %392 = vmatpush2.msra.mxu0 0.0
  %393 = vmatprep.subr.mxu0 0.0
  %394 = vmatpush2.msra.mxu0 0.0
  %395 = vmatprep.subr.mxu0 0.0
  %396 = vmatpush2.msra.mxu0 0.0
  %397 = vmatprep.mubr.f32.mxu0 0.0
  %398 = vmatmul.mubr.f32.gmra.mxu0 %v331
  %v399 = vpop.f32.mrf.mxu0
  %v400 = vadd.f32 %v58, %v399
  %v401 = vpop.f32.mrf.mxu0
  %402 = vdwg.mxu0
  %v403 = vsel %vm65, %v323, 0
  %405 = vmatprep.subr.mxu0 0.0
  %406 = vmatpush1.msra.mxu0 0.0
  %407 = vmatprep.subr.mxu0 0.0
  %408 = vmatpush1.msra.mxu0 0.0
  %409 = vmatprep.subr.mxu0 0.0
  %410 = vmatpush1.msra.mxu0 0.0
  %411 = vmatprep.subr.mxu0 0.0
  %412 = vmatpush1.msra.mxu0 0.0
  %413 = vmatprep.subr.mxu0 0.0
  %414 = vmatpush1.msra.mxu0 0.0
  %415 = vmatprep.subr.mxu0 0.0
  %416 = vmatpush1.msra.mxu0 0.0
  %417 = vmatprep.subr.mxu0 0.0
  %418 = vmatpush1.msra.mxu0 0.0
  %419 = vmatprep.subr.mxu0 0.0
  %420 = vmatpush1.msra.mxu0 0.0
  %421 = vmatprep.subr.mxu0 0.0
  %422 = vmatpush1.msra.mxu0 0.0
  %423 = vmatprep.subr.mxu0 0.0
  %424 = vmatpush1.msra.mxu0 0.0
  %425 = vmatprep.subr.mxu0 0.0
  %426 = vmatpush1.msra.mxu0 0.0
  %427 = vmatprep.subr.mxu0 0.0
  %428 = vmatpush1.msra.mxu0 0.0
  %429 = vmatprep.subr.mxu0 0.0
  %430 = vmatpush1.msra.mxu0 %v41
  %431 = vmatprep.subr.mxu0 0.0
  %432 = vmatpush1.msra.mxu0 %v40
  %433 = vmatprep.subr.mxu0 0.0
  %434 = vmatpush1.msra.mxu0 %v39
  %435 = vmatprep.subr.mxu0 0.0
  %436 = vmatpush1.msra.mxu0 %v38
  %437 = vmatprep.subr.mxu0 0.0
  %438 = vmatpush2.msra.mxu0 0.0
  %439 = vmatprep.subr.mxu0 0.0
  %440 = vmatpush2.msra.mxu0 0.0
  %441 = vmatprep.subr.mxu0 0.0
  %442 = vmatpush2.msra.mxu0 0.0
  %443 = vmatprep.subr.mxu0 0.0
  %444 = vmatpush2.msra.mxu0 0.0
  %445 = vmatprep.subr.mxu0 0.0
  %446 = vmatpush2.msra.mxu0 0.0
  %447 = vmatprep.subr.mxu0 0.0
  %448 = vmatpush2.msra.mxu0 0.0
  %449 = vmatprep.subr.mxu0 0.0
  %450 = vmatpush2.msra.mxu0 0.0
  %451 = vmatprep.subr.mxu0 0.0
  %452 = vmatpush2.msra.mxu0 0.0
  %453 = vmatprep.subr.mxu0 0.0
  %454 = vmatpush2.msra.mxu0 0.0
  %455 = vmatprep.subr.mxu0 0.0
  %456 = vmatpush2.msra.mxu0 0.0
  %457 = vmatprep.subr.mxu0 0.0
  %458 = vmatpush2.msra.mxu0 0.0
  %459 = vmatprep.subr.mxu0 0.0
  %460 = vmatpush2.msra.mxu0 0.0
  %461 = vmatprep.subr.mxu0 0.0
  %462 = vmatpush2.msra.mxu0 0.0
  %463 = vmatprep.subr.mxu0 0.0
  %464 = vmatpush2.msra.mxu0 0.0
  %465 = vmatprep.subr.mxu0 0.0
  %466 = vmatpush2.msra.mxu0 0.0
  %467 = vmatprep.subr.mxu0 0.0
  %468 = vmatpush2.msra.mxu0 0.0
  %469 = vmatprep.mubr.f32.mxu0 0.0
  %470 = vmatmul.mubr.f32.gmra.mxu0 %v403
  %v471 = vpop.f32.mrf.mxu0
  %v472 = vadd.f32 %v62, %v471
  %v473 = vpop.f32.mrf.mxu0
  %474 = vdwg.mxu0
  %v475 = vadd.f32 %v329, %v400
  %v476 = vadd.f32 %v330, %v472
  %v477 = vxor.u32 %v475, 2147483648
  %v478 = vxor.u32 %v476, 2147483648
  %v479 = vmul.f32 %v477, 1.442695
  %v480 = vpow.pop %v479
  %v481 = vmul.f32 %v478, 1.442695
  %v482 = vpow.pop %v481
  %v483 = vadd.f32 %v480, 1.0
  %v484 = vadd.f32 %v482, 1.0
  %v485 = vrcp.pop %v483
  %v486 = vmul.f32 1.0, %v485
  %v487 = vrcp.pop %v484
  %v488 = vmul.f32 1.0, %v487
  %491 = vrot.lane.b32.xlu0 %v400, 64
  %v492 = vpop.permute.xlu0 %491
  %493 = vrot.lane.b32.xlu0 %v472, 64
  %v494 = vpop.permute.xlu0 %493
  %v497 = vmul.f32 %v486, %v492
  %v498 = vmul.f32 %v488, %v494
  %501 = vrot.lane.b32.xlu0 %v497, 64
  %v502 = vpop.permute.xlu0 %501
  %503 = vrot.lane.b32.xlu0 %v498, 64
  %v504 = vpop.permute.xlu0 %503
  %v507 = vadd.f32 %v329, %v502
  %v508 = vadd.f32 %v330, %v504
  %v509 = vtanh.pop %v507
  %v510 = vtanh.pop %v508
  %v511 = vsub.f32 1.0, %v486
  %v512 = vsub.f32 1.0, %v488
  %515 = vrot.lane.b32.xlu0 %v509, 96
  %v516 = vpop.permute.xlu0 %515
  %517 = vrot.lane.b32.xlu0 %v510, 96
  %v518 = vpop.permute.xlu0 %517
  %v521 = vmul.f32 %v511, %v516
  %v522 = vmul.f32 %v512, %v518
  %v523 = vmul.f32 %v486, %v316
  %v524 = vmul.f32 %v488, %v317
  %v525 = vadd.f32 %v521, %v523
  %v526 = vadd.f32 %v522, %v524
  %s527 = sadd.s32 %s48, 1
  %s528 = scvt.s32.f32 %s527
  %v529 = vstv %s528
  %vm530 = vcmp.ge.f32.partialorder %v529, %v44
  %vm531 = vcmp.ge.f32.partialorder %v529, %v45
  %vm532 = vcmp.lt.f32.partialorder %v529, %v46
  %vm533 = vcmp.lt.f32.partialorder %v529, %v47
  %vm534 = vmand %vm530, %vm532
  %vm535 = vmand %vm531, %vm533
  %v536 = vsel %vm534, 1, 0
  %v537 = vsel %vm535, 1, 0
  %v538 = vcvt.s32.f32 %v536
  %v539 = vcvt.s32.f32 %v537
  %541 = vset.pattern.permute.xlu0 0
  %542 = vperm.xlu0 %541, %v538
  %v543 = vpop.permute.xlu0 %542
  %546 = vset.pattern.permute.xlu0 0
  %547 = vperm.xlu0 %546, %v539
  %v548 = vpop.permute.xlu0 %547
  %v550 = vmul.f32 %v543, %v525
  %v551 = vmul.f32 %v548, %v526
  %v552 = vsub.f32 1.0, %v538
  %v553 = vsub.f32 1.0, %v539
  %555 = vset.pattern.permute.xlu0 0
  %556 = vperm.xlu0 %555, %v552
  %v557 = vpop.permute.xlu0 %556
  %560 = vset.pattern.permute.xlu0 0
  %561 = vperm.xlu0 %560, %v553
  %v562 = vpop.permute.xlu0 %561
  %v564 = vmul.f32 %v557, %v316
  %v565 = vmul.f32 %v562, %v317
  %v566 = vadd.f32 %v550, %v564
  %v567 = vadd.f32 %v551, %v565
  %570 = vrot.lane.b32.xlu0 %v566, 96
  %v571 = vpop.permute.xlu0 %570
  %572 = vrot.lane.b32.xlu0 %v567, 96
  %v573 = vpop.permute.xlu0 %572
  %s576 = scalar_lea.vmem %s6, 16
  %577 = vst.msk [vmem:[%s576] sm:$0xff] %vm65, %v571
  %578 = vst.msk [vmem:[%s576 + $0x8] sm:$0xff] %vm65, %v573
  %s579 = scalar_lea.vmem %s0, 32
  %v580 = vld [vmem:[%s579] sm:$0xff]
  %v581 = vld [vmem:[%s579 + $0x8] sm:$0xff]
  %v582 = vsel %vm65, %v571, 0
  %584 = vmatprep.subr.mxu0 0.0
  %585 = vmatpush1.msra.mxu0 0.0
  %586 = vmatprep.subr.mxu0 0.0
  %587 = vmatpush1.msra.mxu0 0.0
  %588 = vmatprep.subr.mxu0 0.0
  %589 = vmatpush1.msra.mxu0 0.0
  %590 = vmatprep.subr.mxu0 0.0
  %591 = vmatpush1.msra.mxu0 0.0
  %592 = vmatprep.subr.mxu0 0.0
  %593 = vmatpush1.msra.mxu0 0.0
  %594 = vmatprep.subr.mxu0 0.0
  %595 = vmatpush1.msra.mxu0 0.0
  %596 = vmatprep.subr.mxu0 0.0
  %597 = vmatpush1.msra.mxu0 0.0
  %598 = vmatprep.subr.mxu0 0.0
  %599 = vmatpush1.msra.mxu0 0.0
  %600 = vmatprep.subr.mxu0 0.0
  %601 = vmatpush1.msra.mxu0 0.0
  %602 = vmatprep.subr.mxu0 0.0
  %603 = vmatpush1.msra.mxu0 0.0
  %604 = vmatprep.subr.mxu0 0.0
  %605 = vmatpush1.msra.mxu0 0.0
  %606 = vmatprep.subr.mxu0 0.0
  %607 = vmatpush1.msra.mxu0 0.0
  %608 = vmatprep.subr.mxu0 0.0
  %609 = vmatpush1.msra.mxu0 %v37
  %610 = vmatprep.subr.mxu0 0.0
  %611 = vmatpush1.msra.mxu0 %v36
  %612 = vmatprep.subr.mxu0 0.0
  %613 = vmatpush1.msra.mxu0 %v35
  %614 = vmatprep.subr.mxu0 0.0
  %615 = vmatpush1.msra.mxu0 %v34
  %616 = vmatprep.subr.mxu0 0.0
  %617 = vmatpush2.msra.mxu0 0.0
  %618 = vmatprep.subr.mxu0 0.0
  %619 = vmatpush2.msra.mxu0 0.0
  %620 = vmatprep.subr.mxu0 0.0
  %621 = vmatpush2.msra.mxu0 0.0
  %622 = vmatprep.subr.mxu0 0.0
  %623 = vmatpush2.msra.mxu0 0.0
  %624 = vmatprep.subr.mxu0 0.0
  %625 = vmatpush2.msra.mxu0 0.0
  %626 = vmatprep.subr.mxu0 0.0
  %627 = vmatpush2.msra.mxu0 0.0
  %628 = vmatprep.subr.mxu0 0.0
  %629 = vmatpush2.msra.mxu0 0.0
  %630 = vmatprep.subr.mxu0 0.0
  %631 = vmatpush2.msra.mxu0 0.0
  %632 = vmatprep.subr.mxu0 0.0
  %633 = vmatpush2.msra.mxu0 0.0
  %634 = vmatprep.subr.mxu0 0.0
  %635 = vmatpush2.msra.mxu0 0.0
  %636 = vmatprep.subr.mxu0 0.0
  %637 = vmatpush2.msra.mxu0 0.0
  %638 = vmatprep.subr.mxu0 0.0
  %639 = vmatpush2.msra.mxu0 0.0
  %640 = vmatprep.subr.mxu0 0.0
  %641 = vmatpush2.msra.mxu0 0.0
  %642 = vmatprep.subr.mxu0 0.0
  %643 = vmatpush2.msra.mxu0 0.0
  %644 = vmatprep.subr.mxu0 0.0
  %645 = vmatpush2.msra.mxu0 0.0
  %646 = vmatprep.subr.mxu0 0.0
  %647 = vmatpush2.msra.mxu0 0.0
  %648 = vmatprep.mubr.f32.mxu0 0.0
  %649 = vmatmul.mubr.f32.gmra.mxu0 %v582
  %v650 = vpop.f32.mrf.mxu0
  %v651 = vadd.f32 %v58, %v650
  %v652 = vpop.f32.mrf.mxu0
  %653 = vdwg.mxu0
  %v654 = vsel %vm65, %v573, 0
  %656 = vmatprep.subr.mxu0 0.0
  %657 = vmatpush1.msra.mxu0 0.0
  %658 = vmatprep.subr.mxu0 0.0
  %659 = vmatpush1.msra.mxu0 0.0
  %660 = vmatprep.subr.mxu0 0.0
  %661 = vmatpush1.msra.mxu0 0.0
  %662 = vmatprep.subr.mxu0 0.0
  %663 = vmatpush1.msra.mxu0 0.0
  %664 = vmatprep.subr.mxu0 0.0
  %665 = vmatpush1.msra.mxu0 0.0
  %666 = vmatprep.subr.mxu0 0.0
  %667 = vmatpush1.msra.mxu0 0.0
  %668 = vmatprep.subr.mxu0 0.0
  %669 = vmatpush1.msra.mxu0 0.0
  %670 = vmatprep.subr.mxu0 0.0
  %671 = vmatpush1.msra.mxu0 0.0
  %672 = vmatprep.subr.mxu0 0.0
  %673 = vmatpush1.msra.mxu0 0.0
  %674 = vmatprep.subr.mxu0 0.0
  %675 = vmatpush1.msra.mxu0 0.0
  %676 = vmatprep.subr.mxu0 0.0
  %677 = vmatpush1.msra.mxu0 0.0
  %678 = vmatprep.subr.mxu0 0.0
  %679 = vmatpush1.msra.mxu0 0.0
  %680 = vmatprep.subr.mxu0 0.0
  %681 = vmatpush1.msra.mxu0 %v41
  %682 = vmatprep.subr.mxu0 0.0
  %683 = vmatpush1.msra.mxu0 %v40
  %684 = vmatprep.subr.mxu0 0.0
  %685 = vmatpush1.msra.mxu0 %v39
  %686 = vmatprep.subr.mxu0 0.0
  %687 = vmatpush1.msra.mxu0 %v38
  %688 = vmatprep.subr.mxu0 0.0
  %689 = vmatpush2.msra.mxu0 0.0
  %690 = vmatprep.subr.mxu0 0.0
  %691 = vmatpush2.msra.mxu0 0.0
  %692 = vmatprep.subr.mxu0 0.0
  %693 = vmatpush2.msra.mxu0 0.0
  %694 = vmatprep.subr.mxu0 0.0
  %695 = vmatpush2.msra.mxu0 0.0
  %696 = vmatprep.subr.mxu0 0.0
  %697 = vmatpush2.msra.mxu0 0.0
  %698 = vmatprep.subr.mxu0 0.0
  %699 = vmatpush2.msra.mxu0 0.0
  %700 = vmatprep.subr.mxu0 0.0
  %701 = vmatpush2.msra.mxu0 0.0
  %702 = vmatprep.subr.mxu0 0.0
  %703 = vmatpush2.msra.mxu0 0.0
  %704 = vmatprep.subr.mxu0 0.0
  %705 = vmatpush2.msra.mxu0 0.0
  %706 = vmatprep.subr.mxu0 0.0
  %707 = vmatpush2.msra.mxu0 0.0
  %708 = vmatprep.subr.mxu0 0.0
  %709 = vmatpush2.msra.mxu0 0.0
  %710 = vmatprep.subr.mxu0 0.0
  %711 = vmatpush2.msra.mxu0 0.0
  %712 = vmatprep.subr.mxu0 0.0
  %713 = vmatpush2.msra.mxu0 0.0
  %714 = vmatprep.subr.mxu0 0.0
  %715 = vmatpush2.msra.mxu0 0.0
  %716 = vmatprep.subr.mxu0 0.0
  %717 = vmatpush2.msra.mxu0 0.0
  %718 = vmatprep.subr.mxu0 0.0
  %719 = vmatpush2.msra.mxu0 0.0
  %720 = vmatprep.mubr.f32.mxu0 0.0
  %721 = vmatmul.mubr.f32.gmra.mxu0 %v654
  %v722 = vpop.f32.mrf.mxu0
  %v723 = vadd.f32 %v62, %v722
  %v724 = vpop.f32.mrf.mxu0
  %725 = vdwg.mxu0
  %v726 = vadd.f32 %v580, %v651
  %v727 = vadd.f32 %v581, %v723
  %v728 = vxor.u32 %v726, 2147483648
  %v729 = vxor.u32 %v727, 2147483648
  %v730 = vmul.f32 %v728, 1.442695
  %v731 = vpow.pop %v730
  %v732 = vmul.f32 %v729, 1.442695
  %v733 = vpow.pop %v732
  %v734 = vadd.f32 %v731, 1.0
  %v735 = vadd.f32 %v733, 1.0
  %v736 = vrcp.pop %v734
  %v737 = vmul.f32 1.0, %v736
  %v738 = vrcp.pop %v735
  %v739 = vmul.f32 1.0, %v738
  %742 = vrot.lane.b32.xlu0 %v651, 64
  %v743 = vpop.permute.xlu0 %742
  %744 = vrot.lane.b32.xlu0 %v723, 64
  %v745 = vpop.permute.xlu0 %744
  %v748 = vmul.f32 %v737, %v743
  %v749 = vmul.f32 %v739, %v745
  %752 = vrot.lane.b32.xlu0 %v748, 64
  %v753 = vpop.permute.xlu0 %752
  %754 = vrot.lane.b32.xlu0 %v749, 64
  %v755 = vpop.permute.xlu0 %754
  %v758 = vadd.f32 %v580, %v753
  %v759 = vadd.f32 %v581, %v755
  %v760 = vtanh.pop %v758
  %v761 = vtanh.pop %v759
  %v762 = vsub.f32 1.0, %v737
  %v763 = vsub.f32 1.0, %v739
  %766 = vrot.lane.b32.xlu0 %v760, 96
  %v767 = vpop.permute.xlu0 %766
  %768 = vrot.lane.b32.xlu0 %v761, 96
  %v769 = vpop.permute.xlu0 %768
  %v772 = vmul.f32 %v762, %v767
  %v773 = vmul.f32 %v763, %v769
  %v774 = vmul.f32 %v737, %v566
  %v775 = vmul.f32 %v739, %v567
  %v776 = vadd.f32 %v772, %v774
  %v777 = vadd.f32 %v773, %v775
  %s778 = sadd.s32 %s48, 2
  %s779 = scvt.s32.f32 %s778
  %v780 = vstv %s779
  %vm781 = vcmp.ge.f32.partialorder %v780, %v44
  %vm782 = vcmp.ge.f32.partialorder %v780, %v45
  %vm783 = vcmp.lt.f32.partialorder %v780, %v46
  %vm784 = vcmp.lt.f32.partialorder %v780, %v47
  %vm785 = vmand %vm781, %vm783
  %vm786 = vmand %vm782, %vm784
  %v787 = vsel %vm785, 1, 0
  %v788 = vsel %vm786, 1, 0
  %v789 = vcvt.s32.f32 %v787
  %v790 = vcvt.s32.f32 %v788
  %792 = vset.pattern.permute.xlu0 0
  %793 = vperm.xlu0 %792, %v789
  %v794 = vpop.permute.xlu0 %793
  %797 = vset.pattern.permute.xlu0 0
  %798 = vperm.xlu0 %797, %v790
  %v799 = vpop.permute.xlu0 %798
  %v801 = vmul.f32 %v794, %v776
  %v802 = vmul.f32 %v799, %v777
  %v803 = vsub.f32 1.0, %v789
  %v804 = vsub.f32 1.0, %v790
  %806 = vset.pattern.permute.xlu0 0
  %807 = vperm.xlu0 %806, %v803
  %v808 = vpop.permute.xlu0 %807
  %811 = vset.pattern.permute.xlu0 0
  %812 = vperm.xlu0 %811, %v804
  %v813 = vpop.permute.xlu0 %812
  %v815 = vmul.f32 %v808, %v566
  %v816 = vmul.f32 %v813, %v567
  %v817 = vadd.f32 %v801, %v815
  %v818 = vadd.f32 %v802, %v816
  %821 = vrot.lane.b32.xlu0 %v817, 96
  %v822 = vpop.permute.xlu0 %821
  %823 = vrot.lane.b32.xlu0 %v818, 96
  %v824 = vpop.permute.xlu0 %823
  %s827 = scalar_lea.vmem %s6, 32
  %828 = vst.msk [vmem:[%s827] sm:$0xff] %vm65, %v822
  %829 = vst.msk [vmem:[%s827 + $0x8] sm:$0xff] %vm65, %v824
  %s830 = scalar_lea.vmem %s0, 48
  %v831 = vld [vmem:[%s830] sm:$0xff]
  %v832 = vld [vmem:[%s830 + $0x8] sm:$0xff]
  %v833 = vsel %vm65, %v822, 0
  %835 = vmatprep.subr.mxu0 0.0
  %836 = vmatpush1.msra.mxu0 0.0
  %837 = vmatprep.subr.mxu0 0.0
  %838 = vmatpush1.msra.mxu0 0.0
  %839 = vmatprep.subr.mxu0 0.0
  %840 = vmatpush1.msra.mxu0 0.0
  %841 = vmatprep.subr.mxu0 0.0
  %842 = vmatpush1.msra.mxu0 0.0
  %843 = vmatprep.subr.mxu0 0.0
  %844 = vmatpush1.msra.mxu0 0.0
  %845 = vmatprep.subr.mxu0 0.0
  %846 = vmatpush1.msra.mxu0 0.0
  %847 = vmatprep.subr.mxu0 0.0
  %848 = vmatpush1.msra.mxu0 0.0
  %849 = vmatprep.subr.mxu0 0.0
  %850 = vmatpush1.msra.mxu0 0.0
  %851 = vmatprep.subr.mxu0 0.0
  %852 = vmatpush1.msra.mxu0 0.0
  %853 = vmatprep.subr.mxu0 0.0
  %854 = vmatpush1.msra.mxu0 0.0
  %855 = vmatprep.subr.mxu0 0.0
  %856 = vmatpush1.msra.mxu0 0.0
  %857 = vmatprep.subr.mxu0 0.0
  %858 = vmatpush1.msra.mxu0 0.0
  %859 = vmatprep.subr.mxu0 0.0
  %860 = vmatpush1.msra.mxu0 %v37
  %861 = vmatprep.subr.mxu0 0.0
  %862 = vmatpush1.msra.mxu0 %v36
  %863 = vmatprep.subr.mxu0 0.0
  %864 = vmatpush1.msra.mxu0 %v35
  %865 = vmatprep.subr.mxu0 0.0
  %866 = vmatpush1.msra.mxu0 %v34
  %867 = vmatprep.subr.mxu0 0.0
  %868 = vmatpush2.msra.mxu0 0.0
  %869 = vmatprep.subr.mxu0 0.0
  %870 = vmatpush2.msra.mxu0 0.0
  %871 = vmatprep.subr.mxu0 0.0
  %872 = vmatpush2.msra.mxu0 0.0
  %873 = vmatprep.subr.mxu0 0.0
  %874 = vmatpush2.msra.mxu0 0.0
  %875 = vmatprep.subr.mxu0 0.0
  %876 = vmatpush2.msra.mxu0 0.0
  %877 = vmatprep.subr.mxu0 0.0
  %878 = vmatpush2.msra.mxu0 0.0
  %879 = vmatprep.subr.mxu0 0.0
  %880 = vmatpush2.msra.mxu0 0.0
  %881 = vmatprep.subr.mxu0 0.0
  %882 = vmatpush2.msra.mxu0 0.0
  %883 = vmatprep.subr.mxu0 0.0
  %884 = vmatpush2.msra.mxu0 0.0
  %885 = vmatprep.subr.mxu0 0.0
  %886 = vmatpush2.msra.mxu0 0.0
  %887 = vmatprep.subr.mxu0 0.0
  %888 = vmatpush2.msra.mxu0 0.0
  %889 = vmatprep.subr.mxu0 0.0
  %890 = vmatpush2.msra.mxu0 0.0
  %891 = vmatprep.subr.mxu0 0.0
  %892 = vmatpush2.msra.mxu0 0.0
  %893 = vmatprep.subr.mxu0 0.0
  %894 = vmatpush2.msra.mxu0 0.0
  %895 = vmatprep.subr.mxu0 0.0
  %896 = vmatpush2.msra.mxu0 0.0
  %897 = vmatprep.subr.mxu0 0.0
  %898 = vmatpush2.msra.mxu0 0.0
  %899 = vmatprep.mubr.f32.mxu0 0.0
  %900 = vmatmul.mubr.f32.gmra.mxu0 %v833
  %v901 = vpop.f32.mrf.mxu0
  %v902 = vadd.f32 %v58, %v901
  %v903 = vpop.f32.mrf.mxu0
  %904 = vdwg.mxu0
  %v905 = vsel %vm65, %v824, 0
  %907 = vmatprep.subr.mxu0 0.0
  %908 = vmatpush1.msra.mxu0 0.0
  %909 = vmatprep.subr.mxu0 0.0
  %910 = vmatpush1.msra.mxu0 0.0
  %911 = vmatprep.subr.mxu0 0.0
  %912 = vmatpush1.msra.mxu0 0.0
  %913 = vmatprep.subr.mxu0 0.0
  %914 = vmatpush1.msra.mxu0 0.0
  %915 = vmatprep.subr.mxu0 0.0
  %916 = vmatpush1.msra.mxu0 0.0
  %917 = vmatprep.subr.mxu0 0.0
  %918 = vmatpush1.msra.mxu0 0.0
  %919 = vmatprep.subr.mxu0 0.0
  %920 = vmatpush1.msra.mxu0 0.0
  %921 = vmatprep.subr.mxu0 0.0
  %922 = vmatpush1.msra.mxu0 0.0
  %923 = vmatprep.subr.mxu0 0.0
  %924 = vmatpush1.msra.mxu0 0.0
  %925 = vmatprep.subr.mxu0 0.0
  %926 = vmatpush1.msra.mxu0 0.0
  %927 = vmatprep.subr.mxu0 0.0
  %928 = vmatpush1.msra.mxu0 0.0
  %929 = vmatprep.subr.mxu0 0.0
  %930 = vmatpush1.msra.mxu0 0.0
  %931 = vmatprep.subr.mxu0 0.0
  %932 = vmatpush1.msra.mxu0 %v41
  %933 = vmatprep.subr.mxu0 0.0
  %934 = vmatpush1.msra.mxu0 %v40
  %935 = vmatprep.subr.mxu0 0.0
  %936 = vmatpush1.msra.mxu0 %v39
  %937 = vmatprep.subr.mxu0 0.0
  %938 = vmatpush1.msra.mxu0 %v38
  %939 = vmatprep.subr.mxu0 0.0
  %940 = vmatpush2.msra.mxu0 0.0
  %941 = vmatprep.subr.mxu0 0.0
  %942 = vmatpush2.msra.mxu0 0.0
  %943 = vmatprep.subr.mxu0 0.0
  %944 = vmatpush2.msra.mxu0 0.0
  %945 = vmatprep.subr.mxu0 0.0
  %946 = vmatpush2.msra.mxu0 0.0
  %947 = vmatprep.subr.mxu0 0.0
  %948 = vmatpush2.msra.mxu0 0.0
  %949 = vmatprep.subr.mxu0 0.0
  %950 = vmatpush2.msra.mxu0 0.0
  %951 = vmatprep.subr.mxu0 0.0
  %952 = vmatpush2.msra.mxu0 0.0
  %953 = vmatprep.subr.mxu0 0.0
  %954 = vmatpush2.msra.mxu0 0.0
  %955 = vmatprep.subr.mxu0 0.0
  %956 = vmatpush2.msra.mxu0 0.0
  %957 = vmatprep.subr.mxu0 0.0
  %958 = vmatpush2.msra.mxu0 0.0
  %959 = vmatprep.subr.mxu0 0.0
  %960 = vmatpush2.msra.mxu0 0.0
  %961 = vmatprep.subr.mxu0 0.0
  %962 = vmatpush2.msra.mxu0 0.0
  %963 = vmatprep.subr.mxu0 0.0
  %964 = vmatpush2.msra.mxu0 0.0
  %965 = vmatprep.subr.mxu0 0.0
  %966 = vmatpush2.msra.mxu0 0.0
  %967 = vmatprep.subr.mxu0 0.0
  %968 = vmatpush2.msra.mxu0 0.0
  %969 = vmatprep.subr.mxu0 0.0
  %970 = vmatpush2.msra.mxu0 0.0
  %971 = vmatprep.mubr.f32.mxu0 0.0
  %972 = vmatmul.mubr.f32.gmra.mxu0 %v905
  %v973 = vpop.f32.mrf.mxu0
  %v974 = vadd.f32 %v62, %v973
  %v975 = vpop.f32.mrf.mxu0
  %976 = vdwg.mxu0
  %v977 = vadd.f32 %v831, %v902
  %v978 = vadd.f32 %v832, %v974
  %v979 = vxor.u32 %v977, 2147483648
  %v980 = vxor.u32 %v978, 2147483648
  %v981 = vmul.f32 %v979, 1.442695
  %v982 = vpow.pop %v981
  %v983 = vmul.f32 %v980, 1.442695
  %v984 = vpow.pop %v983
  %v985 = vadd.f32 %v982, 1.0
  %v986 = vadd.f32 %v984, 1.0
  %v987 = vrcp.pop %v985
  %v988 = vmul.f32 1.0, %v987
  %v989 = vrcp.pop %v986
  %v990 = vmul.f32 1.0, %v989
  %993 = vrot.lane.b32.xlu0 %v902, 64
  %v994 = vpop.permute.xlu0 %993
  %995 = vrot.lane.b32.xlu0 %v974, 64
  %v996 = vpop.permute.xlu0 %995
  %v999 = vmul.f32 %v988, %v994
  %v1000 = vmul.f32 %v990, %v996
  %1003 = vrot.lane.b32.xlu0 %v999, 64
  %v1004 = vpop.permute.xlu0 %1003
  %1005 = vrot.lane.b32.xlu0 %v1000, 64
  %v1006 = vpop.permute.xlu0 %1005
  %v1009 = vadd.f32 %v831, %v1004
  %v1010 = vadd.f32 %v832, %v1006
  %v1011 = vtanh.pop %v1009
  %v1012 = vtanh.pop %v1010
  %v1013 = vsub.f32 1.0, %v988
  %v1014 = vsub.f32 1.0, %v990
  %1017 = vrot.lane.b32.xlu0 %v1011, 96
  %v1018 = vpop.permute.xlu0 %1017
  %1019 = vrot.lane.b32.xlu0 %v1012, 96
  %v1020 = vpop.permute.xlu0 %1019
  %v1023 = vmul.f32 %v1013, %v1018
  %v1024 = vmul.f32 %v1014, %v1020
  %v1025 = vmul.f32 %v988, %v817
  %v1026 = vmul.f32 %v990, %v818
  %v1027 = vadd.f32 %v1023, %v1025
  %v1028 = vadd.f32 %v1024, %v1026
  %s1029 = sadd.s32 %s48, 3
  %s1030 = scvt.s32.f32 %s1029
  %v1031 = vstv %s1030
  %vm1032 = vcmp.ge.f32.partialorder %v1031, %v44
  %vm1033 = vcmp.ge.f32.partialorder %v1031, %v45
  %vm1034 = vcmp.lt.f32.partialorder %v1031, %v46
  %vm1035 = vcmp.lt.f32.partialorder %v1031, %v47
  %vm1036 = vmand %vm1032, %vm1034
  %vm1037 = vmand %vm1033, %vm1035
  %v1038 = vsel %vm1036, 1, 0
  %v1039 = vsel %vm1037, 1, 0
  %v1040 = vcvt.s32.f32 %v1038
  %v1041 = vcvt.s32.f32 %v1039
  %1043 = vset.pattern.permute.xlu0 0
  %1044 = vperm.xlu0 %1043, %v1040
  %v1045 = vpop.permute.xlu0 %1044
  %1048 = vset.pattern.permute.xlu0 0
  %1049 = vperm.xlu0 %1048, %v1041
  %v1050 = vpop.permute.xlu0 %1049
  %v1052 = vmul.f32 %v1045, %v1027
  %v1053 = vmul.f32 %v1050, %v1028
  %v1054 = vsub.f32 1.0, %v1040
  %v1055 = vsub.f32 1.0, %v1041
  %1057 = vset.pattern.permute.xlu0 0
  %1058 = vperm.xlu0 %1057, %v1054
  %v1059 = vpop.permute.xlu0 %1058
  %1062 = vset.pattern.permute.xlu0 0
  %1063 = vperm.xlu0 %1062, %v1055
  %v1064 = vpop.permute.xlu0 %1063
  %v1066 = vmul.f32 %v1059, %v817
  %v1067 = vmul.f32 %v1064, %v818
  %v1068 = vadd.f32 %v1052, %v1066
  %v1069 = vadd.f32 %v1053, %v1067
  %1072 = vrot.lane.b32.xlu0 %v1068, 96
  %v1073 = vpop.permute.xlu0 %1072
  %1074 = vrot.lane.b32.xlu0 %v1069, 96
  %v1075 = vpop.permute.xlu0 %1074
  %s1078 = scalar_lea.vmem %s6, 48
  %1079 = vst.msk [vmem:[%s1078] sm:$0xff] %vm65, %v1073
  %1080 = vst.msk [vmem:[%s1078 + $0x8] sm:$0xff] %vm65, %v1075
  %s1081 = scalar_lea.vmem %s0, 64
  %v1082 = vld [vmem:[%s1081] sm:$0xff]
  %v1083 = vld [vmem:[%s1081 + $0x8] sm:$0xff]
  %v1084 = vsel %vm65, %v1073, 0
  %1086 = vmatprep.subr.mxu0 0.0
  %1087 = vmatpush1.msra.mxu0 0.0
  %1088 = vmatprep.subr.mxu0 0.0
  %1089 = vmatpush1.msra.mxu0 0.0
  %1090 = vmatprep.subr.mxu0 0.0
  %1091 = vmatpush1.msra.mxu0 0.0
  %1092 = vmatprep.subr.mxu0 0.0
  %1093 = vmatpush1.msra.mxu0 0.0
  %1094 = vmatprep.subr.mxu0 0.0
  %1095 = vmatpush1.msra.mxu0 0.0
  %1096 = vmatprep.subr.mxu0 0.0
  %1097 = vmatpush1.msra.mxu0 0.0
  %1098 = vmatprep.subr.mxu0 0.0
  %1099 = vmatpush1.msra.mxu0 0.0
  %1100 = vmatprep.subr.mxu0 0.0
  %1101 = vmatpush1.msra.mxu0 0.0
  %1102 = vmatprep.subr.mxu0 0.0
  %1103 = vmatpush1.msra.mxu0 0.0
  %1104 = vmatprep.subr.mxu0 0.0
  %1105 = vmatpush1.msra.mxu0 0.0
  %1106 = vmatprep.subr.mxu0 0.0
  %1107 = vmatpush1.msra.mxu0 0.0
  %1108 = vmatprep.subr.mxu0 0.0
  %1109 = vmatpush1.msra.mxu0 0.0
  %1110 = vmatprep.subr.mxu0 0.0
  %1111 = vmatpush1.msra.mxu0 %v37
  %1112 = vmatprep.subr.mxu0 0.0
  %1113 = vmatpush1.msra.mxu0 %v36
  %1114 = vmatprep.subr.mxu0 0.0
  %1115 = vmatpush1.msra.mxu0 %v35
  %1116 = vmatprep.subr.mxu0 0.0
  %1117 = vmatpush1.msra.mxu0 %v34
  %1118 = vmatprep.subr.mxu0 0.0
  %1119 = vmatpush2.msra.mxu0 0.0
  %1120 = vmatprep.subr.mxu0 0.0
  %1121 = vmatpush2.msra.mxu0 0.0
  %1122 = vmatprep.subr.mxu0 0.0
  %1123 = vmatpush2.msra.mxu0 0.0
  %1124 = vmatprep.subr.mxu0 0.0
  %1125 = vmatpush2.msra.mxu0 0.0
  %1126 = vmatprep.subr.mxu0 0.0
  %1127 = vmatpush2.msra.mxu0 0.0
  %1128 = vmatprep.subr.mxu0 0.0
  %1129 = vmatpush2.msra.mxu0 0.0
  %1130 = vmatprep.subr.mxu0 0.0
  %1131 = vmatpush2.msra.mxu0 0.0
  %1132 = vmatprep.subr.mxu0 0.0
  %1133 = vmatpush2.msra.mxu0 0.0
  %1134 = vmatprep.subr.mxu0 0.0
  %1135 = vmatpush2.msra.mxu0 0.0
  %1136 = vmatprep.subr.mxu0 0.0
  %1137 = vmatpush2.msra.mxu0 0.0
  %1138 = vmatprep.subr.mxu0 0.0
  %1139 = vmatpush2.msra.mxu0 0.0
  %1140 = vmatprep.subr.mxu0 0.0
  %1141 = vmatpush2.msra.mxu0 0.0
  %1142 = vmatprep.subr.mxu0 0.0
  %1143 = vmatpush2.msra.mxu0 0.0
  %1144 = vmatprep.subr.mxu0 0.0
  %1145 = vmatpush2.msra.mxu0 0.0
  %1146 = vmatprep.subr.mxu0 0.0
  %1147 = vmatpush2.msra.mxu0 0.0
  %1148 = vmatprep.subr.mxu0 0.0
  %1149 = vmatpush2.msra.mxu0 0.0
  %1150 = vmatprep.mubr.f32.mxu0 0.0
  %1151 = vmatmul.mubr.f32.gmra.mxu0 %v1084
  %v1152 = vpop.f32.mrf.mxu0
  %v1153 = vadd.f32 %v58, %v1152
  %v1154 = vpop.f32.mrf.mxu0
  %1155 = vdwg.mxu0
  %v1156 = vsel %vm65, %v1075, 0
  %1158 = vmatprep.subr.mxu0 0.0
  %1159 = vmatpush1.msra.mxu0 0.0
  %1160 = vmatprep.subr.mxu0 0.0
  %1161 = vmatpush1.msra.mxu0 0.0
  %1162 = vmatprep.subr.mxu0 0.0
  %1163 = vmatpush1.msra.mxu0 0.0
  %1164 = vmatprep.subr.mxu0 0.0
  %1165 = vmatpush1.msra.mxu0 0.0
  %1166 = vmatprep.subr.mxu0 0.0
  %1167 = vmatpush1.msra.mxu0 0.0
  %1168 = vmatprep.subr.mxu0 0.0
  %1169 = vmatpush1.msra.mxu0 0.0
  %1170 = vmatprep.subr.mxu0 0.0
  %1171 = vmatpush1.msra.mxu0 0.0
  %1172 = vmatprep.subr.mxu0 0.0
  %1173 = vmatpush1.msra.mxu0 0.0
  %1174 = vmatprep.subr.mxu0 0.0
  %1175 = vmatpush1.msra.mxu0 0.0
  %1176 = vmatprep.subr.mxu0 0.0
  %1177 = vmatpush1.msra.mxu0 0.0
  %1178 = vmatprep.subr.mxu0 0.0
  %1179 = vmatpush1.msra.mxu0 0.0
  %1180 = vmatprep.subr.mxu0 0.0
  %1181 = vmatpush1.msra.mxu0 0.0
  %1182 = vmatprep.subr.mxu0 0.0
  %1183 = vmatpush1.msra.mxu0 %v41
  %1184 = vmatprep.subr.mxu0 0.0
  %1185 = vmatpush1.msra.mxu0 %v40
  %1186 = vmatprep.subr.mxu0 0.0
  %1187 = vmatpush1.msra.mxu0 %v39
  %1188 = vmatprep.subr.mxu0 0.0
  %1189 = vmatpush1.msra.mxu0 %v38
  %1190 = vmatprep.subr.mxu0 0.0
  %1191 = vmatpush2.msra.mxu0 0.0
  %1192 = vmatprep.subr.mxu0 0.0
  %1193 = vmatpush2.msra.mxu0 0.0
  %1194 = vmatprep.subr.mxu0 0.0
  %1195 = vmatpush2.msra.mxu0 0.0
  %1196 = vmatprep.subr.mxu0 0.0
  %1197 = vmatpush2.msra.mxu0 0.0
  %1198 = vmatprep.subr.mxu0 0.0
  %1199 = vmatpush2.msra.mxu0 0.0
  %1200 = vmatprep.subr.mxu0 0.0
  %1201 = vmatpush2.msra.mxu0 0.0
  %1202 = vmatprep.subr.mxu0 0.0
  %1203 = vmatpush2.msra.mxu0 0.0
  %1204 = vmatprep.subr.mxu0 0.0
  %1205 = vmatpush2.msra.mxu0 0.0
  %1206 = vmatprep.subr.mxu0 0.0
  %1207 = vmatpush2.msra.mxu0 0.0
  %1208 = vmatprep.subr.mxu0 0.0
  %1209 = vmatpush2.msra.mxu0 0.0
  %1210 = vmatprep.subr.mxu0 0.0
  %1211 = vmatpush2.msra.mxu0 0.0
  %1212 = vmatprep.subr.mxu0 0.0
  %1213 = vmatpush2.msra.mxu0 0.0
  %1214 = vmatprep.subr.mxu0 0.0
  %1215 = vmatpush2.msra.mxu0 0.0
  %1216 = vmatprep.subr.mxu0 0.0
  %1217 = vmatpush2.msra.mxu0 0.0
  %1218 = vmatprep.subr.mxu0 0.0
  %1219 = vmatpush2.msra.mxu0 0.0
  %1220 = vmatprep.subr.mxu0 0.0
  %1221 = vmatpush2.msra.mxu0 0.0
  %1222 = vmatprep.mubr.f32.mxu0 0.0
  %1223 = vmatmul.mubr.f32.gmra.mxu0 %v1156
  %v1224 = vpop.f32.mrf.mxu0
  %v1225 = vadd.f32 %v62, %v1224
  %v1226 = vpop.f32.mrf.mxu0
  %1227 = vdwg.mxu0
  %v1228 = vadd.f32 %v1082, %v1153
  %v1229 = vadd.f32 %v1083, %v1225
  %v1230 = vxor.u32 %v1228, 2147483648
  %v1231 = vxor.u32 %v1229, 2147483648
  %v1232 = vmul.f32 %v1230, 1.442695
  %v1233 = vpow.pop %v1232
  %v1234 = vmul.f32 %v1231, 1.442695
  %v1235 = vpow.pop %v1234
  %v1236 = vadd.f32 %v1233, 1.0
  %v1237 = vadd.f32 %v1235, 1.0
  %v1238 = vrcp.pop %v1236
  %v1239 = vmul.f32 1.0, %v1238
  %v1240 = vrcp.pop %v1237
  %v1241 = vmul.f32 1.0, %v1240
  %1244 = vrot.lane.b32.xlu0 %v1153, 64
  %v1245 = vpop.permute.xlu0 %1244
  %1246 = vrot.lane.b32.xlu0 %v1225, 64
  %v1247 = vpop.permute.xlu0 %1246
  %v1250 = vmul.f32 %v1239, %v1245
  %v1251 = vmul.f32 %v1241, %v1247
  %1254 = vrot.lane.b32.xlu0 %v1250, 64
  %v1255 = vpop.permute.xlu0 %1254
  %1256 = vrot.lane.b32.xlu0 %v1251, 64
  %v1257 = vpop.permute.xlu0 %1256
  %v1260 = vadd.f32 %v1082, %v1255
  %v1261 = vadd.f32 %v1083, %v1257
  %v1262 = vtanh.pop %v1260
  %v1263 = vtanh.pop %v1261
  %v1264 = vsub.f32 1.0, %v1239
  %v1265 = vsub.f32 1.0, %v1241
  %1268 = vrot.lane.b32.xlu0 %v1262, 96
  %v1269 = vpop.permute.xlu0 %1268
  %1270 = vrot.lane.b32.xlu0 %v1263, 96
  %v1271 = vpop.permute.xlu0 %1270
  %v1274 = vmul.f32 %v1264, %v1269
  %v1275 = vmul.f32 %v1265, %v1271
  %v1276 = vmul.f32 %v1239, %v1068
  %v1277 = vmul.f32 %v1241, %v1069
  %v1278 = vadd.f32 %v1274, %v1276
  %v1279 = vadd.f32 %v1275, %v1277
  %s1280 = sadd.s32 %s48, 4
  %s1281 = scvt.s32.f32 %s1280
  %v1282 = vstv %s1281
  %vm1283 = vcmp.ge.f32.partialorder %v1282, %v44
  %vm1284 = vcmp.ge.f32.partialorder %v1282, %v45
  %vm1285 = vcmp.lt.f32.partialorder %v1282, %v46
  %vm1286 = vcmp.lt.f32.partialorder %v1282, %v47
  %vm1287 = vmand %vm1283, %vm1285
  %vm1288 = vmand %vm1284, %vm1286
  %v1289 = vsel %vm1287, 1, 0
  %v1290 = vsel %vm1288, 1, 0
  %v1291 = vcvt.s32.f32 %v1289
  %v1292 = vcvt.s32.f32 %v1290
  %1294 = vset.pattern.permute.xlu0 0
  %1295 = vperm.xlu0 %1294, %v1291
  %v1296 = vpop.permute.xlu0 %1295
  %1299 = vset.pattern.permute.xlu0 0
  %1300 = vperm.xlu0 %1299, %v1292
  %v1301 = vpop.permute.xlu0 %1300
  %v1303 = vmul.f32 %v1296, %v1278
  %v1304 = vmul.f32 %v1301, %v1279
  %v1305 = vsub.f32 1.0, %v1291
  %v1306 = vsub.f32 1.0, %v1292
  %1308 = vset.pattern.permute.xlu0 0
  %1309 = vperm.xlu0 %1308, %v1305
  %v1310 = vpop.permute.xlu0 %1309
  %1313 = vset.pattern.permute.xlu0 0
  %1314 = vperm.xlu0 %1313, %v1306
  %v1315 = vpop.permute.xlu0 %1314
  %v1317 = vmul.f32 %v1310, %v1068
  %v1318 = vmul.f32 %v1315, %v1069
  %v1319 = vadd.f32 %v1303, %v1317
  %v1320 = vadd.f32 %v1304, %v1318
  %1323 = vrot.lane.b32.xlu0 %v1319, 96
  %v1324 = vpop.permute.xlu0 %1323
  %1325 = vrot.lane.b32.xlu0 %v1320, 96
  %v1326 = vpop.permute.xlu0 %1325
  %s1329 = scalar_lea.vmem %s6, 64
  %1330 = vst.msk [vmem:[%s1329] sm:$0xff] %vm65, %v1324
  %1331 = vst.msk [vmem:[%s1329 + $0x8] sm:$0xff] %vm65, %v1326
  %s1332 = scalar_lea.vmem %s0, 80
  %v1333 = vld [vmem:[%s1332] sm:$0xff]
  %v1334 = vld [vmem:[%s1332 + $0x8] sm:$0xff]
  %v1335 = vsel %vm65, %v1324, 0
  %1337 = vmatprep.subr.mxu0 0.0
  %1338 = vmatpush1.msra.mxu0 0.0
  %1339 = vmatprep.subr.mxu0 0.0
  %1340 = vmatpush1.msra.mxu0 0.0
  %1341 = vmatprep.subr.mxu0 0.0
  %1342 = vmatpush1.msra.mxu0 0.0
  %1343 = vmatprep.subr.mxu0 0.0
  %1344 = vmatpush1.msra.mxu0 0.0
  %1345 = vmatprep.subr.mxu0 0.0
  %1346 = vmatpush1.msra.mxu0 0.0
  %1347 = vmatprep.subr.mxu0 0.0
  %1348 = vmatpush1.msra.mxu0 0.0
  %1349 = vmatprep.subr.mxu0 0.0
  %1350 = vmatpush1.msra.mxu0 0.0
  %1351 = vmatprep.subr.mxu0 0.0
  %1352 = vmatpush1.msra.mxu0 0.0
  %1353 = vmatprep.subr.mxu0 0.0
  %1354 = vmatpush1.msra.mxu0 0.0
  %1355 = vmatprep.subr.mxu0 0.0
  %1356 = vmatpush1.msra.mxu0 0.0
  %1357 = vmatprep.subr.mxu0 0.0
  %1358 = vmatpush1.msra.mxu0 0.0
  %1359 = vmatprep.subr.mxu0 0.0
  %1360 = vmatpush1.msra.mxu0 0.0
  %1361 = vmatprep.subr.mxu0 0.0
  %1362 = vmatpush1.msra.mxu0 %v37
  %1363 = vmatprep.subr.mxu0 0.0
  %1364 = vmatpush1.msra.mxu0 %v36
  %1365 = vmatprep.subr.mxu0 0.0
  %1366 = vmatpush1.msra.mxu0 %v35
  %1367 = vmatprep.subr.mxu0 0.0
  %1368 = vmatpush1.msra.mxu0 %v34
  %1369 = vmatprep.subr.mxu0 0.0
  %1370 = vmatpush2.msra.mxu0 0.0
  %1371 = vmatprep.subr.mxu0 0.0
  %1372 = vmatpush2.msra.mxu0 0.0
  %1373 = vmatprep.subr.mxu0 0.0
  %1374 = vmatpush2.msra.mxu0 0.0
  %1375 = vmatprep.subr.mxu0 0.0
  %1376 = vmatpush2.msra.mxu0 0.0
  %1377 = vmatprep.subr.mxu0 0.0
  %1378 = vmatpush2.msra.mxu0 0.0
  %1379 = vmatprep.subr.mxu0 0.0
  %1380 = vmatpush2.msra.mxu0 0.0
  %1381 = vmatprep.subr.mxu0 0.0
  %1382 = vmatpush2.msra.mxu0 0.0
  %1383 = vmatprep.subr.mxu0 0.0
  %1384 = vmatpush2.msra.mxu0 0.0
  %1385 = vmatprep.subr.mxu0 0.0
  %1386 = vmatpush2.msra.mxu0 0.0
  %1387 = vmatprep.subr.mxu0 0.0
  %1388 = vmatpush2.msra.mxu0 0.0
  %1389 = vmatprep.subr.mxu0 0.0
  %1390 = vmatpush2.msra.mxu0 0.0
  %1391 = vmatprep.subr.mxu0 0.0
  %1392 = vmatpush2.msra.mxu0 0.0
  %1393 = vmatprep.subr.mxu0 0.0
  %1394 = vmatpush2.msra.mxu0 0.0
  %1395 = vmatprep.subr.mxu0 0.0
  %1396 = vmatpush2.msra.mxu0 0.0
  %1397 = vmatprep.subr.mxu0 0.0
  %1398 = vmatpush2.msra.mxu0 0.0
  %1399 = vmatprep.subr.mxu0 0.0
  %1400 = vmatpush2.msra.mxu0 0.0
  %1401 = vmatprep.mubr.f32.mxu0 0.0
  %1402 = vmatmul.mubr.f32.gmra.mxu0 %v1335
  %v1403 = vpop.f32.mrf.mxu0
  %v1404 = vadd.f32 %v58, %v1403
  %v1405 = vpop.f32.mrf.mxu0
  %1406 = vdwg.mxu0
  %v1407 = vsel %vm65, %v1326, 0
  %1409 = vmatprep.subr.mxu0 0.0
  %1410 = vmatpush1.msra.mxu0 0.0
  %1411 = vmatprep.subr.mxu0 0.0
  %1412 = vmatpush1.msra.mxu0 0.0
  %1413 = vmatprep.subr.mxu0 0.0
  %1414 = vmatpush1.msra.mxu0 0.0
  %1415 = vmatprep.subr.mxu0 0.0
  %1416 = vmatpush1.msra.mxu0 0.0
  %1417 = vmatprep.subr.mxu0 0.0
  %1418 = vmatpush1.msra.mxu0 0.0
  %1419 = vmatprep.subr.mxu0 0.0
  %1420 = vmatpush1.msra.mxu0 0.0
  %1421 = vmatprep.subr.mxu0 0.0
  %1422 = vmatpush1.msra.mxu0 0.0
  %1423 = vmatprep.subr.mxu0 0.0
  %1424 = vmatpush1.msra.mxu0 0.0
  %1425 = vmatprep.subr.mxu0 0.0
  %1426 = vmatpush1.msra.mxu0 0.0
  %1427 = vmatprep.subr.mxu0 0.0
  %1428 = vmatpush1.msra.mxu0 0.0
  %1429 = vmatprep.subr.mxu0 0.0
  %1430 = vmatpush1.msra.mxu0 0.0
  %1431 = vmatprep.subr.mxu0 0.0
  %1432 = vmatpush1.msra.mxu0 0.0
  %1433 = vmatprep.subr.mxu0 0.0
  %1434 = vmatpush1.msra.mxu0 %v41
  %1435 = vmatprep.subr.mxu0 0.0
  %1436 = vmatpush1.msra.mxu0 %v40
  %1437 = vmatprep.subr.mxu0 0.0
  %1438 = vmatpush1.msra.mxu0 %v39
  %1439 = vmatprep.subr.mxu0 0.0
  %1440 = vmatpush1.msra.mxu0 %v38
  %1441 = vmatprep.subr.mxu0 0.0
  %1442 = vmatpush2.msra.mxu0 0.0
  %1443 = vmatprep.subr.mxu0 0.0
  %1444 = vmatpush2.msra.mxu0 0.0
  %1445 = vmatprep.subr.mxu0 0.0
  %1446 = vmatpush2.msra.mxu0 0.0
  %1447 = vmatprep.subr.mxu0 0.0
  %1448 = vmatpush2.msra.mxu0 0.0
  %1449 = vmatprep.subr.mxu0 0.0
  %1450 = vmatpush2.msra.mxu0 0.0
  %1451 = vmatprep.subr.mxu0 0.0
  %1452 = vmatpush2.msra.mxu0 0.0
  %1453 = vmatprep.subr.mxu0 0.0
  %1454 = vmatpush2.msra.mxu0 0.0
  %1455 = vmatprep.subr.mxu0 0.0
  %1456 = vmatpush2.msra.mxu0 0.0
  %1457 = vmatprep.subr.mxu0 0.0
  %1458 = vmatpush2.msra.mxu0 0.0
  %1459 = vmatprep.subr.mxu0 0.0
  %1460 = vmatpush2.msra.mxu0 0.0
  %1461 = vmatprep.subr.mxu0 0.0
  %1462 = vmatpush2.msra.mxu0 0.0
  %1463 = vmatprep.subr.mxu0 0.0
  %1464 = vmatpush2.msra.mxu0 0.0
  %1465 = vmatprep.subr.mxu0 0.0
  %1466 = vmatpush2.msra.mxu0 0.0
  %1467 = vmatprep.subr.mxu0 0.0
  %1468 = vmatpush2.msra.mxu0 0.0
  %1469 = vmatprep.subr.mxu0 0.0
  %1470 = vmatpush2.msra.mxu0 0.0
  %1471 = vmatprep.subr.mxu0 0.0
  %1472 = vmatpush2.msra.mxu0 0.0
  %1473 = vmatprep.mubr.f32.mxu0 0.0
  %1474 = vmatmul.mubr.f32.gmra.mxu0 %v1407
  %v1475 = vpop.f32.mrf.mxu0
  %v1476 = vadd.f32 %v62, %v1475
  %v1477 = vpop.f32.mrf.mxu0
  %1478 = vdwg.mxu0
  %v1479 = vadd.f32 %v1333, %v1404
  %v1480 = vadd.f32 %v1334, %v1476
  %v1481 = vxor.u32 %v1479, 2147483648
  %v1482 = vxor.u32 %v1480, 2147483648
  %v1483 = vmul.f32 %v1481, 1.442695
  %v1484 = vpow.pop %v1483
  %v1485 = vmul.f32 %v1482, 1.442695
  %v1486 = vpow.pop %v1485
  %v1487 = vadd.f32 %v1484, 1.0
  %v1488 = vadd.f32 %v1486, 1.0
  %v1489 = vrcp.pop %v1487
  %v1490 = vmul.f32 1.0, %v1489
  %v1491 = vrcp.pop %v1488
  %v1492 = vmul.f32 1.0, %v1491
  %1495 = vrot.lane.b32.xlu0 %v1404, 64
  %v1496 = vpop.permute.xlu0 %1495
  %1497 = vrot.lane.b32.xlu0 %v1476, 64
  %v1498 = vpop.permute.xlu0 %1497
  %v1501 = vmul.f32 %v1490, %v1496
  %v1502 = vmul.f32 %v1492, %v1498
  %1505 = vrot.lane.b32.xlu0 %v1501, 64
  %v1506 = vpop.permute.xlu0 %1505
  %1507 = vrot.lane.b32.xlu0 %v1502, 64
  %v1508 = vpop.permute.xlu0 %1507
  %v1511 = vadd.f32 %v1333, %v1506
  %v1512 = vadd.f32 %v1334, %v1508
  %v1513 = vtanh.pop %v1511
  %v1514 = vtanh.pop %v1512
  %v1515 = vsub.f32 1.0, %v1490
  %v1516 = vsub.f32 1.0, %v1492
  %1519 = vrot.lane.b32.xlu0 %v1513, 96
  %v1520 = vpop.permute.xlu0 %1519
  %1521 = vrot.lane.b32.xlu0 %v1514, 96
  %v1522 = vpop.permute.xlu0 %1521
  %v1525 = vmul.f32 %v1515, %v1520
  %v1526 = vmul.f32 %v1516, %v1522
  %v1527 = vmul.f32 %v1490, %v1319
  %v1528 = vmul.f32 %v1492, %v1320
  %v1529 = vadd.f32 %v1525, %v1527
  %v1530 = vadd.f32 %v1526, %v1528
  %s1531 = sadd.s32 %s48, 5
  %s1532 = scvt.s32.f32 %s1531
  %v1533 = vstv %s1532
  %vm1534 = vcmp.ge.f32.partialorder %v1533, %v44
  %vm1535 = vcmp.ge.f32.partialorder %v1533, %v45
  %vm1536 = vcmp.lt.f32.partialorder %v1533, %v46
  %vm1537 = vcmp.lt.f32.partialorder %v1533, %v47
  %vm1538 = vmand %vm1534, %vm1536
  %vm1539 = vmand %vm1535, %vm1537
  %v1540 = vsel %vm1538, 1, 0
  %v1541 = vsel %vm1539, 1, 0
  %v1542 = vcvt.s32.f32 %v1540
  %v1543 = vcvt.s32.f32 %v1541
  %1545 = vset.pattern.permute.xlu0 0
  %1546 = vperm.xlu0 %1545, %v1542
  %v1547 = vpop.permute.xlu0 %1546
  %1550 = vset.pattern.permute.xlu0 0
  %1551 = vperm.xlu0 %1550, %v1543
  %v1552 = vpop.permute.xlu0 %1551
  %v1554 = vmul.f32 %v1547, %v1529
  %v1555 = vmul.f32 %v1552, %v1530
  %v1556 = vsub.f32 1.0, %v1542
  %v1557 = vsub.f32 1.0, %v1543
  %1559 = vset.pattern.permute.xlu0 0
  %1560 = vperm.xlu0 %1559, %v1556
  %v1561 = vpop.permute.xlu0 %1560
  %1564 = vset.pattern.permute.xlu0 0
  %1565 = vperm.xlu0 %1564, %v1557
  %v1566 = vpop.permute.xlu0 %1565
  %v1568 = vmul.f32 %v1561, %v1319
  %v1569 = vmul.f32 %v1566, %v1320
  %v1570 = vadd.f32 %v1554, %v1568
  %v1571 = vadd.f32 %v1555, %v1569
  %1574 = vrot.lane.b32.xlu0 %v1570, 96
  %v1575 = vpop.permute.xlu0 %1574
  %1576 = vrot.lane.b32.xlu0 %v1571, 96
  %v1577 = vpop.permute.xlu0 %1576
  %s1580 = scalar_lea.vmem %s6, 80
  %1581 = vst.msk [vmem:[%s1580] sm:$0xff] %vm65, %v1575
  %1582 = vst.msk [vmem:[%s1580 + $0x8] sm:$0xff] %vm65, %v1577
  %s1583 = scalar_lea.vmem %s0, 96
  %v1584 = vld [vmem:[%s1583] sm:$0xff]
  %v1585 = vld [vmem:[%s1583 + $0x8] sm:$0xff]
  %v1586 = vsel %vm65, %v1575, 0
  %1588 = vmatprep.subr.mxu0 0.0
  %1589 = vmatpush1.msra.mxu0 0.0
  %1590 = vmatprep.subr.mxu0 0.0
  %1591 = vmatpush1.msra.mxu0 0.0
  %1592 = vmatprep.subr.mxu0 0.0
  %1593 = vmatpush1.msra.mxu0 0.0
  %1594 = vmatprep.subr.mxu0 0.0
  %1595 = vmatpush1.msra.mxu0 0.0
  %1596 = vmatprep.subr.mxu0 0.0
  %1597 = vmatpush1.msra.mxu0 0.0
  %1598 = vmatprep.subr.mxu0 0.0
  %1599 = vmatpush1.msra.mxu0 0.0
  %1600 = vmatprep.subr.mxu0 0.0
  %1601 = vmatpush1.msra.mxu0 0.0
  %1602 = vmatprep.subr.mxu0 0.0
  %1603 = vmatpush1.msra.mxu0 0.0
  %1604 = vmatprep.subr.mxu0 0.0
  %1605 = vmatpush1.msra.mxu0 0.0
  %1606 = vmatprep.subr.mxu0 0.0
  %1607 = vmatpush1.msra.mxu0 0.0
  %1608 = vmatprep.subr.mxu0 0.0
  %1609 = vmatpush1.msra.mxu0 0.0
  %1610 = vmatprep.subr.mxu0 0.0
  %1611 = vmatpush1.msra.mxu0 0.0
  %1612 = vmatprep.subr.mxu0 0.0
  %1613 = vmatpush1.msra.mxu0 %v37
  %1614 = vmatprep.subr.mxu0 0.0
  %1615 = vmatpush1.msra.mxu0 %v36
  %1616 = vmatprep.subr.mxu0 0.0
  %1617 = vmatpush1.msra.mxu0 %v35
  %1618 = vmatprep.subr.mxu0 0.0
  %1619 = vmatpush1.msra.mxu0 %v34
  %1620 = vmatprep.subr.mxu0 0.0
  %1621 = vmatpush2.msra.mxu0 0.0
  %1622 = vmatprep.subr.mxu0 0.0
  %1623 = vmatpush2.msra.mxu0 0.0
  %1624 = vmatprep.subr.mxu0 0.0
  %1625 = vmatpush2.msra.mxu0 0.0
  %1626 = vmatprep.subr.mxu0 0.0
  %1627 = vmatpush2.msra.mxu0 0.0
  %1628 = vmatprep.subr.mxu0 0.0
  %1629 = vmatpush2.msra.mxu0 0.0
  %1630 = vmatprep.subr.mxu0 0.0
  %1631 = vmatpush2.msra.mxu0 0.0
  %1632 = vmatprep.subr.mxu0 0.0
  %1633 = vmatpush2.msra.mxu0 0.0
  %1634 = vmatprep.subr.mxu0 0.0
  %1635 = vmatpush2.msra.mxu0 0.0
  %1636 = vmatprep.subr.mxu0 0.0
  %1637 = vmatpush2.msra.mxu0 0.0
  %1638 = vmatprep.subr.mxu0 0.0
  %1639 = vmatpush2.msra.mxu0 0.0
  %1640 = vmatprep.subr.mxu0 0.0
  %1641 = vmatpush2.msra.mxu0 0.0
  %1642 = vmatprep.subr.mxu0 0.0
  %1643 = vmatpush2.msra.mxu0 0.0
  %1644 = vmatprep.subr.mxu0 0.0
  %1645 = vmatpush2.msra.mxu0 0.0
  %1646 = vmatprep.subr.mxu0 0.0
  %1647 = vmatpush2.msra.mxu0 0.0
  %1648 = vmatprep.subr.mxu0 0.0
  %1649 = vmatpush2.msra.mxu0 0.0
  %1650 = vmatprep.subr.mxu0 0.0
  %1651 = vmatpush2.msra.mxu0 0.0
  %1652 = vmatprep.mubr.f32.mxu0 0.0
  %1653 = vmatmul.mubr.f32.gmra.mxu0 %v1586
  %v1654 = vpop.f32.mrf.mxu0
  %v1655 = vadd.f32 %v58, %v1654
  %v1656 = vpop.f32.mrf.mxu0
  %1657 = vdwg.mxu0
  %v1658 = vsel %vm65, %v1577, 0
  %1660 = vmatprep.subr.mxu0 0.0
  %1661 = vmatpush1.msra.mxu0 0.0
  %1662 = vmatprep.subr.mxu0 0.0
  %1663 = vmatpush1.msra.mxu0 0.0
  %1664 = vmatprep.subr.mxu0 0.0
  %1665 = vmatpush1.msra.mxu0 0.0
  %1666 = vmatprep.subr.mxu0 0.0
  %1667 = vmatpush1.msra.mxu0 0.0
  %1668 = vmatprep.subr.mxu0 0.0
  %1669 = vmatpush1.msra.mxu0 0.0
  %1670 = vmatprep.subr.mxu0 0.0
  %1671 = vmatpush1.msra.mxu0 0.0
  %1672 = vmatprep.subr.mxu0 0.0
  %1673 = vmatpush1.msra.mxu0 0.0
  %1674 = vmatprep.subr.mxu0 0.0
  %1675 = vmatpush1.msra.mxu0 0.0
  %1676 = vmatprep.subr.mxu0 0.0
  %1677 = vmatpush1.msra.mxu0 0.0
  %1678 = vmatprep.subr.mxu0 0.0
  %1679 = vmatpush1.msra.mxu0 0.0
  %1680 = vmatprep.subr.mxu0 0.0
  %1681 = vmatpush1.msra.mxu0 0.0
  %1682 = vmatprep.subr.mxu0 0.0
  %1683 = vmatpush1.msra.mxu0 0.0
  %1684 = vmatprep.subr.mxu0 0.0
  %1685 = vmatpush1.msra.mxu0 %v41
  %1686 = vmatprep.subr.mxu0 0.0
  %1687 = vmatpush1.msra.mxu0 %v40
  %1688 = vmatprep.subr.mxu0 0.0
  %1689 = vmatpush1.msra.mxu0 %v39
  %1690 = vmatprep.subr.mxu0 0.0
  %1691 = vmatpush1.msra.mxu0 %v38
  %1692 = vmatprep.subr.mxu0 0.0
  %1693 = vmatpush2.msra.mxu0 0.0
  %1694 = vmatprep.subr.mxu0 0.0
  %1695 = vmatpush2.msra.mxu0 0.0
  %1696 = vmatprep.subr.mxu0 0.0
  %1697 = vmatpush2.msra.mxu0 0.0
  %1698 = vmatprep.subr.mxu0 0.0
  %1699 = vmatpush2.msra.mxu0 0.0
  %1700 = vmatprep.subr.mxu0 0.0
  %1701 = vmatpush2.msra.mxu0 0.0
  %1702 = vmatprep.subr.mxu0 0.0
  %1703 = vmatpush2.msra.mxu0 0.0
  %1704 = vmatprep.subr.mxu0 0.0
  %1705 = vmatpush2.msra.mxu0 0.0
  %1706 = vmatprep.subr.mxu0 0.0
  %1707 = vmatpush2.msra.mxu0 0.0
  %1708 = vmatprep.subr.mxu0 0.0
  %1709 = vmatpush2.msra.mxu0 0.0
  %1710 = vmatprep.subr.mxu0 0.0
  %1711 = vmatpush2.msra.mxu0 0.0
  %1712 = vmatprep.subr.mxu0 0.0
  %1713 = vmatpush2.msra.mxu0 0.0
  %1714 = vmatprep.subr.mxu0 0.0
  %1715 = vmatpush2.msra.mxu0 0.0
  %1716 = vmatprep.subr.mxu0 0.0
  %1717 = vmatpush2.msra.mxu0 0.0
  %1718 = vmatprep.subr.mxu0 0.0
  %1719 = vmatpush2.msra.mxu0 0.0
  %1720 = vmatprep.subr.mxu0 0.0
  %1721 = vmatpush2.msra.mxu0 0.0
  %1722 = vmatprep.subr.mxu0 0.0
  %1723 = vmatpush2.msra.mxu0 0.0
  %1724 = vmatprep.mubr.f32.mxu0 0.0
  %1725 = vmatmul.mubr.f32.gmra.mxu0 %v1658
  %v1726 = vpop.f32.mrf.mxu0
  %v1727 = vadd.f32 %v62, %v1726
  %v1728 = vpop.f32.mrf.mxu0
  %1729 = vdwg.mxu0
  %v1730 = vadd.f32 %v1584, %v1655
  %v1731 = vadd.f32 %v1585, %v1727
  %v1732 = vxor.u32 %v1730, 2147483648
  %v1733 = vxor.u32 %v1731, 2147483648
  %v1734 = vmul.f32 %v1732, 1.442695
  %v1735 = vpow.pop %v1734
  %v1736 = vmul.f32 %v1733, 1.442695
  %v1737 = vpow.pop %v1736
  %v1738 = vadd.f32 %v1735, 1.0
  %v1739 = vadd.f32 %v1737, 1.0
  %v1740 = vrcp.pop %v1738
  %v1741 = vmul.f32 1.0, %v1740
  %v1742 = vrcp.pop %v1739
  %v1743 = vmul.f32 1.0, %v1742
  %1746 = vrot.lane.b32.xlu0 %v1655, 64
  %v1747 = vpop.permute.xlu0 %1746
  %1748 = vrot.lane.b32.xlu0 %v1727, 64
  %v1749 = vpop.permute.xlu0 %1748
  %v1752 = vmul.f32 %v1741, %v1747
  %v1753 = vmul.f32 %v1743, %v1749
  %1756 = vrot.lane.b32.xlu0 %v1752, 64
  %v1757 = vpop.permute.xlu0 %1756
  %1758 = vrot.lane.b32.xlu0 %v1753, 64
  %v1759 = vpop.permute.xlu0 %1758
  %v1762 = vadd.f32 %v1584, %v1757
  %v1763 = vadd.f32 %v1585, %v1759
  %v1764 = vtanh.pop %v1762
  %v1765 = vtanh.pop %v1763
  %v1766 = vsub.f32 1.0, %v1741
  %v1767 = vsub.f32 1.0, %v1743
  %1770 = vrot.lane.b32.xlu0 %v1764, 96
  %v1771 = vpop.permute.xlu0 %1770
  %1772 = vrot.lane.b32.xlu0 %v1765, 96
  %v1773 = vpop.permute.xlu0 %1772
  %v1776 = vmul.f32 %v1766, %v1771
  %v1777 = vmul.f32 %v1767, %v1773
  %v1778 = vmul.f32 %v1741, %v1570
  %v1779 = vmul.f32 %v1743, %v1571
  %v1780 = vadd.f32 %v1776, %v1778
  %v1781 = vadd.f32 %v1777, %v1779
  %s1782 = sadd.s32 %s48, 6
  %s1783 = scvt.s32.f32 %s1782
  %v1784 = vstv %s1783
  %vm1785 = vcmp.ge.f32.partialorder %v1784, %v44
  %vm1786 = vcmp.ge.f32.partialorder %v1784, %v45
  %vm1787 = vcmp.lt.f32.partialorder %v1784, %v46
  %vm1788 = vcmp.lt.f32.partialorder %v1784, %v47
  %vm1789 = vmand %vm1785, %vm1787
  %vm1790 = vmand %vm1786, %vm1788
  %v1791 = vsel %vm1789, 1, 0
  %v1792 = vsel %vm1790, 1, 0
  %v1793 = vcvt.s32.f32 %v1791
  %v1794 = vcvt.s32.f32 %v1792
  %1796 = vset.pattern.permute.xlu0 0
  %1797 = vperm.xlu0 %1796, %v1793
  %v1798 = vpop.permute.xlu0 %1797
  %1801 = vset.pattern.permute.xlu0 0
  %1802 = vperm.xlu0 %1801, %v1794
  %v1803 = vpop.permute.xlu0 %1802
  %v1805 = vmul.f32 %v1798, %v1780
  %v1806 = vmul.f32 %v1803, %v1781
  %v1807 = vsub.f32 1.0, %v1793
  %v1808 = vsub.f32 1.0, %v1794
  %1810 = vset.pattern.permute.xlu0 0
  %1811 = vperm.xlu0 %1810, %v1807
  %v1812 = vpop.permute.xlu0 %1811
  %1815 = vset.pattern.permute.xlu0 0
  %1816 = vperm.xlu0 %1815, %v1808
  %v1817 = vpop.permute.xlu0 %1816
  %v1819 = vmul.f32 %v1812, %v1570
  %v1820 = vmul.f32 %v1817, %v1571
  %v1821 = vadd.f32 %v1805, %v1819
  %v1822 = vadd.f32 %v1806, %v1820
  %1825 = vrot.lane.b32.xlu0 %v1821, 96
  %v1826 = vpop.permute.xlu0 %1825
  %1827 = vrot.lane.b32.xlu0 %v1822, 96
  %v1828 = vpop.permute.xlu0 %1827
  %s1831 = scalar_lea.vmem %s6, 96
  %1832 = vst.msk [vmem:[%s1831] sm:$0xff] %vm65, %v1826
  %1833 = vst.msk [vmem:[%s1831 + $0x8] sm:$0xff] %vm65, %v1828
  %s1834 = scalar_lea.vmem %s0, 112
  %v1835 = vld [vmem:[%s1834] sm:$0xff]
  %v1836 = vld [vmem:[%s1834 + $0x8] sm:$0xff]
  %v1837 = vsel %vm65, %v1826, 0
  %1839 = vmatprep.subr.mxu0 0.0
  %1840 = vmatpush1.msra.mxu0 0.0
  %1841 = vmatprep.subr.mxu0 0.0
  %1842 = vmatpush1.msra.mxu0 0.0
  %1843 = vmatprep.subr.mxu0 0.0
  %1844 = vmatpush1.msra.mxu0 0.0
  %1845 = vmatprep.subr.mxu0 0.0
  %1846 = vmatpush1.msra.mxu0 0.0
  %1847 = vmatprep.subr.mxu0 0.0
  %1848 = vmatpush1.msra.mxu0 0.0
  %1849 = vmatprep.subr.mxu0 0.0
  %1850 = vmatpush1.msra.mxu0 0.0
  %1851 = vmatprep.subr.mxu0 0.0
  %1852 = vmatpush1.msra.mxu0 0.0
  %1853 = vmatprep.subr.mxu0 0.0
  %1854 = vmatpush1.msra.mxu0 0.0
  %1855 = vmatprep.subr.mxu0 0.0
  %1856 = vmatpush1.msra.mxu0 0.0
  %1857 = vmatprep.subr.mxu0 0.0
  %1858 = vmatpush1.msra.mxu0 0.0
  %1859 = vmatprep.subr.mxu0 0.0
  %1860 = vmatpush1.msra.mxu0 0.0
  %1861 = vmatprep.subr.mxu0 0.0
  %1862 = vmatpush1.msra.mxu0 0.0
  %1863 = vmatprep.subr.mxu0 0.0
  %1864 = vmatpush1.msra.mxu0 %v37
  %1865 = vmatprep.subr.mxu0 0.0
  %1866 = vmatpush1.msra.mxu0 %v36
  %1867 = vmatprep.subr.mxu0 0.0
  %1868 = vmatpush1.msra.mxu0 %v35
  %1869 = vmatprep.subr.mxu0 0.0
  %1870 = vmatpush1.msra.mxu0 %v34
  %1871 = vmatprep.subr.mxu0 0.0
  %1872 = vmatpush2.msra.mxu0 0.0
  %1873 = vmatprep.subr.mxu0 0.0
  %1874 = vmatpush2.msra.mxu0 0.0
  %1875 = vmatprep.subr.mxu0 0.0
  %1876 = vmatpush2.msra.mxu0 0.0
  %1877 = vmatprep.subr.mxu0 0.0
  %1878 = vmatpush2.msra.mxu0 0.0
  %1879 = vmatprep.subr.mxu0 0.0
  %1880 = vmatpush2.msra.mxu0 0.0
  %1881 = vmatprep.subr.mxu0 0.0
  %1882 = vmatpush2.msra.mxu0 0.0
  %1883 = vmatprep.subr.mxu0 0.0
  %1884 = vmatpush2.msra.mxu0 0.0
  %1885 = vmatprep.subr.mxu0 0.0
  %1886 = vmatpush2.msra.mxu0 0.0
  %1887 = vmatprep.subr.mxu0 0.0
  %1888 = vmatpush2.msra.mxu0 0.0
  %1889 = vmatprep.subr.mxu0 0.0
  %1890 = vmatpush2.msra.mxu0 0.0
  %1891 = vmatprep.subr.mxu0 0.0
  %1892 = vmatpush2.msra.mxu0 0.0
  %1893 = vmatprep.subr.mxu0 0.0
  %1894 = vmatpush2.msra.mxu0 0.0
  %1895 = vmatprep.subr.mxu0 0.0
  %1896 = vmatpush2.msra.mxu0 0.0
  %1897 = vmatprep.subr.mxu0 0.0
  %1898 = vmatpush2.msra.mxu0 0.0
  %1899 = vmatprep.subr.mxu0 0.0
  %1900 = vmatpush2.msra.mxu0 0.0
  %1901 = vmatprep.subr.mxu0 0.0
  %1902 = vmatpush2.msra.mxu0 0.0
  %1903 = vmatprep.mubr.f32.mxu0 0.0
  %1904 = vmatmul.mubr.f32.gmra.mxu0 %v1837
  %v1905 = vpop.f32.mrf.mxu0
  %v1906 = vadd.f32 %v58, %v1905
  %v1907 = vpop.f32.mrf.mxu0
  %1908 = vdwg.mxu0
  %v1909 = vsel %vm65, %v1828, 0
  %1911 = vmatprep.subr.mxu0 0.0
  %1912 = vmatpush1.msra.mxu0 0.0
  %1913 = vmatprep.subr.mxu0 0.0
  %1914 = vmatpush1.msra.mxu0 0.0
  %1915 = vmatprep.subr.mxu0 0.0
  %1916 = vmatpush1.msra.mxu0 0.0
  %1917 = vmatprep.subr.mxu0 0.0
  %1918 = vmatpush1.msra.mxu0 0.0
  %1919 = vmatprep.subr.mxu0 0.0
  %1920 = vmatpush1.msra.mxu0 0.0
  %1921 = vmatprep.subr.mxu0 0.0
  %1922 = vmatpush1.msra.mxu0 0.0
  %1923 = vmatprep.subr.mxu0 0.0
  %1924 = vmatpush1.msra.mxu0 0.0
  %1925 = vmatprep.subr.mxu0 0.0
  %1926 = vmatpush1.msra.mxu0 0.0
  %1927 = vmatprep.subr.mxu0 0.0
  %1928 = vmatpush1.msra.mxu0 0.0
  %1929 = vmatprep.subr.mxu0 0.0
  %1930 = vmatpush1.msra.mxu0 0.0
  %1931 = vmatprep.subr.mxu0 0.0
  %1932 = vmatpush1.msra.mxu0 0.0
  %1933 = vmatprep.subr.mxu0 0.0
  %1934 = vmatpush1.msra.mxu0 0.0
  %1935 = vmatprep.subr.mxu0 0.0
  %1936 = vmatpush1.msra.mxu0 %v41
  %1937 = vmatprep.subr.mxu0 0.0
  %1938 = vmatpush1.msra.mxu0 %v40
  %1939 = vmatprep.subr.mxu0 0.0
  %1940 = vmatpush1.msra.mxu0 %v39
  %1941 = vmatprep.subr.mxu0 0.0
  %1942 = vmatpush1.msra.mxu0 %v38
  %1943 = vmatprep.subr.mxu0 0.0
  %1944 = vmatpush2.msra.mxu0 0.0
  %1945 = vmatprep.subr.mxu0 0.0
  %1946 = vmatpush2.msra.mxu0 0.0
  %1947 = vmatprep.subr.mxu0 0.0
  %1948 = vmatpush2.msra.mxu0 0.0
  %1949 = vmatprep.subr.mxu0 0.0
  %1950 = vmatpush2.msra.mxu0 0.0
  %1951 = vmatprep.subr.mxu0 0.0
  %1952 = vmatpush2.msra.mxu0 0.0
  %1953 = vmatprep.subr.mxu0 0.0
  %1954 = vmatpush2.msra.mxu0 0.0
  %1955 = vmatprep.subr.mxu0 0.0
  %1956 = vmatpush2.msra.mxu0 0.0
  %1957 = vmatprep.subr.mxu0 0.0
  %1958 = vmatpush2.msra.mxu0 0.0
  %1959 = vmatprep.subr.mxu0 0.0
  %1960 = vmatpush2.msra.mxu0 0.0
  %1961 = vmatprep.subr.mxu0 0.0
  %1962 = vmatpush2.msra.mxu0 0.0
  %1963 = vmatprep.subr.mxu0 0.0
  %1964 = vmatpush2.msra.mxu0 0.0
  %1965 = vmatprep.subr.mxu0 0.0
  %1966 = vmatpush2.msra.mxu0 0.0
  %1967 = vmatprep.subr.mxu0 0.0
  %1968 = vmatpush2.msra.mxu0 0.0
  %1969 = vmatprep.subr.mxu0 0.0
  %1970 = vmatpush2.msra.mxu0 0.0
  %1971 = vmatprep.subr.mxu0 0.0
  %1972 = vmatpush2.msra.mxu0 0.0
  %1973 = vmatprep.subr.mxu0 0.0
  %1974 = vmatpush2.msra.mxu0 0.0
  %1975 = vmatprep.mubr.f32.mxu0 0.0
  %1976 = vmatmul.mubr.f32.gmra.mxu0 %v1909
  %v1977 = vpop.f32.mrf.mxu0
  %v1978 = vadd.f32 %v62, %v1977
  %v1979 = vpop.f32.mrf.mxu0
  %1980 = vdwg.mxu0
  %v1981 = vadd.f32 %v1835, %v1906
  %v1982 = vadd.f32 %v1836, %v1978
  %v1983 = vxor.u32 %v1981, 2147483648
  %v1984 = vxor.u32 %v1982, 2147483648
  %v1985 = vmul.f32 %v1983, 1.442695
  %v1986 = vpow.pop %v1985
  %v1987 = vmul.f32 %v1984, 1.442695
  %v1988 = vpow.pop %v1987
  %v1989 = vadd.f32 %v1986, 1.0
  %v1990 = vadd.f32 %v1988, 1.0
  %v1991 = vrcp.pop %v1989
  %v1992 = vmul.f32 1.0, %v1991
  %v1993 = vrcp.pop %v1990
  %v1994 = vmul.f32 1.0, %v1993
  %1997 = vrot.lane.b32.xlu0 %v1906, 64
  %v1998 = vpop.permute.xlu0 %1997
  %1999 = vrot.lane.b32.xlu0 %v1978, 64
  %v2000 = vpop.permute.xlu0 %1999
  %v2003 = vmul.f32 %v1992, %v1998
  %v2004 = vmul.f32 %v1994, %v2000
  %2007 = vrot.lane.b32.xlu0 %v2003, 64
  %v2008 = vpop.permute.xlu0 %2007
  %2009 = vrot.lane.b32.xlu0 %v2004, 64
  %v2010 = vpop.permute.xlu0 %2009
  %v2013 = vadd.f32 %v1835, %v2008
  %v2014 = vadd.f32 %v1836, %v2010
  %v2015 = vtanh.pop %v2013
  %v2016 = vtanh.pop %v2014
  %v2017 = vsub.f32 1.0, %v1992
  %v2018 = vsub.f32 1.0, %v1994
  %2021 = vrot.lane.b32.xlu0 %v2015, 96
  %v2022 = vpop.permute.xlu0 %2021
  %2023 = vrot.lane.b32.xlu0 %v2016, 96
  %v2024 = vpop.permute.xlu0 %2023
  %v2027 = vmul.f32 %v2017, %v2022
  %v2028 = vmul.f32 %v2018, %v2024
  %v2029 = vmul.f32 %v1992, %v1821
  %v2030 = vmul.f32 %v1994, %v1822
  %v2031 = vadd.f32 %v2027, %v2029
  %v2032 = vadd.f32 %v2028, %v2030
  %s2033 = sadd.s32 %s48, 7
  %s2034 = scvt.s32.f32 %s2033
  %v2035 = vstv %s2034
  %vm2036 = vcmp.ge.f32.partialorder %v2035, %v44
  %vm2037 = vcmp.ge.f32.partialorder %v2035, %v45
  %vm2038 = vcmp.lt.f32.partialorder %v2035, %v46
  %vm2039 = vcmp.lt.f32.partialorder %v2035, %v47
  %vm2040 = vmand %vm2036, %vm2038
  %vm2041 = vmand %vm2037, %vm2039
  %v2042 = vsel %vm2040, 1, 0
  %v2043 = vsel %vm2041, 1, 0
  %v2044 = vcvt.s32.f32 %v2042
  %v2045 = vcvt.s32.f32 %v2043
  %2047 = vset.pattern.permute.xlu0 0
  %2048 = vperm.xlu0 %2047, %v2044
  %v2049 = vpop.permute.xlu0 %2048
  %2052 = vset.pattern.permute.xlu0 0
  %2053 = vperm.xlu0 %2052, %v2045
  %v2054 = vpop.permute.xlu0 %2053
  %v2056 = vmul.f32 %v2049, %v2031
  %v2057 = vmul.f32 %v2054, %v2032
  %v2058 = vsub.f32 1.0, %v2044
  %v2059 = vsub.f32 1.0, %v2045
  %2061 = vset.pattern.permute.xlu0 0
  %2062 = vperm.xlu0 %2061, %v2058
  %v2063 = vpop.permute.xlu0 %2062
  %2066 = vset.pattern.permute.xlu0 0
  %2067 = vperm.xlu0 %2066, %v2059
  %v2068 = vpop.permute.xlu0 %2067
  %v2070 = vmul.f32 %v2063, %v1821
  %v2071 = vmul.f32 %v2068, %v1822
  %v2072 = vadd.f32 %v2056, %v2070
  %v2073 = vadd.f32 %v2057, %v2071
  %2076 = vrot.lane.b32.xlu0 %v2072, 96
  %v2077 = vpop.permute.xlu0 %2076
  %2078 = vrot.lane.b32.xlu0 %v2073, 96
  %v2079 = vpop.permute.xlu0 %2078
  %s2082 = scalar_lea.vmem %s6, 112
  %2083 = vst.msk [vmem:[%s2082] sm:$0xff] %vm65, %v2077
  %2084 = vst.msk [vmem:[%s2082 + $0x8] sm:$0xff] %vm65, %v2079
  %2085 = vst.msk [vmem:[%s7] sm:$0xff] %vm65, %v2077
  %2086 = vst.msk [vmem:[%s7 + $0x8] sm:$0xff] %vm65, %v2079
  // Predicated region
  $region30: #{hred_forward.4} parent=0 // pred_check
    _
  $region31: #{hred_forward.4} parent=0 // pred_check_branch
    %2088 = sbr.rel (0) target = $region33
  $region32: #{hred_forward.4} parent=0 // pred_region
    _
  $region33: #{hred_forward.4} parent=0 // pred_fallthru
    _
  // Predicated region
  $region34: #{hred_forward.4} parent=0 // pred_check
    _
  $region35: #{hred_forward.4} parent=0 // pred_check_branch
    %2090 = sbr.rel (0) target = $region37
  $region36: #{hred_forward.4} parent=0 // pred_region
    _
  $region37: #{hred_forward.4} parent=0 // pred_fallthru
    _
  // Predicated region
  $region38: #{hred_forward.4} parent=0 // pred_check
    _
  $region39: #{hred_forward.4} parent=0 // pred_check_branch
    %2092 = sbr.rel (0) target = $region41
  $region40: #{hred_forward.4} parent=0 // pred_region
    _
  $region41: #{hred_forward.4} parent=0 // pred_fallthru
    _
  // Predicated region
  $region42: #{hred_forward.4} parent=0 // pred_check
    _
  $region43: #{hred_forward.4} parent=0 // pred_check_branch
    %2094 = sbr.rel (0) target = $region45
  $region44: #{hred_forward.4} parent=0 // pred_region
    _
  $region45: #{hred_forward.4} parent=0 // pred_fallthru
    _

// kernel: hred_forward.7
$region0: #{hred_forward.7}
  #allocation0 [shape = 'u32[]', space=smem, size = 0x4, offset = 0x4, fixed_abs, tag = 'smem constant byte address 0x4 - core index']
  #allocation1 [shape = 'u32[144,128]{1,0:T(1,128)}', space=vmem, size = 0x12000, scoped, tag = 'internal scratch']
  #allocation2 [shape = 'f32[2,8,32]{2,1,0:T(8,128)}', space=vmem, size = 0x2000, scoped, tag = 'scratch operand']
  %s0 = inlined_call_operand.vmem [shape: f32[5,8,96], index: 0, kind: input, shape index: {}]
  %s1 = inlined_call_operand.vmem [shape: f32[2,8,32], index: 1, kind: input, shape index: {}]
  %s2 = inlined_call_operand.vmem [shape: f32[3,8,32], index: 2, kind: input, shape index: {}]
  %s3 = inlined_call_operand.vmem [shape: f32[3,8,32], index: 3, kind: input, shape index: {}]
  %s4 = inlined_call_operand.vmem [shape: f32[32,32], index: 4, kind: input, shape index: {}]
  %s5 = inlined_call_operand.vmem [shape: f32[1,32], index: 5, kind: input, shape index: {}]
  %s6 = inlined_call_operand.vmem [shape: f32[32,96], index: 6, kind: input, shape index: {}]
  %s7 = inlined_call_operand.vmem [shape: f32[32,96], index: 7, kind: input, shape index: {}]
  %s8 = inlined_call_operand.vmem [shape: f32[1,96], index: 8, kind: input, shape index: {}]
  %s9 = inlined_call_operand.vmem [shape: f32[32,96], index: 9, kind: input, shape index: {}]
  %s10 = inlined_call_operand.vmem [shape: f32[1,96], index: 10, kind: input, shape index: {}]
  %s11 = inlined_call_operand.vmem [shape: f32[32,96], index: 11, kind: input, shape index: {}]
  %s12 = inlined_call_operand.vmem [shape: f32[1,96], index: 12, kind: input, shape index: {}]
  %s13 = inlined_call_operand.vmem [shape: f32[32,128], index: 13, kind: input, shape index: {}]
  %s14 = inlined_call_operand.vmem [shape: f32[1,128], index: 14, kind: input, shape index: {}]
  %s15 = inlined_call_operand.vmem [shape: f32[5,8,128], index: 15, kind: output, shape index: {}]
  %s16 = sld [smem:[#allocation0]]
  $region97: #{hred_forward.7} parent=0
    _
  %s18 = ssub.s32 1, %s16
  %s19 = scalar_select 0, %s18, %s16
  loop: start=0, step=1, limit=7
  $region2: #{hred_forward.7} parent=0 // loop_pre_header
    _
  $region3: #{hred_forward.7} parent=0 // loop_header
    %s21 = sphi 0, %s25
    %p22 = scmp.ge.s32.totalorder %s21, 7
    %s31 = sphi 0, %s33
    %s34 = sphi 0, %s31
    %s35 = sphi 0, %s34
    %s51 = sphi 0, %s35
    %s55 = sphi 0, %s55
    %s57 = sphi 0, %s55
    %s58 = sphi 0, %s57
    %s72 = sphi 0, %s58
    %s76 = sphi 0, %s76
    %s78 = sphi 0, %s76
    %s79 = sphi 0, %s78
    %s93 = sphi 0, %s79
    %s97 = sphi 0, %s97
    %s99 = sphi 0, %s97
    %s100 = sphi 0, %s99
    %s114 = sphi 0, %s100
    %s118 = sphi 0, %s118
    %s120 = sphi 0, %s118
    %s121 = sphi 0, %s120
    %s135 = sphi 0, %s121
    %s139 = sphi 0, %s139
    %s141 = sphi 0, %s139
    %s142 = sphi 0, %s141
    %s156 = sphi 0, %s142
    %s160 = sphi 0, %s160
    %s162 = sphi 0, %s160
    %s163 = sphi 0, %s162
    %s177 = sphi 0, %s163
    %s181 = sphi 0, %s181
    %s183 = sphi 0, %s181
    %s184 = sphi 0, %s183
    %s198 = sphi 0, %s184
    %s202 = sphi 0, %s202
    %s204 = sphi 0, %s202
    %s205 = sphi 0, %s204
    %s219 = sphi 0, %s205
    %s223 = sphi 0, %s223
    %s225 = sphi 0, %s223
    %s226 = sphi 0, %s225
    %s240 = sphi 0, %s226
    %s244 = sphi 0, %s244
    %s246 = sphi 0, %s244
    %s247 = sphi 0, %s246
    %s261 = sphi 0, %s247
    %s265 = sphi 0, %s265
    %s267 = sphi 0, %s265
    %s268 = sphi 0, %s267
    %s282 = sphi 0, %s268
    %s286 = sphi 0, %s286
    %s288 = sphi 0, %s286
    %s289 = sphi 0, %s288
    %s303 = sphi 0, %s289
    %s307 = sphi 0, %s307
    %s309 = sphi 0, %s307
    %s310 = sphi 0, %s309
    %s324 = sphi 0, %s310
    %s328 = sphi 0, %s328
    %s330 = sphi 0, %s328
    %s331 = sphi 0, %s330
    %s345 = sphi 0, %s331
    %s351 = sphi 0, %s353
    %s354 = sphi 0, %s351
    %s355 = sphi 0, %s354
    %s371 = sphi 0, %s355
  $region4: #{hred_forward.7} parent=0 // loop_header_branch
    %24 = sbr.rel (%p22) target = $region8
  $region5: #{hred_forward.7} parent=0 // loop_body
    %s26 = ssub.s32 %s21, 1
    %s27 = ssub.s32 %s21, 2
    %s28 = sadd.s32 %s21, 1
    %s29 = ssub.s32 %s21, %s28
    %p30 = scmp.eq.s32.totalorder %s29, 0
    %s32 = sadd.s32 %s31, 1
    %s33 = scalar_select %p30, %s31, %s32
    %p36 = pneg %p30
    %p37 = scmp.eq.s32.totalorder %s21, 4
    %p38 = por %p36, %p37
    %p39 = scmp.ne.s32.totalorder %s31, %s34
    %p40 = scmp.eq.s32.totalorder %s21, 0
    %p41 = por %p39, %p40
    %p42 = scmp.ne.s32.totalorder %s31, %s34
    %p43 = scmp.eq.s32.totalorder %s26, 4
    %p44 = por %p42, %p43
    %p45 = scmp.ne.s32.totalorder %s34, %s35
    %p46 = scmp.eq.s32.totalorder %s26, 0
    %p47 = por %p45, %p46
    %p48 = scmp.ne.s32.totalorder %s34, %s35
    %p49 = scmp.eq.s32.totalorder %s27, 4
    %p50 = por %p48, %p49
    %p52 = scmp.ne.s32.totalorder %s35, %s51
    %p53 = scmp.eq.s32.totalorder %s27, 0
    %p54 = por %p52, %p53
    %s56 = sadd.s32 %s55, 1
    %p59 = scmp.eq.s32.totalorder %s21, 4
    %p60 = scmp.ne.s32.totalorder %s55, %s57
    %p61 = scmp.eq.s32.totalorder %s21, 0
    %p62 = por %p60, %p61
    %p63 = scmp.ne.s32.totalorder %s55, %s57
    %p64 = scmp.eq.s32.totalorder %s26, 4
    %p65 = por %p63, %p64
    %p66 = scmp.ne.s32.totalorder %s57, %s58
    %p67 = scmp.eq.s32.totalorder %s26, 0
    %p68 = por %p66, %p67
    %p69 = scmp.ne.s32.totalorder %s57, %s58
    %p70 = scmp.eq.s32.totalorder %s27, 4
    %p71 = por %p69, %p70
    %p73 = scmp.ne.s32.totalorder %s58, %s72
    %p74 = scmp.eq.s32.totalorder %s27, 0
    %p75 = por %p73, %p74
    %s77 = sadd.s32 %s76, 1
    %p80 = scmp.eq.s32.totalorder %s21, 4
    %p81 = scmp.ne.s32.totalorder %s76, %s78
    %p82 = scmp.eq.s32.totalorder %s21, 0
    %p83 = por %p81, %p82
    %p84 = scmp.ne.s32.totalorder %s76, %s78
    %p85 = scmp.eq.s32.totalorder %s26, 4
    %p86 = por %p84, %p85
    %p87 = scmp.ne.s32.totalorder %s78, %s79
    %p88 = scmp.eq.s32.totalorder %s26, 0
    %p89 = por %p87, %p88
    %p90 = scmp.ne.s32.totalorder %s78, %s79
    %p91 = scmp.eq.s32.totalorder %s27, 4
    %p92 = por %p90, %p91
    %p94 = scmp.ne.s32.totalorder %s79, %s93
    %p95 = scmp.eq.s32.totalorder %s27, 0
    %p96 = por %p94, %p95
    %s98 = sadd.s32 %s97, 1
    %p101 = scmp.eq.s32.totalorder %s21, 4
    %p102 = scmp.ne.s32.totalorder %s97, %s99
    %p103 = scmp.eq.s32.totalorder %s21, 0
    %p104 = por %p102, %p103
    %p105 = scmp.ne.s32.totalorder %s97, %s99
    %p106 = scmp.eq.s32.totalorder %s26, 4
    %p107 = por %p105, %p106
    %p108 = scmp.ne.s32.totalorder %s99, %s100
    %p109 = scmp.eq.s32.totalorder %s26, 0
    %p110 = por %p108, %p109
    %p111 = scmp.ne.s32.totalorder %s99, %s100
    %p112 = scmp.eq.s32.totalorder %s27, 4
    %p113 = por %p111, %p112
    %p115 = scmp.ne.s32.totalorder %s100, %s114
    %p116 = scmp.eq.s32.totalorder %s27, 0
    %p117 = por %p115, %p116
    %s119 = sadd.s32 %s118, 1
    %p122 = scmp.eq.s32.totalorder %s21, 4
    %p123 = scmp.ne.s32.totalorder %s118, %s120
    %p124 = scmp.eq.s32.totalorder %s21, 0
    %p125 = por %p123, %p124
    %p126 = scmp.ne.s32.totalorder %s118, %s120
    %p127 = scmp.eq.s32.totalorder %s26, 4
    %p128 = por %p126, %p127
    %p129 = scmp.ne.s32.totalorder %s120, %s121
    %p130 = scmp.eq.s32.totalorder %s26, 0
    %p131 = por %p129, %p130
    %p132 = scmp.ne.s32.totalorder %s120, %s121
    %p133 = scmp.eq.s32.totalorder %s27, 4
    %p134 = por %p132, %p133
    %p136 = scmp.ne.s32.totalorder %s121, %s135
    %p137 = scmp.eq.s32.totalorder %s27, 0
    %p138 = por %p136, %p137
    %s140 = sadd.s32 %s139, 1
    %p143 = scmp.eq.s32.totalorder %s21, 4
    %p144 = scmp.ne.s32.totalorder %s139, %s141
    %p145 = scmp.eq.s32.totalorder %s21, 0
    %p146 = por %p144, %p145
    %p147 = scmp.ne.s32.totalorder %s139, %s141
    %p148 = scmp.eq.s32.totalorder %s26, 4
    %p149 = por %p147, %p148
    %p150 = scmp.ne.s32.totalorder %s141, %s142
    %p151 = scmp.eq.s32.totalorder %s26, 0
    %p152 = por %p150, %p151
    %p153 = scmp.ne.s32.totalorder %s141, %s142
    %p154 = scmp.eq.s32.totalorder %s27, 4
    %p155 = por %p153, %p154
    %p157 = scmp.ne.s32.totalorder %s142, %s156
    %p158 = scmp.eq.s32.totalorder %s27, 0
    %p159 = por %p157, %p158
    %s161 = sadd.s32 %s160, 1
    %p164 = scmp.eq.s32.totalorder %s21, 4
    %p165 = scmp.ne.s32.totalorder %s160, %s162
    %p166 = scmp.eq.s32.totalorder %s21, 0
    %p167 = por %p165, %p166
    %p168 = scmp.ne.s32.totalorder %s160, %s162
    %p169 = scmp.eq.s32.totalorder %s26, 4
    %p170 = por %p168, %p169
    %p171 = scmp.ne.s32.totalorder %s162, %s163
    %p172 = scmp.eq.s32.totalorder %s26, 0
    %p173 = por %p171, %p172
    %p174 = scmp.ne.s32.totalorder %s162, %s163
    %p175 = scmp.eq.s32.totalorder %s27, 4
    %p176 = por %p174, %p175
    %p178 = scmp.ne.s32.totalorder %s163, %s177
    %p179 = scmp.eq.s32.totalorder %s27, 0
    %p180 = por %p178, %p179
    %s182 = sadd.s32 %s181, 1
    %p185 = scmp.eq.s32.totalorder %s21, 4
    %p186 = scmp.ne.s32.totalorder %s181, %s183
    %p187 = scmp.eq.s32.totalorder %s21, 0
    %p188 = por %p186, %p187
    %p189 = scmp.ne.s32.totalorder %s181, %s183
    %p190 = scmp.eq.s32.totalorder %s26, 4
    %p191 = por %p189, %p190
    %p192 = scmp.ne.s32.totalorder %s183, %s184
    %p193 = scmp.eq.s32.totalorder %s26, 0
    %p194 = por %p192, %p193
    %p195 = scmp.ne.s32.totalorder %s183, %s184
    %p196 = scmp.eq.s32.totalorder %s27, 4
    %p197 = por %p195, %p196
    %p199 = scmp.ne.s32.totalorder %s184, %s198
    %p200 = scmp.eq.s32.totalorder %s27, 0
    %p201 = por %p199, %p200
    %s203 = sadd.s32 %s202, 1
    %p206 = scmp.eq.s32.totalorder %s21, 4
    %p207 = scmp.ne.s32.totalorder %s202, %s204
    %p208 = scmp.eq.s32.totalorder %s21, 0
    %p209 = por %p207, %p208
    %p210 = scmp.ne.s32.totalorder %s202, %s204
    %p211 = scmp.eq.s32.totalorder %s26, 4
    %p212 = por %p210, %p211
    %p213 = scmp.ne.s32.totalorder %s204, %s205
    %p214 = scmp.eq.s32.totalorder %s26, 0
    %p215 = por %p213, %p214
    %p216 = scmp.ne.s32.totalorder %s204, %s205
    %p217 = scmp.eq.s32.totalorder %s27, 4
    %p218 = por %p216, %p217
    %p220 = scmp.ne.s32.totalorder %s205, %s219
    %p221 = scmp.eq.s32.totalorder %s27, 0
    %p222 = por %p220, %p221
    %s224 = sadd.s32 %s223, 1
    %p227 = scmp.eq.s32.totalorder %s21, 4
    %p228 = scmp.ne.s32.totalorder %s223, %s225
    %p229 = scmp.eq.s32.totalorder %s21, 0
    %p230 = por %p228, %p229
    %p231 = scmp.ne.s32.totalorder %s223, %s225
    %p232 = scmp.eq.s32.totalorder %s26, 4
    %p233 = por %p231, %p232
    %p234 = scmp.ne.s32.totalorder %s225, %s226
    %p235 = scmp.eq.s32.totalorder %s26, 0
    %p236 = por %p234, %p235
    %p237 = scmp.ne.s32.totalorder %s225, %s226
    %p238 = scmp.eq.s32.totalorder %s27, 4
    %p239 = por %p237, %p238
    %p241 = scmp.ne.s32.totalorder %s226, %s240
    %p242 = scmp.eq.s32.totalorder %s27, 0
    %p243 = por %p241, %p242
    %s245 = sadd.s32 %s244, 1
    %p248 = scmp.eq.s32.totalorder %s21, 4
    %p249 = scmp.ne.s32.totalorder %s244, %s246
    %p250 = scmp.eq.s32.totalorder %s21, 0
    %p251 = por %p249, %p250
    %p252 = scmp.ne.s32.totalorder %s244, %s246
    %p253 = scmp.eq.s32.totalorder %s26, 4
    %p254 = por %p252, %p253
    %p255 = scmp.ne.s32.totalorder %s246, %s247
    %p256 = scmp.eq.s32.totalorder %s26, 0
    %p257 = por %p255, %p256
    %p258 = scmp.ne.s32.totalorder %s246, %s247
    %p259 = scmp.eq.s32.totalorder %s27, 4
    %p260 = por %p258, %p259
    %p262 = scmp.ne.s32.totalorder %s247, %s261
    %p263 = scmp.eq.s32.totalorder %s27, 0
    %p264 = por %p262, %p263
    %s266 = sadd.s32 %s265, 1
    %p269 = scmp.eq.s32.totalorder %s21, 4
    %p270 = scmp.ne.s32.totalorder %s265, %s267
    %p271 = scmp.eq.s32.totalorder %s21, 0
    %p272 = por %p270, %p271
    %p273 = scmp.ne.s32.totalorder %s265, %s267
    %p274 = scmp.eq.s32.totalorder %s26, 4
    %p275 = por %p273, %p274
    %p276 = scmp.ne.s32.totalorder %s267, %s268
    %p277 = scmp.eq.s32.totalorder %s26, 0
    %p278 = por %p276, %p277
    %p279 = scmp.ne.s32.totalorder %s267, %s268
    %p280 = scmp.eq.s32.totalorder %s27, 4
    %p281 = por %p279, %p280
    %p283 = scmp.ne.s32.totalorder %s268, %s282
    %p284 = scmp.eq.s32.totalorder %s27, 0
    %p285 = por %p283, %p284
    %s287 = sadd.s32 %s286, 1
    %p290 = scmp.eq.s32.totalorder %s21, 4
    %p291 = scmp.ne.s32.totalorder %s286, %s288
    %p292 = scmp.eq.s32.totalorder %s21, 0
    %p293 = por %p291, %p292
    %p294 = scmp.ne.s32.totalorder %s286, %s288
    %p295 = scmp.eq.s32.totalorder %s26, 4
    %p296 = por %p294, %p295
    %p297 = scmp.ne.s32.totalorder %s288, %s289
    %p298 = scmp.eq.s32.totalorder %s26, 0
    %p299 = por %p297, %p298
    %p300 = scmp.ne.s32.totalorder %s288, %s289
    %p301 = scmp.eq.s32.totalorder %s27, 4
    %p302 = por %p300, %p301
    %p304 = scmp.ne.s32.totalorder %s289, %s303
    %p305 = scmp.eq.s32.totalorder %s27, 0
    %p306 = por %p304, %p305
    %s308 = sadd.s32 %s307, 1
    %p311 = scmp.eq.s32.totalorder %s21, 4
    %p312 = scmp.ne.s32.totalorder %s307, %s309
    %p313 = scmp.eq.s32.totalorder %s21, 0
    %p314 = por %p312, %p313
    %p315 = scmp.ne.s32.totalorder %s307, %s309
    %p316 = scmp.eq.s32.totalorder %s26, 4
    %p317 = por %p315, %p316
    %p318 = scmp.ne.s32.totalorder %s309, %s310
    %p319 = scmp.eq.s32.totalorder %s26, 0
    %p320 = por %p318, %p319
    %p321 = scmp.ne.s32.totalorder %s309, %s310
    %p322 = scmp.eq.s32.totalorder %s27, 4
    %p323 = por %p321, %p322
    %p325 = scmp.ne.s32.totalorder %s310, %s324
    %p326 = scmp.eq.s32.totalorder %s27, 0
    %p327 = por %p325, %p326
    %s329 = sadd.s32 %s328, 1
    %p332 = scmp.eq.s32.totalorder %s21, 4
    %p333 = scmp.ne.s32.totalorder %s328, %s330
    %p334 = scmp.eq.s32.totalorder %s21, 0
    %p335 = por %p333, %p334
    %p336 = scmp.ne.s32.totalorder %s328, %s330
    %p337 = scmp.eq.s32.totalorder %s26, 4
    %p338 = por %p336, %p337
    %p339 = scmp.ne.s32.totalorder %s330, %s331
    %p340 = scmp.eq.s32.totalorder %s26, 0
    %p341 = por %p339, %p340
    %p342 = scmp.ne.s32.totalorder %s330, %s331
    %p343 = scmp.eq.s32.totalorder %s27, 4
    %p344 = por %p342, %p343
    %p346 = scmp.ne.s32.totalorder %s331, %s345
    %p347 = scmp.eq.s32.totalorder %s27, 0
    %p348 = por %p346, %p347
    %s349 = ssub.s32 %s21, %s28
    %p350 = scmp.eq.s32.totalorder %s349, 0
    %s352 = sadd.s32 %s351, 1
    %s353 = scalar_select %p350, %s351, %s352
    %p356 = pneg %p350
    %p357 = scmp.eq.s32.totalorder %s21, 4
    %p358 = por %p356, %p357
    %p359 = scmp.ne.s32.totalorder %s351, %s354
    %p360 = scmp.eq.s32.totalorder %s21, 0
    %p361 = por %p359, %p360
    %p362 = scmp.ne.s32.totalorder %s351, %s354
    %p363 = scmp.eq.s32.totalorder %s26, 4
    %p364 = por %p362, %p363
    %p365 = scmp.ne.s32.totalorder %s354, %s355
    %p366 = scmp.eq.s32.totalorder %s26, 0
    %p367 = por %p365, %p366
    %p368 = scmp.ne.s32.totalorder %s354, %s355
    %p369 = scmp.eq.s32.totalorder %s27, 4
    %p370 = por %p368, %p369
    %p372 = scmp.ne.s32.totalorder %s355, %s371
    %p373 = scmp.eq.s32.totalorder %s27, 0
    %p374 = por %p372, %p373
    %p375 = scmp.le.s32.totalorder 1, %s21
    %p376 = scmp.lt.s32.totalorder %s21, 6
    %p377 = pnand %p375, %p376
    %p378 = pneg %p377
    // Predicated region
    $region9: #{hred_forward.7} parent=5 // pred_check
      _
    $region10: #{hred_forward.7} parent=5 // pred_check_branch
      %380 = sbr.rel (%p377) target = $region12
    $region11: #{hred_forward.7} parent=5 // pred_region
      %s381 = ssub.s32 %s21, 1
      // Predicated region
      $region13: #{hred_forward.7} parent=11 // pred_check
        %p382 = pneg %p68
      $region14: #{hred_forward.7} parent=11 // pred_check_branch
        %384 = sbr.rel (%p382) target = $region16
      $region15: #{hred_forward.7} parent=11 // pred_region
        _
      $region16: #{hred_forward.7} parent=11 // pred_fallthru
        _
      // Predicated region
      $region17: #{hred_forward.7} parent=11 // pred_check
        %p385 = pneg %p89
      $region18: #{hred_forward.7} parent=11 // pred_check_branch
        %387 = sbr.rel (%p385) target = $region20
      $region19: #{hred_forward.7} parent=11 // pred_region
        _
      $region20: #{hred_forward.7} parent=11 // pred_fallthru
        _
      // Predicated region
      $region21: #{hred_forward.7} parent=11 // pred_check
        %p388 = pneg %p110
      $region22: #{hred_forward.7} parent=11 // pred_check_branch
        %390 = sbr.rel (%p388) target = $region24
      $region23: #{hred_forward.7} parent=11 // pred_region
        _
      $region24: #{hred_forward.7} parent=11 // pred_fallthru
        _
      // Predicated region
      $region25: #{hred_forward.7} parent=11 // pred_check
        %p391 = pneg %p131
      $region26: #{hred_forward.7} parent=11 // pred_check_branch
        %393 = sbr.rel (%p391) target = $region28
      $region27: #{hred_forward.7} parent=11 // pred_region
        _
      $region28: #{hred_forward.7} parent=11 // pred_fallthru
        _
      // Predicated region
      $region29: #{hred_forward.7} parent=11 // pred_check
        %p394 = pneg %p152
      $region30: #{hred_forward.7} parent=11 // pred_check_branch
        %396 = sbr.rel (%p394) target = $region32
      $region31: #{hred_forward.7} parent=11 // pred_region
        _
      $region32: #{hred_forward.7} parent=11 // pred_fallthru
        _
      // Predicated region
      $region33: #{hred_forward.7} parent=11 // pred_check
        %p397 = pneg %p173
      $region34: #{hred_forward.7} parent=11 // pred_check_branch
        %399 = sbr.rel (%p397) target = $region36
      $region35: #{hred_forward.7} parent=11 // pred_region
        _
      $region36: #{hred_forward.7} parent=11 // pred_fallthru
        _
      // Predicated region
      $region37: #{hred_forward.7} parent=11 // pred_check
        %p400 = pneg %p194
      $region38: #{hred_forward.7} parent=11 // pred_check_branch
        %402 = sbr.rel (%p400) target = $region40
      $region39: #{hred_forward.7} parent=11 // pred_region
        _
      $region40: #{hred_forward.7} parent=11 // pred_fallthru
        _
      // Predicated region
      $region41: #{hred_forward.7} parent=11 // pred_check
        %p403 = pneg %p215
      $region42: #{hred_forward.7} parent=11 // pred_check_branch
        %405 = sbr.rel (%p403) target = $region44
      $region43: #{hred_forward.7} parent=11 // pred_region
        _
      $region44: #{hred_forward.7} parent=11 // pred_fallthru
        _
      // Predicated region
      $region45: #{hred_forward.7} parent=11 // pred_check
        %p406 = pneg %p236
      $region46: #{hred_forward.7} parent=11 // pred_check_branch
        %408 = sbr.rel (%p406) target = $region48
      $region47: #{hred_forward.7} parent=11 // pred_region
        _
      $region48: #{hred_forward.7} parent=11 // pred_fallthru
        _
      // Predicated region
      $region49: #{hred_forward.7} parent=11 // pred_check
        %p409 = pneg %p257
      $region50: #{hred_forward.7} parent=11 // pred_check_branch
        %411 = sbr.rel (%p409) target = $region52
      $region51: #{hred_forward.7} parent=11 // pred_region
        _
      $region52: #{hred_forward.7} parent=11 // pred_fallthru
        _
      // Predicated region
      $region53: #{hred_forward.7} parent=11 // pred_check
        %p412 = pneg %p278
      $region54: #{hred_forward.7} parent=11 // pred_check_branch
        %414 = sbr.rel (%p412) target = $region56
      $region55: #{hred_forward.7} parent=11 // pred_region
        _
      $region56: #{hred_forward.7} parent=11 // pred_fallthru
        _
      // Predicated region
      $region57: #{hred_forward.7} parent=11 // pred_check
        %p415 = pneg %p299
      $region58: #{hred_forward.7} parent=11 // pred_check_branch
        %417 = sbr.rel (%p415) target = $region60
      $region59: #{hred_forward.7} parent=11 // pred_region
        _
      $region60: #{hred_forward.7} parent=11 // pred_fallthru
        _
      // Predicated region
      $region61: #{hred_forward.7} parent=11 // pred_check
        %p418 = pneg %p320
      $region62: #{hred_forward.7} parent=11 // pred_check_branch
        %420 = sbr.rel (%p418) target = $region64
      $region63: #{hred_forward.7} parent=11 // pred_region
        _
      $region64: #{hred_forward.7} parent=11 // pred_fallthru
        _
      // Predicated region
      $region65: #{hred_forward.7} parent=11 // pred_check
        %p421 = pneg %p341
      $region66: #{hred_forward.7} parent=11 // pred_check_branch
        %423 = sbr.rel (%p421) target = $region68
      $region67: #{hred_forward.7} parent=11 // pred_region
        _
      $region68: #{hred_forward.7} parent=11 // pred_fallthru
        _
    $region12: #{hred_forward.7} parent=5 // pred_fallthru
      _
    %p424 = scmp.lt.s32.totalorder %s21, 5
    // Predicated region
    $region69: #{hred_forward.7} parent=5 // pred_check
      %p425 = pneg %p424
    $region70: #{hred_forward.7} parent=5 // pred_check_branch
      %427 = sbr.rel (%p425) target = $region72
    $region71: #{hred_forward.7} parent=5 // pred_region
      // Predicated region
      $region73: #{hred_forward.7} parent=71 // pred_check
        %p428 = pneg %p41
      $region74: #{hred_forward.7} parent=71 // pred_check_branch
        %430 = sbr.rel (%p428) target = $region76
      $region75: #{hred_forward.7} parent=71 // pred_region
        %p431 = scmp.lt.s32.totalorder %s21, 4
        %s432 = scalar_select %p431, %s21, 4
        %s433 = smul.addr %s432, 8
        %s434 = scalar_lea.vmem %s0, %s433
      $region76: #{hred_forward.7} parent=71 // pred_fallthru
        _
    $region72: #{hred_forward.7} parent=5 // pred_fallthru
      _
    %p435 = scmp.le.s32.totalorder 1, %s21
    %p436 = scmp.lt.s32.totalorder %s21, 6
    %p437 = pnand %p435, %p436
    %p438 = pneg %p437
    // Predicated region
    $region77: #{hred_forward.7} parent=5 // pred_check
      _
    $region78: #{hred_forward.7} parent=5 // pred_check_branch
      %440 = sbr.rel (%p437) target = $region80
    $region79: #{hred_forward.7} parent=5 // pred_region
      %s441 = ssub.s32 %s21, 1
      %p442 = scmp.lt.s32.totalorder %s26, 4
      %s443 = scalar_select %p442, %s26, 4
      %s444 = smul.addr %s443, 8
      %s445 = scalar_lea.vmem %s0, %s444
      %p446 = pneg %p47
      %p447 = pneg %p44
      %p448 = pneg %p68
      %p449 = pneg %p65
      %p450 = pneg %p89
      %p451 = pneg %p86
      %p452 = pneg %p110
      %p453 = pneg %p107
      %p454 = pneg %p131
      %p455 = pneg %p128
      %p456 = pneg %p152
      %p457 = pneg %p149
      %p458 = pneg %p173
      %p459 = pneg %p170
      %p460 = pneg %p194
      %p461 = pneg %p191
      %p462 = pneg %p215
      %p463 = pneg %p212
      %p464 = pneg %p236
      %p465 = pneg %p233
      %p466 = pneg %p257
      %p467 = pneg %p254
      %p468 = pneg %p278
      %p469 = pneg %p275
      %p470 = pneg %p299
      %p471 = pneg %p296
      %p472 = pneg %p320
      %p473 = pneg %p317
      %p474 = pneg %p341
      %p475 = pneg %p338
      %p476 = pneg %p367
      %p477 = pneg %p364
      %p478 = scmp.lt.s32.totalorder %s26, 4
      %s479 = scalar_select %p478, %s26, 4
      %s480 = smul.addr %s479, 8
      %s481 = scalar_lea.vmem %s15, %s480
      %p482 = scmp.lt.s32.totalorder %s26, 4
      %s483 = scalar_select %p482, %s26, 4
      %s484 = smul.addr %s483, 8
      %s485 = scalar_lea.vmem %s0, %s484
      %p486 = scmp.lt.s32.totalorder %s26, 4
      %s487 = scalar_select %p486, %s26, 4
      %s488 = smul.addr %s487, 8
      %s489 = scalar_lea.vmem %s15, %s488
      %p490 = scmp.eq.s32.totalorder %s26, 0
      // Predicated region
      $region81: #{hred_forward.7} parent=79 // pred_check
        %p491 = pneg %p490
      $region82: #{hred_forward.7} parent=79 // pred_check_branch
        %493 = sbr.rel (%p491) target = $region84
      $region83: #{hred_forward.7} parent=79 // pred_region
        %v494 = vld [vmem:[%s1] sm:$0xff]
        %v495 = vld [vmem:[%s1 + $0x8] sm:$0xff]
        %vm496 = vcmask 261120
        %497 = vst.msk [vmem:[#allocation2] sm:$0xff] %vm496, %v494
        %498 = vst.msk [vmem:[#allocation2 + $0x8] sm:$0xff] %vm496, %v495
      $region84: #{hred_forward.7} parent=79 // pred_fallthru
        _
      %v499 = vld [vmem:[#allocation2] sm:$0xff]
      %s500 = scalar_lea.vmem [#allocation2], 8
      %v501 = vld [vmem:[%s500] sm:$0xff]
      %v502 = vadd.f32 %v499, %v501
      %v503 = vld [vmem:[%s4] sm:$0xff]
      %v504 = vld [vmem:[%s4 + $0x8] sm:$0xff]
      %v505 = vld [vmem:[%s4 + $0x10] sm:$0xff]
      %v506 = vld [vmem:[%s4 + $0x18] sm:$0xff]
      %vm507 = vcmask 261120
      %v509 = vsel %vm507, %v502, 0
      %511 = vmatprep.subr.mxu0 0.0
      %512 = vmatpush1.msra.mxu0 0.0
      %513 = vmatprep.subr.mxu0 0.0
      %514 = vmatpush1.msra.mxu0 0.0
      %515 = vmatprep.subr.mxu0 0.0
      %516 = vmatpush1.msra.mxu0 0.0
      %517 = vmatprep.subr.mxu0 0.0
      %518 = vmatpush1.msra.mxu0 0.0
      %519 = vmatprep.subr.mxu0 0.0
      %520 = vmatpush1.msra.mxu0 0.0
      %521 = vmatprep.subr.mxu0 0.0
      %522 = vmatpush1.msra.mxu0 0.0
      %523 = vmatprep.subr.mxu0 0.0
      %524 = vmatpush1.msra.mxu0 0.0
      %525 = vmatprep.subr.mxu0 0.0
      %526 = vmatpush1.msra.mxu0 0.0
      %527 = vmatprep.subr.mxu0 0.0
      %528 = vmatpush1.msra.mxu0 0.0
      %529 = vmatprep.subr.mxu0 0.0
      %530 = vmatpush1.msra.mxu0 0.0
      %531 = vmatprep.subr.mxu0 0.0
      %532 = vmatpush1.msra.mxu0 0.0
      %533 = vmatprep.subr.mxu0 0.0
      %534 = vmatpush1.msra.mxu0 0.0
      %535 = vmatprep.subr.mxu0 0.0
      %536 = vmatpush1.msra.mxu0 %v506
      %537 = vmatprep.subr.mxu0 0.0
      %538 = vmatpush1.msra.mxu0 %v505
      %539 = vmatprep.subr.mxu0 0.0
      %540 = vmatpush1.msra.mxu0 %v504
      %541 = vmatprep.subr.mxu0 0.0
      %542 = vmatpush1.msra.mxu0 %v503
      %543 = vmatprep.subr.mxu0 0.0
      %544 = vmatpush2.msra.mxu0 0.0
      %545 = vmatprep.subr.mxu0 0.0
      %546 = vmatpush2.msra.mxu0 0.0
      %547 = vmatprep.subr.mxu0 0.0
      %548 = vmatpush2.msra.mxu0 0.0
      %549 = vmatprep.subr.mxu0 0.0
      %550 = vmatpush2.msra.mxu0 0.0
      %551 = vmatprep.subr.mxu0 0.0
      %552 = vmatpush2.msra.mxu0 0.0
      %553 = vmatprep.subr.mxu0 0.0
      %554 = vmatpush2.msra.mxu0 0.0
      %555 = vmatprep.subr.mxu0 0.0
      %556 = vmatpush2.msra.mxu0 0.0
      %557 = vmatprep.subr.mxu0 0.0
      %558 = vmatpush2.msra.mxu0 0.0
      %559 = vmatprep.subr.mxu0 0.0
      %560 = vmatpush2.msra.mxu0 0.0
      %561 = vmatprep.subr.mxu0 0.0
      %562 = vmatpush2.msra.mxu0 0.0
      %563 = vmatprep.subr.mxu0 0.0
      %564 = vmatpush2.msra.mxu0 0.0
      %565 = vmatprep.subr.mxu0 0.0
      %566 = vmatpush2.msra.mxu0 0.0
      %567 = vmatprep.subr.mxu0 0.0
      %568 = vmatpush2.msra.mxu0 0.0
      %569 = vmatprep.subr.mxu0 0.0
      %570 = vmatpush2.msra.mxu0 0.0
      %571 = vmatprep.subr.mxu0 0.0
      %572 = vmatpush2.msra.mxu0 0.0
      %573 = vmatprep.subr.mxu0 0.0
      %574 = vmatpush2.msra.mxu0 0.0
      %575 = vmatprep.mubr.f32.mxu0 0.0
      %576 = vmatmul.mubr.f32.gmra.mxu0 %v509
      %v577 = vpop.f32.mrf.mxu0
      %v578 = vadd.f32 0.0, %v577
      %v579 = vpop.f32.mrf.mxu0
      %580 = vdwg.mxu0
      %v581 = vld [vmem:[%s2] sm:$0xff]
      %v582 = vld [vmem:[%s2 + $0x8] sm:$0xff]
      %v583 = vld [vmem:[%s2 + $0x10] sm:$0xff]
      %v584 = vadd.f32 %v578, %v581
      %v585 = vadd.f32 %v578, %v582
      %v586 = vadd.f32 %v578, %v583
      %v587 = vtanh.pop %v584
      %v588 = vtanh.pop %v585
      %v589 = vtanh.pop %v586
      %v590 = vld [vmem:[%s5] sm:$0x1]
      %v592 = vlaneseq
      %v593 = vshrl.u32 %v592, 7
      %v594 = vsub.s32 0, %v593
      %v595 = vrot.slane %v590, %v594
      %v597 = vmul.f32 %v587, %v595
      %v598 = vmul.f32 %v588, %v595
      %v599 = vmul.f32 %v589, %v595
      %v600 = vsel %vm507, %v597, 0.0
      %601 = vadd.xlane.f32.xlu0 %v600
      %v602 = vpop.xlane.xlu0 %601
      %v603 = vsel %vm507, %v598, 0.0
      %604 = vadd.xlane.f32.xlu0 %v603
      %v605 = vpop.xlane.xlu0 %604
      %v606 = vsel %vm507, %v599, 0.0
      %607 = vadd.xlane.f32.xlu0 %v606
      %v608 = vpop.xlane.xlu0 %607
      %v609 = vmax.f32 %v602, %v605
      %v610 = vmax.f32 %v609, %v608
      %v611 = vsub.f32 %v602, %v610
      %v612 = vsub.f32 %v605, %v610
      %v613 = vsub.f32 %v608, %v610
      %v614 = vmul.f32 %v611, 1.442695
      %v615 = vpow.pop %v614
      %v616 = vmul.f32 %v612, 1.442695
      %v617 = vpow.pop %v616
      %v618 = vmul.f32 %v613, 1.442695
      %v619 = vpow.pop %v618
      %v620 = vadd.f32 %v615, %v617
      %v621 = vadd.f32 %v620, %v619
      %v622 = vrcp.pop %v621
      %v623 = vmul.f32 %v615, %v622
      %v624 = vmul.f32 %v617, %v622
      %v625 = vmul.f32 %v619, %v622
      %v626 = vld [vmem:[%s3] sm:$0xff]
      %v627 = vld [vmem:[%s3 + $0x8] sm:$0xff]
      %v628 = vld [vmem:[%s3 + $0x10] sm:$0xff]
      %v629 = vmul.f32 %v623, %v626
      %v630 = vmul.f32 %v624, %v627
      %v631 = vmul.f32 %v625, %v628
      %v632 = vsel %vm507, %v629, 0.0
      %v633 = vsel %vm507, %v630, 0.0
      %v634 = vadd.f32 %v632, %v633
      %v635 = vsel %vm507, %v631, 0.0
      %v636 = vadd.f32 %v634, %v635
      %v637 = vld [vmem:[%s485] sm:$0xff]
      %v638 = vld [vmem:[%s6] sm:$0xff]
      %v639 = vld [vmem:[%s6 + $0x8] sm:$0xff]
      %v640 = vld [vmem:[%s6 + $0x10] sm:$0xff]
      %v641 = vld [vmem:[%s6 + $0x18] sm:$0xff]
      %v643 = vsel %vm507, %v636, 0
      %645 = vmatprep.subr.mxu0 0.0
      %646 = vmatpush1.msra.mxu0 0.0
      %647 = vmatprep.subr.mxu0 0.0
      %648 = vmatpush1.msra.mxu0 0.0
      %649 = vmatprep.subr.mxu0 0.0
      %650 = vmatpush1.msra.mxu0 0.0
      %651 = vmatprep.subr.mxu0 0.0
      %652 = vmatpush1.msra.mxu0 0.0
      %653 = vmatprep.subr.mxu0 0.0
      %654 = vmatpush1.msra.mxu0 0.0
      %655 = vmatprep.subr.mxu0 0.0
      %656 = vmatpush1.msra.mxu0 0.0
      %657 = vmatprep.subr.mxu0 0.0
      %658 = vmatpush1.msra.mxu0 0.0
      %659 = vmatprep.subr.mxu0 0.0
      %660 = vmatpush1.msra.mxu0 0.0
      %661 = vmatprep.subr.mxu0 0.0
      %662 = vmatpush1.msra.mxu0 0.0
      %663 = vmatprep.subr.mxu0 0.0
      %664 = vmatpush1.msra.mxu0 0.0
      %665 = vmatprep.subr.mxu0 0.0
      %666 = vmatpush1.msra.mxu0 0.0
      %667 = vmatprep.subr.mxu0 0.0
      %668 = vmatpush1.msra.mxu0 0.0
      %669 = vmatprep.subr.mxu0 0.0
      %670 = vmatpush1.msra.mxu0 %v641
      %671 = vmatprep.subr.mxu0 0.0
      %672 = vmatpush1.msra.mxu0 %v640
      %673 = vmatprep.subr.mxu0 0.0
      %674 = vmatpush1.msra.mxu0 %v639
      %675 = vmatprep.subr.mxu0 0.0
      %676 = vmatpush1.msra.mxu0 %v638
      %677 = vmatprep.subr.mxu0 0.0
      %678 = vmatpush2.msra.mxu0 0.0
      %679 = vmatprep.subr.mxu0 0.0
      %680 = vmatpush2.msra.mxu0 0.0
      %681 = vmatprep.subr.mxu0 0.0
      %682 = vmatpush2.msra.mxu0 0.0
      %683 = vmatprep.subr.mxu0 0.0
      %684 = vmatpush2.msra.mxu0 0.0
      %685 = vmatprep.subr.mxu0 0.0
      %686 = vmatpush2.msra.mxu0 0.0
      %687 = vmatprep.subr.mxu0 0.0
      %688 = vmatpush2.msra.mxu0 0.0
      %689 = vmatprep.subr.mxu0 0.0
      %690 = vmatpush2.msra.mxu0 0.0
      %691 = vmatprep.subr.mxu0 0.0
      %692 = vmatpush2.msra.mxu0 0.0
      %693 = vmatprep.subr.mxu0 0.0
      %694 = vmatpush2.msra.mxu0 0.0
      %695 = vmatprep.subr.mxu0 0.0
      %696 = vmatpush2.msra.mxu0 0.0
      %697 = vmatprep.subr.mxu0 0.0
      %698 = vmatpush2.msra.mxu0 0.0
      %699 = vmatprep.subr.mxu0 0.0
      %700 = vmatpush2.msra.mxu0 0.0
      %701 = vmatprep.subr.mxu0 0.0
      %702 = vmatpush2.msra.mxu0 0.0
      %703 = vmatprep.subr.mxu0 0.0
      %704 = vmatpush2.msra.mxu0 0.0
      %705 = vmatprep.subr.mxu0 0.0
      %706 = vmatpush2.msra.mxu0 0.0
      %707 = vmatprep.subr.mxu0 0.0
      %708 = vmatpush2.msra.mxu0 0.0
      %709 = vmatprep.mubr.f32.mxu0 0.0
      %710 = vmatmul.mubr.f32.gmra.mxu0 %v643
      %v711 = vpop.f32.mrf.mxu0
      %v712 = vadd.f32 0.0, %v711
      %v713 = vpop.f32.mrf.mxu0
      %714 = vdwg.mxu0
      %v715 = vadd.f32 %v637, %v712
      %v716 = vld [vmem:[%s7] sm:$0xff]
      %v717 = vld [vmem:[%s7 + $0x8] sm:$0xff]
      %v718 = vld [vmem:[%s7 + $0x10] sm:$0xff]
      %v719 = vld [vmem:[%s7 + $0x18] sm:$0xff]
      %v720 = vld [vmem:[%s8] sm:$0x1]
      %v722 = vlaneseq
      %v723 = vshrl.u32 %v722, 7
      %v724 = vsub.s32 0, %v723
      %v725 = vrot.slane %v720, %v724
      %v728 = vsel %vm507, %v499, 0
      %730 = vmatprep.subr.mxu0 0.0
      %731 = vmatpush1.msra.mxu0 0.0
      %732 = vmatprep.subr.mxu0 0.0
      %733 = vmatpush1.msra.mxu0 0.0
      %734 = vmatprep.subr.mxu0 0.0
      %735 = vmatpush1.msra.mxu0 0.0
      %736 = vmatprep.subr.mxu0 0.0
      %737 = vmatpush1.msra.mxu0 0.0
      %738 = vmatprep.subr.mxu0 0.0
      %739 = vmatpush1.msra.mxu0 0.0
      %740 = vmatprep.subr.mxu0 0.0
      %741 = vmatpush1.msra.mxu0 0.0
      %742 = vmatprep.subr.mxu0 0.0
      %743 = vmatpush1.msra.mxu0 0.0
      %744 = vmatprep.subr.mxu0 0.0
      %745 = vmatpush1.msra.mxu0 0.0
      %746 = vmatprep.subr.mxu0 0.0
      %747 = vmatpush1.msra.mxu0 0.0
      %748 = vmatprep.subr.mxu0 0.0
      %749 = vmatpush1.msra.mxu0 0.0
      %750 = vmatprep.subr.mxu0 0.0
      %751 = vmatpush1.msra.mxu0 0.0
      %752 = vmatprep.subr.mxu0 0.0
      %753 = vmatpush1.msra.mxu0 0.0
      %754 = vmatprep.subr.mxu0 0.0
      %755 = vmatpush1.msra.mxu0 %v719
      %756 = vmatprep.subr.mxu0 0.0
      %757 = vmatpush1.msra.mxu0 %v718
      %758 = vmatprep.subr.mxu0 0.0
      %759 = vmatpush1.msra.mxu0 %v717
      %760 = vmatprep.subr.mxu0 0.0
      %761 = vmatpush1.msra.mxu0 %v716
      %762 = vmatprep.subr.mxu0 0.0
      %763 = vmatpush2.msra.mxu0 0.0
      %764 = vmatprep.subr.mxu0 0.0
      %765 = vmatpush2.msra.mxu0 0.0
      %766 = vmatprep.subr.mxu0 0.0
      %767 = vmatpush2.msra.mxu0 0.0
      %768 = vmatprep.subr.mxu0 0.0
      %769 = vmatpush2.msra.mxu0 0.0
      %770 = vmatprep.subr.mxu0 0.0
      %771 = vmatpush2.msra.mxu0 0.0
      %772 = vmatprep.subr.mxu0 0.0
      %773 = vmatpush2.msra.mxu0 0.0
      %774 = vmatprep.subr.mxu0 0.0
      %775 = vmatpush2.msra.mxu0 0.0
      %776 = vmatprep.subr.mxu0 0.0
      %777 = vmatpush2.msra.mxu0 0.0
      %778 = vmatprep.subr.mxu0 0.0
      %779 = vmatpush2.msra.mxu0 0.0
      %780 = vmatprep.subr.mxu0 0.0
      %781 = vmatpush2.msra.mxu0 0.0
      %782 = vmatprep.subr.mxu0 0.0
      %783 = vmatpush2.msra.mxu0 0.0
      %784 = vmatprep.subr.mxu0 0.0
      %785 = vmatpush2.msra.mxu0 0.0
      %786 = vmatprep.subr.mxu0 0.0
      %787 = vmatpush2.msra.mxu0 0.0
      %788 = vmatprep.subr.mxu0 0.0
      %789 = vmatpush2.msra.mxu0 0.0
      %790 = vmatprep.subr.mxu0 0.0
      %791 = vmatpush2.msra.mxu0 0.0
      %792 = vmatprep.subr.mxu0 0.0
      %793 = vmatpush2.msra.mxu0 0.0
      %794 = vmatprep.mubr.f32.mxu0 0.0
      %795 = vmatmul.mubr.f32.gmra.mxu0 %v728
      %v796 = vpop.f32.mrf.mxu0
      %v797 = vadd.f32 %v725, %v796
      %v798 = vpop.f32.mrf.mxu0
      %799 = vdwg.mxu0
      %v800 = vadd.f32 %v715, %v797
      %v801 = vxor.u32 %v800, 2147483648
      %v802 = vmul.f32 %v801, 1.442695
      %v803 = vpow.pop %v802
      %v804 = vadd.f32 %v803, 1.0
      %v805 = vrcp.pop %v804
      %v806 = vmul.f32 1.0, %v805
      %808 = vrot.lane.b32.xlu0 %v797, 64
      %v809 = vpop.permute.xlu0 %808
      %v811 = vmul.f32 %v806, %v809
      %813 = vrot.lane.b32.xlu0 %v811, 64
      %v814 = vpop.permute.xlu0 %813
      %v816 = vadd.f32 %v715, %v814
      %v817 = vtanh.pop %v816
      %v818 = vsub.f32 1.0, %v806
      %820 = vrot.lane.b32.xlu0 %v817, 96
      %v821 = vpop.permute.xlu0 %820
      %v823 = vmul.f32 %v818, %v821
      %824 = vrot.lane.b32.xlu0 %v499, 32
      %v825 = vpop.permute.xlu0 %824
      %v827 = vmul.f32 %v806, %v825
      %v828 = vadd.f32 %v823, %v827
      %v829 = vld [vmem:[%s9] sm:$0xff]
      %v830 = vld [vmem:[%s9 + $0x8] sm:$0xff]
      %v831 = vld [vmem:[%s9 + $0x10] sm:$0xff]
      %v832 = vld [vmem:[%s9 + $0x18] sm:$0xff]
      %v833 = vld [vmem:[%s10] sm:$0x1]
      %v835 = vlaneseq
      %v836 = vshrl.u32 %v835, 7
      %v837 = vsub.s32 0, %v836
      %v838 = vrot.slane %v833, %v837
      %841 = vrot.lane.b32.xlu0 %v828, 96
      %v842 = vpop.permute.xlu0 %841
      %v843 = vsel %vm507, %v842, 0
      %845 = vmatprep.subr.mxu0 0.0
      %846 = vmatpush1.msra.mxu0 0.0
      %847 = vmatprep.subr.mxu0 0.0
      %848 = vmatpush1.msra.mxu0 0.0
      %849 = vmatprep.subr.mxu0 0.0
      %850 = vmatpush1.msra.mxu0 0.0
      %851 = vmatprep.subr.mxu0 0.0
      %852 = vmatpush1.msra.mxu0 0.0
      %853 = vmatprep.subr.mxu0 0.0
      %854 = vmatpush1.msra.mxu0 0.0
      %855 = vmatprep.subr.mxu0 0.0
      %856 = vmatpush1.msra.mxu0 0.0
      %857 = vmatprep.subr.mxu0 0.0
      %858 = vmatpush1.msra.mxu0 0.0
      %859 = vmatprep.subr.mxu0 0.0
      %860 = vmatpush1.msra.mxu0 0.0
      %861 = vmatprep.subr.mxu0 0.0
      %862 = vmatpush1.msra.mxu0 0.0
      %863 = vmatprep.subr.mxu0 0.0
      %864 = vmatpush1.msra.mxu0 0.0
      %865 = vmatprep.subr.mxu0 0.0
      %866 = vmatpush1.msra.mxu0 0.0
      %867 = vmatprep.subr.mxu0 0.0
      %868 = vmatpush1.msra.mxu0 0.0
      %869 = vmatprep.subr.mxu0 0.0
      %870 = vmatpush1.msra.mxu0 %v832
      %871 = vmatprep.subr.mxu0 0.0
      %872 = vmatpush1.msra.mxu0 %v831
      %873 = vmatprep.subr.mxu0 0.0
      %874 = vmatpush1.msra.mxu0 %v830
      %875 = vmatprep.subr.mxu0 0.0
      %876 = vmatpush1.msra.mxu0 %v829
      %877 = vmatprep.subr.mxu0 0.0
      %878 = vmatpush2.msra.mxu0 0.0
      %879 = vmatprep.subr.mxu0 0.0
      %880 = vmatpush2.msra.mxu0 0.0
      %881 = vmatprep.subr.mxu0 0.0
      %882 = vmatpush2.msra.mxu0 0.0
      %883 = vmatprep.subr.mxu0 0.0
      %884 = vmatpush2.msra.mxu0 0.0
      %885 = vmatprep.subr.mxu0 0.0
      %886 = vmatpush2.msra.mxu0 0.0
      %887 = vmatprep.subr.mxu0 0.0
      %888 = vmatpush2.msra.mxu0 0.0
      %889 = vmatprep.subr.mxu0 0.0
      %890 = vmatpush2.msra.mxu0 0.0
      %891 = vmatprep.subr.mxu0 0.0
      %892 = vmatpush2.msra.mxu0 0.0
      %893 = vmatprep.subr.mxu0 0.0
      %894 = vmatpush2.msra.mxu0 0.0
      %895 = vmatprep.subr.mxu0 0.0
      %896 = vmatpush2.msra.mxu0 0.0
      %897 = vmatprep.subr.mxu0 0.0
      %898 = vmatpush2.msra.mxu0 0.0
      %899 = vmatprep.subr.mxu0 0.0
      %900 = vmatpush2.msra.mxu0 0.0
      %901 = vmatprep.subr.mxu0 0.0
      %902 = vmatpush2.msra.mxu0 0.0
      %903 = vmatprep.subr.mxu0 0.0
      %904 = vmatpush2.msra.mxu0 0.0
      %905 = vmatprep.subr.mxu0 0.0
      %906 = vmatpush2.msra.mxu0 0.0
      %907 = vmatprep.subr.mxu0 0.0
      %908 = vmatpush2.msra.mxu0 0.0
      %909 = vmatprep.mubr.f32.mxu0 0.0
      %910 = vmatmul.mubr.f32.gmra.mxu0 %v843
      %v911 = vpop.f32.mrf.mxu0
      %v912 = vadd.f32 %v838, %v911
      %v913 = vpop.f32.mrf.mxu0
      %914 = vdwg.mxu0
      %v915 = vld [vmem:[%s11] sm:$0xff]
      %v916 = vld [vmem:[%s11 + $0x8] sm:$0xff]
      %v917 = vld [vmem:[%s11 + $0x10] sm:$0xff]
      %v918 = vld [vmem:[%s11 + $0x18] sm:$0xff]
      %v919 = vld [vmem:[%s12] sm:$0x1]
      %v921 = vlaneseq
      %v922 = vshrl.u32 %v921, 7
      %v923 = vsub.s32 0, %v922
      %v924 = vrot.slane %v919, %v923
      %v927 = vsel %vm507, %v501, 0
      %929 = vmatprep.subr.mxu0 0.0
      %930 = vmatpush1.msra.mxu0 0.0
      %931 = vmatprep.subr.mxu0 0.0
      %932 = vmatpush1.msra.mxu0 0.0
      %933 = vmatprep.subr.mxu0 0.0
      %934 = vmatpush1.msra.mxu0 0.0
      %935 = vmatprep.subr.mxu0 0.0
      %936 = vmatpush1.msra.mxu0 0.0
      %937 = vmatprep.subr.mxu0 0.0
      %938 = vmatpush1.msra.mxu0 0.0
      %939 = vmatprep.subr.mxu0 0.0
      %940 = vmatpush1.msra.mxu0 0.0
      %941 = vmatprep.subr.mxu0 0.0
      %942 = vmatpush1.msra.mxu0 0.0
      %943 = vmatprep.subr.mxu0 0.0
      %944 = vmatpush1.msra.mxu0 0.0
      %945 = vmatprep.subr.mxu0 0.0
      %946 = vmatpush1.msra.mxu0 0.0
      %947 = vmatprep.subr.mxu0 0.0
      %948 = vmatpush1.msra.mxu0 0.0
      %949 = vmatprep.subr.mxu0 0.0
      %950 = vmatpush1.msra.mxu0 0.0
      %951 = vmatprep.subr.mxu0 0.0
      %952 = vmatpush1.msra.mxu0 0.0
      %953 = vmatprep.subr.mxu0 0.0
      %954 = vmatpush1.msra.mxu0 %v918
      %955 = vmatprep.subr.mxu0 0.0
      %956 = vmatpush1.msra.mxu0 %v917
      %957 = vmatprep.subr.mxu0 0.0
      %958 = vmatpush1.msra.mxu0 %v916
      %959 = vmatprep.subr.mxu0 0.0
      %960 = vmatpush1.msra.mxu0 %v915
      %961 = vmatprep.subr.mxu0 0.0
      %962 = vmatpush2.msra.mxu0 0.0
      %963 = vmatprep.subr.mxu0 0.0
      %964 = vmatpush2.msra.mxu0 0.0
      %965 = vmatprep.subr.mxu0 0.0
      %966 = vmatpush2.msra.mxu0 0.0
      %967 = vmatprep.subr.mxu0 0.0
      %968 = vmatpush2.msra.mxu0 0.0
      %969 = vmatprep.subr.mxu0 0.0
      %970 = vmatpush2.msra.mxu0 0.0
      %971 = vmatprep.subr.mxu0 0.0
      %972 = vmatpush2.msra.mxu0 0.0
      %973 = vmatprep.subr.mxu0 0.0
      %974 = vmatpush2.msra.mxu0 0.0
      %975 = vmatprep.subr.mxu0 0.0
      %976 = vmatpush2.msra.mxu0 0.0
      %977 = vmatprep.subr.mxu0 0.0
      %978 = vmatpush2.msra.mxu0 0.0
      %979 = vmatprep.subr.mxu0 0.0
      %980 = vmatpush2.msra.mxu0 0.0
      %981 = vmatprep.subr.mxu0 0.0
      %982 = vmatpush2.msra.mxu0 0.0
      %983 = vmatprep.subr.mxu0 0.0
      %984 = vmatpush2.msra.mxu0 0.0
      %985 = vmatprep.subr.mxu0 0.0
      %986 = vmatpush2.msra.mxu0 0.0
      %987 = vmatprep.subr.mxu0 0.0
      %988 = vmatpush2.msra.mxu0 0.0
      %989 = vmatprep.subr.mxu0 0.0
      %990 = vmatpush2.msra.mxu0 0.0
      %991 = vmatprep.subr.mxu0 0.0
      %992 = vmatpush2.msra.mxu0 0.0
      %993 = vmatprep.mubr.f32.mxu0 0.0
      %994 = vmatmul.mubr.f32.gmra.mxu0 %v927
      %v995 = vpop.f32.mrf.mxu0
      %v996 = vadd.f32 %v924, %v995
      %v997 = vpop.f32.mrf.mxu0
      %998 = vdwg.mxu0
      %v999 = vadd.f32 %v912, %v996
      %v1000 = vxor.u32 %v999, 2147483648
      %v1001 = vmul.f32 %v1000, 1.442695
      %v1002 = vpow.pop %v1001
      %v1003 = vadd.f32 %v1002, 1.0
      %v1004 = vrcp.pop %v1003
      %v1005 = vmul.f32 1.0, %v1004
      %1007 = vrot.lane.b32.xlu0 %v996, 64
      %v1008 = vpop.permute.xlu0 %1007
      %v1010 = vmul.f32 %v1005, %v1008
      %1012 = vrot.lane.b32.xlu0 %v1010, 64
      %v1013 = vpop.permute.xlu0 %1012
      %v1015 = vadd.f32 %v912, %v1013
      %v1016 = vtanh.pop %v1015
      %v1017 = vsub.f32 1.0, %v1005
      %1019 = vrot.lane.b32.xlu0 %v1016, 96
      %v1020 = vpop.permute.xlu0 %1019
      %v1022 = vmul.f32 %v1017, %v1020
      %1023 = vrot.lane.b32.xlu0 %v501, 32
      %v1024 = vpop.permute.xlu0 %1023
      %v1026 = vmul.f32 %v1005, %v1024
      %v1027 = vadd.f32 %v1022, %v1026
      %v1028 = vld [vmem:[%s13] sm:$0xff]
      %v1029 = vld [vmem:[%s13 + $0x8] sm:$0xff]
      %v1030 = vld [vmem:[%s13 + $0x10] sm:$0xff]
      %v1031 = vld [vmem:[%s13 + $0x18] sm:$0xff]
      %v1032 = vld [vmem:[%s14] sm:$0x1]
      %v1034 = vlaneseq
      %v1035 = vshrl.u32 %v1034, 7
      %v1036 = vsub.s32 0, %v1035
      %v1037 = vrot.slane %v1032, %v1036
      %1040 = vrot.lane.b32.xlu0 %v1027, 96
      %v1041 = vpop.permute.xlu0 %1040
      %v1042 = vsel %vm507, %v1041, 0
      %1044 = vmatprep.subr.mxu0 0.0
      %1045 = vmatpush1.msra.mxu0 0.0
      %1046 = vmatprep.subr.mxu0 0.0
      %1047 = vmatpush1.msra.mxu0 0.0
      %1048 = vmatprep.subr.mxu0 0.0
      %1049 = vmatpush1.msra.mxu0 0.0
      %1050 = vmatprep.subr.mxu0 0.0
      %1051 = vmatpush1.msra.mxu0 0.0
      %1052 = vmatprep.subr.mxu0 0.0
      %1053 = vmatpush1.msra.mxu0 0.0
      %1054 = vmatprep.subr.mxu0 0.0
      %1055 = vmatpush1.msra.mxu0 0.0
      %1056 = vmatprep.subr.mxu0 0.0
      %1057 = vmatpush1.msra.mxu0 0.0
      %1058 = vmatprep.subr.mxu0 0.0
      %1059 = vmatpush1.msra.mxu0 0.0
      %1060 = vmatprep.subr.mxu0 0.0
      %1061 = vmatpush1.msra.mxu0 0.0
      %1062 = vmatprep.subr.mxu0 0.0
      %1063 = vmatpush1.msra.mxu0 0.0
      %1064 = vmatprep.subr.mxu0 0.0
      %1065 = vmatpush1.msra.mxu0 0.0
      %1066 = vmatprep.subr.mxu0 0.0
      %1067 = vmatpush1.msra.mxu0 0.0
      %1068 = vmatprep.subr.mxu0 0.0
      %1069 = vmatpush1.msra.mxu0 %v1031
      %1070 = vmatprep.subr.mxu0 0.0
      %1071 = vmatpush1.msra.mxu0 %v1030
      %1072 = vmatprep.subr.mxu0 0.0
      %1073 = vmatpush1.msra.mxu0 %v1029
      %1074 = vmatprep.subr.mxu0 0.0
      %1075 = vmatpush1.msra.mxu0 %v1028
      %1076 = vmatprep.subr.mxu0 0.0
      %1077 = vmatpush2.msra.mxu0 0.0
      %1078 = vmatprep.subr.mxu0 0.0
      %1079 = vmatpush2.msra.mxu0 0.0
      %1080 = vmatprep.subr.mxu0 0.0
      %1081 = vmatpush2.msra.mxu0 0.0
      %1082 = vmatprep.subr.mxu0 0.0
      %1083 = vmatpush2.msra.mxu0 0.0
      %1084 = vmatprep.subr.mxu0 0.0
      %1085 = vmatpush2.msra.mxu0 0.0
      %1086 = vmatprep.subr.mxu0 0.0
      %1087 = vmatpush2.msra.mxu0 0.0
      %1088 = vmatprep.subr.mxu0 0.0
      %1089 = vmatpush2.msra.mxu0 0.0
      %1090 = vmatprep.subr.mxu0 0.0
      %1091 = vmatpush2.msra.mxu0 0.0
      %1092 = vmatprep.subr.mxu0 0.0
      %1093 = vmatpush2.msra.mxu0 0.0
      %1094 = vmatprep.subr.mxu0 0.0
      %1095 = vmatpush2.msra.mxu0 0.0
      %1096 = vmatprep.subr.mxu0 0.0
      %1097 = vmatpush2.msra.mxu0 0.0
      %1098 = vmatprep.subr.mxu0 0.0
      %1099 = vmatpush2.msra.mxu0 0.0
      %1100 = vmatprep.subr.mxu0 0.0
      %1101 = vmatpush2.msra.mxu0 0.0
      %1102 = vmatprep.subr.mxu0 0.0
      %1103 = vmatpush2.msra.mxu0 0.0
      %1104 = vmatprep.subr.mxu0 0.0
      %1105 = vmatpush2.msra.mxu0 0.0
      %1106 = vmatprep.subr.mxu0 0.0
      %1107 = vmatpush2.msra.mxu0 0.0
      %1108 = vmatprep.mubr.f32.mxu0 0.0
      %1109 = vmatmul.mubr.f32.gmra.mxu0 %v1042
      %v1110 = vpop.f32.mrf.mxu0
      %v1111 = vadd.f32 %v1037, %v1110
      %v1112 = vpop.f32.mrf.mxu0
      %1113 = vdwg.mxu0
      %1114 = vmax.xlane.f32.xlu0 %v1111
      %v1115 = vpop.xlane.xlu0 %1114
      %v1116 = vsub.f32 %v1111, %v1115
      %v1117 = vmul.f32 %v1116, 1.442695
      %v1118 = vpow.pop %v1117
      %1119 = vadd.xlane.f32.xlu0 %v1118
      %v1120 = vpop.xlane.xlu0 %1119
      %v1121 = vlog2.pop %v1120
      %v1122 = vmul.f32 %v1121, 0.6931472
      %v1123 = vsub.f32 %v1116, %v1122
      %1124 = vst [vmem:[%s489] sm:$0xff] %v1123
      %1126 = vst.msk [vmem:[#allocation2] sm:$0xff] %vm507, %v842
      %1128 = vst.msk [vmem:[%s500] sm:$0xff] %vm507, %v1041
      %p1129 = scmp.lt.s32.totalorder %s26, 4
      %s1130 = scalar_select %p1129, %s26, 4
      %s1131 = smul.addr %s1130, 8
      %s1132 = scalar_lea.vmem %s15, %s1131
      // Predicated region
      $region85: #{hred_forward.7} parent=79 // pred_check
        %p1133 = pneg %p364
      $region86: #{hred_forward.7} parent=79 // pred_check_branch
        %1135 = sbr.rel (%p1133) target = $region88
      $region87: #{hred_forward.7} parent=79 // pred_region
        _
      $region88: #{hred_forward.7} parent=79 // pred_fallthru
        _
    $region80: #{hred_forward.7} parent=5 // pred_fallthru
      _
    %p1136 = scmp.le.s32.totalorder 2, %s21
    // Predicated region
    $region89: #{hred_forward.7} parent=5 // pred_check
      %p1137 = pneg %p1136
    $region90: #{hred_forward.7} parent=5 // pred_check_branch
      %1139 = sbr.rel (%p1137) target = $region92
    $region91: #{hred_forward.7} parent=5 // pred_region
      %s1140 = ssub.s32 %s21, 2
      // Predicated region
      $region93: #{hred_forward.7} parent=91 // pred_check
        %p1141 = pneg %p370
      $region94: #{hred_forward.7} parent=91 // pred_check_branch
        %1143 = sbr.rel (%p1141) target = $region96
      $region95: #{hred_forward.7} parent=91 // pred_region
        %p1144 = scmp.lt.s32.totalorder %s27, 4
        %s1145 = scalar_select %p1144, %s27, 4
        %s1146 = smul.addr %s1145, 8
        %s1147 = scalar_lea.vmem %s15, %s1146
      $region96: #{hred_forward.7} parent=91 // pred_fallthru
        _
    $region92: #{hred_forward.7} parent=5 // pred_fallthru
      _
  $region6: #{hred_forward.7} parent=0 // loop_footer
    %s25 = sadd.s32 1, %s21
  $region7: #{hred_forward.7} parent=0 // loop_footer_branch
    %20 = sbr.rel target = $region3
  $region8: #{hred_forward.7} parent=0 // loop_exit
    _

</llo_original>
